<compile_context>
chip_gen: v7x
topology: tpu7x:2x2x1
jax: 0.10.0
libtpu: 0.0.40
codegen_flags: <defaults>
</compile_context>

<pallas_src>
import jax
import jax.numpy as jnp
import numpy as np
from jax.experimental import pallas as pl
from jax.experimental.pallas import tpu as pltpu

MAX_B_TILE = 512          # max batch tile (lane axis); multiple of 128
W_PAD = 32                # image width 28 padded to 32
IMG_ROWS = 28
IMG_FLAT = IMG_ROWS * W_PAD   # 896


# ----------------------------------------------------------------------------
# Fused forward kernel: one batch tile per grid step.
# ----------------------------------------------------------------------------
def _convnet_kernel(x_ref, a_ref, c_ref, b1_ref, b2_ref,
                    w1_ref, fb1_ref, w2_ref, fb2_ref, o_ref,
                    h1_ref, feat_ref):
    # x_ref   : (896, B)   bf16 row-padded, flattened image; batch on lanes
    # a_ref   : (416, 128) bf16 conv1 pool-pair band:
    #           row r*208+ow*8+co, col s*32+j = w1[co,0,kh,kw], s=r+kh, j=ow+kw
    # c_ref   : (160, 416) bf16 conv2 pool-pair band:
    #           row r*80+ow*8+co, col s*104+pw*8+ci = w2[co,ci,kh,kw]
    # b1_ref  : (104, 1) f32 conv1 bias tiled per (pw, co);  b2_ref: (40, 1)
    # w1_ref  : (64, 200) bf16 fc1 weight, columns permuted to (h, w, c) order
    # fb1_ref : (64, 1) f32;  w2_ref: (10, 64) bf16;  fb2_ref: (10, 1) f32
    # o_ref   : (10, B) f32 log-softmax output
    # h1_ref  : (1352, B) bf16 scratch: pooled conv1 map, row r*104+pw*8+ci
    # feat_ref: (200, B)  bf16 scratch: pooled conv2 map, row r*40+qw*8+co
    B = x_ref.shape[-1]
    f32 = jnp.float32
    bf16 = jnp.bfloat16

    A = a_ref[...]                                    # (416, 128)
    C = c_ref[...]                                    # (160, 416)
    b1b = jnp.broadcast_to(b1_ref[...], (104, B))     # hoisted broadcasts
    b2b = jnp.broadcast_to(b2_ref[...], (40, B))

    # conv1 + 2x2 max-pool + bias + ReLU: one MXU push per pooled row (K=128)
    for ph in range(13):
        rhs = x_ref[pl.ds(64 * ph, 128), :]                          # rows 2ph..2ph+3
        pair = jnp.dot(A, rhs, preferred_element_type=f32)           # (416, B)
        m = jnp.maximum(pair[:208, :], pair[208:, :])                # H-pool
        m = jnp.max(m.reshape(13, 2, 8, B), axis=1).reshape(104, B)  # W-pool
        h1_ref[pl.ds(104 * ph, 104), :] = jnp.maximum(m + b1b, 0.0).astype(bf16)

    # conv2 + 2x2 max-pool + bias + ReLU: one MXU push per pooled row (K=416)
    for qh in range(5):
        rhs = h1_ref[pl.ds(208 * qh, 416), :]                        # pooled rows 2qh..2qh+3
        pair = jnp.dot(C, rhs, preferred_element_type=f32)           # (160, B)
        m = jnp.maximum(pair[:80, :], pair[80:, :])
        m = jnp.max(m.reshape(5, 2, 8, B), axis=1).reshape(40, B)
        feat_ref[pl.ds(40 * qh, 40), :] = jnp.maximum(m + b2b, 0.0).astype(bf16)

    # fc1 -> ReLU -> fc2 -> log_softmax
    hid = jnp.dot(w1_ref[...], feat_ref[...], preferred_element_type=f32)
    hid = jnp.maximum(hid + fb1_ref[...], 0.0).astype(bf16)          # (64, B)
    z = jnp.dot(w2_ref[...], hid, preferred_element_type=f32) + fb2_ref[...]

    zmax = jnp.max(z, axis=0, keepdims=True)                         # (1, B)
    lse = zmax + jnp.log(jnp.sum(jnp.exp(z - zmax), axis=0, keepdims=True))
    o_ref[...] = z - lse                                             # (10, B)


# ----------------------------------------------------------------------------
# Wrapper-side weight repacking (weights-only math, done once per call).
# ----------------------------------------------------------------------------
def _conv1_pair_band(w1):
    # A[r*208+ow*8+co, s*32+j] = w1[co,0,kh,kw] where s=r+kh, j=ow+kw
    w = w1[:, 0].astype(jnp.float32)                                 # (co, kh, kw)
    r = jnp.arange(2); kh = jnp.arange(3); s = jnp.arange(4)
    row1 = (s[None, None, :] == r[:, None, None] + kh[None, :, None]).astype(jnp.float32)
    ow = jnp.arange(26); kw = jnp.arange(3); j = jnp.arange(W_PAD)
    col1 = (j[None, None, :] == ow[:, None, None] + kw[None, :, None]).astype(jnp.float32)
    a = jnp.einsum('ckl,rks,olj->rocsj', w, row1, col1)              # (2,26,8,4,32)
    return a.reshape(416, 128)


def _conv2_pair_band(w2):
    # C[r*80+ow*8+co, s*104+pw*8+ci] = w2[co,ci,kh,kw] where s=r+kh, pw=ow+kw
    w = w2.astype(jnp.float32)                                       # (co, ci, kh, kw)
    r = jnp.arange(2); kh = jnp.arange(3); s = jnp.arange(4)
    row1 = (s[None, None, :] == r[:, None, None] + kh[None, :, None]).astype(jnp.float32)
    ow = jnp.arange(10); kw = jnp.arange(3); p = jnp.arange(13)
    col1 = (p[None, None, :] == ow[:, None, None] + kw[None, :, None]).astype(jnp.float32)
    c = jnp.einsum('cikl,rks,olp->rocspi', w, row1, col1)            # (2,10,8,4,13,8)
    return c.reshape(160, 416)


# ----------------------------------------------------------------------------
# Full forward pass (matches PyTorch ConvNet.forward in eval mode)
# ----------------------------------------------------------------------------
@jax.jit
def convnet_forward(x_nchw, params):
    w1, b1, w2, b2, fw1, fb1, fw2, fb2 = params
    N = x_nchw.shape[0]

    # Batch tile: up to 512 lanes; large batches keep grid >= 2 (v7x dual-TC).
    b_tile = min(MAX_B_TILE, ((N + 127) // 128) * 128)
    n_pad = ((N + b_tile - 1) // b_tile) * b_tile
    grid = n_pad // b_tile

    # NCHW -> (grid, 896, b_tile): row-padded, flattened, batch on lanes and
    # pre-tiled so each grid step is ONE contiguous bf16 DMA.
    # TODO(synk): on v5e keep activations in this layout upstream to avoid this
    # extra XLA transpose pass over the full input.
    x = x_nchw[:, 0, :, :].astype(jnp.bfloat16)                      # (N, 28, 28)
    x = jnp.pad(x, ((0, n_pad - N), (0, 0), (0, W_PAD - 28)))        # (n_pad, 28, 32)
    x = jnp.transpose(x.reshape(grid, b_tile, IMG_FLAT), (0, 2, 1))  # (grid, 896, b_tile)

    a_pair = _conv1_pair_band(w1).astype(jnp.bfloat16)               # (416, 128)
    c_pair = _conv2_pair_band(w2).astype(jnp.bfloat16)               # (160, 416)
    b1t = jnp.tile(b1, 13).reshape(104, 1).astype(jnp.float32)       # bias per (pw, co)
    b2t = jnp.tile(b2, 5).reshape(40, 1).astype(jnp.float32)
    # fc1 columns permuted from PyTorch (c,h,w) flatten order to (h,w,c).
    w1p = fw1.reshape(64, 8, 5, 5).transpose(0, 2, 3, 1).reshape(64, 200)
    w1p = w1p.astype(jnp.bfloat16)
    fb1c = fb1.reshape(64, 1).astype(jnp.float32)
    fw2b = fw2.astype(jnp.bfloat16)
    fb2c = fb2.reshape(10, 1).astype(jnp.float32)

    flops = 2 * n_pad * (13 * 416 * 128 + 5 * 160 * 416 + 64 * 200 + 10 * 64)
    bytes_accessed = (2 * (x.size + a_pair.size + c_pair.size + w1p.size + fw2b.size)
                      + 4 * (b1t.size + b2t.size + fb1c.size + fb2c.size)
                      + 4 * 10 * n_pad)

    out = pl.pallas_call(
        _convnet_kernel,
        out_shape=jax.ShapeDtypeStruct((10, n_pad), jnp.float32),
        grid=(grid,),
        in_specs=[
            pl.BlockSpec((None, IMG_FLAT, b_tile), lambda b: (b, 0, 0)),  # image tile
            pl.BlockSpec((416, 128), lambda b: (0, 0)),     # conv1 pool-pair band
            pl.BlockSpec((160, 416), lambda b: (0, 0)),     # conv2 pool-pair band
            pl.BlockSpec((104, 1), lambda b: (0, 0)),       # conv1 bias (tiled)
            pl.BlockSpec((40, 1), lambda b: (0, 0)),        # conv2 bias (tiled)
            pl.BlockSpec((64, 200), lambda b: (0, 0)),      # fc1 W (permuted)
            pl.BlockSpec((64, 1), lambda b: (0, 0)),        # fc1 b
            pl.BlockSpec((10, 64), lambda b: (0, 0)),       # fc2 W
            pl.BlockSpec((10, 1), lambda b: (0, 0)),        # fc2 b
        ],
        out_specs=pl.BlockSpec((10, b_tile), lambda b: (0, b)),       # lane-dense
        scratch_shapes=[
            pltpu.VMEM((1352, b_tile), jnp.bfloat16),   # pooled conv1 map (h1)
            pltpu.VMEM((200, b_tile), jnp.bfloat16),    # pooled conv2 map (feat)
        ],
        compiler_params=pltpu.CompilerParams(
            dimension_semantics=("parallel",),
            vmem_limit_bytes=48 * 1024 * 1024,
        ),
        cost_estimate=pl.CostEstimate(
            flops=flops, transcendentals=11 * n_pad,
            bytes_accessed=bytes_accessed),
    )(x, a_pair, c_pair, b1t, b2t, w1p, fb1c, fw2b, fb2c)

    return out[:, :N].T                                              # (N, 10)


# ----------------------------------------------------------------------------
# Pure-JAX reference (for the numerical sanity check)
# ----------------------------------------------------------------------------
def reference_forward(x, params):
    w1, b1, w2, b2, fw1, fb1, fw2, fb2 = params
    dn = ("NCHW", "OIHW", "NCHW")
    hp = jax.lax.Precision.HIGHEST
    y = jax.lax.conv_general_dilated(x, w1, (1, 1), "VALID",
                                     dimension_numbers=dn, precision=hp)
    y = jax.nn.relu(y + b1.reshape(1, -1, 1, 1))
    y = jax.lax.reduce_window(y, -jnp.inf, jax.lax.max, (1, 1, 2, 2), (1, 1, 2, 2), "VALID")
    y = jax.lax.conv_general_dilated(y, w2, (1, 1), "VALID",
                                     dimension_numbers=dn, precision=hp)
    y = jax.nn.relu(y + b2.reshape(1, -1, 1, 1))
    y = jax.lax.reduce_window(y, -jnp.inf, jax.lax.max, (1, 1, 2, 2), (1, 1, 2, 2), "VALID")
    y = y.reshape(y.shape[0], -1)
    y = jax.nn.relu(jnp.dot(y, fw1.T, precision=hp) + fb1)
    y = jnp.dot(y, fw2.T, precision=hp) + fb2
    return jax.nn.log_softmax(y, axis=1)


if __name__ == "__main__":
    key = jax.random.PRNGKey(0)
    ks = jax.random.split(key, 9)
    N = 2

    x = jax.random.normal(ks[0], (N, 1, 28, 28), jnp.float32)
    # Deterministic synthetic parameters (shapes from ConvNet.__init__).
    w1 = 0.20 * jax.random.normal(ks[1], (8, 1, 3, 3), jnp.float32)
    b1 = 0.10 * jax.random.normal(ks[2], (8,), jnp.float32)
    w2 = 0.10 * jax.random.normal(ks[3], (8, 8, 3, 3), jnp.float32)
    b2 = 0.10 * jax.random.normal(ks[4], (8,), jnp.float32)
    fw1 = 0.05 * jax.random.normal(ks[5], (64, 200), jnp.float32)
    fb1 = 0.10 * jax.random.normal(ks[6], (64,), jnp.float32)
    fw2 = 0.10 * jax.random.normal(ks[7], (10, 64), jnp.float32)
    fb2 = 0.10 * jax.random.normal(ks[8], (10,), jnp.float32)
    params = (w1, b1, w2, b2, fw1, fb1, fw2, fb2)

    out = jax.block_until_ready(convnet_forward(x, params))
    ref = jax.block_until_ready(reference_forward(x, params))

    assert out.shape == (N, 10) and out.dtype == jnp.float32
    np.testing.assert_allclose(np.asarray(out), np.asarray(ref), rtol=2e-2, atol=2e-2)
    print("KERNEL_OK")
</pallas_src>

<mosaic_0001>
module attributes {stable_mosaic.version = 11 : i64} {
  func.func @_convnet_kernel(%arg0: i32, %arg1: memref<1x896x128xbf16, #tpu.memory_space<vmem>>, %arg2: memref<416x128xbf16, #tpu.memory_space<vmem>>, %arg3: memref<160x416xbf16, #tpu.memory_space<vmem>>, %arg4: memref<104x1xf32, #tpu.memory_space<vmem>>, %arg5: memref<40x1xf32, #tpu.memory_space<vmem>>, %arg6: memref<64x200xbf16, #tpu.memory_space<vmem>>, %arg7: memref<64x1xf32, #tpu.memory_space<vmem>>, %arg8: memref<10x64xbf16, #tpu.memory_space<vmem>>, %arg9: memref<10x1xf32, #tpu.memory_space<vmem>>, %arg10: memref<10x128xf32, #tpu.memory_space<vmem>>, %arg11: memref<1352x128xbf16, #tpu.memory_space<vmem>>, %arg12: memref<200x128xbf16, #tpu.memory_space<vmem>>) attributes {dimension_semantics = [#tpu.dimension_semantics<parallel>], iteration_bounds = array<i64: 1>, scalar_prefetch = 0 : i64, scratch_operands = 2 : i64, tpu.core_type = #tpu.core_type<tc>, window_params = [{transform_indices = @transform_0, window_bounds = array<i64: 1, 896, 128>}, {pipeline_mode = #tpu.pipeline_mode<synchronous>, transform_indices = @transform_1, window_bounds = array<i64: 416, 128>}, {pipeline_mode = #tpu.pipeline_mode<synchronous>, transform_indices = @transform_2, window_bounds = array<i64: 160, 416>}, {pipeline_mode = #tpu.pipeline_mode<synchronous>, transform_indices = @transform_3, window_bounds = array<i64: 104, 1>}, {pipeline_mode = #tpu.pipeline_mode<synchronous>, transform_indices = @transform_4, window_bounds = array<i64: 40, 1>}, {pipeline_mode = #tpu.pipeline_mode<synchronous>, transform_indices = @transform_5, window_bounds = array<i64: 64, 200>}, {pipeline_mode = #tpu.pipeline_mode<synchronous>, transform_indices = @transform_6, window_bounds = array<i64: 64, 1>}, {pipeline_mode = #tpu.pipeline_mode<synchronous>, transform_indices = @transform_7, window_bounds = array<i64: 10, 64>}, {pipeline_mode = #tpu.pipeline_mode<synchronous>, transform_indices = @transform_8, window_bounds = array<i64: 10, 1>}, {transform_indices = @transform_9, window_bounds = array<i64: 10, 128>}]} {
    %c0 = arith.constant 0 : index
    %c0_0 = arith.constant 0 : index
    %0 = vector.load %arg2[%c0, %c0_0] : memref<416x128xbf16, #tpu.memory_space<vmem>>, vector<416x128xbf16>
    %c0_1 = arith.constant 0 : index
    %c0_2 = arith.constant 0 : index
    %1 = vector.load %arg3[%c0_1, %c0_2] : memref<160x416xbf16, #tpu.memory_space<vmem>>, vector<160x416xbf16>
    %c0_3 = arith.constant 0 : index
    %c0_4 = arith.constant 0 : index
    %2 = vector.load %arg4[%c0_3, %c0_4] : memref<104x1xf32, #tpu.memory_space<vmem>>, vector<104x1xf32>
    %3 = vector.shape_cast %2 : vector<104x1xf32> to vector<104x1xf32>
    %4 = vector.broadcast %3 : vector<104x1xf32> to vector<104x128xf32>
    %c0_5 = arith.constant 0 : index
    %c0_6 = arith.constant 0 : index
    %5 = vector.load %arg5[%c0_5, %c0_6] : memref<40x1xf32, #tpu.memory_space<vmem>>, vector<40x1xf32>
    %6 = vector.shape_cast %5 : vector<40x1xf32> to vector<40x1xf32>
    %7 = vector.broadcast %6 : vector<40x1xf32> to vector<40x128xf32>
    %c0_7 = arith.constant 0 : index
    %c0_8 = arith.constant 0 : index
    %c0_9 = arith.constant 0 : index
    %8 = vector.load %arg1[%c0_7, %c0_8, %c0_9] : memref<1x896x128xbf16, #tpu.memory_space<vmem>>, vector<1x128x128xbf16>
    %9 = vector.shape_cast %8 : vector<1x128x128xbf16> to vector<128x128xbf16>
    %cst = arith.constant dense<0.000000e+00> : vector<416x128xf32>
    %10 = tpu.matmul %0, %9, %cst {dimension_numbers = #tpu.dot_dimension_numbers<[1], [0], [0], [1], [0, 0, 1, 1], [], []>} : vector<416x128xbf16>, vector<128x128xbf16>, vector<416x128xf32> -> vector<416x128xf32>
    %11 = vector.extract_strided_slice %10 {offsets = [0, 0], sizes = [208, 128], strides = [1, 1]} : vector<416x128xf32> to vector<208x128xf32>
    %12 = vector.extract_strided_slice %10 {offsets = [208, 0], sizes = [208, 128], strides = [1, 1]} : vector<416x128xf32> to vector<208x128xf32>
    %13 = arith.maximumf %11, %12 : vector<208x128xf32>
    %14 = vector.shape_cast %13 : vector<208x128xf32> to vector<13x2x8x128xf32>
    %cst_10 = arith.constant dense<0xFF800000> : vector<13x8x128xf32>
    %15 = vector.multi_reduction <maximumf>, %14, %cst_10 [1] : vector<13x2x8x128xf32> to vector<13x8x128xf32>
    %16 = vector.shape_cast %15 : vector<13x8x128xf32> to vector<104x128xf32>
    %17 = arith.addf %16, %4 : vector<104x128xf32>
    %cst_11 = arith.constant 0.000000e+00 : f32
    %18 = vector.broadcast %cst_11 : f32 to vector<104x128xf32>
    %19 = arith.maximumf %17, %18 : vector<104x128xf32>
    %20 = arith.truncf %19 : vector<104x128xf32> to vector<104x128xbf16>
    %c0_12 = arith.constant 0 : index
    %c0_13 = arith.constant 0 : index
    %21 = vector.load %arg11[%c0_12, %c0_13] : memref<1352x128xbf16, #tpu.memory_space<vmem>>, vector<104x128xbf16>
    tpu.vector_store %arg11[%c0_12, %c0_13], %20 {strides = array<i32>} : memref<1352x128xbf16, #tpu.memory_space<vmem>>, vector<104x128xbf16>,
    %c0_14 = arith.constant 0 : index
    %c64 = arith.constant 64 : index
    %c0_15 = arith.constant 0 : index
    %22 = vector.load %arg1[%c0_14, %c64, %c0_15] : memref<1x896x128xbf16, #tpu.memory_space<vmem>>, vector<1x128x128xbf16>
    %23 = vector.shape_cast %22 : vector<1x128x128xbf16> to vector<128x128xbf16>
    %cst_16 = arith.constant dense<0.000000e+00> : vector<416x128xf32>
    %24 = tpu.matmul %0, %23, %cst_16 {dimension_numbers = #tpu.dot_dimension_numbers<[1], [0], [0], [1], [0, 0, 1, 1], [], []>} : vector<416x128xbf16>, vector<128x128xbf16>, vector<416x128xf32> -> vector<416x128xf32>
    %25 = vector.extract_strided_slice %24 {offsets = [0, 0], sizes = [208, 128], strides = [1, 1]} : vector<416x128xf32> to vector<208x128xf32>
    %26 = vector.extract_strided_slice %24 {offsets = [208, 0], sizes = [208, 128], strides = [1, 1]} : vector<416x128xf32> to vector<208x128xf32>
    %27 = arith.maximumf %25, %26 : vector<208x128xf32>
    %28 = vector.shape_cast %27 : vector<208x128xf32> to vector<13x2x8x128xf32>
    %cst_17 = arith.constant dense<0xFF800000> : vector<13x8x128xf32>
    %29 = vector.multi_reduction <maximumf>, %28, %cst_17 [1] : vector<13x2x8x128xf32> to vector<13x8x128xf32>
    %30 = vector.shape_cast %29 : vector<13x8x128xf32> to vector<104x128xf32>
    %31 = arith.addf %30, %4 : vector<104x128xf32>
    %cst_18 = arith.constant 0.000000e+00 : f32
    %32 = vector.broadcast %cst_18 : f32 to vector<104x128xf32>
    %33 = arith.maximumf %31, %32 : vector<104x128xf32>
    %34 = arith.truncf %33 : vector<104x128xf32> to vector<104x128xbf16>
    %c104 = arith.constant 104 : index
    %c0_19 = arith.constant 0 : index
    %35 = vector.load %arg11[%c104, %c0_19] : memref<1352x128xbf16, #tpu.memory_space<vmem>>, vector<104x128xbf16>
    tpu.vector_store %arg11[%c104, %c0_19], %34 {strides = array<i32>} : memref<1352x128xbf16, #tpu.memory_space<vmem>>, vector<104x128xbf16>,
    %c0_20 = arith.constant 0 : index
    %c128 = arith.constant 128 : index
    %c0_21 = arith.constant 0 : index
    %36 = vector.load %arg1[%c0_20, %c128, %c0_21] : memref<1x896x128xbf16, #tpu.memory_space<vmem>>, vector<1x128x128xbf16>
    %37 = vector.shape_cast %36 : vector<1x128x128xbf16> to vector<128x128xbf16>
    %cst_22 = arith.constant dense<0.000000e+00> : vector<416x128xf32>
    %38 = tpu.matmul %0, %37, %cst_22 {dimension_numbers = #tpu.dot_dimension_numbers<[1], [0], [0], [1], [0, 0, 1, 1], [], []>} : vector<416x128xbf16>, vector<128x128xbf16>, vector<416x128xf32> -> vector<416x128xf32>
    %39 = vector.extract_strided_slice %38 {offsets = [0, 0], sizes = [208, 128], strides = [1, 1]} : vector<416x128xf32> to vector<208x128xf32>
    %40 = vector.extract_strided_slice %38 {offsets = [208, 0], sizes = [208, 128], strides = [1, 1]} : vector<416x128xf32> to vector<208x128xf32>
    %41 = arith.maximumf %39, %40 : vector<208x128xf32>
    %42 = vector.shape_cast %41 : vector<208x128xf32> to vector<13x2x8x128xf32>
    %cst_23 = arith.constant dense<0xFF800000> : vector<13x8x128xf32>
    %43 = vector.multi_reduction <maximumf>, %42, %cst_23 [1] : vector<13x2x8x128xf32> to vector<13x8x128xf32>
    %44 = vector.shape_cast %43 : vector<13x8x128xf32> to vector<104x128xf32>
    %45 = arith.addf %44, %4 : vector<104x128xf32>
    %cst_24 = arith.constant 0.000000e+00 : f32
    %46 = vector.broadcast %cst_24 : f32 to vector<104x128xf32>
    %47 = arith.maximumf %45, %46 : vector<104x128xf32>
    %48 = arith.truncf %47 : vector<104x128xf32> to vector<104x128xbf16>
    %c208 = arith.constant 208 : index
    %c0_25 = arith.constant 0 : index
    %49 = vector.load %arg11[%c208, %c0_25] : memref<1352x128xbf16, #tpu.memory_space<vmem>>, vector<104x128xbf16>
    tpu.vector_store %arg11[%c208, %c0_25], %48 {strides = array<i32>} : memref<1352x128xbf16, #tpu.memory_space<vmem>>, vector<104x128xbf16>,
    %c0_26 = arith.constant 0 : index
    %c192 = arith.constant 192 : index
    %c0_27 = arith.constant 0 : index
    %50 = vector.load %arg1[%c0_26, %c192, %c0_27] : memref<1x896x128xbf16, #tpu.memory_space<vmem>>, vector<1x128x128xbf16>
    %51 = vector.shape_cast %50 : vector<1x128x128xbf16> to vector<128x128xbf16>
    %cst_28 = arith.constant dense<0.000000e+00> : vector<416x128xf32>
    %52 = tpu.matmul %0, %51, %cst_28 {dimension_numbers = #tpu.dot_dimension_numbers<[1], [0], [0], [1], [0, 0, 1, 1], [], []>} : vector<416x128xbf16>, vector<128x128xbf16>, vector<416x128xf32> -> vector<416x128xf32>
    %53 = vector.extract_strided_slice %52 {offsets = [0, 0], sizes = [208, 128], strides = [1, 1]} : vector<416x128xf32> to vector<208x128xf32>
    %54 = vector.extract_strided_slice %52 {offsets = [208, 0], sizes = [208, 128], strides = [1, 1]} : vector<416x128xf32> to vector<208x128xf32>
    %55 = arith.maximumf %53, %54 : vector<208x128xf32>
    %56 = vector.shape_cast %55 : vector<208x128xf32> to vector<13x2x8x128xf32>
    %cst_29 = arith.constant dense<0xFF800000> : vector<13x8x128xf32>
    %57 = vector.multi_reduction <maximumf>, %56, %cst_29 [1] : vector<13x2x8x128xf32> to vector<13x8x128xf32>
    %58 = vector.shape_cast %57 : vector<13x8x128xf32> to vector<104x128xf32>
    %59 = arith.addf %58, %4 : vector<104x128xf32>
    %cst_30 = arith.constant 0.000000e+00 : f32
    %60 = vector.broadcast %cst_30 : f32 to vector<104x128xf32>
    %61 = arith.maximumf %59, %60 : vector<104x128xf32>
    %62 = arith.truncf %61 : vector<104x128xf32> to vector<104x128xbf16>
    %c312 = arith.constant 312 : index
    %c0_31 = arith.constant 0 : index
    %63 = vector.load %arg11[%c312, %c0_31] : memref<1352x128xbf16, #tpu.memory_space<vmem>>, vector<104x128xbf16>
    tpu.vector_store %arg11[%c312, %c0_31], %62 {strides = array<i32>} : memref<1352x128xbf16, #tpu.memory_space<vmem>>, vector<104x128xbf16>,
    %c0_32 = arith.constant 0 : index
    %c256 = arith.constant 256 : index
    %c0_33 = arith.constant 0 : index
    %64 = vector.load %arg1[%c0_32, %c256, %c0_33] : memref<1x896x128xbf16, #tpu.memory_space<vmem>>, vector<1x128x128xbf16>
    %65 = vector.shape_cast %64 : vector<1x128x128xbf16> to vector<128x128xbf16>
    %cst_34 = arith.constant dense<0.000000e+00> : vector<416x128xf32>
    %66 = tpu.matmul %0, %65, %cst_34 {dimension_numbers = #tpu.dot_dimension_numbers<[1], [0], [0], [1], [0, 0, 1, 1], [], []>} : vector<416x128xbf16>, vector<128x128xbf16>, vector<416x128xf32> -> vector<416x128xf32>
    %67 = vector.extract_strided_slice %66 {offsets = [0, 0], sizes = [208, 128], strides = [1, 1]} : vector<416x128xf32> to vector<208x128xf32>
    %68 = vector.extract_strided_slice %66 {offsets = [208, 0], sizes = [208, 128], strides = [1, 1]} : vector<416x128xf32> to vector<208x128xf32>
    %69 = arith.maximumf %67, %68 : vector<208x128xf32>
    %70 = vector.shape_cast %69 : vector<208x128xf32> to vector<13x2x8x128xf32>
    %cst_35 = arith.constant dense<0xFF800000> : vector<13x8x128xf32>
    %71 = vector.multi_reduction <maximumf>, %70, %cst_35 [1] : vector<13x2x8x128xf32> to vector<13x8x128xf32>
    %72 = vector.shape_cast %71 : vector<13x8x128xf32> to vector<104x128xf32>
    %73 = arith.addf %72, %4 : vector<104x128xf32>
    %cst_36 = arith.constant 0.000000e+00 : f32
    %74 = vector.broadcast %cst_36 : f32 to vector<104x128xf32>
    %75 = arith.maximumf %73, %74 : vector<104x128xf32>
    %76 = arith.truncf %75 : vector<104x128xf32> to vector<104x128xbf16>
    %c416 = arith.constant 416 : index
    %c0_37 = arith.constant 0 : index
    %77 = vector.load %arg11[%c416, %c0_37] : memref<1352x128xbf16, #tpu.memory_space<vmem>>, vector<104x128xbf16>
    tpu.vector_store %arg11[%c416, %c0_37], %76 {strides = array<i32>} : memref<1352x128xbf16, #tpu.memory_space<vmem>>, vector<104x128xbf16>,
    %c0_38 = arith.constant 0 : index
    %c320 = arith.constant 320 : index
    %c0_39 = arith.constant 0 : index
    %78 = vector.load %arg1[%c0_38, %c320, %c0_39] : memref<1x896x128xbf16, #tpu.memory_space<vmem>>, vector<1x128x128xbf16>
    %79 = vector.shape_cast %78 : vector<1x128x128xbf16> to vector<128x128xbf16>
    %cst_40 = arith.constant dense<0.000000e+00> : vector<416x128xf32>
    %80 = tpu.matmul %0, %79, %cst_40 {dimension_numbers = #tpu.dot_dimension_numbers<[1], [0], [0], [1], [0, 0, 1, 1], [], []>} : vector<416x128xbf16>, vector<128x128xbf16>, vector<416x128xf32> -> vector<416x128xf32>
    %81 = vector.extract_strided_slice %80 {offsets = [0, 0], sizes = [208, 128], strides = [1, 1]} : vector<416x128xf32> to vector<208x128xf32>
    %82 = vector.extract_strided_slice %80 {offsets = [208, 0], sizes = [208, 128], strides = [1, 1]} : vector<416x128xf32> to vector<208x128xf32>
    %83 = arith.maximumf %81, %82 : vector<208x128xf32>
    %84 = vector.shape_cast %83 : vector<208x128xf32> to vector<13x2x8x128xf32>
    %cst_41 = arith.constant dense<0xFF800000> : vector<13x8x128xf32>
    %85 = vector.multi_reduction <maximumf>, %84, %cst_41 [1] : vector<13x2x8x128xf32> to vector<13x8x128xf32>
    %86 = vector.shape_cast %85 : vector<13x8x128xf32> to vector<104x128xf32>
    %87 = arith.addf %86, %4 : vector<104x128xf32>
    %cst_42 = arith.constant 0.000000e+00 : f32
    %88 = vector.broadcast %cst_42 : f32 to vector<104x128xf32>
    %89 = arith.maximumf %87, %88 : vector<104x128xf32>
    %90 = arith.truncf %89 : vector<104x128xf32> to vector<104x128xbf16>
    %c520 = arith.constant 520 : index
    %c0_43 = arith.constant 0 : index
    %91 = vector.load %arg11[%c520, %c0_43] : memref<1352x128xbf16, #tpu.memory_space<vmem>>, vector<104x128xbf16>
    tpu.vector_store %arg11[%c520, %c0_43], %90 {strides = array<i32>} : memref<1352x128xbf16, #tpu.memory_space<vmem>>, vector<104x128xbf16>,
    %c0_44 = arith.constant 0 : index
    %c384 = arith.constant 384 : index
    %c0_45 = arith.constant 0 : index
    %92 = vector.load %arg1[%c0_44, %c384, %c0_45] : memref<1x896x128xbf16, #tpu.memory_space<vmem>>, vector<1x128x128xbf16>
    %93 = vector.shape_cast %92 : vector<1x128x128xbf16> to vector<128x128xbf16>
    %cst_46 = arith.constant dense<0.000000e+00> : vector<416x128xf32>
    %94 = tpu.matmul %0, %93, %cst_46 {dimension_numbers = #tpu.dot_dimension_numbers<[1], [0], [0], [1], [0, 0, 1, 1], [], []>} : vector<416x128xbf16>, vector<128x128xbf16>, vector<416x128xf32> -> vector<416x128xf32>
    %95 = vector.extract_strided_slice %94 {offsets = [0, 0], sizes = [208, 128], strides = [1, 1]} : vector<416x128xf32> to vector<208x128xf32>
    %96 = vector.extract_strided_slice %94 {offsets = [208, 0], sizes = [208, 128], strides = [1, 1]} : vector<416x128xf32> to vector<208x128xf32>
    %97 = arith.maximumf %95, %96 : vector<208x128xf32>
    %98 = vector.shape_cast %97 : vector<208x128xf32> to vector<13x2x8x128xf32>
    %cst_47 = arith.constant dense<0xFF800000> : vector<13x8x128xf32>
    %99 = vector.multi_reduction <maximumf>, %98, %cst_47 [1] : vector<13x2x8x128xf32> to vector<13x8x128xf32>
    %100 = vector.shape_cast %99 : vector<13x8x128xf32> to vector<104x128xf32>
    %101 = arith.addf %100, %4 : vector<104x128xf32>
    %cst_48 = arith.constant 0.000000e+00 : f32
    %102 = vector.broadcast %cst_48 : f32 to vector<104x128xf32>
    %103 = arith.maximumf %101, %102 : vector<104x128xf32>
    %104 = arith.truncf %103 : vector<104x128xf32> to vector<104x128xbf16>
    %c624 = arith.constant 624 : index
    %c0_49 = arith.constant 0 : index
    %105 = vector.load %arg11[%c624, %c0_49] : memref<1352x128xbf16, #tpu.memory_space<vmem>>, vector<104x128xbf16>
    tpu.vector_store %arg11[%c624, %c0_49], %104 {strides = array<i32>} : memref<1352x128xbf16, #tpu.memory_space<vmem>>, vector<104x128xbf16>,
    %c0_50 = arith.constant 0 : index
    %c448 = arith.constant 448 : index
    %c0_51 = arith.constant 0 : index
    %106 = vector.load %arg1[%c0_50, %c448, %c0_51] : memref<1x896x128xbf16, #tpu.memory_space<vmem>>, vector<1x128x128xbf16>
    %107 = vector.shape_cast %106 : vector<1x128x128xbf16> to vector<128x128xbf16>
    %cst_52 = arith.constant dense<0.000000e+00> : vector<416x128xf32>
    %108 = tpu.matmul %0, %107, %cst_52 {dimension_numbers = #tpu.dot_dimension_numbers<[1], [0], [0], [1], [0, 0, 1, 1], [], []>} : vector<416x128xbf16>, vector<128x128xbf16>, vector<416x128xf32> -> vector<416x128xf32>
    %109 = vector.extract_strided_slice %108 {offsets = [0, 0], sizes = [208, 128], strides = [1, 1]} : vector<416x128xf32> to vector<208x128xf32>
    %110 = vector.extract_strided_slice %108 {offsets = [208, 0], sizes = [208, 128], strides = [1, 1]} : vector<416x128xf32> to vector<208x128xf32>
    %111 = arith.maximumf %109, %110 : vector<208x128xf32>
    %112 = vector.shape_cast %111 : vector<208x128xf32> to vector<13x2x8x128xf32>
    %cst_53 = arith.constant dense<0xFF800000> : vector<13x8x128xf32>
    %113 = vector.multi_reduction <maximumf>, %112, %cst_53 [1] : vector<13x2x8x128xf32> to vector<13x8x128xf32>
    %114 = vector.shape_cast %113 : vector<13x8x128xf32> to vector<104x128xf32>
    %115 = arith.addf %114, %4 : vector<104x128xf32>
    %cst_54 = arith.constant 0.000000e+00 : f32
    %116 = vector.broadcast %cst_54 : f32 to vector<104x128xf32>
    %117 = arith.maximumf %115, %116 : vector<104x128xf32>
    %118 = arith.truncf %117 : vector<104x128xf32> to vector<104x128xbf16>
    %c728 = arith.constant 728 : index
    %c0_55 = arith.constant 0 : index
    %119 = vector.load %arg11[%c728, %c0_55] : memref<1352x128xbf16, #tpu.memory_space<vmem>>, vector<104x128xbf16>
    tpu.vector_store %arg11[%c728, %c0_55], %118 {strides = array<i32>} : memref<1352x128xbf16, #tpu.memory_space<vmem>>, vector<104x128xbf16>,
    %c0_56 = arith.constant 0 : index
    %c512 = arith.constant 512 : index
    %c0_57 = arith.constant 0 : index
    %120 = vector.load %arg1[%c0_56, %c512, %c0_57] : memref<1x896x128xbf16, #tpu.memory_space<vmem>>, vector<1x128x128xbf16>
    %121 = vector.shape_cast %120 : vector<1x128x128xbf16> to vector<128x128xbf16>
    %cst_58 = arith.constant dense<0.000000e+00> : vector<416x128xf32>
    %122 = tpu.matmul %0, %121, %cst_58 {dimension_numbers = #tpu.dot_dimension_numbers<[1], [0], [0], [1], [0, 0, 1, 1], [], []>} : vector<416x128xbf16>, vector<128x128xbf16>, vector<416x128xf32> -> vector<416x128xf32>
    %123 = vector.extract_strided_slice %122 {offsets = [0, 0], sizes = [208, 128], strides = [1, 1]} : vector<416x128xf32> to vector<208x128xf32>
    %124 = vector.extract_strided_slice %122 {offsets = [208, 0], sizes = [208, 128], strides = [1, 1]} : vector<416x128xf32> to vector<208x128xf32>
    %125 = arith.maximumf %123, %124 : vector<208x128xf32>
    %126 = vector.shape_cast %125 : vector<208x128xf32> to vector<13x2x8x128xf32>
    %cst_59 = arith.constant dense<0xFF800000> : vector<13x8x128xf32>
    %127 = vector.multi_reduction <maximumf>, %126, %cst_59 [1] : vector<13x2x8x128xf32> to vector<13x8x128xf32>
    %128 = vector.shape_cast %127 : vector<13x8x128xf32> to vector<104x128xf32>
    %129 = arith.addf %128, %4 : vector<104x128xf32>
    %cst_60 = arith.constant 0.000000e+00 : f32
    %130 = vector.broadcast %cst_60 : f32 to vector<104x128xf32>
    %131 = arith.maximumf %129, %130 : vector<104x128xf32>
    %132 = arith.truncf %131 : vector<104x128xf32> to vector<104x128xbf16>
    %c832 = arith.constant 832 : index
    %c0_61 = arith.constant 0 : index
    %133 = vector.load %arg11[%c832, %c0_61] : memref<1352x128xbf16, #tpu.memory_space<vmem>>, vector<104x128xbf16>
    tpu.vector_store %arg11[%c832, %c0_61], %132 {strides = array<i32>} : memref<1352x128xbf16, #tpu.memory_space<vmem>>, vector<104x128xbf16>,
    %c0_62 = arith.constant 0 : index
    %c576 = arith.constant 576 : index
    %c0_63 = arith.constant 0 : index
    %134 = vector.load %arg1[%c0_62, %c576, %c0_63] : memref<1x896x128xbf16, #tpu.memory_space<vmem>>, vector<1x128x128xbf16>
    %135 = vector.shape_cast %134 : vector<1x128x128xbf16> to vector<128x128xbf16>
    %cst_64 = arith.constant dense<0.000000e+00> : vector<416x128xf32>
    %136 = tpu.matmul %0, %135, %cst_64 {dimension_numbers = #tpu.dot_dimension_numbers<[1], [0], [0], [1], [0, 0, 1, 1], [], []>} : vector<416x128xbf16>, vector<128x128xbf16>, vector<416x128xf32> -> vector<416x128xf32>
    %137 = vector.extract_strided_slice %136 {offsets = [0, 0], sizes = [208, 128], strides = [1, 1]} : vector<416x128xf32> to vector<208x128xf32>
    %138 = vector.extract_strided_slice %136 {offsets = [208, 0], sizes = [208, 128], strides = [1, 1]} : vector<416x128xf32> to vector<208x128xf32>
    %139 = arith.maximumf %137, %138 : vector<208x128xf32>
    %140 = vector.shape_cast %139 : vector<208x128xf32> to vector<13x2x8x128xf32>
    %cst_65 = arith.constant dense<0xFF800000> : vector<13x8x128xf32>
    %141 = vector.multi_reduction <maximumf>, %140, %cst_65 [1] : vector<13x2x8x128xf32> to vector<13x8x128xf32>
    %142 = vector.shape_cast %141 : vector<13x8x128xf32> to vector<104x128xf32>
    %143 = arith.addf %142, %4 : vector<104x128xf32>
    %cst_66 = arith.constant 0.000000e+00 : f32
    %144 = vector.broadcast %cst_66 : f32 to vector<104x128xf32>
    %145 = arith.maximumf %143, %144 : vector<104x128xf32>
    %146 = arith.truncf %145 : vector<104x128xf32> to vector<104x128xbf16>
    %c936 = arith.constant 936 : index
    %c0_67 = arith.constant 0 : index
    %147 = vector.load %arg11[%c936, %c0_67] : memref<1352x128xbf16, #tpu.memory_space<vmem>>, vector<104x128xbf16>
    tpu.vector_store %arg11[%c936, %c0_67], %146 {strides = array<i32>} : memref<1352x128xbf16, #tpu.memory_space<vmem>>, vector<104x128xbf16>,
    %c0_68 = arith.constant 0 : index
    %c640 = arith.constant 640 : index
    %c0_69 = arith.constant 0 : index
    %148 = vector.load %arg1[%c0_68, %c640, %c0_69] : memref<1x896x128xbf16, #tpu.memory_space<vmem>>, vector<1x128x128xbf16>
    %149 = vector.shape_cast %148 : vector<1x128x128xbf16> to vector<128x128xbf16>
    %cst_70 = arith.constant dense<0.000000e+00> : vector<416x128xf32>
    %150 = tpu.matmul %0, %149, %cst_70 {dimension_numbers = #tpu.dot_dimension_numbers<[1], [0], [0], [1], [0, 0, 1, 1], [], []>} : vector<416x128xbf16>, vector<128x128xbf16>, vector<416x128xf32> -> vector<416x128xf32>
    %151 = vector.extract_strided_slice %150 {offsets = [0, 0], sizes = [208, 128], strides = [1, 1]} : vector<416x128xf32> to vector<208x128xf32>
    %152 = vector.extract_strided_slice %150 {offsets = [208, 0], sizes = [208, 128], strides = [1, 1]} : vector<416x128xf32> to vector<208x128xf32>
    %153 = arith.maximumf %151, %152 : vector<208x128xf32>
    %154 = vector.shape_cast %153 : vector<208x128xf32> to vector<13x2x8x128xf32>
    %cst_71 = arith.constant dense<0xFF800000> : vector<13x8x128xf32>
    %155 = vector.multi_reduction <maximumf>, %154, %cst_71 [1] : vector<13x2x8x128xf32> to vector<13x8x128xf32>
    %156 = vector.shape_cast %155 : vector<13x8x128xf32> to vector<104x128xf32>
    %157 = arith.addf %156, %4 : vector<104x128xf32>
    %cst_72 = arith.constant 0.000000e+00 : f32
    %158 = vector.broadcast %cst_72 : f32 to vector<104x128xf32>
    %159 = arith.maximumf %157, %158 : vector<104x128xf32>
    %160 = arith.truncf %159 : vector<104x128xf32> to vector<104x128xbf16>
    %c1040 = arith.constant 1040 : index
    %c0_73 = arith.constant 0 : index
    %161 = vector.load %arg11[%c1040, %c0_73] : memref<1352x128xbf16, #tpu.memory_space<vmem>>, vector<104x128xbf16>
    tpu.vector_store %arg11[%c1040, %c0_73], %160 {strides = array<i32>} : memref<1352x128xbf16, #tpu.memory_space<vmem>>, vector<104x128xbf16>,
    %c0_74 = arith.constant 0 : index
    %c704 = arith.constant 704 : index
    %c0_75 = arith.constant 0 : index
    %162 = vector.load %arg1[%c0_74, %c704, %c0_75] : memref<1x896x128xbf16, #tpu.memory_space<vmem>>, vector<1x128x128xbf16>
    %163 = vector.shape_cast %162 : vector<1x128x128xbf16> to vector<128x128xbf16>
    %cst_76 = arith.constant dense<0.000000e+00> : vector<416x128xf32>
    %164 = tpu.matmul %0, %163, %cst_76 {dimension_numbers = #tpu.dot_dimension_numbers<[1], [0], [0], [1], [0, 0, 1, 1], [], []>} : vector<416x128xbf16>, vector<128x128xbf16>, vector<416x128xf32> -> vector<416x128xf32>
    %165 = vector.extract_strided_slice %164 {offsets = [0, 0], sizes = [208, 128], strides = [1, 1]} : vector<416x128xf32> to vector<208x128xf32>
    %166 = vector.extract_strided_slice %164 {offsets = [208, 0], sizes = [208, 128], strides = [1, 1]} : vector<416x128xf32> to vector<208x128xf32>
    %167 = arith.maximumf %165, %166 : vector<208x128xf32>
    %168 = vector.shape_cast %167 : vector<208x128xf32> to vector<13x2x8x128xf32>
    %cst_77 = arith.constant dense<0xFF800000> : vector<13x8x128xf32>
    %169 = vector.multi_reduction <maximumf>, %168, %cst_77 [1] : vector<13x2x8x128xf32> to vector<13x8x128xf32>
    %170 = vector.shape_cast %169 : vector<13x8x128xf32> to vector<104x128xf32>
    %171 = arith.addf %170, %4 : vector<104x128xf32>
    %cst_78 = arith.constant 0.000000e+00 : f32
    %172 = vector.broadcast %cst_78 : f32 to vector<104x128xf32>
    %173 = arith.maximumf %171, %172 : vector<104x128xf32>
    %174 = arith.truncf %173 : vector<104x128xf32> to vector<104x128xbf16>
    %c1144 = arith.constant 1144 : index
    %c0_79 = arith.constant 0 : index
    %175 = vector.load %arg11[%c1144, %c0_79] : memref<1352x128xbf16, #tpu.memory_space<vmem>>, vector<104x128xbf16>
    tpu.vector_store %arg11[%c1144, %c0_79], %174 {strides = array<i32>} : memref<1352x128xbf16, #tpu.memory_space<vmem>>, vector<104x128xbf16>,
    %c0_80 = arith.constant 0 : index
    %c768 = arith.constant 768 : index
    %c0_81 = arith.constant 0 : index
    %176 = vector.load %arg1[%c0_80, %c768, %c0_81] : memref<1x896x128xbf16, #tpu.memory_space<vmem>>, vector<1x128x128xbf16>
    %177 = vector.shape_cast %176 : vector<1x128x128xbf16> to vector<128x128xbf16>
    %cst_82 = arith.constant dense<0.000000e+00> : vector<416x128xf32>
    %178 = tpu.matmul %0, %177, %cst_82 {dimension_numbers = #tpu.dot_dimension_numbers<[1], [0], [0], [1], [0, 0, 1, 1], [], []>} : vector<416x128xbf16>, vector<128x128xbf16>, vector<416x128xf32> -> vector<416x128xf32>
    %179 = vector.extract_strided_slice %178 {offsets = [0, 0], sizes = [208, 128], strides = [1, 1]} : vector<416x128xf32> to vector<208x128xf32>
    %180 = vector.extract_strided_slice %178 {offsets = [208, 0], sizes = [208, 128], strides = [1, 1]} : vector<416x128xf32> to vector<208x128xf32>
    %181 = arith.maximumf %179, %180 : vector<208x128xf32>
    %182 = vector.shape_cast %181 : vector<208x128xf32> to vector<13x2x8x128xf32>
    %cst_83 = arith.constant dense<0xFF800000> : vector<13x8x128xf32>
    %183 = vector.multi_reduction <maximumf>, %182, %cst_83 [1] : vector<13x2x8x128xf32> to vector<13x8x128xf32>
    %184 = vector.shape_cast %183 : vector<13x8x128xf32> to vector<104x128xf32>
    %185 = arith.addf %184, %4 : vector<104x128xf32>
    %cst_84 = arith.constant 0.000000e+00 : f32
    %186 = vector.broadcast %cst_84 : f32 to vector<104x128xf32>
    %187 = arith.maximumf %185, %186 : vector<104x128xf32>
    %188 = arith.truncf %187 : vector<104x128xf32> to vector<104x128xbf16>
    %c1248 = arith.constant 1248 : index
    %c0_85 = arith.constant 0 : index
    %189 = vector.load %arg11[%c1248, %c0_85] : memref<1352x128xbf16, #tpu.memory_space<vmem>>, vector<104x128xbf16>
    tpu.vector_store %arg11[%c1248, %c0_85], %188 {strides = array<i32>} : memref<1352x128xbf16, #tpu.memory_space<vmem>>, vector<104x128xbf16>,
    %c0_86 = arith.constant 0 : index
    %c0_87 = arith.constant 0 : index
    %190 = vector.load %arg11[%c0_86, %c0_87] : memref<1352x128xbf16, #tpu.memory_space<vmem>>, vector<416x128xbf16>
    %cst_88 = arith.constant dense<0.000000e+00> : vector<160x128xf32>
    %191 = tpu.matmul %1, %190, %cst_88 {dimension_numbers = #tpu.dot_dimension_numbers<[1], [0], [0], [1], [0, 0, 1, 1], [], []>} : vector<160x416xbf16>, vector<416x128xbf16>, vector<160x128xf32> -> vector<160x128xf32>
    %192 = vector.extract_strided_slice %191 {offsets = [0, 0], sizes = [80, 128], strides = [1, 1]} : vector<160x128xf32> to vector<80x128xf32>
    %193 = vector.extract_strided_slice %191 {offsets = [80, 0], sizes = [80, 128], strides = [1, 1]} : vector<160x128xf32> to vector<80x128xf32>
    %194 = arith.maximumf %192, %193 : vector<80x128xf32>
    %195 = vector.shape_cast %194 : vector<80x128xf32> to vector<5x2x8x128xf32>
    %cst_89 = arith.constant dense<0xFF800000> : vector<5x8x128xf32>
    %196 = vector.multi_reduction <maximumf>, %195, %cst_89 [1] : vector<5x2x8x128xf32> to vector<5x8x128xf32>
    %197 = vector.shape_cast %196 : vector<5x8x128xf32> to vector<40x128xf32>
    %198 = arith.addf %197, %7 : vector<40x128xf32>
    %cst_90 = arith.constant 0.000000e+00 : f32
    %199 = vector.broadcast %cst_90 : f32 to vector<40x128xf32>
    %200 = arith.maximumf %198, %199 : vector<40x128xf32>
    %201 = arith.truncf %200 : vector<40x128xf32> to vector<40x128xbf16>
    %c0_91 = arith.constant 0 : index
    %c0_92 = arith.constant 0 : index
    %202 = vector.load %arg12[%c0_91, %c0_92] : memref<200x128xbf16, #tpu.memory_space<vmem>>, vector<40x128xbf16>
    tpu.vector_store %arg12[%c0_91, %c0_92], %201 {strides = array<i32>} : memref<200x128xbf16, #tpu.memory_space<vmem>>, vector<40x128xbf16>,
    %c208_93 = arith.constant 208 : index
    %c0_94 = arith.constant 0 : index
    %203 = vector.load %arg11[%c208_93, %c0_94] : memref<1352x128xbf16, #tpu.memory_space<vmem>>, vector<416x128xbf16>
    %cst_95 = arith.constant dense<0.000000e+00> : vector<160x128xf32>
    %204 = tpu.matmul %1, %203, %cst_95 {dimension_numbers = #tpu.dot_dimension_numbers<[1], [0], [0], [1], [0, 0, 1, 1], [], []>} : vector<160x416xbf16>, vector<416x128xbf16>, vector<160x128xf32> -> vector<160x128xf32>
    %205 = vector.extract_strided_slice %204 {offsets = [0, 0], sizes = [80, 128], strides = [1, 1]} : vector<160x128xf32> to vector<80x128xf32>
    %206 = vector.extract_strided_slice %204 {offsets = [80, 0], sizes = [80, 128], strides = [1, 1]} : vector<160x128xf32> to vector<80x128xf32>
    %207 = arith.maximumf %205, %206 : vector<80x128xf32>
    %208 = vector.shape_cast %207 : vector<80x128xf32> to vector<5x2x8x128xf32>
    %cst_96 = arith.constant dense<0xFF800000> : vector<5x8x128xf32>
    %209 = vector.multi_reduction <maximumf>, %208, %cst_96 [1] : vector<5x2x8x128xf32> to vector<5x8x128xf32>
    %210 = vector.shape_cast %209 : vector<5x8x128xf32> to vector<40x128xf32>
    %211 = arith.addf %210, %7 : vector<40x128xf32>
    %cst_97 = arith.constant 0.000000e+00 : f32
    %212 = vector.broadcast %cst_97 : f32 to vector<40x128xf32>
    %213 = arith.maximumf %211, %212 : vector<40x128xf32>
    %214 = arith.truncf %213 : vector<40x128xf32> to vector<40x128xbf16>
    %c40 = arith.constant 40 : index
    %c0_98 = arith.constant 0 : index
    %215 = vector.load %arg12[%c40, %c0_98] : memref<200x128xbf16, #tpu.memory_space<vmem>>, vector<40x128xbf16>
    tpu.vector_store %arg12[%c40, %c0_98], %214 {strides = array<i32>} : memref<200x128xbf16, #tpu.memory_space<vmem>>, vector<40x128xbf16>,
    %c416_99 = arith.constant 416 : index
    %c0_100 = arith.constant 0 : index
    %216 = vector.load %arg11[%c416_99, %c0_100] : memref<1352x128xbf16, #tpu.memory_space<vmem>>, vector<416x128xbf16>
    %cst_101 = arith.constant dense<0.000000e+00> : vector<160x128xf32>
    %217 = tpu.matmul %1, %216, %cst_101 {dimension_numbers = #tpu.dot_dimension_numbers<[1], [0], [0], [1], [0, 0, 1, 1], [], []>} : vector<160x416xbf16>, vector<416x128xbf16>, vector<160x128xf32> -> vector<160x128xf32>
    %218 = vector.extract_strided_slice %217 {offsets = [0, 0], sizes = [80, 128], strides = [1, 1]} : vector<160x128xf32> to vector<80x128xf32>
    %219 = vector.extract_strided_slice %217 {offsets = [80, 0], sizes = [80, 128], strides = [1, 1]} : vector<160x128xf32> to vector<80x128xf32>
    %220 = arith.maximumf %218, %219 : vector<80x128xf32>
    %221 = vector.shape_cast %220 : vector<80x128xf32> to vector<5x2x8x128xf32>
    %cst_102 = arith.constant dense<0xFF800000> : vector<5x8x128xf32>
    %222 = vector.multi_reduction <maximumf>, %221, %cst_102 [1] : vector<5x2x8x128xf32> to vector<5x8x128xf32>
    %223 = vector.shape_cast %222 : vector<5x8x128xf32> to vector<40x128xf32>
    %224 = arith.addf %223, %7 : vector<40x128xf32>
    %cst_103 = arith.constant 0.000000e+00 : f32
    %225 = vector.broadcast %cst_103 : f32 to vector<40x128xf32>
    %226 = arith.maximumf %224, %225 : vector<40x128xf32>
    %227 = arith.truncf %226 : vector<40x128xf32> to vector<40x128xbf16>
    %c80 = arith.constant 80 : index
    %c0_104 = arith.constant 0 : index
    %228 = vector.load %arg12[%c80, %c0_104] : memref<200x128xbf16, #tpu.memory_space<vmem>>, vector<40x128xbf16>
    tpu.vector_store %arg12[%c80, %c0_104], %227 {strides = array<i32>} : memref<200x128xbf16, #tpu.memory_space<vmem>>, vector<40x128xbf16>,
    %c624_105 = arith.constant 624 : index
    %c0_106 = arith.constant 0 : index
    %229 = vector.load %arg11[%c624_105, %c0_106] : memref<1352x128xbf16, #tpu.memory_space<vmem>>, vector<416x128xbf16>
    %cst_107 = arith.constant dense<0.000000e+00> : vector<160x128xf32>
    %230 = tpu.matmul %1, %229, %cst_107 {dimension_numbers = #tpu.dot_dimension_numbers<[1], [0], [0], [1], [0, 0, 1, 1], [], []>} : vector<160x416xbf16>, vector<416x128xbf16>, vector<160x128xf32> -> vector<160x128xf32>
    %231 = vector.extract_strided_slice %230 {offsets = [0, 0], sizes = [80, 128], strides = [1, 1]} : vector<160x128xf32> to vector<80x128xf32>
    %232 = vector.extract_strided_slice %230 {offsets = [80, 0], sizes = [80, 128], strides = [1, 1]} : vector<160x128xf32> to vector<80x128xf32>
    %233 = arith.maximumf %231, %232 : vector<80x128xf32>
    %234 = vector.shape_cast %233 : vector<80x128xf32> to vector<5x2x8x128xf32>
    %cst_108 = arith.constant dense<0xFF800000> : vector<5x8x128xf32>
    %235 = vector.multi_reduction <maximumf>, %234, %cst_108 [1] : vector<5x2x8x128xf32> to vector<5x8x128xf32>
    %236 = vector.shape_cast %235 : vector<5x8x128xf32> to vector<40x128xf32>
    %237 = arith.addf %236, %7 : vector<40x128xf32>
    %cst_109 = arith.constant 0.000000e+00 : f32
    %238 = vector.broadcast %cst_109 : f32 to vector<40x128xf32>
    %239 = arith.maximumf %237, %238 : vector<40x128xf32>
    %240 = arith.truncf %239 : vector<40x128xf32> to vector<40x128xbf16>
    %c120 = arith.constant 120 : index
    %c0_110 = arith.constant 0 : index
    %241 = vector.load %arg12[%c120, %c0_110] : memref<200x128xbf16, #tpu.memory_space<vmem>>, vector<40x128xbf16>
    tpu.vector_store %arg12[%c120, %c0_110], %240 {strides = array<i32>} : memref<200x128xbf16, #tpu.memory_space<vmem>>, vector<40x128xbf16>,
    %c832_111 = arith.constant 832 : index
    %c0_112 = arith.constant 0 : index
    %242 = vector.load %arg11[%c832_111, %c0_112] : memref<1352x128xbf16, #tpu.memory_space<vmem>>, vector<416x128xbf16>
    %cst_113 = arith.constant dense<0.000000e+00> : vector<160x128xf32>
    %243 = tpu.matmul %1, %242, %cst_113 {dimension_numbers = #tpu.dot_dimension_numbers<[1], [0], [0], [1], [0, 0, 1, 1], [], []>} : vector<160x416xbf16>, vector<416x128xbf16>, vector<160x128xf32> -> vector<160x128xf32>
    %244 = vector.extract_strided_slice %243 {offsets = [0, 0], sizes = [80, 128], strides = [1, 1]} : vector<160x128xf32> to vector<80x128xf32>
    %245 = vector.extract_strided_slice %243 {offsets = [80, 0], sizes = [80, 128], strides = [1, 1]} : vector<160x128xf32> to vector<80x128xf32>
    %246 = arith.maximumf %244, %245 : vector<80x128xf32>
    %247 = vector.shape_cast %246 : vector<80x128xf32> to vector<5x2x8x128xf32>
    %cst_114 = arith.constant dense<0xFF800000> : vector<5x8x128xf32>
    %248 = vector.multi_reduction <maximumf>, %247, %cst_114 [1] : vector<5x2x8x128xf32> to vector<5x8x128xf32>
    %249 = vector.shape_cast %248 : vector<5x8x128xf32> to vector<40x128xf32>
    %250 = arith.addf %249, %7 : vector<40x128xf32>
    %cst_115 = arith.constant 0.000000e+00 : f32
    %251 = vector.broadcast %cst_115 : f32 to vector<40x128xf32>
    %252 = arith.maximumf %250, %251 : vector<40x128xf32>
    %253 = arith.truncf %252 : vector<40x128xf32> to vector<40x128xbf16>
    %c160 = arith.constant 160 : index
    %c0_116 = arith.constant 0 : index
    %254 = vector.load %arg12[%c160, %c0_116] : memref<200x128xbf16, #tpu.memory_space<vmem>>, vector<40x128xbf16>
    tpu.vector_store %arg12[%c160, %c0_116], %253 {strides = array<i32>} : memref<200x128xbf16, #tpu.memory_space<vmem>>, vector<40x128xbf16>,
    %c0_117 = arith.constant 0 : index
    %c0_118 = arith.constant 0 : index
    %255 = vector.load %arg6[%c0_117, %c0_118] : memref<64x200xbf16, #tpu.memory_space<vmem>>, vector<64x200xbf16>
    %c0_119 = arith.constant 0 : index
    %c0_120 = arith.constant 0 : index
    %256 = vector.load %arg12[%c0_119, %c0_120] : memref<200x128xbf16, #tpu.memory_space<vmem>>, vector<200x128xbf16>
    %cst_121 = arith.constant dense<0.000000e+00> : vector<64x128xf32>
    %257 = tpu.matmul %255, %256, %cst_121 {dimension_numbers = #tpu.dot_dimension_numbers<[1], [0], [0], [1], [0, 0, 1, 1], [], []>} : vector<64x200xbf16>, vector<200x128xbf16>, vector<64x128xf32> -> vector<64x128xf32>
    %c0_122 = arith.constant 0 : index
    %c0_123 = arith.constant 0 : index
    %258 = vector.load %arg7[%c0_122, %c0_123] : memref<64x1xf32, #tpu.memory_space<vmem>>, vector<64x1xf32>
    %259 = vector.broadcast %258 : vector<64x1xf32> to vector<64x128xf32>
    %260 = arith.addf %257, %259 : vector<64x128xf32>
    %cst_124 = arith.constant 0.000000e+00 : f32
    %261 = vector.broadcast %cst_124 : f32 to vector<64x128xf32>
    %262 = arith.maximumf %260, %261 : vector<64x128xf32>
    %263 = arith.truncf %262 : vector<64x128xf32> to vector<64x128xbf16>
    %c0_125 = arith.constant 0 : index
    %c0_126 = arith.constant 0 : index
    %264 = vector.load %arg8[%c0_125, %c0_126] : memref<10x64xbf16, #tpu.memory_space<vmem>>, vector<10x64xbf16>
    %cst_127 = arith.constant dense<0.000000e+00> : vector<10x128xf32>
    %265 = tpu.matmul %264, %263, %cst_127 {dimension_numbers = #tpu.dot_dimension_numbers<[1], [0], [0], [1], [0, 0, 1, 1], [], []>} : vector<10x64xbf16>, vector<64x128xbf16>, vector<10x128xf32> -> vector<10x128xf32>
    %c0_128 = arith.constant 0 : index
    %c0_129 = arith.constant 0 : index
    %266 = vector.load %arg9[%c0_128, %c0_129] : memref<10x1xf32, #tpu.memory_space<vmem>>, vector<10x1xf32>
    %267 = vector.broadcast %266 : vector<10x1xf32> to vector<10x128xf32>
    %268 = arith.addf %265, %267 : vector<10x128xf32>
    %cst_130 = arith.constant dense<0xFF800000> : vector<128xf32>
    %269 = vector.multi_reduction <maximumf>, %268, %cst_130 [0] : vector<10x128xf32> to vector<128xf32>
    %270 = vector.shape_cast %269 : vector<128xf32> to vector<1x128xf32>
    %271 = vector.broadcast %270 : vector<1x128xf32> to vector<10x128xf32>
    %272 = arith.subf %268, %271 : vector<10x128xf32>
    %273 = math.exp %272 : vector<10x128xf32>
    %cst_131 = arith.constant dense<0.000000e+00> : vector<128xf32>
    %274 = vector.multi_reduction <add>, %273, %cst_131 [0] : vector<10x128xf32> to vector<128xf32>
    %275 = vector.shape_cast %274 : vector<128xf32> to vector<1x128xf32>
    %276 = math.log %275 : vector<1x128xf32>
    %277 = arith.addf %270, %276 : vector<1x128xf32>
    %278 = vector.broadcast %277 : vector<1x128xf32> to vector<10x128xf32>
    %279 = arith.subf %268, %278 : vector<10x128xf32>
    %c0_132 = arith.constant 0 : index
    %c0_133 = arith.constant 0 : index
    %280 = vector.load %arg10[%c0_132, %c0_133] : memref<10x128xf32, #tpu.memory_space<vmem>>, vector<10x128xf32>
    tpu.vector_store %arg10[%c0_132, %c0_133], %279 {strides = array<i32>} : memref<10x128xf32, #tpu.memory_space<vmem>>, vector<10x128xf32>,
    return
  }
  func.func @transform_0(%arg0: i32) -> (i32, i32, i32) {
    %c0_i32 = arith.constant 0 : i32
    %c0_i32_0 = arith.constant 0 : i32
    %c0_i32_1 = arith.constant 0 : i32
    return %arg0, %c0_i32, %c0_i32_0 : i32, i32, i32
  }
  func.func @transform_1(%arg0: i32) -> (i32, i32) {
    %c0_i32 = arith.constant 0 : i32
    %c0_i32_0 = arith.constant 0 : i32
    %c0_i32_1 = arith.constant 0 : i32
    return %c0_i32, %c0_i32_0 : i32, i32
  }
  func.func @transform_2(%arg0: i32) -> (i32, i32) {
    %c0_i32 = arith.constant 0 : i32
    %c0_i32_0 = arith.constant 0 : i32
    %c0_i32_1 = arith.constant 0 : i32
    return %c0_i32, %c0_i32_0 : i32, i32
  }
  func.func @transform_3(%arg0: i32) -> (i32, i32) {
    %c0_i32 = arith.constant 0 : i32
    %c0_i32_0 = arith.constant 0 : i32
    %c0_i32_1 = arith.constant 0 : i32
    return %c0_i32, %c0_i32_0 : i32, i32
  }
  func.func @transform_4(%arg0: i32) -> (i32, i32) {
    %c0_i32 = arith.constant 0 : i32
    %c0_i32_0 = arith.constant 0 : i32
    %c0_i32_1 = arith.constant 0 : i32
    return %c0_i32, %c0_i32_0 : i32, i32
  }
  func.func @transform_5(%arg0: i32) -> (i32, i32) {
    %c0_i32 = arith.constant 0 : i32
    %c0_i32_0 = arith.constant 0 : i32
    %c0_i32_1 = arith.constant 0 : i32
    return %c0_i32, %c0_i32_0 : i32, i32
  }
  func.func @transform_6(%arg0: i32) -> (i32, i32) {
    %c0_i32 = arith.constant 0 : i32
    %c0_i32_0 = arith.constant 0 : i32
    %c0_i32_1 = arith.constant 0 : i32
    return %c0_i32, %c0_i32_0 : i32, i32
  }
  func.func @transform_7(%arg0: i32) -> (i32, i32) {
    %c0_i32 = arith.constant 0 : i32
    %c0_i32_0 = arith.constant 0 : i32
    %c0_i32_1 = arith.constant 0 : i32
    return %c0_i32, %c0_i32_0 : i32, i32
  }
  func.func @transform_8(%arg0: i32) -> (i32, i32) {
    %c0_i32 = arith.constant 0 : i32
    %c0_i32_0 = arith.constant 0 : i32
    %c0_i32_1 = arith.constant 0 : i32
    return %c0_i32, %c0_i32_0 : i32, i32
  }
  func.func @transform_9(%arg0: i32) -> (i32, i32) {
    %c0_i32 = arith.constant 0 : i32
    %c0_i32_0 = arith.constant 0 : i32
    return %c0_i32, %arg0 : i32, i32
  }
}

</mosaic_0001>

<llo_original>
// kernel: tile.13
$region0: #{tile.13}
  #allocation0 [shape = 's32[1]{0}', space=sflag, size = 0x4, scoped, tag = 'scoped memory for tile.13']
  %s0 = inlined_call_operand.vmem [shape: f32[8], index: 0, kind: input, shape index: {}]
  %s1 = inlined_call_operand.vmem [shape: f32[13,8], index: 1, kind: output, shape index: {}]
  // Predicated region
  $region2: #{tile.13} parent=0 // pred_check
    _
  $region3: #{tile.13} parent=0 // pred_check_branch
    %3 = sbr.rel (0) target = $region5
  $region4: #{tile.13} parent=0 // pred_region
    _
  $region5: #{tile.13} parent=0 // pred_fallthru
    _
  %v4 = vld [vmem:[%s0] ss:$0 sm:$0xff]
  %5 = vst [vmem:[%s1] sm:$0xff] %v4
  %s6 = scalar_lea.vmem %s1, 8
  %7 = vst [vmem:[%s6] sm:$0xff] %v4

// kernel: tile.0
$region0: #{tile.0}
  %s0 = inlined_call_operand.vmem [shape: f32[13,8], index: 0, kind: input, shape index: {}]
  %s1 = inlined_call_operand.vmem [shape: f32[104,1], index: 1, kind: output, shape index: {}]
  %v2 = vld [vmem:[%s0] sm:$0xff]
  %vm3 = vcmask 7168
  %4 = vst.msk [vmem:[%s1] ss:$8 sm:$0xf] %vm3, %v2
  %5 = vst.msk [vmem:[%s1] ss:$8 sm:$0xf0] %vm3, %v2
  %s6 = scalar_lea.vmem %s0, 8
  %v7 = vld [vmem:[%s6] sm:$0x1f]
  %vm8 = vcmask 7168
  %s9 = scalar_lea.vmem %s1, 64
  %10 = vst.msk [vmem:[%s9] ss:$8 sm:$0xf] %vm8, %v7
  %s11 = scalar_lea.vmem %s1, 92
  %12 = vst.msk [vmem:[%s11] sm:$0x10] %vm8, %v7
  %v13 = vld [vmem:[%s0] sm:$0xff]
  %14 = vrot.lane.b32.xlu0 %v13, 127
  %v15 = vpop.permute.xlu0 %14
  %vm16 = vcmask 7168
  %s17 = scalar_lea.vmem %s1, 1
  %18 = vst.msk [vmem:[%s17] ss:$8 sm:$0xf] %vm16, %v15
  %s19 = scalar_lea.vmem %s1, 1
  %20 = vst.msk [vmem:[%s19] ss:$8 sm:$0xf0] %vm16, %v15
  %s21 = scalar_lea.vmem %s0, 8
  %v22 = vld [vmem:[%s21] sm:$0x1f]
  %23 = vrot.lane.b32.xlu0 %v22, 127
  %v24 = vpop.permute.xlu0 %23
  %vm25 = vcmask 7168
  %s26 = scalar_lea.vmem %s1, 65
  %27 = vst.msk [vmem:[%s26] ss:$8 sm:$0xf] %vm25, %v24
  %s28 = scalar_lea.vmem %s1, 93
  %29 = vst.msk [vmem:[%s28] sm:$0x10] %vm25, %v24
  %v30 = vld [vmem:[%s0] sm:$0xff]
  %31 = vrot.lane.b32.xlu0 %v30, 126
  %v32 = vpop.permute.xlu0 %31
  %vm33 = vcmask 7168
  %s34 = scalar_lea.vmem %s1, 2
  %35 = vst.msk [vmem:[%s34] ss:$8 sm:$0xf] %vm33, %v32
  %s36 = scalar_lea.vmem %s1, 2
  %37 = vst.msk [vmem:[%s36] ss:$8 sm:$0xf0] %vm33, %v32
  %s38 = scalar_lea.vmem %s0, 8
  %v39 = vld [vmem:[%s38] sm:$0x1f]
  %40 = vrot.lane.b32.xlu0 %v39, 126
  %v41 = vpop.permute.xlu0 %40
  %vm42 = vcmask 7168
  %s43 = scalar_lea.vmem %s1, 66
  %44 = vst.msk [vmem:[%s43] ss:$8 sm:$0xf] %vm42, %v41
  %s45 = scalar_lea.vmem %s1, 94
  %46 = vst.msk [vmem:[%s45] sm:$0x10] %vm42, %v41
  %v47 = vld [vmem:[%s0] sm:$0xff]
  %48 = vrot.lane.b32.xlu0 %v47, 125
  %v49 = vpop.permute.xlu0 %48
  %vm50 = vcmask 7168
  %s51 = scalar_lea.vmem %s1, 3
  %52 = vst.msk [vmem:[%s51] ss:$8 sm:$0xf] %vm50, %v49
  %s53 = scalar_lea.vmem %s1, 3
  %54 = vst.msk [vmem:[%s53] ss:$8 sm:$0xf0] %vm50, %v49
  %s55 = scalar_lea.vmem %s0, 8
  %v56 = vld [vmem:[%s55] sm:$0x1f]
  %57 = vrot.lane.b32.xlu0 %v56, 125
  %v58 = vpop.permute.xlu0 %57
  %vm59 = vcmask 7168
  %s60 = scalar_lea.vmem %s1, 67
  %61 = vst.msk [vmem:[%s60] ss:$8 sm:$0xf] %vm59, %v58
  %s62 = scalar_lea.vmem %s1, 95
  %63 = vst.msk [vmem:[%s62] sm:$0x10] %vm59, %v58
  %v64 = vld [vmem:[%s0] sm:$0xff]
  %65 = vrot.lane.b32.xlu0 %v64, 124
  %v66 = vpop.permute.xlu0 %65
  %vm67 = vcmask 7168
  %s68 = scalar_lea.vmem %s1, 4
  %69 = vst.msk [vmem:[%s68] ss:$8 sm:$0xf] %vm67, %v66
  %s70 = scalar_lea.vmem %s1, 4
  %71 = vst.msk [vmem:[%s70] ss:$8 sm:$0xf0] %vm67, %v66
  %s72 = scalar_lea.vmem %s0, 8
  %v73 = vld [vmem:[%s72] sm:$0x1f]
  %74 = vrot.lane.b32.xlu0 %v73, 124
  %v75 = vpop.permute.xlu0 %74
  %vm76 = vcmask 7168
  %s77 = scalar_lea.vmem %s1, 68
  %78 = vst.msk [vmem:[%s77] ss:$8 sm:$0xf] %vm76, %v75
  %s79 = scalar_lea.vmem %s1, 96
  %80 = vst.msk [vmem:[%s79] sm:$0x10] %vm76, %v75
  %v81 = vld [vmem:[%s0] sm:$0xff]
  %82 = vrot.lane.b32.xlu0 %v81, 123
  %v83 = vpop.permute.xlu0 %82
  %vm84 = vcmask 7168
  %s85 = scalar_lea.vmem %s1, 5
  %86 = vst.msk [vmem:[%s85] ss:$8 sm:$0xf] %vm84, %v83
  %s87 = scalar_lea.vmem %s1, 5
  %88 = vst.msk [vmem:[%s87] ss:$8 sm:$0xf0] %vm84, %v83
  %s89 = scalar_lea.vmem %s0, 8
  %v90 = vld [vmem:[%s89] sm:$0x1f]
  %91 = vrot.lane.b32.xlu0 %v90, 123
  %v92 = vpop.permute.xlu0 %91
  %vm93 = vcmask 7168
  %s94 = scalar_lea.vmem %s1, 69
  %95 = vst.msk [vmem:[%s94] ss:$8 sm:$0xf] %vm93, %v92
  %s96 = scalar_lea.vmem %s1, 97
  %97 = vst.msk [vmem:[%s96] sm:$0x10] %vm93, %v92
  %v98 = vld [vmem:[%s0] sm:$0xff]
  %99 = vrot.lane.b32.xlu0 %v98, 122
  %v100 = vpop.permute.xlu0 %99
  %vm101 = vcmask 7168
  %s102 = scalar_lea.vmem %s1, 6
  %103 = vst.msk [vmem:[%s102] ss:$8 sm:$0xf] %vm101, %v100
  %s104 = scalar_lea.vmem %s1, 6
  %105 = vst.msk [vmem:[%s104] ss:$8 sm:$0xf0] %vm101, %v100
  %s106 = scalar_lea.vmem %s0, 8
  %v107 = vld [vmem:[%s106] sm:$0x1f]
  %108 = vrot.lane.b32.xlu0 %v107, 122
  %v109 = vpop.permute.xlu0 %108
  %vm110 = vcmask 7168
  %s111 = scalar_lea.vmem %s1, 70
  %112 = vst.msk [vmem:[%s111] ss:$8 sm:$0xf] %vm110, %v109
  %s113 = scalar_lea.vmem %s1, 98
  %114 = vst.msk [vmem:[%s113] sm:$0x10] %vm110, %v109
  %v115 = vld [vmem:[%s0] sm:$0xff]
  %116 = vrot.lane.b32.xlu0 %v115, 121
  %v117 = vpop.permute.xlu0 %116
  %vm118 = vcmask 7168
  %s119 = scalar_lea.vmem %s1, 7
  %120 = vst.msk [vmem:[%s119] ss:$8 sm:$0xf] %vm118, %v117
  %s121 = scalar_lea.vmem %s1, 7
  %122 = vst.msk [vmem:[%s121] ss:$8 sm:$0xf0] %vm118, %v117
  %s123 = scalar_lea.vmem %s0, 8
  %v124 = vld [vmem:[%s123] sm:$0x1f]
  %125 = vrot.lane.b32.xlu0 %v124, 121
  %v126 = vpop.permute.xlu0 %125
  %vm127 = vcmask 7168
  %s128 = scalar_lea.vmem %s1, 71
  %129 = vst.msk [vmem:[%s128] ss:$8 sm:$0xf] %vm127, %v126
  %s130 = scalar_lea.vmem %s1, 99
  %131 = vst.msk [vmem:[%s130] sm:$0x10] %vm127, %v126

// kernel: tile.18
$region0: #{tile.18}
  #allocation0 [shape = 's32[1]{0}', space=sflag, size = 0x4, scoped, tag = 'scoped memory for tile.18']
  %s0 = inlined_call_operand.vmem [shape: f32[8], index: 0, kind: input, shape index: {}]
  %s1 = inlined_call_operand.vmem [shape: f32[5,8], index: 1, kind: output, shape index: {}]
  // Predicated region
  $region2: #{tile.18} parent=0 // pred_check
    _
  $region3: #{tile.18} parent=0 // pred_check_branch
    %3 = sbr.rel (0) target = $region5
  $region4: #{tile.18} parent=0 // pred_region
    _
  $region5: #{tile.18} parent=0 // pred_fallthru
    _
  %v4 = vld [vmem:[%s0] ss:$0 sm:$0xff]
  %5 = vst [vmem:[%s1] sm:$0xff] %v4

// kernel: tile.1
$region0: #{tile.1}
  %s0 = inlined_call_operand.vmem [shape: f32[5,8], index: 0, kind: input, shape index: {}]
  %s1 = inlined_call_operand.vmem [shape: f32[40,1], index: 1, kind: output, shape index: {}]
  %v2 = vld [vmem:[%s0] sm:$0x1f]
  %vm3 = vcmask 7168
  %4 = vst.msk [vmem:[%s1] ss:$8 sm:$0xf] %vm3, %v2
  %s5 = scalar_lea.vmem %s1, 28
  %6 = vst.msk [vmem:[%s5] sm:$0x10] %vm3, %v2
  %v7 = vld [vmem:[%s0] sm:$0x1f]
  %8 = vrot.lane.b32.xlu0 %v7, 127
  %v9 = vpop.permute.xlu0 %8
  %vm10 = vcmask 7168
  %s11 = scalar_lea.vmem %s1, 1
  %12 = vst.msk [vmem:[%s11] ss:$8 sm:$0xf] %vm10, %v9
  %s13 = scalar_lea.vmem %s1, 29
  %14 = vst.msk [vmem:[%s13] sm:$0x10] %vm10, %v9
  %v15 = vld [vmem:[%s0] sm:$0x1f]
  %16 = vrot.lane.b32.xlu0 %v15, 126
  %v17 = vpop.permute.xlu0 %16
  %vm18 = vcmask 7168
  %s19 = scalar_lea.vmem %s1, 2
  %20 = vst.msk [vmem:[%s19] ss:$8 sm:$0xf] %vm18, %v17
  %s21 = scalar_lea.vmem %s1, 30
  %22 = vst.msk [vmem:[%s21] sm:$0x10] %vm18, %v17
  %v23 = vld [vmem:[%s0] sm:$0x1f]
  %24 = vrot.lane.b32.xlu0 %v23, 125
  %v25 = vpop.permute.xlu0 %24
  %vm26 = vcmask 7168
  %s27 = scalar_lea.vmem %s1, 3
  %28 = vst.msk [vmem:[%s27] ss:$8 sm:$0xf] %vm26, %v25
  %s29 = scalar_lea.vmem %s1, 31
  %30 = vst.msk [vmem:[%s29] sm:$0x10] %vm26, %v25
  %v31 = vld [vmem:[%s0] sm:$0x1f]
  %32 = vrot.lane.b32.xlu0 %v31, 124
  %v33 = vpop.permute.xlu0 %32
  %vm34 = vcmask 7168
  %s35 = scalar_lea.vmem %s1, 4
  %36 = vst.msk [vmem:[%s35] ss:$8 sm:$0xf] %vm34, %v33
  %s37 = scalar_lea.vmem %s1, 32
  %38 = vst.msk [vmem:[%s37] sm:$0x10] %vm34, %v33
  %v39 = vld [vmem:[%s0] sm:$0x1f]
  %40 = vrot.lane.b32.xlu0 %v39, 123
  %v41 = vpop.permute.xlu0 %40
  %vm42 = vcmask 7168
  %s43 = scalar_lea.vmem %s1, 5
  %44 = vst.msk [vmem:[%s43] ss:$8 sm:$0xf] %vm42, %v41
  %s45 = scalar_lea.vmem %s1, 33
  %46 = vst.msk [vmem:[%s45] sm:$0x10] %vm42, %v41
  %v47 = vld [vmem:[%s0] sm:$0x1f]
  %48 = vrot.lane.b32.xlu0 %v47, 122
  %v49 = vpop.permute.xlu0 %48
  %vm50 = vcmask 7168
  %s51 = scalar_lea.vmem %s1, 6
  %52 = vst.msk [vmem:[%s51] ss:$8 sm:$0xf] %vm50, %v49
  %s53 = scalar_lea.vmem %s1, 34
  %54 = vst.msk [vmem:[%s53] sm:$0x10] %vm50, %v49
  %v55 = vld [vmem:[%s0] sm:$0x1f]
  %56 = vrot.lane.b32.xlu0 %v55, 121
  %v57 = vpop.permute.xlu0 %56
  %vm58 = vcmask 7168
  %s59 = scalar_lea.vmem %s1, 7
  %60 = vst.msk [vmem:[%s59] ss:$8 sm:$0xf] %vm58, %v57
  %s61 = scalar_lea.vmem %s1, 35
  %62 = vst.msk [vmem:[%s61] sm:$0x10] %vm58, %v57

// kernel: convnet_forward.1
$region0: #{convnet_forward.1}
  #allocation0 [shape = 'u32[]', space=smem, size = 0x4, offset = 0x4, fixed_abs, tag = 'smem constant byte address 0x4 - core index']
  #allocation1 [shape = 'u32[144,128]{1,0:T(1,128)}', space=vmem, size = 0x12000, scoped, tag = 'internal scratch']
  #allocation2 [shape = 'bf16[1352,128]{1,0:T(8,128)(2,1)}', space=vmem, size = 0x54800, scoped, tag = 'scratch operand']
  #allocation3 [shape = 'bf16[200,128]{1,0:T(8,128)(2,1)}', space=vmem, size = 0xc800, scoped, tag = 'scratch operand']
  %s0 = inlined_call_operand.vmem [shape: bf16[1,896,128], index: 0, kind: input, shape index: {}]
  %s1 = inlined_call_operand.vmem [shape: bf16[416,128], index: 1, kind: input, shape index: {}]
  %s2 = inlined_call_operand.vmem [shape: bf16[160,416], index: 2, kind: input, shape index: {}]
  %s3 = inlined_call_operand.vmem [shape: f32[104,1], index: 3, kind: input, shape index: {}]
  %s4 = inlined_call_operand.vmem [shape: f32[40,1], index: 4, kind: input, shape index: {}]
  %s5 = inlined_call_operand.vmem [shape: bf16[64,200], index: 5, kind: input, shape index: {}]
  %s6 = inlined_call_operand.vmem [shape: f32[64,1], index: 6, kind: input, shape index: {}]
  %s7 = inlined_call_operand.vmem [shape: bf16[10,64], index: 7, kind: input, shape index: {}]
  %s8 = inlined_call_operand.vmem [shape: f32[10,1], index: 8, kind: input, shape index: {}]
  %s9 = inlined_call_operand.vmem [shape: f32[10,128], index: 9, kind: output, shape index: {}]
  %s10 = sld [smem:[#allocation0]]
  $region46: #{convnet_forward.1} parent=0
    _
  %s12 = ssub.s32 1, %s10
  %s13 = scalar_select 0, %s12, %s10
  // Predicated region
  $region2: #{convnet_forward.1} parent=0 // pred_check
    _
  $region3: #{convnet_forward.1} parent=0 // pred_check_branch
    %15 = sbr.rel (0) target = $region5
  $region4: #{convnet_forward.1} parent=0 // pred_region
    _
  $region5: #{convnet_forward.1} parent=0 // pred_fallthru
    _
  // Predicated region
  $region6: #{convnet_forward.1} parent=0 // pred_check
    _
  $region7: #{convnet_forward.1} parent=0 // pred_check_branch
    %17 = sbr.rel (0) target = $region9
  $region8: #{convnet_forward.1} parent=0 // pred_region
    _
  $region9: #{convnet_forward.1} parent=0 // pred_fallthru
    _
  // Predicated region
  $region10: #{convnet_forward.1} parent=0 // pred_check
    _
  $region11: #{convnet_forward.1} parent=0 // pred_check_branch
    %19 = sbr.rel (0) target = $region13
  $region12: #{convnet_forward.1} parent=0 // pred_region
    _
  $region13: #{convnet_forward.1} parent=0 // pred_fallthru
    _
  // Predicated region
  $region14: #{convnet_forward.1} parent=0 // pred_check
    _
  $region15: #{convnet_forward.1} parent=0 // pred_check_branch
    %21 = sbr.rel (0) target = $region17
  $region16: #{convnet_forward.1} parent=0 // pred_region
    _
  $region17: #{convnet_forward.1} parent=0 // pred_fallthru
    _
  // Predicated region
  $region18: #{convnet_forward.1} parent=0 // pred_check
    _
  $region19: #{convnet_forward.1} parent=0 // pred_check_branch
    %23 = sbr.rel (0) target = $region21
  $region20: #{convnet_forward.1} parent=0 // pred_region
    _
  $region21: #{convnet_forward.1} parent=0 // pred_fallthru
    _
  // Predicated region
  $region22: #{convnet_forward.1} parent=0 // pred_check
    _
  $region23: #{convnet_forward.1} parent=0 // pred_check_branch
    %25 = sbr.rel (0) target = $region25
  $region24: #{convnet_forward.1} parent=0 // pred_region
    _
  $region25: #{convnet_forward.1} parent=0 // pred_fallthru
    _
  // Predicated region
  $region26: #{convnet_forward.1} parent=0 // pred_check
    _
  $region27: #{convnet_forward.1} parent=0 // pred_check_branch
    %27 = sbr.rel (0) target = $region29
  $region28: #{convnet_forward.1} parent=0 // pred_region
    _
  $region29: #{convnet_forward.1} parent=0 // pred_fallthru
    _
  // Predicated region
  $region30: #{convnet_forward.1} parent=0 // pred_check
    _
  $region31: #{convnet_forward.1} parent=0 // pred_check_branch
    %29 = sbr.rel (0) target = $region33
  $region32: #{convnet_forward.1} parent=0 // pred_region
    _
  $region33: #{convnet_forward.1} parent=0 // pred_fallthru
    _
  // Predicated region
  $region34: #{convnet_forward.1} parent=0 // pred_check
    _
  $region35: #{convnet_forward.1} parent=0 // pred_check_branch
    %31 = sbr.rel (0) target = $region37
  $region36: #{convnet_forward.1} parent=0 // pred_region
    _
  $region37: #{convnet_forward.1} parent=0 // pred_fallthru
    _
  %v33 = vld [vmem:[%s1] sm:$0xf]
  %v34 = vld [vmem:[%s1 + $0x4] sm:$0xf]
  %v35 = vld [vmem:[%s1 + $0x8] sm:$0xf]
  %v36 = vld [vmem:[%s1 + $0xc] sm:$0xf]
  %v37 = vld [vmem:[%s1 + $0x10] sm:$0xf]
  %v38 = vld [vmem:[%s1 + $0x14] sm:$0xf]
  %v39 = vld [vmem:[%s1 + $0x18] sm:$0xf]
  %v40 = vld [vmem:[%s1 + $0x1c] sm:$0xf]
  %v41 = vld [vmem:[%s1 + $0x20] sm:$0xf]
  %v42 = vld [vmem:[%s1 + $0x24] sm:$0xf]
  %v43 = vld [vmem:[%s1 + $0x28] sm:$0xf]
  %v44 = vld [vmem:[%s1 + $0x2c] sm:$0xf]
  %v45 = vld [vmem:[%s1 + $0x30] sm:$0xf]
  %v46 = vld [vmem:[%s1 + $0x34] sm:$0xf]
  %v47 = vld [vmem:[%s1 + $0x38] sm:$0xf]
  %v48 = vld [vmem:[%s1 + $0x3c] sm:$0xf]
  %v49 = vld [vmem:[%s1 + $0x40] sm:$0xf]
  %v50 = vld [vmem:[%s1 + $0x44] sm:$0xf]
  %v51 = vld [vmem:[%s1 + $0x48] sm:$0xf]
  %v52 = vld [vmem:[%s1 + $0x4c] sm:$0xf]
  %v53 = vld [vmem:[%s1 + $0x50] sm:$0xf]
  %v54 = vld [vmem:[%s1 + $0x54] sm:$0xf]
  %v55 = vld [vmem:[%s1 + $0x58] sm:$0xf]
  %v56 = vld [vmem:[%s1 + $0x5c] sm:$0xf]
  %v57 = vld [vmem:[%s1 + $0x60] sm:$0xf]
  %v58 = vld [vmem:[%s1 + $0x64] sm:$0xf]
  %v59 = vld [vmem:[%s1 + $0x68] sm:$0xf]
  %v60 = vld [vmem:[%s1 + $0x6c] sm:$0xf]
  %v61 = vld [vmem:[%s1 + $0x70] sm:$0xf]
  %v62 = vld [vmem:[%s1 + $0x74] sm:$0xf]
  %v63 = vld [vmem:[%s1 + $0x78] sm:$0xf]
  %v64 = vld [vmem:[%s1 + $0x7c] sm:$0xf]
  %v65 = vld [vmem:[%s1 + $0x80] sm:$0xf]
  %v66 = vld [vmem:[%s1 + $0x84] sm:$0xf]
  %v67 = vld [vmem:[%s1 + $0x88] sm:$0xf]
  %v68 = vld [vmem:[%s1 + $0x8c] sm:$0xf]
  %v69 = vld [vmem:[%s1 + $0x90] sm:$0xf]
  %v70 = vld [vmem:[%s1 + $0x94] sm:$0xf]
  %v71 = vld [vmem:[%s1 + $0x98] sm:$0xf]
  %v72 = vld [vmem:[%s1 + $0x9c] sm:$0xf]
  %v73 = vld [vmem:[%s1 + $0xa0] sm:$0xf]
  %v74 = vld [vmem:[%s1 + $0xa4] sm:$0xf]
  %v75 = vld [vmem:[%s1 + $0xa8] sm:$0xf]
  %v76 = vld [vmem:[%s1 + $0xac] sm:$0xf]
  %v77 = vld [vmem:[%s1 + $0xb0] sm:$0xf]
  %v78 = vld [vmem:[%s1 + $0xb4] sm:$0xf]
  %v79 = vld [vmem:[%s1 + $0xb8] sm:$0xf]
  %v80 = vld [vmem:[%s1 + $0xbc] sm:$0xf]
  %v81 = vld [vmem:[%s1 + $0xc0] sm:$0xf]
  %v82 = vld [vmem:[%s1 + $0xc4] sm:$0xf]
  %v83 = vld [vmem:[%s1 + $0xc8] sm:$0xf]
  %v84 = vld [vmem:[%s1 + $0xcc] sm:$0xf]
  %v85 = vld [vmem:[%s2] sm:$0xff]
  %v86 = vld [vmem:[%s2 + $0x8] sm:$0xff]
  %v87 = vld [vmem:[%s2 + $0x10] sm:$0xff]
  %v88 = vld [vmem:[%s2 + $0x18] sm:$0xff]
  %v89 = vld [vmem:[%s2 + $0x20] sm:$0xff]
  %v90 = vld [vmem:[%s2 + $0x28] sm:$0xff]
  %v91 = vld [vmem:[%s2 + $0x30] sm:$0xff]
  %v92 = vld [vmem:[%s2 + $0x38] sm:$0xff]
  %v93 = vld [vmem:[%s2 + $0x40] sm:$0xff]
  %v94 = vld [vmem:[%s2 + $0x48] sm:$0xff]
  %v95 = vld [vmem:[%s2 + $0x50] sm:$0xff]
  %v96 = vld [vmem:[%s2 + $0x58] sm:$0xff]
  %v97 = vld [vmem:[%s2 + $0x60] sm:$0xff]
  %v98 = vld [vmem:[%s2 + $0x68] sm:$0xff]
  %v99 = vld [vmem:[%s2 + $0x70] sm:$0xff]
  %v100 = vld [vmem:[%s2 + $0x78] sm:$0xff]
  %v101 = vld [vmem:[%s2 + $0x80] sm:$0xff]
  %v102 = vld [vmem:[%s2 + $0x88] sm:$0xff]
  %v103 = vld [vmem:[%s2 + $0x90] sm:$0xff]
  %v104 = vld [vmem:[%s2 + $0x98] sm:$0xff]
  %v105 = vld [vmem:[%s2 + $0xa0] sm:$0xff]
  %v106 = vld [vmem:[%s2 + $0xa8] sm:$0xff]
  %v107 = vld [vmem:[%s2 + $0xb0] sm:$0xff]
  %v108 = vld [vmem:[%s2 + $0xb8] sm:$0xff]
  %v109 = vld [vmem:[%s2 + $0xc0] sm:$0xff]
  %v110 = vld [vmem:[%s2 + $0xc8] sm:$0xff]
  %v111 = vld [vmem:[%s2 + $0xd0] sm:$0xff]
  %v112 = vld [vmem:[%s2 + $0xd8] sm:$0xff]
  %v113 = vld [vmem:[%s2 + $0xe0] sm:$0xff]
  %v114 = vld [vmem:[%s2 + $0xe8] sm:$0xff]
  %v115 = vld [vmem:[%s2 + $0xf0] sm:$0xff]
  %v116 = vld [vmem:[%s2 + $0xf8] sm:$0xff]
  %v117 = vld [vmem:[%s2 + $0x100] sm:$0xff]
  %v118 = vld [vmem:[%s2 + $0x108] sm:$0xff]
  %v119 = vld [vmem:[%s2 + $0x110] sm:$0xff]
  %v120 = vld [vmem:[%s2 + $0x118] sm:$0xff]
  %v121 = vld [vmem:[%s2 + $0x120] sm:$0xff]
  %v122 = vld [vmem:[%s2 + $0x128] sm:$0xff]
  %v123 = vld [vmem:[%s2 + $0x130] sm:$0xff]
  %v124 = vld [vmem:[%s2 + $0x138] sm:$0xff]
  %v125 = vld [vmem:[%s3] sm:$0xff]
  %v126 = vld [vmem:[%s3 + $0x8] sm:$0xff]
  %v127 = vld [vmem:[%s3 + $0x10] sm:$0xff]
  %v128 = vld [vmem:[%s3 + $0x18] sm:$0xff]
  %v129 = vld [vmem:[%s3 + $0x20] sm:$0xff]
  %v130 = vld [vmem:[%s3 + $0x28] sm:$0xff]
  %v131 = vld [vmem:[%s3 + $0x30] sm:$0xff]
  %v132 = vld [vmem:[%s3 + $0x38] sm:$0xff]
  %v133 = vld [vmem:[%s3 + $0x40] sm:$0xff]
  %v134 = vld [vmem:[%s3 + $0x48] sm:$0xff]
  %v135 = vld [vmem:[%s3 + $0x50] sm:$0xff]
  %v136 = vld [vmem:[%s3 + $0x58] sm:$0xff]
  %v137 = vld [vmem:[%s3 + $0x60] sm:$0xff]
  %139 = vset.pattern.permute.xlu0 0
  %140 = vperm.xlu0 %139, %v125
  %v141 = vpop.permute.xlu0 %140
  %144 = vset.pattern.permute.xlu0 0
  %145 = vperm.xlu0 %144, %v126
  %v146 = vpop.permute.xlu0 %145
  %149 = vset.pattern.permute.xlu0 0
  %150 = vperm.xlu0 %149, %v127
  %v151 = vpop.permute.xlu0 %150
  %154 = vset.pattern.permute.xlu0 0
  %155 = vperm.xlu0 %154, %v128
  %v156 = vpop.permute.xlu0 %155
  %159 = vset.pattern.permute.xlu0 0
  %160 = vperm.xlu0 %159, %v129
  %v161 = vpop.permute.xlu0 %160
  %164 = vset.pattern.permute.xlu0 0
  %165 = vperm.xlu0 %164, %v130
  %v166 = vpop.permute.xlu0 %165
  %169 = vset.pattern.permute.xlu0 0
  %170 = vperm.xlu0 %169, %v131
  %v171 = vpop.permute.xlu0 %170
  %174 = vset.pattern.permute.xlu0 0
  %175 = vperm.xlu0 %174, %v132
  %v176 = vpop.permute.xlu0 %175
  %179 = vset.pattern.permute.xlu0 0
  %180 = vperm.xlu0 %179, %v133
  %v181 = vpop.permute.xlu0 %180
  %184 = vset.pattern.permute.xlu0 0
  %185 = vperm.xlu0 %184, %v134
  %v186 = vpop.permute.xlu0 %185
  %189 = vset.pattern.permute.xlu0 0
  %190 = vperm.xlu0 %189, %v135
  %v191 = vpop.permute.xlu0 %190
  %194 = vset.pattern.permute.xlu0 0
  %195 = vperm.xlu0 %194, %v136
  %v196 = vpop.permute.xlu0 %195
  %199 = vset.pattern.permute.xlu0 0
  %200 = vperm.xlu0 %199, %v137
  %v201 = vpop.permute.xlu0 %200
  %v203 = vld [vmem:[%s4] sm:$0xff]
  %v204 = vld [vmem:[%s4 + $0x8] sm:$0xff]
  %v205 = vld [vmem:[%s4 + $0x10] sm:$0xff]
  %v206 = vld [vmem:[%s4 + $0x18] sm:$0xff]
  %v207 = vld [vmem:[%s4 + $0x20] sm:$0xff]
  %209 = vset.pattern.permute.xlu0 0
  %210 = vperm.xlu0 %209, %v203
  %v211 = vpop.permute.xlu0 %210
  %214 = vset.pattern.permute.xlu0 0
  %215 = vperm.xlu0 %214, %v204
  %v216 = vpop.permute.xlu0 %215
  %219 = vset.pattern.permute.xlu0 0
  %220 = vperm.xlu0 %219, %v205
  %v221 = vpop.permute.xlu0 %220
  %224 = vset.pattern.permute.xlu0 0
  %225 = vperm.xlu0 %224, %v206
  %v226 = vpop.permute.xlu0 %225
  %229 = vset.pattern.permute.xlu0 0
  %230 = vperm.xlu0 %229, %v207
  %v231 = vpop.permute.xlu0 %230
  %v233 = vld [vmem:[%s0] sm:$0xf]
  %v234 = vld [vmem:[%s0 + $0x4] sm:$0xf]
  %v235 = vld [vmem:[%s0 + $0x8] sm:$0xf]
  %v236 = vld [vmem:[%s0 + $0xc] sm:$0xf]
  %v237 = vld [vmem:[%s0 + $0x10] sm:$0xf]
  %v238 = vld [vmem:[%s0 + $0x14] sm:$0xf]
  %v239 = vld [vmem:[%s0 + $0x18] sm:$0xf]
  %v240 = vld [vmem:[%s0 + $0x1c] sm:$0xf]
  %v241 = vld [vmem:[%s0 + $0x20] sm:$0xf]
  %v242 = vld [vmem:[%s0 + $0x24] sm:$0xf]
  %v243 = vld [vmem:[%s0 + $0x28] sm:$0xf]
  %v244 = vld [vmem:[%s0 + $0x2c] sm:$0xf]
  %v245 = vld [vmem:[%s0 + $0x30] sm:$0xf]
  %v246 = vld [vmem:[%s0 + $0x34] sm:$0xf]
  %v247 = vld [vmem:[%s0 + $0x38] sm:$0xf]
  %v248 = vld [vmem:[%s0 + $0x3c] sm:$0xf]
  %v301 = vunpack.c.l.b16 %v33
  %v302 = vunpack.c.l.b16 %v34
  %v303 = vunpack.c.l.b16 %v35
  %v304 = vunpack.c.l.b16 %v36
  %v305 = vunpack.c.l.b16 %v37
  %v306 = vunpack.c.l.b16 %v38
  %v307 = vunpack.c.l.b16 %v39
  %v308 = vunpack.c.l.b16 %v40
  %v309 = vunpack.c.l.b16 %v41
  %v310 = vunpack.c.l.b16 %v42
  %v311 = vunpack.c.l.b16 %v43
  %v312 = vunpack.c.l.b16 %v44
  %v313 = vunpack.c.l.b16 %v45
  %v314 = vunpack.c.l.b16 %v46
  %v315 = vunpack.c.l.b16 %v47
  %v316 = vunpack.c.l.b16 %v48
  %v317 = vunpack.c.l.b16 %v49
  %v318 = vunpack.c.l.b16 %v50
  %v319 = vunpack.c.l.b16 %v51
  %v320 = vunpack.c.l.b16 %v52
  %v321 = vunpack.c.l.b16 %v53
  %v322 = vunpack.c.l.b16 %v54
  %v323 = vunpack.c.l.b16 %v55
  %v324 = vunpack.c.l.b16 %v56
  %v325 = vunpack.c.l.b16 %v57
  %v326 = vunpack.c.l.b16 %v58
  %v327 = vunpack.c.l.b16 %v59
  %v328 = vunpack.c.l.b16 %v60
  %v329 = vunpack.c.l.b16 %v61
  %v330 = vunpack.c.l.b16 %v62
  %v331 = vunpack.c.l.b16 %v63
  %v332 = vunpack.c.l.b16 %v64
  %v333 = vunpack.c.l.b16 %v65
  %v334 = vunpack.c.l.b16 %v66
  %v335 = vunpack.c.l.b16 %v67
  %v336 = vunpack.c.l.b16 %v68
  %v337 = vunpack.c.l.b16 %v69
  %v338 = vunpack.c.l.b16 %v70
  %v339 = vunpack.c.l.b16 %v71
  %v340 = vunpack.c.l.b16 %v72
  %v341 = vunpack.c.l.b16 %v73
  %v342 = vunpack.c.l.b16 %v74
  %v343 = vunpack.c.l.b16 %v75
  %v344 = vunpack.c.l.b16 %v76
  %v345 = vunpack.c.l.b16 %v77
  %v346 = vunpack.c.l.b16 %v78
  %v347 = vunpack.c.l.b16 %v79
  %v348 = vunpack.c.l.b16 %v80
  %v349 = vunpack.c.l.b16 %v81
  %v350 = vunpack.c.l.b16 %v82
  %v351 = vunpack.c.l.b16 %v83
  %v352 = vunpack.c.l.b16 %v84
  %v353 = vpack.c.b16 %v302, %v301
  %v354 = vpack.c.b16 %v304, %v303
  %v355 = vpack.c.b16 %v306, %v305
  %v356 = vpack.c.b16 %v308, %v307
  %v357 = vpack.c.b16 %v310, %v309
  %v358 = vpack.c.b16 %v312, %v311
  %v359 = vpack.c.b16 %v314, %v313
  %v360 = vpack.c.b16 %v316, %v315
  %v361 = vpack.c.b16 %v318, %v317
  %v362 = vpack.c.b16 %v320, %v319
  %v363 = vpack.c.b16 %v322, %v321
  %v364 = vpack.c.b16 %v324, %v323
  %v365 = vpack.c.b16 %v326, %v325
  %v366 = vpack.c.b16 %v328, %v327
  %v367 = vpack.c.b16 %v330, %v329
  %v368 = vpack.c.b16 %v332, %v331
  %v369 = vpack.c.b16 %v334, %v333
  %v370 = vpack.c.b16 %v336, %v335
  %v371 = vpack.c.b16 %v338, %v337
  %v372 = vpack.c.b16 %v340, %v339
  %v373 = vpack.c.b16 %v342, %v341
  %v374 = vpack.c.b16 %v344, %v343
  %v375 = vpack.c.b16 %v346, %v345
  %v376 = vpack.c.b16 %v348, %v347
  %v377 = vpack.c.b16 %v350, %v349
  %v378 = vpack.c.b16 %v352, %v351
  %v421 = vunpack.c.l.b16 %v233
  %v422 = vunpack.c.l.b16 %v234
  %v423 = vunpack.c.l.b16 %v235
  %v424 = vunpack.c.l.b16 %v236
  %v425 = vunpack.c.l.b16 %v237
  %v426 = vunpack.c.l.b16 %v238
  %v427 = vunpack.c.l.b16 %v239
  %v428 = vunpack.c.l.b16 %v240
  %v429 = vunpack.c.l.b16 %v241
  %v430 = vunpack.c.l.b16 %v242
  %v431 = vunpack.c.l.b16 %v243
  %v432 = vunpack.c.l.b16 %v244
  %v433 = vunpack.c.l.b16 %v245
  %v434 = vunpack.c.l.b16 %v246
  %v435 = vunpack.c.l.b16 %v247
  %v436 = vunpack.c.l.b16 %v248
  %v437 = vpack.c.b16 %v422, %v421
  %v438 = vpack.c.b16 %v424, %v423
  %v439 = vpack.c.b16 %v426, %v425
  %v440 = vpack.c.b16 %v428, %v427
  %v441 = vpack.c.b16 %v430, %v429
  %v442 = vpack.c.b16 %v432, %v431
  %v443 = vpack.c.b16 %v434, %v433
  %v444 = vpack.c.b16 %v436, %v435
  %453 = vmatprep.subr.bf16.mxu0 0
  %454 = vmatpush1.bf16.msra.mxu0 %v437
  %455 = vmatprep.subr.bf16.mxu0 0
  %456 = vmatpush1.bf16.msra.mxu0 %v438
  %457 = vmatprep.subr.bf16.mxu0 0
  %458 = vmatpush1.bf16.msra.mxu0 %v439
  %459 = vmatprep.subr.bf16.mxu0 0
  %460 = vmatpush1.bf16.msra.mxu0 %v440
  %461 = vmatprep.subr.bf16.mxu0 0
  %462 = vmatpush1.bf16.msra.mxu0 %v441
  %463 = vmatprep.subr.bf16.mxu0 0
  %464 = vmatpush1.bf16.msra.mxu0 %v442
  %465 = vmatprep.subr.bf16.mxu0 0
  %466 = vmatpush1.bf16.msra.mxu0 %v443
  %467 = vmatprep.subr.bf16.mxu0 0
  %468 = vmatpush1.bf16.msra.mxu0 %v444
  %469 = vmatprep.subr.bf16.mxu0 0
  %470 = vmatpush1.bf16.msra.mxu0 0
  %471 = vmatprep.subr.bf16.mxu0 0
  %472 = vmatpush1.bf16.msra.mxu0 0
  %473 = vmatprep.subr.bf16.mxu0 0
  %474 = vmatpush1.bf16.msra.mxu0 0
  %475 = vmatprep.subr.bf16.mxu0 0
  %476 = vmatpush1.bf16.msra.mxu0 0
  %477 = vmatprep.subr.bf16.mxu0 0
  %478 = vmatpush1.bf16.msra.mxu0 0
  %479 = vmatprep.subr.bf16.mxu0 0
  %480 = vmatpush1.bf16.msra.mxu0 0
  %481 = vmatprep.subr.bf16.mxu0 0
  %482 = vmatpush1.bf16.msra.mxu0 0
  %483 = vmatprep.subr.bf16.mxu0 0
  %484 = vmatpush1.bf16.msra.mxu0 0
  %485 = vmatprep.mubr.bf16.mxu0 0
  %486 = vmatmul.mubr.bf16.gmra.mrb[0].mxu0 %v353
  %v487 = vpop.f32.mrb[0].mxu0
  %v488 = vadd.f32 0.0, %v487
  %v489 = vpop.f32.mrb[0].mxu0
  %v490 = vpop.f32.mrb[0].mxu0
  %v491 = vadd.f32 0.0, %v490
  %v492 = vpop.f32.mrb[0].mxu0
  %493 = vmatprep.mubr.bf16.mxu0 0
  %494 = vmatmul.mubr.bf16.gmra.mrb[0].mxu0 %v354
  %v495 = vpop.f32.mrb[0].mxu0
  %v496 = vadd.f32 0.0, %v495
  %v497 = vpop.f32.mrb[0].mxu0
  %v498 = vpop.f32.mrb[0].mxu0
  %v499 = vadd.f32 0.0, %v498
  %v500 = vpop.f32.mrb[0].mxu0
  %501 = vmatprep.mubr.bf16.mxu0 0
  %502 = vmatmul.mubr.bf16.gmra.mrb[0].mxu0 %v355
  %v503 = vpop.f32.mrb[0].mxu0
  %v504 = vadd.f32 0.0, %v503
  %v505 = vpop.f32.mrb[0].mxu0
  %v506 = vpop.f32.mrb[0].mxu0
  %v507 = vadd.f32 0.0, %v506
  %v508 = vpop.f32.mrb[0].mxu0
  %509 = vmatprep.mubr.bf16.mxu0 0
  %510 = vmatmul.mubr.bf16.gmra.mrb[0].mxu0 %v356
  %v511 = vpop.f32.mrb[0].mxu0
  %v512 = vadd.f32 0.0, %v511
  %v513 = vpop.f32.mrb[0].mxu0
  %v514 = vpop.f32.mrb[0].mxu0
  %v515 = vadd.f32 0.0, %v514
  %v516 = vpop.f32.mrb[0].mxu0
  %517 = vmatprep.mubr.bf16.mxu0 0
  %518 = vmatmul.mubr.bf16.gmra.mrb[0].mxu0 %v357
  %v519 = vpop.f32.mrb[0].mxu0
  %v520 = vadd.f32 0.0, %v519
  %v521 = vpop.f32.mrb[0].mxu0
  %v522 = vpop.f32.mrb[0].mxu0
  %v523 = vadd.f32 0.0, %v522
  %v524 = vpop.f32.mrb[0].mxu0
  %525 = vmatprep.mubr.bf16.mxu0 0
  %526 = vmatmul.mubr.bf16.gmra.mrb[0].mxu0 %v358
  %v527 = vpop.f32.mrb[0].mxu0
  %v528 = vadd.f32 0.0, %v527
  %v529 = vpop.f32.mrb[0].mxu0
  %v530 = vpop.f32.mrb[0].mxu0
  %v531 = vadd.f32 0.0, %v530
  %v532 = vpop.f32.mrb[0].mxu0
  %533 = vmatprep.mubr.bf16.mxu0 0
  %534 = vmatmul.mubr.bf16.gmra.mrb[0].mxu0 %v359
  %v535 = vpop.f32.mrb[0].mxu0
  %v536 = vadd.f32 0.0, %v535
  %v537 = vpop.f32.mrb[0].mxu0
  %v538 = vpop.f32.mrb[0].mxu0
  %v539 = vadd.f32 0.0, %v538
  %v540 = vpop.f32.mrb[0].mxu0
  %541 = vmatprep.mubr.bf16.mxu0 0
  %542 = vmatmul.mubr.bf16.gmra.mrb[0].mxu0 %v360
  %v543 = vpop.f32.mrb[0].mxu0
  %v544 = vadd.f32 0.0, %v543
  %v545 = vpop.f32.mrb[0].mxu0
  %v546 = vpop.f32.mrb[0].mxu0
  %v547 = vadd.f32 0.0, %v546
  %v548 = vpop.f32.mrb[0].mxu0
  %549 = vmatprep.mubr.bf16.mxu0 0
  %550 = vmatmul.mubr.bf16.gmra.mrb[0].mxu0 %v361
  %v551 = vpop.f32.mrb[0].mxu0
  %v552 = vadd.f32 0.0, %v551
  %v553 = vpop.f32.mrb[0].mxu0
  %v554 = vpop.f32.mrb[0].mxu0
  %v555 = vadd.f32 0.0, %v554
  %v556 = vpop.f32.mrb[0].mxu0
  %557 = vmatprep.mubr.bf16.mxu0 0
  %558 = vmatmul.mubr.bf16.gmra.mrb[0].mxu0 %v362
  %v559 = vpop.f32.mrb[0].mxu0
  %v560 = vadd.f32 0.0, %v559
  %v561 = vpop.f32.mrb[0].mxu0
  %v562 = vpop.f32.mrb[0].mxu0
  %v563 = vadd.f32 0.0, %v562
  %v564 = vpop.f32.mrb[0].mxu0
  %565 = vmatprep.mubr.bf16.mxu0 0
  %566 = vmatmul.mubr.bf16.gmra.mrb[0].mxu0 %v363
  %v567 = vpop.f32.mrb[0].mxu0
  %v568 = vadd.f32 0.0, %v567
  %v569 = vpop.f32.mrb[0].mxu0
  %v570 = vpop.f32.mrb[0].mxu0
  %v571 = vadd.f32 0.0, %v570
  %v572 = vpop.f32.mrb[0].mxu0
  %573 = vmatprep.mubr.bf16.mxu0 0
  %574 = vmatmul.mubr.bf16.gmra.mrb[0].mxu0 %v364
  %v575 = vpop.f32.mrb[0].mxu0
  %v576 = vadd.f32 0.0, %v575
  %v577 = vpop.f32.mrb[0].mxu0
  %v578 = vpop.f32.mrb[0].mxu0
  %v579 = vadd.f32 0.0, %v578
  %v580 = vpop.f32.mrb[0].mxu0
  %581 = vmatprep.mubr.bf16.mxu0 0
  %582 = vmatmul.mubr.bf16.gmra.mrb[0].mxu0 %v365
  %v583 = vpop.f32.mrb[0].mxu0
  %v584 = vadd.f32 0.0, %v583
  %v585 = vpop.f32.mrb[0].mxu0
  %v586 = vpop.f32.mrb[0].mxu0
  %v587 = vadd.f32 0.0, %v586
  %v588 = vpop.f32.mrb[0].mxu0
  %589 = vmatprep.mubr.bf16.mxu0 0
  %590 = vmatmul.mubr.bf16.gmra.mrb[0].mxu0 %v366
  %v591 = vpop.f32.mrb[0].mxu0
  %v592 = vadd.f32 0.0, %v591
  %v593 = vpop.f32.mrb[0].mxu0
  %v594 = vpop.f32.mrb[0].mxu0
  %v595 = vadd.f32 0.0, %v594
  %v596 = vpop.f32.mrb[0].mxu0
  %597 = vmatprep.mubr.bf16.mxu0 0
  %598 = vmatmul.mubr.bf16.gmra.mrb[0].mxu0 %v367
  %v599 = vpop.f32.mrb[0].mxu0
  %v600 = vadd.f32 0.0, %v599
  %v601 = vpop.f32.mrb[0].mxu0
  %v602 = vpop.f32.mrb[0].mxu0
  %v603 = vadd.f32 0.0, %v602
  %v604 = vpop.f32.mrb[0].mxu0
  %605 = vmatprep.mubr.bf16.mxu0 0
  %606 = vmatmul.mubr.bf16.gmra.mrb[0].mxu0 %v368
  %v607 = vpop.f32.mrb[0].mxu0
  %v608 = vadd.f32 0.0, %v607
  %v609 = vpop.f32.mrb[0].mxu0
  %v610 = vpop.f32.mrb[0].mxu0
  %v611 = vadd.f32 0.0, %v610
  %v612 = vpop.f32.mrb[0].mxu0
  %613 = vmatprep.mubr.bf16.mxu0 0
  %614 = vmatmul.mubr.bf16.gmra.mrb[0].mxu0 %v369
  %v615 = vpop.f32.mrb[0].mxu0
  %v616 = vadd.f32 0.0, %v615
  %v617 = vpop.f32.mrb[0].mxu0
  %v618 = vpop.f32.mrb[0].mxu0
  %v619 = vadd.f32 0.0, %v618
  %v620 = vpop.f32.mrb[0].mxu0
  %621 = vmatprep.mubr.bf16.mxu0 0
  %622 = vmatmul.mubr.bf16.gmra.mrb[0].mxu0 %v370
  %v623 = vpop.f32.mrb[0].mxu0
  %v624 = vadd.f32 0.0, %v623
  %v625 = vpop.f32.mrb[0].mxu0
  %v626 = vpop.f32.mrb[0].mxu0
  %v627 = vadd.f32 0.0, %v626
  %v628 = vpop.f32.mrb[0].mxu0
  %629 = vmatprep.mubr.bf16.mxu0 0
  %630 = vmatmul.mubr.bf16.gmra.mrb[0].mxu0 %v371
  %v631 = vpop.f32.mrb[0].mxu0
  %v632 = vadd.f32 0.0, %v631
  %v633 = vpop.f32.mrb[0].mxu0
  %v634 = vpop.f32.mrb[0].mxu0
  %v635 = vadd.f32 0.0, %v634
  %v636 = vpop.f32.mrb[0].mxu0
  %637 = vmatprep.mubr.bf16.mxu0 0
  %638 = vmatmul.mubr.bf16.gmra.mrb[0].mxu0 %v372
  %v639 = vpop.f32.mrb[0].mxu0
  %v640 = vadd.f32 0.0, %v639
  %v641 = vpop.f32.mrb[0].mxu0
  %v642 = vpop.f32.mrb[0].mxu0
  %v643 = vadd.f32 0.0, %v642
  %v644 = vpop.f32.mrb[0].mxu0
  %645 = vmatprep.mubr.bf16.mxu0 0
  %646 = vmatmul.mubr.bf16.gmra.mrb[0].mxu0 %v373
  %v647 = vpop.f32.mrb[0].mxu0
  %v648 = vadd.f32 0.0, %v647
  %v649 = vpop.f32.mrb[0].mxu0
  %v650 = vpop.f32.mrb[0].mxu0
  %v651 = vadd.f32 0.0, %v650
  %v652 = vpop.f32.mrb[0].mxu0
  %653 = vmatprep.mubr.bf16.mxu0 0
  %654 = vmatmul.mubr.bf16.gmra.mrb[0].mxu0 %v374
  %v655 = vpop.f32.mrb[0].mxu0
  %v656 = vadd.f32 0.0, %v655
  %v657 = vpop.f32.mrb[0].mxu0
  %v658 = vpop.f32.mrb[0].mxu0
  %v659 = vadd.f32 0.0, %v658
  %v660 = vpop.f32.mrb[0].mxu0
  %661 = vmatprep.mubr.bf16.mxu0 0
  %662 = vmatmul.mubr.bf16.gmra.mrb[0].mxu0 %v375
  %v663 = vpop.f32.mrb[0].mxu0
  %v664 = vadd.f32 0.0, %v663
  %v665 = vpop.f32.mrb[0].mxu0
  %v666 = vpop.f32.mrb[0].mxu0
  %v667 = vadd.f32 0.0, %v666
  %v668 = vpop.f32.mrb[0].mxu0
  %669 = vmatprep.mubr.bf16.mxu0 0
  %670 = vmatmul.mubr.bf16.gmra.mrb[0].mxu0 %v376
  %v671 = vpop.f32.mrb[0].mxu0
  %v672 = vadd.f32 0.0, %v671
  %v673 = vpop.f32.mrb[0].mxu0
  %v674 = vpop.f32.mrb[0].mxu0
  %v675 = vadd.f32 0.0, %v674
  %v676 = vpop.f32.mrb[0].mxu0
  %677 = vmatprep.mubr.bf16.mxu0 0
  %678 = vmatmul.mubr.bf16.gmra.mrb[0].mxu0 %v377
  %v679 = vpop.f32.mrb[0].mxu0
  %v680 = vadd.f32 0.0, %v679
  %v681 = vpop.f32.mrb[0].mxu0
  %v682 = vpop.f32.mrb[0].mxu0
  %v683 = vadd.f32 0.0, %v682
  %v684 = vpop.f32.mrb[0].mxu0
  %685 = vmatprep.mubr.bf16.mxu0 0
  %686 = vmatmul.mubr.bf16.gmra.mrb[0].mxu0 %v378
  %v687 = vpop.f32.mrb[0].mxu0
  %v688 = vadd.f32 0.0, %v687
  %v689 = vpop.f32.mrb[0].mxu0
  %v690 = vpop.f32.mrb[0].mxu0
  %v691 = vadd.f32 0.0, %v690
  %v692 = vpop.f32.mrb[0].mxu0
  %693 = vdwg.mxu0
  %v694 = vmax.f32 %v488, %v592
  %v695 = vmax.f32 %v491, %v595
  %v696 = vmax.f32 %v496, %v600
  %v697 = vmax.f32 %v499, %v603
  %v698 = vmax.f32 %v504, %v608
  %v699 = vmax.f32 %v507, %v611
  %v700 = vmax.f32 %v512, %v616
  %v701 = vmax.f32 %v515, %v619
  %v702 = vmax.f32 %v520, %v624
  %v703 = vmax.f32 %v523, %v627
  %v704 = vmax.f32 %v528, %v632
  %v705 = vmax.f32 %v531, %v635
  %v706 = vmax.f32 %v536, %v640
  %v707 = vmax.f32 %v539, %v643
  %v708 = vmax.f32 %v544, %v648
  %v709 = vmax.f32 %v547, %v651
  %v710 = vmax.f32 %v552, %v656
  %v711 = vmax.f32 %v555, %v659
  %v712 = vmax.f32 %v560, %v664
  %v713 = vmax.f32 %v563, %v667
  %v714 = vmax.f32 %v568, %v672
  %v715 = vmax.f32 %v571, %v675
  %v716 = vmax.f32 %v576, %v680
  %v717 = vmax.f32 %v579, %v683
  %v718 = vmax.f32 %v584, %v688
  %v719 = vmax.f32 %v587, %v691
  %v720 = vmax.f32 %v694, %v695
  %v721 = vmax.f32 %v696, %v697
  %v722 = vmax.f32 %v698, %v699
  %v723 = vmax.f32 %v700, %v701
  %v724 = vmax.f32 %v702, %v703
  %v725 = vmax.f32 %v704, %v705
  %v726 = vmax.f32 %v706, %v707
  %v727 = vmax.f32 %v708, %v709
  %v728 = vmax.f32 %v710, %v711
  %v729 = vmax.f32 %v712, %v713
  %v730 = vmax.f32 %v714, %v715
  %v731 = vmax.f32 %v716, %v717
  %v732 = vmax.f32 %v718, %v719
  %v733 = vadd.f32 %v720, %v141
  %v734 = vadd.f32 %v721, %v146
  %v735 = vadd.f32 %v722, %v151
  %v736 = vadd.f32 %v723, %v156
  %v737 = vadd.f32 %v724, %v161
  %v738 = vadd.f32 %v725, %v166
  %v739 = vadd.f32 %v726, %v171
  %v740 = vadd.f32 %v727, %v176
  %v741 = vadd.f32 %v728, %v181
  %v742 = vadd.f32 %v729, %v186
  %v743 = vadd.f32 %v730, %v191
  %v744 = vadd.f32 %v731, %v196
  %v745 = vadd.f32 %v732, %v201
  %v746 = vmax.f32 %v733, 0.0
  %v747 = vmax.f32 %v734, 0.0
  %v748 = vmax.f32 %v735, 0.0
  %v749 = vmax.f32 %v736, 0.0
  %v750 = vmax.f32 %v737, 0.0
  %v751 = vmax.f32 %v738, 0.0
  %v752 = vmax.f32 %v739, 0.0
  %v753 = vmax.f32 %v740, 0.0
  %v754 = vmax.f32 %v741, 0.0
  %v755 = vmax.f32 %v742, 0.0
  %v756 = vmax.f32 %v743, 0.0
  %v757 = vmax.f32 %v744, 0.0
  %v758 = vmax.f32 %v745, 0.0
  %v759 = vpack.c.bf16 %v747, %v746
  %v760 = vpack.c.bf16 %v749, %v748
  %v761 = vpack.c.bf16 %v751, %v750
  %v762 = vpack.c.bf16 %v753, %v752
  %v763 = vpack.c.bf16 %v755, %v754
  %v764 = vpack.c.bf16 %v757, %v756
  %v765 = vpack.c.bf16 %v758, %v758
  %v773 = vunpack.c.l.b16 %v759
  %v774 = vunpack.c.h.b16 %v759
  %v775 = vunpack.c.l.b16 %v760
  %v776 = vunpack.c.h.b16 %v760
  %v777 = vunpack.c.l.b16 %v761
  %v778 = vunpack.c.h.b16 %v761
  %v779 = vunpack.c.l.b16 %v762
  %v780 = vunpack.c.h.b16 %v762
  %v781 = vunpack.c.l.b16 %v763
  %v782 = vunpack.c.h.b16 %v763
  %v783 = vunpack.c.l.b16 %v764
  %v784 = vunpack.c.h.b16 %v764
  %v785 = vunpack.c.l.b16 %v765
  %v786 = vpack.c.b16 %v773, %v773
  %v787 = vpack.c.b16 %v774, %v774
  %v788 = vpack.c.b16 %v775, %v775
  %v789 = vpack.c.b16 %v776, %v776
  %v790 = vpack.c.b16 %v777, %v777
  %v791 = vpack.c.b16 %v778, %v778
  %v792 = vpack.c.b16 %v779, %v779
  %v793 = vpack.c.b16 %v780, %v780
  %v794 = vpack.c.b16 %v781, %v781
  %v795 = vpack.c.b16 %v782, %v782
  %v796 = vpack.c.b16 %v783, %v783
  %v797 = vpack.c.b16 %v784, %v784
  %v798 = vpack.c.b16 %v785, %v785
  %812 = vst [vmem:[#allocation2] sm:$0xf] %v786
  %813 = vst [vmem:[#allocation2 + $0x4] sm:$0xf] %v787
  %814 = vst [vmem:[#allocation2 + $0x8] sm:$0xf] %v788
  %815 = vst [vmem:[#allocation2 + $0xc] sm:$0xf] %v789
  %816 = vst [vmem:[#allocation2 + $0x10] sm:$0xf] %v790
  %817 = vst [vmem:[#allocation2 + $0x14] sm:$0xf] %v791
  %818 = vst [vmem:[#allocation2 + $0x18] sm:$0xf] %v792
  %819 = vst [vmem:[#allocation2 + $0x1c] sm:$0xf] %v793
  %820 = vst [vmem:[#allocation2 + $0x20] sm:$0xf] %v794
  %821 = vst [vmem:[#allocation2 + $0x24] sm:$0xf] %v795
  %822 = vst [vmem:[#allocation2 + $0x28] sm:$0xf] %v796
  %823 = vst [vmem:[#allocation2 + $0x2c] sm:$0xf] %v797
  %824 = vst [vmem:[#allocation2 + $0x30] sm:$0xf] %v798
  %v825 = vld [vmem:[%s0 + $0x20] sm:$0xf]
  %v826 = vld [vmem:[%s0 + $0x24] sm:$0xf]
  %v827 = vld [vmem:[%s0 + $0x28] sm:$0xf]
  %v828 = vld [vmem:[%s0 + $0x2c] sm:$0xf]
  %v829 = vld [vmem:[%s0 + $0x30] sm:$0xf]
  %v830 = vld [vmem:[%s0 + $0x34] sm:$0xf]
  %v831 = vld [vmem:[%s0 + $0x38] sm:$0xf]
  %v832 = vld [vmem:[%s0 + $0x3c] sm:$0xf]
  %v833 = vld [vmem:[%s0 + $0x40] sm:$0xf]
  %v834 = vld [vmem:[%s0 + $0x44] sm:$0xf]
  %v835 = vld [vmem:[%s0 + $0x48] sm:$0xf]
  %v836 = vld [vmem:[%s0 + $0x4c] sm:$0xf]
  %v837 = vld [vmem:[%s0 + $0x50] sm:$0xf]
  %v838 = vld [vmem:[%s0 + $0x54] sm:$0xf]
  %v839 = vld [vmem:[%s0 + $0x58] sm:$0xf]
  %v840 = vld [vmem:[%s0 + $0x5c] sm:$0xf]
  %v857 = vunpack.c.l.b16 %v825
  %v858 = vunpack.c.l.b16 %v826
  %v859 = vunpack.c.l.b16 %v827
  %v860 = vunpack.c.l.b16 %v828
  %v861 = vunpack.c.l.b16 %v829
  %v862 = vunpack.c.l.b16 %v830
  %v863 = vunpack.c.l.b16 %v831
  %v864 = vunpack.c.l.b16 %v832
  %v865 = vunpack.c.l.b16 %v833
  %v866 = vunpack.c.l.b16 %v834
  %v867 = vunpack.c.l.b16 %v835
  %v868 = vunpack.c.l.b16 %v836
  %v869 = vunpack.c.l.b16 %v837
  %v870 = vunpack.c.l.b16 %v838
  %v871 = vunpack.c.l.b16 %v839
  %v872 = vunpack.c.l.b16 %v840
  %v873 = vpack.c.b16 %v858, %v857
  %v874 = vpack.c.b16 %v860, %v859
  %v875 = vpack.c.b16 %v862, %v861
  %v876 = vpack.c.b16 %v864, %v863
  %v877 = vpack.c.b16 %v866, %v865
  %v878 = vpack.c.b16 %v868, %v867
  %v879 = vpack.c.b16 %v870, %v869
  %v880 = vpack.c.b16 %v872, %v871
  %889 = vmatprep.subr.bf16.mxu0 0
  %890 = vmatpush1.bf16.msra.mxu0 %v873
  %891 = vmatprep.subr.bf16.mxu0 0
  %892 = vmatpush1.bf16.msra.mxu0 %v874
  %893 = vmatprep.subr.bf16.mxu0 0
  %894 = vmatpush1.bf16.msra.mxu0 %v875
  %895 = vmatprep.subr.bf16.mxu0 0
  %896 = vmatpush1.bf16.msra.mxu0 %v876
  %897 = vmatprep.subr.bf16.mxu0 0
  %898 = vmatpush1.bf16.msra.mxu0 %v877
  %899 = vmatprep.subr.bf16.mxu0 0
  %900 = vmatpush1.bf16.msra.mxu0 %v878
  %901 = vmatprep.subr.bf16.mxu0 0
  %902 = vmatpush1.bf16.msra.mxu0 %v879
  %903 = vmatprep.subr.bf16.mxu0 0
  %904 = vmatpush1.bf16.msra.mxu0 %v880
  %905 = vmatprep.subr.bf16.mxu0 0
  %906 = vmatpush1.bf16.msra.mxu0 0
  %907 = vmatprep.subr.bf16.mxu0 0
  %908 = vmatpush1.bf16.msra.mxu0 0
  %909 = vmatprep.subr.bf16.mxu0 0
  %910 = vmatpush1.bf16.msra.mxu0 0
  %911 = vmatprep.subr.bf16.mxu0 0
  %912 = vmatpush1.bf16.msra.mxu0 0
  %913 = vmatprep.subr.bf16.mxu0 0
  %914 = vmatpush1.bf16.msra.mxu0 0
  %915 = vmatprep.subr.bf16.mxu0 0
  %916 = vmatpush1.bf16.msra.mxu0 0
  %917 = vmatprep.subr.bf16.mxu0 0
  %918 = vmatpush1.bf16.msra.mxu0 0
  %919 = vmatprep.subr.bf16.mxu0 0
  %920 = vmatpush1.bf16.msra.mxu0 0
  %921 = vmatprep.mubr.bf16.mxu0 0
  %922 = vmatmul.mubr.bf16.gmra.mrb[0].mxu0 %v353
  %v923 = vpop.f32.mrb[0].mxu0
  %v924 = vadd.f32 0.0, %v923
  %v925 = vpop.f32.mrb[0].mxu0
  %v926 = vpop.f32.mrb[0].mxu0
  %v927 = vadd.f32 0.0, %v926
  %v928 = vpop.f32.mrb[0].mxu0
  %929 = vmatprep.mubr.bf16.mxu0 0
  %930 = vmatmul.mubr.bf16.gmra.mrb[0].mxu0 %v354
  %v931 = vpop.f32.mrb[0].mxu0
  %v932 = vadd.f32 0.0, %v931
  %v933 = vpop.f32.mrb[0].mxu0
  %v934 = vpop.f32.mrb[0].mxu0
  %v935 = vadd.f32 0.0, %v934
  %v936 = vpop.f32.mrb[0].mxu0
  %937 = vmatprep.mubr.bf16.mxu0 0
  %938 = vmatmul.mubr.bf16.gmra.mrb[0].mxu0 %v355
  %v939 = vpop.f32.mrb[0].mxu0
  %v940 = vadd.f32 0.0, %v939
  %v941 = vpop.f32.mrb[0].mxu0
  %v942 = vpop.f32.mrb[0].mxu0
  %v943 = vadd.f32 0.0, %v942
  %v944 = vpop.f32.mrb[0].mxu0
  %945 = vmatprep.mubr.bf16.mxu0 0
  %946 = vmatmul.mubr.bf16.gmra.mrb[0].mxu0 %v356
  %v947 = vpop.f32.mrb[0].mxu0
  %v948 = vadd.f32 0.0, %v947
  %v949 = vpop.f32.mrb[0].mxu0
  %v950 = vpop.f32.mrb[0].mxu0
  %v951 = vadd.f32 0.0, %v950
  %v952 = vpop.f32.mrb[0].mxu0
  %953 = vmatprep.mubr.bf16.mxu0 0
  %954 = vmatmul.mubr.bf16.gmra.mrb[0].mxu0 %v357
  %v955 = vpop.f32.mrb[0].mxu0
  %v956 = vadd.f32 0.0, %v955
  %v957 = vpop.f32.mrb[0].mxu0
  %v958 = vpop.f32.mrb[0].mxu0
  %v959 = vadd.f32 0.0, %v958
  %v960 = vpop.f32.mrb[0].mxu0
  %961 = vmatprep.mubr.bf16.mxu0 0
  %962 = vmatmul.mubr.bf16.gmra.mrb[0].mxu0 %v358
  %v963 = vpop.f32.mrb[0].mxu0
  %v964 = vadd.f32 0.0, %v963
  %v965 = vpop.f32.mrb[0].mxu0
  %v966 = vpop.f32.mrb[0].mxu0
  %v967 = vadd.f32 0.0, %v966
  %v968 = vpop.f32.mrb[0].mxu0
  %969 = vmatprep.mubr.bf16.mxu0 0
  %970 = vmatmul.mubr.bf16.gmra.mrb[0].mxu0 %v359
  %v971 = vpop.f32.mrb[0].mxu0
  %v972 = vadd.f32 0.0, %v971
  %v973 = vpop.f32.mrb[0].mxu0
  %v974 = vpop.f32.mrb[0].mxu0
  %v975 = vadd.f32 0.0, %v974
  %v976 = vpop.f32.mrb[0].mxu0
  %977 = vmatprep.mubr.bf16.mxu0 0
  %978 = vmatmul.mubr.bf16.gmra.mrb[0].mxu0 %v360
  %v979 = vpop.f32.mrb[0].mxu0
  %v980 = vadd.f32 0.0, %v979
  %v981 = vpop.f32.mrb[0].mxu0
  %v982 = vpop.f32.mrb[0].mxu0
  %v983 = vadd.f32 0.0, %v982
  %v984 = vpop.f32.mrb[0].mxu0
  %985 = vmatprep.mubr.bf16.mxu0 0
  %986 = vmatmul.mubr.bf16.gmra.mrb[0].mxu0 %v361
  %v987 = vpop.f32.mrb[0].mxu0
  %v988 = vadd.f32 0.0, %v987
  %v989 = vpop.f32.mrb[0].mxu0
  %v990 = vpop.f32.mrb[0].mxu0
  %v991 = vadd.f32 0.0, %v990
  %v992 = vpop.f32.mrb[0].mxu0
  %993 = vmatprep.mubr.bf16.mxu0 0
  %994 = vmatmul.mubr.bf16.gmra.mrb[0].mxu0 %v362
  %v995 = vpop.f32.mrb[0].mxu0
  %v996 = vadd.f32 0.0, %v995
  %v997 = vpop.f32.mrb[0].mxu0
  %v998 = vpop.f32.mrb[0].mxu0
  %v999 = vadd.f32 0.0, %v998
  %v1000 = vpop.f32.mrb[0].mxu0
  %1001 = vmatprep.mubr.bf16.mxu0 0
  %1002 = vmatmul.mubr.bf16.gmra.mrb[0].mxu0 %v363
  %v1003 = vpop.f32.mrb[0].mxu0
  %v1004 = vadd.f32 0.0, %v1003
  %v1005 = vpop.f32.mrb[0].mxu0
  %v1006 = vpop.f32.mrb[0].mxu0
  %v1007 = vadd.f32 0.0, %v1006
  %v1008 = vpop.f32.mrb[0].mxu0
  %1009 = vmatprep.mubr.bf16.mxu0 0
  %1010 = vmatmul.mubr.bf16.gmra.mrb[0].mxu0 %v364
  %v1011 = vpop.f32.mrb[0].mxu0
  %v1012 = vadd.f32 0.0, %v1011
  %v1013 = vpop.f32.mrb[0].mxu0
  %v1014 = vpop.f32.mrb[0].mxu0
  %v1015 = vadd.f32 0.0, %v1014
  %v1016 = vpop.f32.mrb[0].mxu0
  %1017 = vmatprep.mubr.bf16.mxu0 0
  %1018 = vmatmul.mubr.bf16.gmra.mrb[0].mxu0 %v365
  %v1019 = vpop.f32.mrb[0].mxu0
  %v1020 = vadd.f32 0.0, %v1019
  %v1021 = vpop.f32.mrb[0].mxu0
  %v1022 = vpop.f32.mrb[0].mxu0
  %v1023 = vadd.f32 0.0, %v1022
  %v1024 = vpop.f32.mrb[0].mxu0
  %1025 = vmatprep.mubr.bf16.mxu0 0
  %1026 = vmatmul.mubr.bf16.gmra.mrb[0].mxu0 %v366
  %v1027 = vpop.f32.mrb[0].mxu0
  %v1028 = vadd.f32 0.0, %v1027
  %v1029 = vpop.f32.mrb[0].mxu0
  %v1030 = vpop.f32.mrb[0].mxu0
  %v1031 = vadd.f32 0.0, %v1030
  %v1032 = vpop.f32.mrb[0].mxu0
  %1033 = vmatprep.mubr.bf16.mxu0 0
  %1034 = vmatmul.mubr.bf16.gmra.mrb[0].mxu0 %v367
  %v1035 = vpop.f32.mrb[0].mxu0
  %v1036 = vadd.f32 0.0, %v1035
  %v1037 = vpop.f32.mrb[0].mxu0
  %v1038 = vpop.f32.mrb[0].mxu0
  %v1039 = vadd.f32 0.0, %v1038
  %v1040 = vpop.f32.mrb[0].mxu0
  %1041 = vmatprep.mubr.bf16.mxu0 0
  %1042 = vmatmul.mubr.bf16.gmra.mrb[0].mxu0 %v368
  %v1043 = vpop.f32.mrb[0].mxu0
  %v1044 = vadd.f32 0.0, %v1043
  %v1045 = vpop.f32.mrb[0].mxu0
  %v1046 = vpop.f32.mrb[0].mxu0
  %v1047 = vadd.f32 0.0, %v1046
  %v1048 = vpop.f32.mrb[0].mxu0
  %1049 = vmatprep.mubr.bf16.mxu0 0
  %1050 = vmatmul.mubr.bf16.gmra.mrb[0].mxu0 %v369
  %v1051 = vpop.f32.mrb[0].mxu0
  %v1052 = vadd.f32 0.0, %v1051
  %v1053 = vpop.f32.mrb[0].mxu0
  %v1054 = vpop.f32.mrb[0].mxu0
  %v1055 = vadd.f32 0.0, %v1054
  %v1056 = vpop.f32.mrb[0].mxu0
  %1057 = vmatprep.mubr.bf16.mxu0 0
  %1058 = vmatmul.mubr.bf16.gmra.mrb[0].mxu0 %v370
  %v1059 = vpop.f32.mrb[0].mxu0
  %v1060 = vadd.f32 0.0, %v1059
  %v1061 = vpop.f32.mrb[0].mxu0
  %v1062 = vpop.f32.mrb[0].mxu0
  %v1063 = vadd.f32 0.0, %v1062
  %v1064 = vpop.f32.mrb[0].mxu0
  %1065 = vmatprep.mubr.bf16.mxu0 0
  %1066 = vmatmul.mubr.bf16.gmra.mrb[0].mxu0 %v371
  %v1067 = vpop.f32.mrb[0].mxu0
  %v1068 = vadd.f32 0.0, %v1067
  %v1069 = vpop.f32.mrb[0].mxu0
  %v1070 = vpop.f32.mrb[0].mxu0
  %v1071 = vadd.f32 0.0, %v1070
  %v1072 = vpop.f32.mrb[0].mxu0
  %1073 = vmatprep.mubr.bf16.mxu0 0
  %1074 = vmatmul.mubr.bf16.gmra.mrb[0].mxu0 %v372
  %v1075 = vpop.f32.mrb[0].mxu0
  %v1076 = vadd.f32 0.0, %v1075
  %v1077 = vpop.f32.mrb[0].mxu0
  %v1078 = vpop.f32.mrb[0].mxu0
  %v1079 = vadd.f32 0.0, %v1078
  %v1080 = vpop.f32.mrb[0].mxu0
  %1081 = vmatprep.mubr.bf16.mxu0 0
  %1082 = vmatmul.mubr.bf16.gmra.mrb[0].mxu0 %v373
  %v1083 = vpop.f32.mrb[0].mxu0
  %v1084 = vadd.f32 0.0, %v1083
  %v1085 = vpop.f32.mrb[0].mxu0
  %v1086 = vpop.f32.mrb[0].mxu0
  %v1087 = vadd.f32 0.0, %v1086
  %v1088 = vpop.f32.mrb[0].mxu0
  %1089 = vmatprep.mubr.bf16.mxu0 0
  %1090 = vmatmul.mubr.bf16.gmra.mrb[0].mxu0 %v374
  %v1091 = vpop.f32.mrb[0].mxu0
  %v1092 = vadd.f32 0.0, %v1091
  %v1093 = vpop.f32.mrb[0].mxu0
  %v1094 = vpop.f32.mrb[0].mxu0
  %v1095 = vadd.f32 0.0, %v1094
  %v1096 = vpop.f32.mrb[0].mxu0
  %1097 = vmatprep.mubr.bf16.mxu0 0
  %1098 = vmatmul.mubr.bf16.gmra.mrb[0].mxu0 %v375
  %v1099 = vpop.f32.mrb[0].mxu0
  %v1100 = vadd.f32 0.0, %v1099
  %v1101 = vpop.f32.mrb[0].mxu0
  %v1102 = vpop.f32.mrb[0].mxu0
  %v1103 = vadd.f32 0.0, %v1102
  %v1104 = vpop.f32.mrb[0].mxu0
  %1105 = vmatprep.mubr.bf16.mxu0 0
  %1106 = vmatmul.mubr.bf16.gmra.mrb[0].mxu0 %v376
  %v1107 = vpop.f32.mrb[0].mxu0
  %v1108 = vadd.f32 0.0, %v1107
  %v1109 = vpop.f32.mrb[0].mxu0
  %v1110 = vpop.f32.mrb[0].mxu0
  %v1111 = vadd.f32 0.0, %v1110
  %v1112 = vpop.f32.mrb[0].mxu0
  %1113 = vmatprep.mubr.bf16.mxu0 0
  %1114 = vmatmul.mubr.bf16.gmra.mrb[0].mxu0 %v377
  %v1115 = vpop.f32.mrb[0].mxu0
  %v1116 = vadd.f32 0.0, %v1115
  %v1117 = vpop.f32.mrb[0].mxu0
  %v1118 = vpop.f32.mrb[0].mxu0
  %v1119 = vadd.f32 0.0, %v1118
  %v1120 = vpop.f32.mrb[0].mxu0
  %1121 = vmatprep.mubr.bf16.mxu0 0
  %1122 = vmatmul.mubr.bf16.gmra.mrb[0].mxu0 %v378
  %v1123 = vpop.f32.mrb[0].mxu0
  %v1124 = vadd.f32 0.0, %v1123
  %v1125 = vpop.f32.mrb[0].mxu0
  %v1126 = vpop.f32.mrb[0].mxu0
  %v1127 = vadd.f32 0.0, %v1126
  %v1128 = vpop.f32.mrb[0].mxu0
  %1129 = vdwg.mxu0
  %v1130 = vmax.f32 %v924, %v1028
  %v1131 = vmax.f32 %v927, %v1031
  %v1132 = vmax.f32 %v932, %v1036
  %v1133 = vmax.f32 %v935, %v1039
  %v1134 = vmax.f32 %v940, %v1044
  %v1135 = vmax.f32 %v943, %v1047
  %v1136 = vmax.f32 %v948, %v1052
  %v1137 = vmax.f32 %v951, %v1055
  %v1138 = vmax.f32 %v956, %v1060
  %v1139 = vmax.f32 %v959, %v1063
  %v1140 = vmax.f32 %v964, %v1068
  %v1141 = vmax.f32 %v967, %v1071
  %v1142 = vmax.f32 %v972, %v1076
  %v1143 = vmax.f32 %v975, %v1079
  %v1144 = vmax.f32 %v980, %v1084
  %v1145 = vmax.f32 %v983, %v1087
  %v1146 = vmax.f32 %v988, %v1092
  %v1147 = vmax.f32 %v991, %v1095
  %v1148 = vmax.f32 %v996, %v1100
  %v1149 = vmax.f32 %v999, %v1103
  %v1150 = vmax.f32 %v1004, %v1108
  %v1151 = vmax.f32 %v1007, %v1111
  %v1152 = vmax.f32 %v1012, %v1116
  %v1153 = vmax.f32 %v1015, %v1119
  %v1154 = vmax.f32 %v1020, %v1124
  %v1155 = vmax.f32 %v1023, %v1127
  %v1156 = vmax.f32 %v1130, %v1131
  %v1157 = vmax.f32 %v1132, %v1133
  %v1158 = vmax.f32 %v1134, %v1135
  %v1159 = vmax.f32 %v1136, %v1137
  %v1160 = vmax.f32 %v1138, %v1139
  %v1161 = vmax.f32 %v1140, %v1141
  %v1162 = vmax.f32 %v1142, %v1143
  %v1163 = vmax.f32 %v1144, %v1145
  %v1164 = vmax.f32 %v1146, %v1147
  %v1165 = vmax.f32 %v1148, %v1149
  %v1166 = vmax.f32 %v1150, %v1151
  %v1167 = vmax.f32 %v1152, %v1153
  %v1168 = vmax.f32 %v1154, %v1155
  %v1169 = vadd.f32 %v1156, %v141
  %v1170 = vadd.f32 %v1157, %v146
  %v1171 = vadd.f32 %v1158, %v151
  %v1172 = vadd.f32 %v1159, %v156
  %v1173 = vadd.f32 %v1160, %v161
  %v1174 = vadd.f32 %v1161, %v166
  %v1175 = vadd.f32 %v1162, %v171
  %v1176 = vadd.f32 %v1163, %v176
  %v1177 = vadd.f32 %v1164, %v181
  %v1178 = vadd.f32 %v1165, %v186
  %v1179 = vadd.f32 %v1166, %v191
  %v1180 = vadd.f32 %v1167, %v196
  %v1181 = vadd.f32 %v1168, %v201
  %v1182 = vmax.f32 %v1169, 0.0
  %v1183 = vmax.f32 %v1170, 0.0
  %v1184 = vmax.f32 %v1171, 0.0
  %v1185 = vmax.f32 %v1172, 0.0
  %v1186 = vmax.f32 %v1173, 0.0
  %v1187 = vmax.f32 %v1174, 0.0
  %v1188 = vmax.f32 %v1175, 0.0
  %v1189 = vmax.f32 %v1176, 0.0
  %v1190 = vmax.f32 %v1177, 0.0
  %v1191 = vmax.f32 %v1178, 0.0
  %v1192 = vmax.f32 %v1179, 0.0
  %v1193 = vmax.f32 %v1180, 0.0
  %v1194 = vmax.f32 %v1181, 0.0
  %v1195 = vpack.c.bf16 %v1183, %v1182
  %v1196 = vpack.c.bf16 %v1185, %v1184
  %v1197 = vpack.c.bf16 %v1187, %v1186
  %v1198 = vpack.c.bf16 %v1189, %v1188
  %v1199 = vpack.c.bf16 %v1191, %v1190
  %v1200 = vpack.c.bf16 %v1193, %v1192
  %v1201 = vpack.c.bf16 %v1194, %v1194
  %v1209 = vunpack.c.l.b16 %v1195
  %v1210 = vunpack.c.h.b16 %v1195
  %v1211 = vunpack.c.l.b16 %v1196
  %v1212 = vunpack.c.h.b16 %v1196
  %v1213 = vunpack.c.l.b16 %v1197
  %v1214 = vunpack.c.h.b16 %v1197
  %v1215 = vunpack.c.l.b16 %v1198
  %v1216 = vunpack.c.h.b16 %v1198
  %v1217 = vunpack.c.l.b16 %v1199
  %v1218 = vunpack.c.h.b16 %v1199
  %v1219 = vunpack.c.l.b16 %v1200
  %v1220 = vunpack.c.h.b16 %v1200
  %v1221 = vunpack.c.l.b16 %v1201
  %v1222 = vpack.c.b16 %v1209, %v1209
  %v1223 = vpack.c.b16 %v1210, %v1210
  %v1224 = vpack.c.b16 %v1211, %v1211
  %v1225 = vpack.c.b16 %v1212, %v1212
  %v1226 = vpack.c.b16 %v1213, %v1213
  %v1227 = vpack.c.b16 %v1214, %v1214
  %v1228 = vpack.c.b16 %v1215, %v1215
  %v1229 = vpack.c.b16 %v1216, %v1216
  %v1230 = vpack.c.b16 %v1217, %v1217
  %v1231 = vpack.c.b16 %v1218, %v1218
  %v1232 = vpack.c.b16 %v1219, %v1219
  %v1233 = vpack.c.b16 %v1220, %v1220
  %v1234 = vpack.c.b16 %v1221, %v1221
  %1248 = vst [vmem:[#allocation2 + $0x34] sm:$0xf] %v1222
  %1249 = vst [vmem:[#allocation2 + $0x38] sm:$0xf] %v1223
  %1250 = vst [vmem:[#allocation2 + $0x3c] sm:$0xf] %v1224
  %1251 = vst [vmem:[#allocation2 + $0x40] sm:$0xf] %v1225
  %1252 = vst [vmem:[#allocation2 + $0x44] sm:$0xf] %v1226
  %1253 = vst [vmem:[#allocation2 + $0x48] sm:$0xf] %v1227
  %1254 = vst [vmem:[#allocation2 + $0x4c] sm:$0xf] %v1228
  %1255 = vst [vmem:[#allocation2 + $0x50] sm:$0xf] %v1229
  %1256 = vst [vmem:[#allocation2 + $0x54] sm:$0xf] %v1230
  %1257 = vst [vmem:[#allocation2 + $0x58] sm:$0xf] %v1231
  %1258 = vst [vmem:[#allocation2 + $0x5c] sm:$0xf] %v1232
  %1259 = vst [vmem:[#allocation2 + $0x60] sm:$0xf] %v1233
  %1260 = vst [vmem:[#allocation2 + $0x64] sm:$0xf] %v1234
  %v1261 = vld [vmem:[%s0 + $0x40] sm:$0xf]
  %v1262 = vld [vmem:[%s0 + $0x44] sm:$0xf]
  %v1263 = vld [vmem:[%s0 + $0x48] sm:$0xf]
  %v1264 = vld [vmem:[%s0 + $0x4c] sm:$0xf]
  %v1265 = vld [vmem:[%s0 + $0x50] sm:$0xf]
  %v1266 = vld [vmem:[%s0 + $0x54] sm:$0xf]
  %v1267 = vld [vmem:[%s0 + $0x58] sm:$0xf]
  %v1268 = vld [vmem:[%s0 + $0x5c] sm:$0xf]
  %v1269 = vld [vmem:[%s0 + $0x60] sm:$0xf]
  %v1270 = vld [vmem:[%s0 + $0x64] sm:$0xf]
  %v1271 = vld [vmem:[%s0 + $0x68] sm:$0xf]
  %v1272 = vld [vmem:[%s0 + $0x6c] sm:$0xf]
  %v1273 = vld [vmem:[%s0 + $0x70] sm:$0xf]
  %v1274 = vld [vmem:[%s0 + $0x74] sm:$0xf]
  %v1275 = vld [vmem:[%s0 + $0x78] sm:$0xf]
  %v1276 = vld [vmem:[%s0 + $0x7c] sm:$0xf]
  %v1293 = vunpack.c.l.b16 %v1261
  %v1294 = vunpack.c.l.b16 %v1262
  %v1295 = vunpack.c.l.b16 %v1263
  %v1296 = vunpack.c.l.b16 %v1264
  %v1297 = vunpack.c.l.b16 %v1265
  %v1298 = vunpack.c.l.b16 %v1266
  %v1299 = vunpack.c.l.b16 %v1267
  %v1300 = vunpack.c.l.b16 %v1268
  %v1301 = vunpack.c.l.b16 %v1269
  %v1302 = vunpack.c.l.b16 %v1270
  %v1303 = vunpack.c.l.b16 %v1271
  %v1304 = vunpack.c.l.b16 %v1272
  %v1305 = vunpack.c.l.b16 %v1273
  %v1306 = vunpack.c.l.b16 %v1274
  %v1307 = vunpack.c.l.b16 %v1275
  %v1308 = vunpack.c.l.b16 %v1276
  %v1309 = vpack.c.b16 %v1294, %v1293
  %v1310 = vpack.c.b16 %v1296, %v1295
  %v1311 = vpack.c.b16 %v1298, %v1297
  %v1312 = vpack.c.b16 %v1300, %v1299
  %v1313 = vpack.c.b16 %v1302, %v1301
  %v1314 = vpack.c.b16 %v1304, %v1303
  %v1315 = vpack.c.b16 %v1306, %v1305
  %v1316 = vpack.c.b16 %v1308, %v1307
  %1325 = vmatprep.subr.bf16.mxu0 0
  %1326 = vmatpush1.bf16.msra.mxu0 %v1309
  %1327 = vmatprep.subr.bf16.mxu0 0
  %1328 = vmatpush1.bf16.msra.mxu0 %v1310
  %1329 = vmatprep.subr.bf16.mxu0 0
  %1330 = vmatpush1.bf16.msra.mxu0 %v1311
  %1331 = vmatprep.subr.bf16.mxu0 0
  %1332 = vmatpush1.bf16.msra.mxu0 %v1312
  %1333 = vmatprep.subr.bf16.mxu0 0
  %1334 = vmatpush1.bf16.msra.mxu0 %v1313
  %1335 = vmatprep.subr.bf16.mxu0 0
  %1336 = vmatpush1.bf16.msra.mxu0 %v1314
  %1337 = vmatprep.subr.bf16.mxu0 0
  %1338 = vmatpush1.bf16.msra.mxu0 %v1315
  %1339 = vmatprep.subr.bf16.mxu0 0
  %1340 = vmatpush1.bf16.msra.mxu0 %v1316
  %1341 = vmatprep.subr.bf16.mxu0 0
  %1342 = vmatpush1.bf16.msra.mxu0 0
  %1343 = vmatprep.subr.bf16.mxu0 0
  %1344 = vmatpush1.bf16.msra.mxu0 0
  %1345 = vmatprep.subr.bf16.mxu0 0
  %1346 = vmatpush1.bf16.msra.mxu0 0
  %1347 = vmatprep.subr.bf16.mxu0 0
  %1348 = vmatpush1.bf16.msra.mxu0 0
  %1349 = vmatprep.subr.bf16.mxu0 0
  %1350 = vmatpush1.bf16.msra.mxu0 0
  %1351 = vmatprep.subr.bf16.mxu0 0
  %1352 = vmatpush1.bf16.msra.mxu0 0
  %1353 = vmatprep.subr.bf16.mxu0 0
  %1354 = vmatpush1.bf16.msra.mxu0 0
  %1355 = vmatprep.subr.bf16.mxu0 0
  %1356 = vmatpush1.bf16.msra.mxu0 0
  %1357 = vmatprep.mubr.bf16.mxu0 0
  %1358 = vmatmul.mubr.bf16.gmra.mrb[0].mxu0 %v353
  %v1359 = vpop.f32.mrb[0].mxu0
  %v1360 = vadd.f32 0.0, %v1359
  %v1361 = vpop.f32.mrb[0].mxu0
  %v1362 = vpop.f32.mrb[0].mxu0
  %v1363 = vadd.f32 0.0, %v1362
  %v1364 = vpop.f32.mrb[0].mxu0
  %1365 = vmatprep.mubr.bf16.mxu0 0
  %1366 = vmatmul.mubr.bf16.gmra.mrb[0].mxu0 %v354
  %v1367 = vpop.f32.mrb[0].mxu0
  %v1368 = vadd.f32 0.0, %v1367
  %v1369 = vpop.f32.mrb[0].mxu0
  %v1370 = vpop.f32.mrb[0].mxu0
  %v1371 = vadd.f32 0.0, %v1370
  %v1372 = vpop.f32.mrb[0].mxu0
  %1373 = vmatprep.mubr.bf16.mxu0 0
  %1374 = vmatmul.mubr.bf16.gmra.mrb[0].mxu0 %v355
  %v1375 = vpop.f32.mrb[0].mxu0
  %v1376 = vadd.f32 0.0, %v1375
  %v1377 = vpop.f32.mrb[0].mxu0
  %v1378 = vpop.f32.mrb[0].mxu0
  %v1379 = vadd.f32 0.0, %v1378
  %v1380 = vpop.f32.mrb[0].mxu0
  %1381 = vmatprep.mubr.bf16.mxu0 0
  %1382 = vmatmul.mubr.bf16.gmra.mrb[0].mxu0 %v356
  %v1383 = vpop.f32.mrb[0].mxu0
  %v1384 = vadd.f32 0.0, %v1383
  %v1385 = vpop.f32.mrb[0].mxu0
  %v1386 = vpop.f32.mrb[0].mxu0
  %v1387 = vadd.f32 0.0, %v1386
  %v1388 = vpop.f32.mrb[0].mxu0
  %1389 = vmatprep.mubr.bf16.mxu0 0
  %1390 = vmatmul.mubr.bf16.gmra.mrb[0].mxu0 %v357
  %v1391 = vpop.f32.mrb[0].mxu0
  %v1392 = vadd.f32 0.0, %v1391
  %v1393 = vpop.f32.mrb[0].mxu0
  %v1394 = vpop.f32.mrb[0].mxu0
  %v1395 = vadd.f32 0.0, %v1394
  %v1396 = vpop.f32.mrb[0].mxu0
  %1397 = vmatprep.mubr.bf16.mxu0 0
  %1398 = vmatmul.mubr.bf16.gmra.mrb[0].mxu0 %v358
  %v1399 = vpop.f32.mrb[0].mxu0
  %v1400 = vadd.f32 0.0, %v1399
  %v1401 = vpop.f32.mrb[0].mxu0
  %v1402 = vpop.f32.mrb[0].mxu0
  %v1403 = vadd.f32 0.0, %v1402
  %v1404 = vpop.f32.mrb[0].mxu0
  %1405 = vmatprep.mubr.bf16.mxu0 0
  %1406 = vmatmul.mubr.bf16.gmra.mrb[0].mxu0 %v359
  %v1407 = vpop.f32.mrb[0].mxu0
  %v1408 = vadd.f32 0.0, %v1407
  %v1409 = vpop.f32.mrb[0].mxu0
  %v1410 = vpop.f32.mrb[0].mxu0
  %v1411 = vadd.f32 0.0, %v1410
  %v1412 = vpop.f32.mrb[0].mxu0
  %1413 = vmatprep.mubr.bf16.mxu0 0
  %1414 = vmatmul.mubr.bf16.gmra.mrb[0].mxu0 %v360
  %v1415 = vpop.f32.mrb[0].mxu0
  %v1416 = vadd.f32 0.0, %v1415
  %v1417 = vpop.f32.mrb[0].mxu0
  %v1418 = vpop.f32.mrb[0].mxu0
  %v1419 = vadd.f32 0.0, %v1418
  %v1420 = vpop.f32.mrb[0].mxu0
  %1421 = vmatprep.mubr.bf16.mxu0 0
  %1422 = vmatmul.mubr.bf16.gmra.mrb[0].mxu0 %v361
  %v1423 = vpop.f32.mrb[0].mxu0
  %v1424 = vadd.f32 0.0, %v1423
  %v1425 = vpop.f32.mrb[0].mxu0
  %v1426 = vpop.f32.mrb[0].mxu0
  %v1427 = vadd.f32 0.0, %v1426
  %v1428 = vpop.f32.mrb[0].mxu0
  %1429 = vmatprep.mubr.bf16.mxu0 0
  %1430 = vmatmul.mubr.bf16.gmra.mrb[0].mxu0 %v362
  %v1431 = vpop.f32.mrb[0].mxu0
  %v1432 = vadd.f32 0.0, %v1431
  %v1433 = vpop.f32.mrb[0].mxu0
  %v1434 = vpop.f32.mrb[0].mxu0
  %v1435 = vadd.f32 0.0, %v1434
  %v1436 = vpop.f32.mrb[0].mxu0
  %1437 = vmatprep.mubr.bf16.mxu0 0
  %1438 = vmatmul.mubr.bf16.gmra.mrb[0].mxu0 %v363
  %v1439 = vpop.f32.mrb[0].mxu0
  %v1440 = vadd.f32 0.0, %v1439
  %v1441 = vpop.f32.mrb[0].mxu0
  %v1442 = vpop.f32.mrb[0].mxu0
  %v1443 = vadd.f32 0.0, %v1442
  %v1444 = vpop.f32.mrb[0].mxu0
  %1445 = vmatprep.mubr.bf16.mxu0 0
  %1446 = vmatmul.mubr.bf16.gmra.mrb[0].mxu0 %v364
  %v1447 = vpop.f32.mrb[0].mxu0
  %v1448 = vadd.f32 0.0, %v1447
  %v1449 = vpop.f32.mrb[0].mxu0
  %v1450 = vpop.f32.mrb[0].mxu0
  %v1451 = vadd.f32 0.0, %v1450
  %v1452 = vpop.f32.mrb[0].mxu0
  %1453 = vmatprep.mubr.bf16.mxu0 0
  %1454 = vmatmul.mubr.bf16.gmra.mrb[0].mxu0 %v365
  %v1455 = vpop.f32.mrb[0].mxu0
  %v1456 = vadd.f32 0.0, %v1455
  %v1457 = vpop.f32.mrb[0].mxu0
  %v1458 = vpop.f32.mrb[0].mxu0
  %v1459 = vadd.f32 0.0, %v1458
  %v1460 = vpop.f32.mrb[0].mxu0
  %1461 = vmatprep.mubr.bf16.mxu0 0
  %1462 = vmatmul.mubr.bf16.gmra.mrb[0].mxu0 %v366
  %v1463 = vpop.f32.mrb[0].mxu0
  %v1464 = vadd.f32 0.0, %v1463
  %v1465 = vpop.f32.mrb[0].mxu0
  %v1466 = vpop.f32.mrb[0].mxu0
  %v1467 = vadd.f32 0.0, %v1466
  %v1468 = vpop.f32.mrb[0].mxu0
  %1469 = vmatprep.mubr.bf16.mxu0 0
  %1470 = vmatmul.mubr.bf16.gmra.mrb[0].mxu0 %v367
  %v1471 = vpop.f32.mrb[0].mxu0
  %v1472 = vadd.f32 0.0, %v1471
  %v1473 = vpop.f32.mrb[0].mxu0
  %v1474 = vpop.f32.mrb[0].mxu0
  %v1475 = vadd.f32 0.0, %v1474
  %v1476 = vpop.f32.mrb[0].mxu0
  %1477 = vmatprep.mubr.bf16.mxu0 0
  %1478 = vmatmul.mubr.bf16.gmra.mrb[0].mxu0 %v368
  %v1479 = vpop.f32.mrb[0].mxu0
  %v1480 = vadd.f32 0.0, %v1479
  %v1481 = vpop.f32.mrb[0].mxu0
  %v1482 = vpop.f32.mrb[0].mxu0
  %v1483 = vadd.f32 0.0, %v1482
  %v1484 = vpop.f32.mrb[0].mxu0
  %1485 = vmatprep.mubr.bf16.mxu0 0
  %1486 = vmatmul.mubr.bf16.gmra.mrb[0].mxu0 %v369
  %v1487 = vpop.f32.mrb[0].mxu0
  %v1488 = vadd.f32 0.0, %v1487
  %v1489 = vpop.f32.mrb[0].mxu0
  %v1490 = vpop.f32.mrb[0].mxu0
  %v1491 = vadd.f32 0.0, %v1490
  %v1492 = vpop.f32.mrb[0].mxu0
  %1493 = vmatprep.mubr.bf16.mxu0 0
  %1494 = vmatmul.mubr.bf16.gmra.mrb[0].mxu0 %v370
  %v1495 = vpop.f32.mrb[0].mxu0
  %v1496 = vadd.f32 0.0, %v1495
  %v1497 = vpop.f32.mrb[0].mxu0
  %v1498 = vpop.f32.mrb[0].mxu0
  %v1499 = vadd.f32 0.0, %v1498
  %v1500 = vpop.f32.mrb[0].mxu0
  %1501 = vmatprep.mubr.bf16.mxu0 0
  %1502 = vmatmul.mubr.bf16.gmra.mrb[0].mxu0 %v371
  %v1503 = vpop.f32.mrb[0].mxu0
  %v1504 = vadd.f32 0.0, %v1503
  %v1505 = vpop.f32.mrb[0].mxu0
  %v1506 = vpop.f32.mrb[0].mxu0
  %v1507 = vadd.f32 0.0, %v1506
  %v1508 = vpop.f32.mrb[0].mxu0
  %1509 = vmatprep.mubr.bf16.mxu0 0
  %1510 = vmatmul.mubr.bf16.gmra.mrb[0].mxu0 %v372
  %v1511 = vpop.f32.mrb[0].mxu0
  %v1512 = vadd.f32 0.0, %v1511
  %v1513 = vpop.f32.mrb[0].mxu0
  %v1514 = vpop.f32.mrb[0].mxu0
  %v1515 = vadd.f32 0.0, %v1514
  %v1516 = vpop.f32.mrb[0].mxu0
  %1517 = vmatprep.mubr.bf16.mxu0 0
  %1518 = vmatmul.mubr.bf16.gmra.mrb[0].mxu0 %v373
  %v1519 = vpop.f32.mrb[0].mxu0
  %v1520 = vadd.f32 0.0, %v1519
  %v1521 = vpop.f32.mrb[0].mxu0
  %v1522 = vpop.f32.mrb[0].mxu0
  %v1523 = vadd.f32 0.0, %v1522
  %v1524 = vpop.f32.mrb[0].mxu0
  %1525 = vmatprep.mubr.bf16.mxu0 0
  %1526 = vmatmul.mubr.bf16.gmra.mrb[0].mxu0 %v374
  %v1527 = vpop.f32.mrb[0].mxu0
  %v1528 = vadd.f32 0.0, %v1527
  %v1529 = vpop.f32.mrb[0].mxu0
  %v1530 = vpop.f32.mrb[0].mxu0
  %v1531 = vadd.f32 0.0, %v1530
  %v1532 = vpop.f32.mrb[0].mxu0
  %1533 = vmatprep.mubr.bf16.mxu0 0
  %1534 = vmatmul.mubr.bf16.gmra.mrb[0].mxu0 %v375
  %v1535 = vpop.f32.mrb[0].mxu0
  %v1536 = vadd.f32 0.0, %v1535
  %v1537 = vpop.f32.mrb[0].mxu0
  %v1538 = vpop.f32.mrb[0].mxu0
  %v1539 = vadd.f32 0.0, %v1538
  %v1540 = vpop.f32.mrb[0].mxu0
  %1541 = vmatprep.mubr.bf16.mxu0 0
  %1542 = vmatmul.mubr.bf16.gmra.mrb[0].mxu0 %v376
  %v1543 = vpop.f32.mrb[0].mxu0
  %v1544 = vadd.f32 0.0, %v1543
  %v1545 = vpop.f32.mrb[0].mxu0
  %v1546 = vpop.f32.mrb[0].mxu0
  %v1547 = vadd.f32 0.0, %v1546
  %v1548 = vpop.f32.mrb[0].mxu0
  %1549 = vmatprep.mubr.bf16.mxu0 0
  %1550 = vmatmul.mubr.bf16.gmra.mrb[0].mxu0 %v377
  %v1551 = vpop.f32.mrb[0].mxu0
  %v1552 = vadd.f32 0.0, %v1551
  %v1553 = vpop.f32.mrb[0].mxu0
  %v1554 = vpop.f32.mrb[0].mxu0
  %v1555 = vadd.f32 0.0, %v1554
  %v1556 = vpop.f32.mrb[0].mxu0
  %1557 = vmatprep.mubr.bf16.mxu0 0
  %1558 = vmatmul.mubr.bf16.gmra.mrb[0].mxu0 %v378
  %v1559 = vpop.f32.mrb[0].mxu0
  %v1560 = vadd.f32 0.0, %v1559
  %v1561 = vpop.f32.mrb[0].mxu0
  %v1562 = vpop.f32.mrb[0].mxu0
  %v1563 = vadd.f32 0.0, %v1562
  %v1564 = vpop.f32.mrb[0].mxu0
  %1565 = vdwg.mxu0
  %v1566 = vmax.f32 %v1360, %v1464
  %v1567 = vmax.f32 %v1363, %v1467
  %v1568 = vmax.f32 %v1368, %v1472
  %v1569 = vmax.f32 %v1371, %v1475
  %v1570 = vmax.f32 %v1376, %v1480
  %v1571 = vmax.f32 %v1379, %v1483
  %v1572 = vmax.f32 %v1384, %v1488
  %v1573 = vmax.f32 %v1387, %v1491
  %v1574 = vmax.f32 %v1392, %v1496
  %v1575 = vmax.f32 %v1395, %v1499
  %v1576 = vmax.f32 %v1400, %v1504
  %v1577 = vmax.f32 %v1403, %v1507
  %v1578 = vmax.f32 %v1408, %v1512
  %v1579 = vmax.f32 %v1411, %v1515
  %v1580 = vmax.f32 %v1416, %v1520
  %v1581 = vmax.f32 %v1419, %v1523
  %v1582 = vmax.f32 %v1424, %v1528
  %v1583 = vmax.f32 %v1427, %v1531
  %v1584 = vmax.f32 %v1432, %v1536
  %v1585 = vmax.f32 %v1435, %v1539
  %v1586 = vmax.f32 %v1440, %v1544
  %v1587 = vmax.f32 %v1443, %v1547
  %v1588 = vmax.f32 %v1448, %v1552
  %v1589 = vmax.f32 %v1451, %v1555
  %v1590 = vmax.f32 %v1456, %v1560
  %v1591 = vmax.f32 %v1459, %v1563
  %v1592 = vmax.f32 %v1566, %v1567
  %v1593 = vmax.f32 %v1568, %v1569
  %v1594 = vmax.f32 %v1570, %v1571
  %v1595 = vmax.f32 %v1572, %v1573
  %v1596 = vmax.f32 %v1574, %v1575
  %v1597 = vmax.f32 %v1576, %v1577
  %v1598 = vmax.f32 %v1578, %v1579
  %v1599 = vmax.f32 %v1580, %v1581
  %v1600 = vmax.f32 %v1582, %v1583
  %v1601 = vmax.f32 %v1584, %v1585
  %v1602 = vmax.f32 %v1586, %v1587
  %v1603 = vmax.f32 %v1588, %v1589
  %v1604 = vmax.f32 %v1590, %v1591
  %v1605 = vadd.f32 %v1592, %v141
  %v1606 = vadd.f32 %v1593, %v146
  %v1607 = vadd.f32 %v1594, %v151
  %v1608 = vadd.f32 %v1595, %v156
  %v1609 = vadd.f32 %v1596, %v161
  %v1610 = vadd.f32 %v1597, %v166
  %v1611 = vadd.f32 %v1598, %v171
  %v1612 = vadd.f32 %v1599, %v176
  %v1613 = vadd.f32 %v1600, %v181
  %v1614 = vadd.f32 %v1601, %v186
  %v1615 = vadd.f32 %v1602, %v191
  %v1616 = vadd.f32 %v1603, %v196
  %v1617 = vadd.f32 %v1604, %v201
  %v1618 = vmax.f32 %v1605, 0.0
  %v1619 = vmax.f32 %v1606, 0.0
  %v1620 = vmax.f32 %v1607, 0.0
  %v1621 = vmax.f32 %v1608, 0.0
  %v1622 = vmax.f32 %v1609, 0.0
  %v1623 = vmax.f32 %v1610, 0.0
  %v1624 = vmax.f32 %v1611, 0.0
  %v1625 = vmax.f32 %v1612, 0.0
  %v1626 = vmax.f32 %v1613, 0.0
  %v1627 = vmax.f32 %v1614, 0.0
  %v1628 = vmax.f32 %v1615, 0.0
  %v1629 = vmax.f32 %v1616, 0.0
  %v1630 = vmax.f32 %v1617, 0.0
  %v1631 = vpack.c.bf16 %v1619, %v1618
  %v1632 = vpack.c.bf16 %v1621, %v1620
  %v1633 = vpack.c.bf16 %v1623, %v1622
  %v1634 = vpack.c.bf16 %v1625, %v1624
  %v1635 = vpack.c.bf16 %v1627, %v1626
  %v1636 = vpack.c.bf16 %v1629, %v1628
  %v1637 = vpack.c.bf16 %v1630, %v1630
  %v1645 = vunpack.c.l.b16 %v1631
  %v1646 = vunpack.c.h.b16 %v1631
  %v1647 = vunpack.c.l.b16 %v1632
  %v1648 = vunpack.c.h.b16 %v1632
  %v1649 = vunpack.c.l.b16 %v1633
  %v1650 = vunpack.c.h.b16 %v1633
  %v1651 = vunpack.c.l.b16 %v1634
  %v1652 = vunpack.c.h.b16 %v1634
  %v1653 = vunpack.c.l.b16 %v1635
  %v1654 = vunpack.c.h.b16 %v1635
  %v1655 = vunpack.c.l.b16 %v1636
  %v1656 = vunpack.c.h.b16 %v1636
  %v1657 = vunpack.c.l.b16 %v1637
  %v1658 = vpack.c.b16 %v1645, %v1645
  %v1659 = vpack.c.b16 %v1646, %v1646
  %v1660 = vpack.c.b16 %v1647, %v1647
  %v1661 = vpack.c.b16 %v1648, %v1648
  %v1662 = vpack.c.b16 %v1649, %v1649
  %v1663 = vpack.c.b16 %v1650, %v1650
  %v1664 = vpack.c.b16 %v1651, %v1651
  %v1665 = vpack.c.b16 %v1652, %v1652
  %v1666 = vpack.c.b16 %v1653, %v1653
  %v1667 = vpack.c.b16 %v1654, %v1654
  %v1668 = vpack.c.b16 %v1655, %v1655
  %v1669 = vpack.c.b16 %v1656, %v1656
  %v1670 = vpack.c.b16 %v1657, %v1657
  %1684 = vst [vmem:[#allocation2 + $0x68] sm:$0xf] %v1658
  %1685 = vst [vmem:[#allocation2 + $0x6c] sm:$0xf] %v1659
  %1686 = vst [vmem:[#allocation2 + $0x70] sm:$0xf] %v1660
  %1687 = vst [vmem:[#allocation2 + $0x74] sm:$0xf] %v1661
  %1688 = vst [vmem:[#allocation2 + $0x78] sm:$0xf] %v1662
  %1689 = vst [vmem:[#allocation2 + $0x7c] sm:$0xf] %v1663
  %1690 = vst [vmem:[#allocation2 + $0x80] sm:$0xf] %v1664
  %1691 = vst [vmem:[#allocation2 + $0x84] sm:$0xf] %v1665
  %1692 = vst [vmem:[#allocation2 + $0x88] sm:$0xf] %v1666
  %1693 = vst [vmem:[#allocation2 + $0x8c] sm:$0xf] %v1667
  %1694 = vst [vmem:[#allocation2 + $0x90] sm:$0xf] %v1668
  %1695 = vst [vmem:[#allocation2 + $0x94] sm:$0xf] %v1669
  %1696 = vst [vmem:[#allocation2 + $0x98] sm:$0xf] %v1670
  %v1697 = vld [vmem:[%s0 + $0x60] sm:$0xf]
  %v1698 = vld [vmem:[%s0 + $0x64] sm:$0xf]
  %v1699 = vld [vmem:[%s0 + $0x68] sm:$0xf]
  %v1700 = vld [vmem:[%s0 + $0x6c] sm:$0xf]
  %v1701 = vld [vmem:[%s0 + $0x70] sm:$0xf]
  %v1702 = vld [vmem:[%s0 + $0x74] sm:$0xf]
  %v1703 = vld [vmem:[%s0 + $0x78] sm:$0xf]
  %v1704 = vld [vmem:[%s0 + $0x7c] sm:$0xf]
  %v1705 = vld [vmem:[%s0 + $0x80] sm:$0xf]
  %v1706 = vld [vmem:[%s0 + $0x84] sm:$0xf]
  %v1707 = vld [vmem:[%s0 + $0x88] sm:$0xf]
  %v1708 = vld [vmem:[%s0 + $0x8c] sm:$0xf]
  %v1709 = vld [vmem:[%s0 + $0x90] sm:$0xf]
  %v1710 = vld [vmem:[%s0 + $0x94] sm:$0xf]
  %v1711 = vld [vmem:[%s0 + $0x98] sm:$0xf]
  %v1712 = vld [vmem:[%s0 + $0x9c] sm:$0xf]
  %v1729 = vunpack.c.l.b16 %v1697
  %v1730 = vunpack.c.l.b16 %v1698
  %v1731 = vunpack.c.l.b16 %v1699
  %v1732 = vunpack.c.l.b16 %v1700
  %v1733 = vunpack.c.l.b16 %v1701
  %v1734 = vunpack.c.l.b16 %v1702
  %v1735 = vunpack.c.l.b16 %v1703
  %v1736 = vunpack.c.l.b16 %v1704
  %v1737 = vunpack.c.l.b16 %v1705
  %v1738 = vunpack.c.l.b16 %v1706
  %v1739 = vunpack.c.l.b16 %v1707
  %v1740 = vunpack.c.l.b16 %v1708
  %v1741 = vunpack.c.l.b16 %v1709
  %v1742 = vunpack.c.l.b16 %v1710
  %v1743 = vunpack.c.l.b16 %v1711
  %v1744 = vunpack.c.l.b16 %v1712
  %v1745 = vpack.c.b16 %v1730, %v1729
  %v1746 = vpack.c.b16 %v1732, %v1731
  %v1747 = vpack.c.b16 %v1734, %v1733
  %v1748 = vpack.c.b16 %v1736, %v1735
  %v1749 = vpack.c.b16 %v1738, %v1737
  %v1750 = vpack.c.b16 %v1740, %v1739
  %v1751 = vpack.c.b16 %v1742, %v1741
  %v1752 = vpack.c.b16 %v1744, %v1743
  %1761 = vmatprep.subr.bf16.mxu0 0
  %1762 = vmatpush1.bf16.msra.mxu0 %v1745
  %1763 = vmatprep.subr.bf16.mxu0 0
  %1764 = vmatpush1.bf16.msra.mxu0 %v1746
  %1765 = vmatprep.subr.bf16.mxu0 0
  %1766 = vmatpush1.bf16.msra.mxu0 %v1747
  %1767 = vmatprep.subr.bf16.mxu0 0
  %1768 = vmatpush1.bf16.msra.mxu0 %v1748
  %1769 = vmatprep.subr.bf16.mxu0 0
  %1770 = vmatpush1.bf16.msra.mxu0 %v1749
  %1771 = vmatprep.subr.bf16.mxu0 0
  %1772 = vmatpush1.bf16.msra.mxu0 %v1750
  %1773 = vmatprep.subr.bf16.mxu0 0
  %1774 = vmatpush1.bf16.msra.mxu0 %v1751
  %1775 = vmatprep.subr.bf16.mxu0 0
  %1776 = vmatpush1.bf16.msra.mxu0 %v1752
  %1777 = vmatprep.subr.bf16.mxu0 0
  %1778 = vmatpush1.bf16.msra.mxu0 0
  %1779 = vmatprep.subr.bf16.mxu0 0
  %1780 = vmatpush1.bf16.msra.mxu0 0
  %1781 = vmatprep.subr.bf16.mxu0 0
  %1782 = vmatpush1.bf16.msra.mxu0 0
  %1783 = vmatprep.subr.bf16.mxu0 0
  %1784 = vmatpush1.bf16.msra.mxu0 0
  %1785 = vmatprep.subr.bf16.mxu0 0
  %1786 = vmatpush1.bf16.msra.mxu0 0
  %1787 = vmatprep.subr.bf16.mxu0 0
  %1788 = vmatpush1.bf16.msra.mxu0 0
  %1789 = vmatprep.subr.bf16.mxu0 0
  %1790 = vmatpush1.bf16.msra.mxu0 0
  %1791 = vmatprep.subr.bf16.mxu0 0
  %1792 = vmatpush1.bf16.msra.mxu0 0
  %1793 = vmatprep.mubr.bf16.mxu0 0
  %1794 = vmatmul.mubr.bf16.gmra.mrb[0].mxu0 %v353
  %v1795 = vpop.f32.mrb[0].mxu0
  %v1796 = vadd.f32 0.0, %v1795
  %v1797 = vpop.f32.mrb[0].mxu0
  %v1798 = vpop.f32.mrb[0].mxu0
  %v1799 = vadd.f32 0.0, %v1798
  %v1800 = vpop.f32.mrb[0].mxu0
  %1801 = vmatprep.mubr.bf16.mxu0 0
  %1802 = vmatmul.mubr.bf16.gmra.mrb[0].mxu0 %v354
  %v1803 = vpop.f32.mrb[0].mxu0
  %v1804 = vadd.f32 0.0, %v1803
  %v1805 = vpop.f32.mrb[0].mxu0
  %v1806 = vpop.f32.mrb[0].mxu0
  %v1807 = vadd.f32 0.0, %v1806
  %v1808 = vpop.f32.mrb[0].mxu0
  %1809 = vmatprep.mubr.bf16.mxu0 0
  %1810 = vmatmul.mubr.bf16.gmra.mrb[0].mxu0 %v355
  %v1811 = vpop.f32.mrb[0].mxu0
  %v1812 = vadd.f32 0.0, %v1811
  %v1813 = vpop.f32.mrb[0].mxu0
  %v1814 = vpop.f32.mrb[0].mxu0
  %v1815 = vadd.f32 0.0, %v1814
  %v1816 = vpop.f32.mrb[0].mxu0
  %1817 = vmatprep.mubr.bf16.mxu0 0
  %1818 = vmatmul.mubr.bf16.gmra.mrb[0].mxu0 %v356
  %v1819 = vpop.f32.mrb[0].mxu0
  %v1820 = vadd.f32 0.0, %v1819
  %v1821 = vpop.f32.mrb[0].mxu0
  %v1822 = vpop.f32.mrb[0].mxu0
  %v1823 = vadd.f32 0.0, %v1822
  %v1824 = vpop.f32.mrb[0].mxu0
  %1825 = vmatprep.mubr.bf16.mxu0 0
  %1826 = vmatmul.mubr.bf16.gmra.mrb[0].mxu0 %v357
  %v1827 = vpop.f32.mrb[0].mxu0
  %v1828 = vadd.f32 0.0, %v1827
  %v1829 = vpop.f32.mrb[0].mxu0
  %v1830 = vpop.f32.mrb[0].mxu0
  %v1831 = vadd.f32 0.0, %v1830
  %v1832 = vpop.f32.mrb[0].mxu0
  %1833 = vmatprep.mubr.bf16.mxu0 0
  %1834 = vmatmul.mubr.bf16.gmra.mrb[0].mxu0 %v358
  %v1835 = vpop.f32.mrb[0].mxu0
  %v1836 = vadd.f32 0.0, %v1835
  %v1837 = vpop.f32.mrb[0].mxu0
  %v1838 = vpop.f32.mrb[0].mxu0
  %v1839 = vadd.f32 0.0, %v1838
  %v1840 = vpop.f32.mrb[0].mxu0
  %1841 = vmatprep.mubr.bf16.mxu0 0
  %1842 = vmatmul.mubr.bf16.gmra.mrb[0].mxu0 %v359
  %v1843 = vpop.f32.mrb[0].mxu0
  %v1844 = vadd.f32 0.0, %v1843
  %v1845 = vpop.f32.mrb[0].mxu0
  %v1846 = vpop.f32.mrb[0].mxu0
  %v1847 = vadd.f32 0.0, %v1846
  %v1848 = vpop.f32.mrb[0].mxu0
  %1849 = vmatprep.mubr.bf16.mxu0 0
  %1850 = vmatmul.mubr.bf16.gmra.mrb[0].mxu0 %v360
  %v1851 = vpop.f32.mrb[0].mxu0
  %v1852 = vadd.f32 0.0, %v1851
  %v1853 = vpop.f32.mrb[0].mxu0
  %v1854 = vpop.f32.mrb[0].mxu0
  %v1855 = vadd.f32 0.0, %v1854
  %v1856 = vpop.f32.mrb[0].mxu0
  %1857 = vmatprep.mubr.bf16.mxu0 0
  %1858 = vmatmul.mubr.bf16.gmra.mrb[0].mxu0 %v361
  %v1859 = vpop.f32.mrb[0].mxu0
  %v1860 = vadd.f32 0.0, %v1859
  %v1861 = vpop.f32.mrb[0].mxu0
  %v1862 = vpop.f32.mrb[0].mxu0
  %v1863 = vadd.f32 0.0, %v1862
  %v1864 = vpop.f32.mrb[0].mxu0
  %1865 = vmatprep.mubr.bf16.mxu0 0
  %1866 = vmatmul.mubr.bf16.gmra.mrb[0].mxu0 %v362
  %v1867 = vpop.f32.mrb[0].mxu0
  %v1868 = vadd.f32 0.0, %v1867
  %v1869 = vpop.f32.mrb[0].mxu0
  %v1870 = vpop.f32.mrb[0].mxu0
  %v1871 = vadd.f32 0.0, %v1870
  %v1872 = vpop.f32.mrb[0].mxu0
  %1873 = vmatprep.mubr.bf16.mxu0 0
  %1874 = vmatmul.mubr.bf16.gmra.mrb[0].mxu0 %v363
  %v1875 = vpop.f32.mrb[0].mxu0
  %v1876 = vadd.f32 0.0, %v1875
  %v1877 = vpop.f32.mrb[0].mxu0
  %v1878 = vpop.f32.mrb[0].mxu0
  %v1879 = vadd.f32 0.0, %v1878
  %v1880 = vpop.f32.mrb[0].mxu0
  %1881 = vmatprep.mubr.bf16.mxu0 0
  %1882 = vmatmul.mubr.bf16.gmra.mrb[0].mxu0 %v364
  %v1883 = vpop.f32.mrb[0].mxu0
  %v1884 = vadd.f32 0.0, %v1883
  %v1885 = vpop.f32.mrb[0].mxu0
  %v1886 = vpop.f32.mrb[0].mxu0
  %v1887 = vadd.f32 0.0, %v1886
  %v1888 = vpop.f32.mrb[0].mxu0
  %1889 = vmatprep.mubr.bf16.mxu0 0
  %1890 = vmatmul.mubr.bf16.gmra.mrb[0].mxu0 %v365
  %v1891 = vpop.f32.mrb[0].mxu0
  %v1892 = vadd.f32 0.0, %v1891
  %v1893 = vpop.f32.mrb[0].mxu0
  %v1894 = vpop.f32.mrb[0].mxu0
  %v1895 = vadd.f32 0.0, %v1894
  %v1896 = vpop.f32.mrb[0].mxu0
  %1897 = vmatprep.mubr.bf16.mxu0 0
  %1898 = vmatmul.mubr.bf16.gmra.mrb[0].mxu0 %v366
  %v1899 = vpop.f32.mrb[0].mxu0
  %v1900 = vadd.f32 0.0, %v1899
  %v1901 = vpop.f32.mrb[0].mxu0
  %v1902 = vpop.f32.mrb[0].mxu0
  %v1903 = vadd.f32 0.0, %v1902
  %v1904 = vpop.f32.mrb[0].mxu0
  %1905 = vmatprep.mubr.bf16.mxu0 0
  %1906 = vmatmul.mubr.bf16.gmra.mrb[0].mxu0 %v367
  %v1907 = vpop.f32.mrb[0].mxu0
  %v1908 = vadd.f32 0.0, %v1907
  %v1909 = vpop.f32.mrb[0].mxu0
  %v1910 = vpop.f32.mrb[0].mxu0
  %v1911 = vadd.f32 0.0, %v1910
  %v1912 = vpop.f32.mrb[0].mxu0
  %1913 = vmatprep.mubr.bf16.mxu0 0
  %1914 = vmatmul.mubr.bf16.gmra.mrb[0].mxu0 %v368
  %v1915 = vpop.f32.mrb[0].mxu0
  %v1916 = vadd.f32 0.0, %v1915
  %v1917 = vpop.f32.mrb[0].mxu0
  %v1918 = vpop.f32.mrb[0].mxu0
  %v1919 = vadd.f32 0.0, %v1918
  %v1920 = vpop.f32.mrb[0].mxu0
  %1921 = vmatprep.mubr.bf16.mxu0 0
  %1922 = vmatmul.mubr.bf16.gmra.mrb[0].mxu0 %v369
  %v1923 = vpop.f32.mrb[0].mxu0
  %v1924 = vadd.f32 0.0, %v1923
  %v1925 = vpop.f32.mrb[0].mxu0
  %v1926 = vpop.f32.mrb[0].mxu0
  %v1927 = vadd.f32 0.0, %v1926
  %v1928 = vpop.f32.mrb[0].mxu0
  %1929 = vmatprep.mubr.bf16.mxu0 0
  %1930 = vmatmul.mubr.bf16.gmra.mrb[0].mxu0 %v370
  %v1931 = vpop.f32.mrb[0].mxu0
  %v1932 = vadd.f32 0.0, %v1931
  %v1933 = vpop.f32.mrb[0].mxu0
  %v1934 = vpop.f32.mrb[0].mxu0
  %v1935 = vadd.f32 0.0, %v1934
  %v1936 = vpop.f32.mrb[0].mxu0
  %1937 = vmatprep.mubr.bf16.mxu0 0
  %1938 = vmatmul.mubr.bf16.gmra.mrb[0].mxu0 %v371
  %v1939 = vpop.f32.mrb[0].mxu0
  %v1940 = vadd.f32 0.0, %v1939
  %v1941 = vpop.f32.mrb[0].mxu0
  %v1942 = vpop.f32.mrb[0].mxu0
  %v1943 = vadd.f32 0.0, %v1942
  %v1944 = vpop.f32.mrb[0].mxu0
  %1945 = vmatprep.mubr.bf16.mxu0 0
  %1946 = vmatmul.mubr.bf16.gmra.mrb[0].mxu0 %v372
  %v1947 = vpop.f32.mrb[0].mxu0
  %v1948 = vadd.f32 0.0, %v1947
  %v1949 = vpop.f32.mrb[0].mxu0
  %v1950 = vpop.f32.mrb[0].mxu0
  %v1951 = vadd.f32 0.0, %v1950
  %v1952 = vpop.f32.mrb[0].mxu0
  %1953 = vmatprep.mubr.bf16.mxu0 0
  %1954 = vmatmul.mubr.bf16.gmra.mrb[0].mxu0 %v373
  %v1955 = vpop.f32.mrb[0].mxu0
  %v1956 = vadd.f32 0.0, %v1955
  %v1957 = vpop.f32.mrb[0].mxu0
  %v1958 = vpop.f32.mrb[0].mxu0
  %v1959 = vadd.f32 0.0, %v1958
  %v1960 = vpop.f32.mrb[0].mxu0
  %1961 = vmatprep.mubr.bf16.mxu0 0
  %1962 = vmatmul.mubr.bf16.gmra.mrb[0].mxu0 %v374
  %v1963 = vpop.f32.mrb[0].mxu0
  %v1964 = vadd.f32 0.0, %v1963
  %v1965 = vpop.f32.mrb[0].mxu0
  %v1966 = vpop.f32.mrb[0].mxu0
  %v1967 = vadd.f32 0.0, %v1966
  %v1968 = vpop.f32.mrb[0].mxu0
  %1969 = vmatprep.mubr.bf16.mxu0 0
  %1970 = vmatmul.mubr.bf16.gmra.mrb[0].mxu0 %v375
  %v1971 = vpop.f32.mrb[0].mxu0
  %v1972 = vadd.f32 0.0, %v1971
  %v1973 = vpop.f32.mrb[0].mxu0
  %v1974 = vpop.f32.mrb[0].mxu0
  %v1975 = vadd.f32 0.0, %v1974
  %v1976 = vpop.f32.mrb[0].mxu0
  %1977 = vmatprep.mubr.bf16.mxu0 0
  %1978 = vmatmul.mubr.bf16.gmra.mrb[0].mxu0 %v376
  %v1979 = vpop.f32.mrb[0].mxu0
  %v1980 = vadd.f32 0.0, %v1979
  %v1981 = vpop.f32.mrb[0].mxu0
  %v1982 = vpop.f32.mrb[0].mxu0
  %v1983 = vadd.f32 0.0, %v1982
  %v1984 = vpop.f32.mrb[0].mxu0
  %1985 = vmatprep.mubr.bf16.mxu0 0
  %1986 = vmatmul.mubr.bf16.gmra.mrb[0].mxu0 %v377
  %v1987 = vpop.f32.mrb[0].mxu0
  %v1988 = vadd.f32 0.0, %v1987
  %v1989 = vpop.f32.mrb[0].mxu0
  %v1990 = vpop.f32.mrb[0].mxu0
  %v1991 = vadd.f32 0.0, %v1990
  %v1992 = vpop.f32.mrb[0].mxu0
  %1993 = vmatprep.mubr.bf16.mxu0 0
  %1994 = vmatmul.mubr.bf16.gmra.mrb[0].mxu0 %v378
  %v1995 = vpop.f32.mrb[0].mxu0
  %v1996 = vadd.f32 0.0, %v1995
  %v1997 = vpop.f32.mrb[0].mxu0
  %v1998 = vpop.f32.mrb[0].mxu0
  %v1999 = vadd.f32 0.0, %v1998
  %v2000 = vpop.f32.mrb[0].mxu0
  %2001 = vdwg.mxu0
  %v2002 = vmax.f32 %v1796, %v1900
  %v2003 = vmax.f32 %v1799, %v1903
  %v2004 = vmax.f32 %v1804, %v1908
  %v2005 = vmax.f32 %v1807, %v1911
  %v2006 = vmax.f32 %v1812, %v1916
  %v2007 = vmax.f32 %v1815, %v1919
  %v2008 = vmax.f32 %v1820, %v1924
  %v2009 = vmax.f32 %v1823, %v1927
  %v2010 = vmax.f32 %v1828, %v1932
  %v2011 = vmax.f32 %v1831, %v1935
  %v2012 = vmax.f32 %v1836, %v1940
  %v2013 = vmax.f32 %v1839, %v1943
  %v2014 = vmax.f32 %v1844, %v1948
  %v2015 = vmax.f32 %v1847, %v1951
  %v2016 = vmax.f32 %v1852, %v1956
  %v2017 = vmax.f32 %v1855, %v1959
  %v2018 = vmax.f32 %v1860, %v1964
  %v2019 = vmax.f32 %v1863, %v1967
  %v2020 = vmax.f32 %v1868, %v1972
  %v2021 = vmax.f32 %v1871, %v1975
  %v2022 = vmax.f32 %v1876, %v1980
  %v2023 = vmax.f32 %v1879, %v1983
  %v2024 = vmax.f32 %v1884, %v1988
  %v2025 = vmax.f32 %v1887, %v1991
  %v2026 = vmax.f32 %v1892, %v1996
  %v2027 = vmax.f32 %v1895, %v1999
  %v2028 = vmax.f32 %v2002, %v2003
  %v2029 = vmax.f32 %v2004, %v2005
  %v2030 = vmax.f32 %v2006, %v2007
  %v2031 = vmax.f32 %v2008, %v2009
  %v2032 = vmax.f32 %v2010, %v2011
  %v2033 = vmax.f32 %v2012, %v2013
  %v2034 = vmax.f32 %v2014, %v2015
  %v2035 = vmax.f32 %v2016, %v2017
  %v2036 = vmax.f32 %v2018, %v2019
  %v2037 = vmax.f32 %v2020, %v2021
  %v2038 = vmax.f32 %v2022, %v2023
  %v2039 = vmax.f32 %v2024, %v2025
  %v2040 = vmax.f32 %v2026, %v2027
  %v2041 = vadd.f32 %v2028, %v141
  %v2042 = vadd.f32 %v2029, %v146
  %v2043 = vadd.f32 %v2030, %v151
  %v2044 = vadd.f32 %v2031, %v156
  %v2045 = vadd.f32 %v2032, %v161
  %v2046 = vadd.f32 %v2033, %v166
  %v2047 = vadd.f32 %v2034, %v171
  %v2048 = vadd.f32 %v2035, %v176
  %v2049 = vadd.f32 %v2036, %v181
  %v2050 = vadd.f32 %v2037, %v186
  %v2051 = vadd.f32 %v2038, %v191
  %v2052 = vadd.f32 %v2039, %v196
  %v2053 = vadd.f32 %v2040, %v201
  %v2054 = vmax.f32 %v2041, 0.0
  %v2055 = vmax.f32 %v2042, 0.0
  %v2056 = vmax.f32 %v2043, 0.0
  %v2057 = vmax.f32 %v2044, 0.0
  %v2058 = vmax.f32 %v2045, 0.0
  %v2059 = vmax.f32 %v2046, 0.0
  %v2060 = vmax.f32 %v2047, 0.0
  %v2061 = vmax.f32 %v2048, 0.0
  %v2062 = vmax.f32 %v2049, 0.0
  %v2063 = vmax.f32 %v2050, 0.0
  %v2064 = vmax.f32 %v2051, 0.0
  %v2065 = vmax.f32 %v2052, 0.0
  %v2066 = vmax.f32 %v2053, 0.0
  %v2067 = vpack.c.bf16 %v2055, %v2054
  %v2068 = vpack.c.bf16 %v2057, %v2056
  %v2069 = vpack.c.bf16 %v2059, %v2058
  %v2070 = vpack.c.bf16 %v2061, %v2060
  %v2071 = vpack.c.bf16 %v2063, %v2062
  %v2072 = vpack.c.bf16 %v2065, %v2064
  %v2073 = vpack.c.bf16 %v2066, %v2066
  %v2081 = vunpack.c.l.b16 %v2067
  %v2082 = vunpack.c.h.b16 %v2067
  %v2083 = vunpack.c.l.b16 %v2068
  %v2084 = vunpack.c.h.b16 %v2068
  %v2085 = vunpack.c.l.b16 %v2069
  %v2086 = vunpack.c.h.b16 %v2069
  %v2087 = vunpack.c.l.b16 %v2070
  %v2088 = vunpack.c.h.b16 %v2070
  %v2089 = vunpack.c.l.b16 %v2071
  %v2090 = vunpack.c.h.b16 %v2071
  %v2091 = vunpack.c.l.b16 %v2072
  %v2092 = vunpack.c.h.b16 %v2072
  %v2093 = vunpack.c.l.b16 %v2073
  %v2094 = vpack.c.b16 %v2081, %v2081
  %v2095 = vpack.c.b16 %v2082, %v2082
  %v2096 = vpack.c.b16 %v2083, %v2083
  %v2097 = vpack.c.b16 %v2084, %v2084
  %v2098 = vpack.c.b16 %v2085, %v2085
  %v2099 = vpack.c.b16 %v2086, %v2086
  %v2100 = vpack.c.b16 %v2087, %v2087
  %v2101 = vpack.c.b16 %v2088, %v2088
  %v2102 = vpack.c.b16 %v2089, %v2089
  %v2103 = vpack.c.b16 %v2090, %v2090
  %v2104 = vpack.c.b16 %v2091, %v2091
  %v2105 = vpack.c.b16 %v2092, %v2092
  %v2106 = vpack.c.b16 %v2093, %v2093
  %2120 = vst [vmem:[#allocation2 + $0x9c] sm:$0xf] %v2094
  %2121 = vst [vmem:[#allocation2 + $0xa0] sm:$0xf] %v2095
  %2122 = vst [vmem:[#allocation2 + $0xa4] sm:$0xf] %v2096
  %2123 = vst [vmem:[#allocation2 + $0xa8] sm:$0xf] %v2097
  %2124 = vst [vmem:[#allocation2 + $0xac] sm:$0xf] %v2098
  %2125 = vst [vmem:[#allocation2 + $0xb0] sm:$0xf] %v2099
  %2126 = vst [vmem:[#allocation2 + $0xb4] sm:$0xf] %v2100
  %2127 = vst [vmem:[#allocation2 + $0xb8] sm:$0xf] %v2101
  %2128 = vst [vmem:[#allocation2 + $0xbc] sm:$0xf] %v2102
  %2129 = vst [vmem:[#allocation2 + $0xc0] sm:$0xf] %v2103
  %2130 = vst [vmem:[#allocation2 + $0xc4] sm:$0xf] %v2104
  %2131 = vst [vmem:[#allocation2 + $0xc8] sm:$0xf] %v2105
  %2132 = vst [vmem:[#allocation2 + $0xcc] sm:$0xf] %v2106
  %v2133 = vld [vmem:[%s0 + $0x80] sm:$0xf]
  %v2134 = vld [vmem:[%s0 + $0x84] sm:$0xf]
  %v2135 = vld [vmem:[%s0 + $0x88] sm:$0xf]
  %v2136 = vld [vmem:[%s0 + $0x8c] sm:$0xf]
  %v2137 = vld [vmem:[%s0 + $0x90] sm:$0xf]
  %v2138 = vld [vmem:[%s0 + $0x94] sm:$0xf]
  %v2139 = vld [vmem:[%s0 + $0x98] sm:$0xf]
  %v2140 = vld [vmem:[%s0 + $0x9c] sm:$0xf]
  %v2141 = vld [vmem:[%s0 + $0xa0] sm:$0xf]
  %v2142 = vld [vmem:[%s0 + $0xa4] sm:$0xf]
  %v2143 = vld [vmem:[%s0 + $0xa8] sm:$0xf]
  %v2144 = vld [vmem:[%s0 + $0xac] sm:$0xf]
  %v2145 = vld [vmem:[%s0 + $0xb0] sm:$0xf]
  %v2146 = vld [vmem:[%s0 + $0xb4] sm:$0xf]
  %v2147 = vld [vmem:[%s0 + $0xb8] sm:$0xf]
  %v2148 = vld [vmem:[%s0 + $0xbc] sm:$0xf]
  %v2165 = vunpack.c.l.b16 %v2133
  %v2166 = vunpack.c.l.b16 %v2134
  %v2167 = vunpack.c.l.b16 %v2135
  %v2168 = vunpack.c.l.b16 %v2136
  %v2169 = vunpack.c.l.b16 %v2137
  %v2170 = vunpack.c.l.b16 %v2138
  %v2171 = vunpack.c.l.b16 %v2139
  %v2172 = vunpack.c.l.b16 %v2140
  %v2173 = vunpack.c.l.b16 %v2141
  %v2174 = vunpack.c.l.b16 %v2142
  %v2175 = vunpack.c.l.b16 %v2143
  %v2176 = vunpack.c.l.b16 %v2144
  %v2177 = vunpack.c.l.b16 %v2145
  %v2178 = vunpack.c.l.b16 %v2146
  %v2179 = vunpack.c.l.b16 %v2147
  %v2180 = vunpack.c.l.b16 %v2148
  %v2181 = vpack.c.b16 %v2166, %v2165
  %v2182 = vpack.c.b16 %v2168, %v2167
  %v2183 = vpack.c.b16 %v2170, %v2169
  %v2184 = vpack.c.b16 %v2172, %v2171
  %v2185 = vpack.c.b16 %v2174, %v2173
  %v2186 = vpack.c.b16 %v2176, %v2175
  %v2187 = vpack.c.b16 %v2178, %v2177
  %v2188 = vpack.c.b16 %v2180, %v2179
  %2197 = vmatprep.subr.bf16.mxu0 0
  %2198 = vmatpush1.bf16.msra.mxu0 %v2181
  %2199 = vmatprep.subr.bf16.mxu0 0
  %2200 = vmatpush1.bf16.msra.mxu0 %v2182
  %2201 = vmatprep.subr.bf16.mxu0 0
  %2202 = vmatpush1.bf16.msra.mxu0 %v2183
  %2203 = vmatprep.subr.bf16.mxu0 0
  %2204 = vmatpush1.bf16.msra.mxu0 %v2184
  %2205 = vmatprep.subr.bf16.mxu0 0
  %2206 = vmatpush1.bf16.msra.mxu0 %v2185
  %2207 = vmatprep.subr.bf16.mxu0 0
  %2208 = vmatpush1.bf16.msra.mxu0 %v2186
  %2209 = vmatprep.subr.bf16.mxu0 0
  %2210 = vmatpush1.bf16.msra.mxu0 %v2187
  %2211 = vmatprep.subr.bf16.mxu0 0
  %2212 = vmatpush1.bf16.msra.mxu0 %v2188
  %2213 = vmatprep.subr.bf16.mxu0 0
  %2214 = vmatpush1.bf16.msra.mxu0 0
  %2215 = vmatprep.subr.bf16.mxu0 0
  %2216 = vmatpush1.bf16.msra.mxu0 0
  %2217 = vmatprep.subr.bf16.mxu0 0
  %2218 = vmatpush1.bf16.msra.mxu0 0
  %2219 = vmatprep.subr.bf16.mxu0 0
  %2220 = vmatpush1.bf16.msra.mxu0 0
  %2221 = vmatprep.subr.bf16.mxu0 0
  %2222 = vmatpush1.bf16.msra.mxu0 0
  %2223 = vmatprep.subr.bf16.mxu0 0
  %2224 = vmatpush1.bf16.msra.mxu0 0
  %2225 = vmatprep.subr.bf16.mxu0 0
  %2226 = vmatpush1.bf16.msra.mxu0 0
  %2227 = vmatprep.subr.bf16.mxu0 0
  %2228 = vmatpush1.bf16.msra.mxu0 0
  %2229 = vmatprep.mubr.bf16.mxu0 0
  %2230 = vmatmul.mubr.bf16.gmra.mrb[0].mxu0 %v353
  %v2231 = vpop.f32.mrb[0].mxu0
  %v2232 = vadd.f32 0.0, %v2231
  %v2233 = vpop.f32.mrb[0].mxu0
  %v2234 = vpop.f32.mrb[0].mxu0
  %v2235 = vadd.f32 0.0, %v2234
  %v2236 = vpop.f32.mrb[0].mxu0
  %2237 = vmatprep.mubr.bf16.mxu0 0
  %2238 = vmatmul.mubr.bf16.gmra.mrb[0].mxu0 %v354
  %v2239 = vpop.f32.mrb[0].mxu0
  %v2240 = vadd.f32 0.0, %v2239
  %v2241 = vpop.f32.mrb[0].mxu0
  %v2242 = vpop.f32.mrb[0].mxu0
  %v2243 = vadd.f32 0.0, %v2242
  %v2244 = vpop.f32.mrb[0].mxu0
  %2245 = vmatprep.mubr.bf16.mxu0 0
  %2246 = vmatmul.mubr.bf16.gmra.mrb[0].mxu0 %v355
  %v2247 = vpop.f32.mrb[0].mxu0
  %v2248 = vadd.f32 0.0, %v2247
  %v2249 = vpop.f32.mrb[0].mxu0
  %v2250 = vpop.f32.mrb[0].mxu0
  %v2251 = vadd.f32 0.0, %v2250
  %v2252 = vpop.f32.mrb[0].mxu0
  %2253 = vmatprep.mubr.bf16.mxu0 0
  %2254 = vmatmul.mubr.bf16.gmra.mrb[0].mxu0 %v356
  %v2255 = vpop.f32.mrb[0].mxu0
  %v2256 = vadd.f32 0.0, %v2255
  %v2257 = vpop.f32.mrb[0].mxu0
  %v2258 = vpop.f32.mrb[0].mxu0
  %v2259 = vadd.f32 0.0, %v2258
  %v2260 = vpop.f32.mrb[0].mxu0
  %2261 = vmatprep.mubr.bf16.mxu0 0
  %2262 = vmatmul.mubr.bf16.gmra.mrb[0].mxu0 %v357
  %v2263 = vpop.f32.mrb[0].mxu0
  %v2264 = vadd.f32 0.0, %v2263
  %v2265 = vpop.f32.mrb[0].mxu0
  %v2266 = vpop.f32.mrb[0].mxu0
  %v2267 = vadd.f32 0.0, %v2266
  %v2268 = vpop.f32.mrb[0].mxu0
  %2269 = vmatprep.mubr.bf16.mxu0 0
  %2270 = vmatmul.mubr.bf16.gmra.mrb[0].mxu0 %v358
  %v2271 = vpop.f32.mrb[0].mxu0
  %v2272 = vadd.f32 0.0, %v2271
  %v2273 = vpop.f32.mrb[0].mxu0
  %v2274 = vpop.f32.mrb[0].mxu0
  %v2275 = vadd.f32 0.0, %v2274
  %v2276 = vpop.f32.mrb[0].mxu0
  %2277 = vmatprep.mubr.bf16.mxu0 0
  %2278 = vmatmul.mubr.bf16.gmra.mrb[0].mxu0 %v359
  %v2279 = vpop.f32.mrb[0].mxu0
  %v2280 = vadd.f32 0.0, %v2279
  %v2281 = vpop.f32.mrb[0].mxu0
  %v2282 = vpop.f32.mrb[0].mxu0
  %v2283 = vadd.f32 0.0, %v2282
  %v2284 = vpop.f32.mrb[0].mxu0
  %2285 = vmatprep.mubr.bf16.mxu0 0
  %2286 = vmatmul.mubr.bf16.gmra.mrb[0].mxu0 %v360
  %v2287 = vpop.f32.mrb[0].mxu0
  %v2288 = vadd.f32 0.0, %v2287
  %v2289 = vpop.f32.mrb[0].mxu0
  %v2290 = vpop.f32.mrb[0].mxu0
  %v2291 = vadd.f32 0.0, %v2290
  %v2292 = vpop.f32.mrb[0].mxu0
  %2293 = vmatprep.mubr.bf16.mxu0 0
  %2294 = vmatmul.mubr.bf16.gmra.mrb[0].mxu0 %v361
  %v2295 = vpop.f32.mrb[0].mxu0
  %v2296 = vadd.f32 0.0, %v2295
  %v2297 = vpop.f32.mrb[0].mxu0
  %v2298 = vpop.f32.mrb[0].mxu0
  %v2299 = vadd.f32 0.0, %v2298
  %v2300 = vpop.f32.mrb[0].mxu0
  %2301 = vmatprep.mubr.bf16.mxu0 0
  %2302 = vmatmul.mubr.bf16.gmra.mrb[0].mxu0 %v362
  %v2303 = vpop.f32.mrb[0].mxu0
  %v2304 = vadd.f32 0.0, %v2303
  %v2305 = vpop.f32.mrb[0].mxu0
  %v2306 = vpop.f32.mrb[0].mxu0
  %v2307 = vadd.f32 0.0, %v2306
  %v2308 = vpop.f32.mrb[0].mxu0
  %2309 = vmatprep.mubr.bf16.mxu0 0
  %2310 = vmatmul.mubr.bf16.gmra.mrb[0].mxu0 %v363
  %v2311 = vpop.f32.mrb[0].mxu0
  %v2312 = vadd.f32 0.0, %v2311
  %v2313 = vpop.f32.mrb[0].mxu0
  %v2314 = vpop.f32.mrb[0].mxu0
  %v2315 = vadd.f32 0.0, %v2314
  %v2316 = vpop.f32.mrb[0].mxu0
  %2317 = vmatprep.mubr.bf16.mxu0 0
  %2318 = vmatmul.mubr.bf16.gmra.mrb[0].mxu0 %v364
  %v2319 = vpop.f32.mrb[0].mxu0
  %v2320 = vadd.f32 0.0, %v2319
  %v2321 = vpop.f32.mrb[0].mxu0
  %v2322 = vpop.f32.mrb[0].mxu0
  %v2323 = vadd.f32 0.0, %v2322
  %v2324 = vpop.f32.mrb[0].mxu0
  %2325 = vmatprep.mubr.bf16.mxu0 0
  %2326 = vmatmul.mubr.bf16.gmra.mrb[0].mxu0 %v365
  %v2327 = vpop.f32.mrb[0].mxu0
  %v2328 = vadd.f32 0.0, %v2327
  %v2329 = vpop.f32.mrb[0].mxu0
  %v2330 = vpop.f32.mrb[0].mxu0
  %v2331 = vadd.f32 0.0, %v2330
  %v2332 = vpop.f32.mrb[0].mxu0
  %2333 = vmatprep.mubr.bf16.mxu0 0
  %2334 = vmatmul.mubr.bf16.gmra.mrb[0].mxu0 %v366
  %v2335 = vpop.f32.mrb[0].mxu0
  %v2336 = vadd.f32 0.0, %v2335
  %v2337 = vpop.f32.mrb[0].mxu0
  %v2338 = vpop.f32.mrb[0].mxu0
  %v2339 = vadd.f32 0.0, %v2338
  %v2340 = vpop.f32.mrb[0].mxu0
  %2341 = vmatprep.mubr.bf16.mxu0 0
  %2342 = vmatmul.mubr.bf16.gmra.mrb[0].mxu0 %v367
  %v2343 = vpop.f32.mrb[0].mxu0
  %v2344 = vadd.f32 0.0, %v2343
  %v2345 = vpop.f32.mrb[0].mxu0
  %v2346 = vpop.f32.mrb[0].mxu0
  %v2347 = vadd.f32 0.0, %v2346
  %v2348 = vpop.f32.mrb[0].mxu0
  %2349 = vmatprep.mubr.bf16.mxu0 0
  %2350 = vmatmul.mubr.bf16.gmra.mrb[0].mxu0 %v368
  %v2351 = vpop.f32.mrb[0].mxu0
  %v2352 = vadd.f32 0.0, %v2351
  %v2353 = vpop.f32.mrb[0].mxu0
  %v2354 = vpop.f32.mrb[0].mxu0
  %v2355 = vadd.f32 0.0, %v2354
  %v2356 = vpop.f32.mrb[0].mxu0
  %2357 = vmatprep.mubr.bf16.mxu0 0
  %2358 = vmatmul.mubr.bf16.gmra.mrb[0].mxu0 %v369
  %v2359 = vpop.f32.mrb[0].mxu0
  %v2360 = vadd.f32 0.0, %v2359
  %v2361 = vpop.f32.mrb[0].mxu0
  %v2362 = vpop.f32.mrb[0].mxu0
  %v2363 = vadd.f32 0.0, %v2362
  %v2364 = vpop.f32.mrb[0].mxu0
  %2365 = vmatprep.mubr.bf16.mxu0 0
  %2366 = vmatmul.mubr.bf16.gmra.mrb[0].mxu0 %v370
  %v2367 = vpop.f32.mrb[0].mxu0
  %v2368 = vadd.f32 0.0, %v2367
  %v2369 = vpop.f32.mrb[0].mxu0
  %v2370 = vpop.f32.mrb[0].mxu0
  %v2371 = vadd.f32 0.0, %v2370
  %v2372 = vpop.f32.mrb[0].mxu0
  %2373 = vmatprep.mubr.bf16.mxu0 0
  %2374 = vmatmul.mubr.bf16.gmra.mrb[0].mxu0 %v371
  %v2375 = vpop.f32.mrb[0].mxu0
  %v2376 = vadd.f32 0.0, %v2375
  %v2377 = vpop.f32.mrb[0].mxu0
  %v2378 = vpop.f32.mrb[0].mxu0
  %v2379 = vadd.f32 0.0, %v2378
  %v2380 = vpop.f32.mrb[0].mxu0
  %2381 = vmatprep.mubr.bf16.mxu0 0
  %2382 = vmatmul.mubr.bf16.gmra.mrb[0].mxu0 %v372
  %v2383 = vpop.f32.mrb[0].mxu0
  %v2384 = vadd.f32 0.0, %v2383
  %v2385 = vpop.f32.mrb[0].mxu0
  %v2386 = vpop.f32.mrb[0].mxu0
  %v2387 = vadd.f32 0.0, %v2386
  %v2388 = vpop.f32.mrb[0].mxu0
  %2389 = vmatprep.mubr.bf16.mxu0 0
  %2390 = vmatmul.mubr.bf16.gmra.mrb[0].mxu0 %v373
  %v2391 = vpop.f32.mrb[0].mxu0
  %v2392 = vadd.f32 0.0, %v2391
  %v2393 = vpop.f32.mrb[0].mxu0
  %v2394 = vpop.f32.mrb[0].mxu0
  %v2395 = vadd.f32 0.0, %v2394
  %v2396 = vpop.f32.mrb[0].mxu0
  %2397 = vmatprep.mubr.bf16.mxu0 0
  %2398 = vmatmul.mubr.bf16.gmra.mrb[0].mxu0 %v374
  %v2399 = vpop.f32.mrb[0].mxu0
  %v2400 = vadd.f32 0.0, %v2399
  %v2401 = vpop.f32.mrb[0].mxu0
  %v2402 = vpop.f32.mrb[0].mxu0
  %v2403 = vadd.f32 0.0, %v2402
  %v2404 = vpop.f32.mrb[0].mxu0
  %2405 = vmatprep.mubr.bf16.mxu0 0
  %2406 = vmatmul.mubr.bf16.gmra.mrb[0].mxu0 %v375
  %v2407 = vpop.f32.mrb[0].mxu0
  %v2408 = vadd.f32 0.0, %v2407
  %v2409 = vpop.f32.mrb[0].mxu0
  %v2410 = vpop.f32.mrb[0].mxu0
  %v2411 = vadd.f32 0.0, %v2410
  %v2412 = vpop.f32.mrb[0].mxu0
  %2413 = vmatprep.mubr.bf16.mxu0 0
  %2414 = vmatmul.mubr.bf16.gmra.mrb[0].mxu0 %v376
  %v2415 = vpop.f32.mrb[0].mxu0
  %v2416 = vadd.f32 0.0, %v2415
  %v2417 = vpop.f32.mrb[0].mxu0
  %v2418 = vpop.f32.mrb[0].mxu0
  %v2419 = vadd.f32 0.0, %v2418
  %v2420 = vpop.f32.mrb[0].mxu0
  %2421 = vmatprep.mubr.bf16.mxu0 0
  %2422 = vmatmul.mubr.bf16.gmra.mrb[0].mxu0 %v377
  %v2423 = vpop.f32.mrb[0].mxu0
  %v2424 = vadd.f32 0.0, %v2423
  %v2425 = vpop.f32.mrb[0].mxu0
  %v2426 = vpop.f32.mrb[0].mxu0
  %v2427 = vadd.f32 0.0, %v2426
  %v2428 = vpop.f32.mrb[0].mxu0
  %2429 = vmatprep.mubr.bf16.mxu0 0
  %2430 = vmatmul.mubr.bf16.gmra.mrb[0].mxu0 %v378
  %v2431 = vpop.f32.mrb[0].mxu0
  %v2432 = vadd.f32 0.0, %v2431
  %v2433 = vpop.f32.mrb[0].mxu0
  %v2434 = vpop.f32.mrb[0].mxu0
  %v2435 = vadd.f32 0.0, %v2434
  %v2436 = vpop.f32.mrb[0].mxu0
  %2437 = vdwg.mxu0
  %v2438 = vmax.f32 %v2232, %v2336
  %v2439 = vmax.f32 %v2235, %v2339
  %v2440 = vmax.f32 %v2240, %v2344
  %v2441 = vmax.f32 %v2243, %v2347
  %v2442 = vmax.f32 %v2248, %v2352
  %v2443 = vmax.f32 %v2251, %v2355
  %v2444 = vmax.f32 %v2256, %v2360
  %v2445 = vmax.f32 %v2259, %v2363
  %v2446 = vmax.f32 %v2264, %v2368
  %v2447 = vmax.f32 %v2267, %v2371
  %v2448 = vmax.f32 %v2272, %v2376
  %v2449 = vmax.f32 %v2275, %v2379
  %v2450 = vmax.f32 %v2280, %v2384
  %v2451 = vmax.f32 %v2283, %v2387
  %v2452 = vmax.f32 %v2288, %v2392
  %v2453 = vmax.f32 %v2291, %v2395
  %v2454 = vmax.f32 %v2296, %v2400
  %v2455 = vmax.f32 %v2299, %v2403
  %v2456 = vmax.f32 %v2304, %v2408
  %v2457 = vmax.f32 %v2307, %v2411
  %v2458 = vmax.f32 %v2312, %v2416
  %v2459 = vmax.f32 %v2315, %v2419
  %v2460 = vmax.f32 %v2320, %v2424
  %v2461 = vmax.f32 %v2323, %v2427
  %v2462 = vmax.f32 %v2328, %v2432
  %v2463 = vmax.f32 %v2331, %v2435
  %v2464 = vmax.f32 %v2438, %v2439
  %v2465 = vmax.f32 %v2440, %v2441
  %v2466 = vmax.f32 %v2442, %v2443
  %v2467 = vmax.f32 %v2444, %v2445
  %v2468 = vmax.f32 %v2446, %v2447
  %v2469 = vmax.f32 %v2448, %v2449
  %v2470 = vmax.f32 %v2450, %v2451
  %v2471 = vmax.f32 %v2452, %v2453
  %v2472 = vmax.f32 %v2454, %v2455
  %v2473 = vmax.f32 %v2456, %v2457
  %v2474 = vmax.f32 %v2458, %v2459
  %v2475 = vmax.f32 %v2460, %v2461
  %v2476 = vmax.f32 %v2462, %v2463
  %v2477 = vadd.f32 %v2464, %v141
  %v2478 = vadd.f32 %v2465, %v146
  %v2479 = vadd.f32 %v2466, %v151
  %v2480 = vadd.f32 %v2467, %v156
  %v2481 = vadd.f32 %v2468, %v161
  %v2482 = vadd.f32 %v2469, %v166
  %v2483 = vadd.f32 %v2470, %v171
  %v2484 = vadd.f32 %v2471, %v176
  %v2485 = vadd.f32 %v2472, %v181
  %v2486 = vadd.f32 %v2473, %v186
  %v2487 = vadd.f32 %v2474, %v191
  %v2488 = vadd.f32 %v2475, %v196
  %v2489 = vadd.f32 %v2476, %v201
  %v2490 = vmax.f32 %v2477, 0.0
  %v2491 = vmax.f32 %v2478, 0.0
  %v2492 = vmax.f32 %v2479, 0.0
  %v2493 = vmax.f32 %v2480, 0.0
  %v2494 = vmax.f32 %v2481, 0.0
  %v2495 = vmax.f32 %v2482, 0.0
  %v2496 = vmax.f32 %v2483, 0.0
  %v2497 = vmax.f32 %v2484, 0.0
  %v2498 = vmax.f32 %v2485, 0.0
  %v2499 = vmax.f32 %v2486, 0.0
  %v2500 = vmax.f32 %v2487, 0.0
  %v2501 = vmax.f32 %v2488, 0.0
  %v2502 = vmax.f32 %v2489, 0.0
  %v2503 = vpack.c.bf16 %v2491, %v2490
  %v2504 = vpack.c.bf16 %v2493, %v2492
  %v2505 = vpack.c.bf16 %v2495, %v2494
  %v2506 = vpack.c.bf16 %v2497, %v2496
  %v2507 = vpack.c.bf16 %v2499, %v2498
  %v2508 = vpack.c.bf16 %v2501, %v2500
  %v2509 = vpack.c.bf16 %v2502, %v2502
  %v2517 = vunpack.c.l.b16 %v2503
  %v2518 = vunpack.c.h.b16 %v2503
  %v2519 = vunpack.c.l.b16 %v2504
  %v2520 = vunpack.c.h.b16 %v2504
  %v2521 = vunpack.c.l.b16 %v2505
  %v2522 = vunpack.c.h.b16 %v2505
  %v2523 = vunpack.c.l.b16 %v2506
  %v2524 = vunpack.c.h.b16 %v2506
  %v2525 = vunpack.c.l.b16 %v2507
  %v2526 = vunpack.c.h.b16 %v2507
  %v2527 = vunpack.c.l.b16 %v2508
  %v2528 = vunpack.c.h.b16 %v2508
  %v2529 = vunpack.c.l.b16 %v2509
  %v2530 = vpack.c.b16 %v2517, %v2517
  %v2531 = vpack.c.b16 %v2518, %v2518
  %v2532 = vpack.c.b16 %v2519, %v2519
  %v2533 = vpack.c.b16 %v2520, %v2520
  %v2534 = vpack.c.b16 %v2521, %v2521
  %v2535 = vpack.c.b16 %v2522, %v2522
  %v2536 = vpack.c.b16 %v2523, %v2523
  %v2537 = vpack.c.b16 %v2524, %v2524
  %v2538 = vpack.c.b16 %v2525, %v2525
  %v2539 = vpack.c.b16 %v2526, %v2526
  %v2540 = vpack.c.b16 %v2527, %v2527
  %v2541 = vpack.c.b16 %v2528, %v2528
  %v2542 = vpack.c.b16 %v2529, %v2529
  %2556 = vst [vmem:[#allocation2 + $0xd0] sm:$0xf] %v2530
  %2557 = vst [vmem:[#allocation2 + $0xd4] sm:$0xf] %v2531
  %2558 = vst [vmem:[#allocation2 + $0xd8] sm:$0xf] %v2532
  %2559 = vst [vmem:[#allocation2 + $0xdc] sm:$0xf] %v2533
  %2560 = vst [vmem:[#allocation2 + $0xe0] sm:$0xf] %v2534
  %2561 = vst [vmem:[#allocation2 + $0xe4] sm:$0xf] %v2535
  %2562 = vst [vmem:[#allocation2 + $0xe8] sm:$0xf] %v2536
  %2563 = vst [vmem:[#allocation2 + $0xec] sm:$0xf] %v2537
  %2564 = vst [vmem:[#allocation2 + $0xf0] sm:$0xf] %v2538
  %2565 = vst [vmem:[#allocation2 + $0xf4] sm:$0xf] %v2539
  %2566 = vst [vmem:[#allocation2 + $0xf8] sm:$0xf] %v2540
  %2567 = vst [vmem:[#allocation2 + $0xfc] sm:$0xf] %v2541
  %2568 = vst [vmem:[#allocation2 + $0x100] sm:$0xf] %v2542
  %v2569 = vld [vmem:[%s0 + $0xa0] sm:$0xf]
  %v2570 = vld [vmem:[%s0 + $0xa4] sm:$0xf]
  %v2571 = vld [vmem:[%s0 + $0xa8] sm:$0xf]
  %v2572 = vld [vmem:[%s0 + $0xac] sm:$0xf]
  %v2573 = vld [vmem:[%s0 + $0xb0] sm:$0xf]
  %v2574 = vld [vmem:[%s0 + $0xb4] sm:$0xf]
  %v2575 = vld [vmem:[%s0 + $0xb8] sm:$0xf]
  %v2576 = vld [vmem:[%s0 + $0xbc] sm:$0xf]
  %v2577 = vld [vmem:[%s0 + $0xc0] sm:$0xf]
  %v2578 = vld [vmem:[%s0 + $0xc4] sm:$0xf]
  %v2579 = vld [vmem:[%s0 + $0xc8] sm:$0xf]
  %v2580 = vld [vmem:[%s0 + $0xcc] sm:$0xf]
  %v2581 = vld [vmem:[%s0 + $0xd0] sm:$0xf]
  %v2582 = vld [vmem:[%s0 + $0xd4] sm:$0xf]
  %v2583 = vld [vmem:[%s0 + $0xd8] sm:$0xf]
  %v2584 = vld [vmem:[%s0 + $0xdc] sm:$0xf]
  %v2601 = vunpack.c.l.b16 %v2569
  %v2602 = vunpack.c.l.b16 %v2570
  %v2603 = vunpack.c.l.b16 %v2571
  %v2604 = vunpack.c.l.b16 %v2572
  %v2605 = vunpack.c.l.b16 %v2573
  %v2606 = vunpack.c.l.b16 %v2574
  %v2607 = vunpack.c.l.b16 %v2575
  %v2608 = vunpack.c.l.b16 %v2576
  %v2609 = vunpack.c.l.b16 %v2577
  %v2610 = vunpack.c.l.b16 %v2578
  %v2611 = vunpack.c.l.b16 %v2579
  %v2612 = vunpack.c.l.b16 %v2580
  %v2613 = vunpack.c.l.b16 %v2581
  %v2614 = vunpack.c.l.b16 %v2582
  %v2615 = vunpack.c.l.b16 %v2583
  %v2616 = vunpack.c.l.b16 %v2584
  %v2617 = vpack.c.b16 %v2602, %v2601
  %v2618 = vpack.c.b16 %v2604, %v2603
  %v2619 = vpack.c.b16 %v2606, %v2605
  %v2620 = vpack.c.b16 %v2608, %v2607
  %v2621 = vpack.c.b16 %v2610, %v2609
  %v2622 = vpack.c.b16 %v2612, %v2611
  %v2623 = vpack.c.b16 %v2614, %v2613
  %v2624 = vpack.c.b16 %v2616, %v2615
  %2633 = vmatprep.subr.bf16.mxu0 0
  %2634 = vmatpush1.bf16.msra.mxu0 %v2617
  %2635 = vmatprep.subr.bf16.mxu0 0
  %2636 = vmatpush1.bf16.msra.mxu0 %v2618
  %2637 = vmatprep.subr.bf16.mxu0 0
  %2638 = vmatpush1.bf16.msra.mxu0 %v2619
  %2639 = vmatprep.subr.bf16.mxu0 0
  %2640 = vmatpush1.bf16.msra.mxu0 %v2620
  %2641 = vmatprep.subr.bf16.mxu0 0
  %2642 = vmatpush1.bf16.msra.mxu0 %v2621
  %2643 = vmatprep.subr.bf16.mxu0 0
  %2644 = vmatpush1.bf16.msra.mxu0 %v2622
  %2645 = vmatprep.subr.bf16.mxu0 0
  %2646 = vmatpush1.bf16.msra.mxu0 %v2623
  %2647 = vmatprep.subr.bf16.mxu0 0
  %2648 = vmatpush1.bf16.msra.mxu0 %v2624
  %2649 = vmatprep.subr.bf16.mxu0 0
  %2650 = vmatpush1.bf16.msra.mxu0 0
  %2651 = vmatprep.subr.bf16.mxu0 0
  %2652 = vmatpush1.bf16.msra.mxu0 0
  %2653 = vmatprep.subr.bf16.mxu0 0
  %2654 = vmatpush1.bf16.msra.mxu0 0
  %2655 = vmatprep.subr.bf16.mxu0 0
  %2656 = vmatpush1.bf16.msra.mxu0 0
  %2657 = vmatprep.subr.bf16.mxu0 0
  %2658 = vmatpush1.bf16.msra.mxu0 0
  %2659 = vmatprep.subr.bf16.mxu0 0
  %2660 = vmatpush1.bf16.msra.mxu0 0
  %2661 = vmatprep.subr.bf16.mxu0 0
  %2662 = vmatpush1.bf16.msra.mxu0 0
  %2663 = vmatprep.subr.bf16.mxu0 0
  %2664 = vmatpush1.bf16.msra.mxu0 0
  %2665 = vmatprep.mubr.bf16.mxu0 0
  %2666 = vmatmul.mubr.bf16.gmra.mrb[0].mxu0 %v353
  %v2667 = vpop.f32.mrb[0].mxu0
  %v2668 = vadd.f32 0.0, %v2667
  %v2669 = vpop.f32.mrb[0].mxu0
  %v2670 = vpop.f32.mrb[0].mxu0
  %v2671 = vadd.f32 0.0, %v2670
  %v2672 = vpop.f32.mrb[0].mxu0
  %2673 = vmatprep.mubr.bf16.mxu0 0
  %2674 = vmatmul.mubr.bf16.gmra.mrb[0].mxu0 %v354
  %v2675 = vpop.f32.mrb[0].mxu0
  %v2676 = vadd.f32 0.0, %v2675
  %v2677 = vpop.f32.mrb[0].mxu0
  %v2678 = vpop.f32.mrb[0].mxu0
  %v2679 = vadd.f32 0.0, %v2678
  %v2680 = vpop.f32.mrb[0].mxu0
  %2681 = vmatprep.mubr.bf16.mxu0 0
  %2682 = vmatmul.mubr.bf16.gmra.mrb[0].mxu0 %v355
  %v2683 = vpop.f32.mrb[0].mxu0
  %v2684 = vadd.f32 0.0, %v2683
  %v2685 = vpop.f32.mrb[0].mxu0
  %v2686 = vpop.f32.mrb[0].mxu0
  %v2687 = vadd.f32 0.0, %v2686
  %v2688 = vpop.f32.mrb[0].mxu0
  %2689 = vmatprep.mubr.bf16.mxu0 0
  %2690 = vmatmul.mubr.bf16.gmra.mrb[0].mxu0 %v356
  %v2691 = vpop.f32.mrb[0].mxu0
  %v2692 = vadd.f32 0.0, %v2691
  %v2693 = vpop.f32.mrb[0].mxu0
  %v2694 = vpop.f32.mrb[0].mxu0
  %v2695 = vadd.f32 0.0, %v2694
  %v2696 = vpop.f32.mrb[0].mxu0
  %2697 = vmatprep.mubr.bf16.mxu0 0
  %2698 = vmatmul.mubr.bf16.gmra.mrb[0].mxu0 %v357
  %v2699 = vpop.f32.mrb[0].mxu0
  %v2700 = vadd.f32 0.0, %v2699
  %v2701 = vpop.f32.mrb[0].mxu0
  %v2702 = vpop.f32.mrb[0].mxu0
  %v2703 = vadd.f32 0.0, %v2702
  %v2704 = vpop.f32.mrb[0].mxu0
  %2705 = vmatprep.mubr.bf16.mxu0 0
  %2706 = vmatmul.mubr.bf16.gmra.mrb[0].mxu0 %v358
  %v2707 = vpop.f32.mrb[0].mxu0
  %v2708 = vadd.f32 0.0, %v2707
  %v2709 = vpop.f32.mrb[0].mxu0
  %v2710 = vpop.f32.mrb[0].mxu0
  %v2711 = vadd.f32 0.0, %v2710
  %v2712 = vpop.f32.mrb[0].mxu0
  %2713 = vmatprep.mubr.bf16.mxu0 0
  %2714 = vmatmul.mubr.bf16.gmra.mrb[0].mxu0 %v359
  %v2715 = vpop.f32.mrb[0].mxu0
  %v2716 = vadd.f32 0.0, %v2715
  %v2717 = vpop.f32.mrb[0].mxu0
  %v2718 = vpop.f32.mrb[0].mxu0
  %v2719 = vadd.f32 0.0, %v2718
  %v2720 = vpop.f32.mrb[0].mxu0
  %2721 = vmatprep.mubr.bf16.mxu0 0
  %2722 = vmatmul.mubr.bf16.gmra.mrb[0].mxu0 %v360
  %v2723 = vpop.f32.mrb[0].mxu0
  %v2724 = vadd.f32 0.0, %v2723
  %v2725 = vpop.f32.mrb[0].mxu0
  %v2726 = vpop.f32.mrb[0].mxu0
  %v2727 = vadd.f32 0.0, %v2726
  %v2728 = vpop.f32.mrb[0].mxu0
  %2729 = vmatprep.mubr.bf16.mxu0 0
  %2730 = vmatmul.mubr.bf16.gmra.mrb[0].mxu0 %v361
  %v2731 = vpop.f32.mrb[0].mxu0
  %v2732 = vadd.f32 0.0, %v2731
  %v2733 = vpop.f32.mrb[0].mxu0
  %v2734 = vpop.f32.mrb[0].mxu0
  %v2735 = vadd.f32 0.0, %v2734
  %v2736 = vpop.f32.mrb[0].mxu0
  %2737 = vmatprep.mubr.bf16.mxu0 0
  %2738 = vmatmul.mubr.bf16.gmra.mrb[0].mxu0 %v362
  %v2739 = vpop.f32.mrb[0].mxu0
  %v2740 = vadd.f32 0.0, %v2739
  %v2741 = vpop.f32.mrb[0].mxu0
  %v2742 = vpop.f32.mrb[0].mxu0
  %v2743 = vadd.f32 0.0, %v2742
  %v2744 = vpop.f32.mrb[0].mxu0
  %2745 = vmatprep.mubr.bf16.mxu0 0
  %2746 = vmatmul.mubr.bf16.gmra.mrb[0].mxu0 %v363
  %v2747 = vpop.f32.mrb[0].mxu0
  %v2748 = vadd.f32 0.0, %v2747
  %v2749 = vpop.f32.mrb[0].mxu0
  %v2750 = vpop.f32.mrb[0].mxu0
  %v2751 = vadd.f32 0.0, %v2750
  %v2752 = vpop.f32.mrb[0].mxu0
  %2753 = vmatprep.mubr.bf16.mxu0 0
  %2754 = vmatmul.mubr.bf16.gmra.mrb[0].mxu0 %v364
  %v2755 = vpop.f32.mrb[0].mxu0
  %v2756 = vadd.f32 0.0, %v2755
  %v2757 = vpop.f32.mrb[0].mxu0
  %v2758 = vpop.f32.mrb[0].mxu0
  %v2759 = vadd.f32 0.0, %v2758
  %v2760 = vpop.f32.mrb[0].mxu0
  %2761 = vmatprep.mubr.bf16.mxu0 0
  %2762 = vmatmul.mubr.bf16.gmra.mrb[0].mxu0 %v365
  %v2763 = vpop.f32.mrb[0].mxu0
  %v2764 = vadd.f32 0.0, %v2763
  %v2765 = vpop.f32.mrb[0].mxu0
  %v2766 = vpop.f32.mrb[0].mxu0
  %v2767 = vadd.f32 0.0, %v2766
  %v2768 = vpop.f32.mrb[0].mxu0
  %2769 = vmatprep.mubr.bf16.mxu0 0
  %2770 = vmatmul.mubr.bf16.gmra.mrb[0].mxu0 %v366
  %v2771 = vpop.f32.mrb[0].mxu0
  %v2772 = vadd.f32 0.0, %v2771
  %v2773 = vpop.f32.mrb[0].mxu0
  %v2774 = vpop.f32.mrb[0].mxu0
  %v2775 = vadd.f32 0.0, %v2774
  %v2776 = vpop.f32.mrb[0].mxu0
  %2777 = vmatprep.mubr.bf16.mxu0 0
  %2778 = vmatmul.mubr.bf16.gmra.mrb[0].mxu0 %v367
  %v2779 = vpop.f32.mrb[0].mxu0
  %v2780 = vadd.f32 0.0, %v2779
  %v2781 = vpop.f32.mrb[0].mxu0
  %v2782 = vpop.f32.mrb[0].mxu0
  %v2783 = vadd.f32 0.0, %v2782
  %v2784 = vpop.f32.mrb[0].mxu0
  %2785 = vmatprep.mubr.bf16.mxu0 0
  %2786 = vmatmul.mubr.bf16.gmra.mrb[0].mxu0 %v368
  %v2787 = vpop.f32.mrb[0].mxu0
  %v2788 = vadd.f32 0.0, %v2787
  %v2789 = vpop.f32.mrb[0].mxu0
  %v2790 = vpop.f32.mrb[0].mxu0
  %v2791 = vadd.f32 0.0, %v2790
  %v2792 = vpop.f32.mrb[0].mxu0
  %2793 = vmatprep.mubr.bf16.mxu0 0
  %2794 = vmatmul.mubr.bf16.gmra.mrb[0].mxu0 %v369
  %v2795 = vpop.f32.mrb[0].mxu0
  %v2796 = vadd.f32 0.0, %v2795
  %v2797 = vpop.f32.mrb[0].mxu0
  %v2798 = vpop.f32.mrb[0].mxu0
  %v2799 = vadd.f32 0.0, %v2798
  %v2800 = vpop.f32.mrb[0].mxu0
  %2801 = vmatprep.mubr.bf16.mxu0 0
  %2802 = vmatmul.mubr.bf16.gmra.mrb[0].mxu0 %v370
  %v2803 = vpop.f32.mrb[0].mxu0
  %v2804 = vadd.f32 0.0, %v2803
  %v2805 = vpop.f32.mrb[0].mxu0
  %v2806 = vpop.f32.mrb[0].mxu0
  %v2807 = vadd.f32 0.0, %v2806
  %v2808 = vpop.f32.mrb[0].mxu0
  %2809 = vmatprep.mubr.bf16.mxu0 0
  %2810 = vmatmul.mubr.bf16.gmra.mrb[0].mxu0 %v371
  %v2811 = vpop.f32.mrb[0].mxu0
  %v2812 = vadd.f32 0.0, %v2811
  %v2813 = vpop.f32.mrb[0].mxu0
  %v2814 = vpop.f32.mrb[0].mxu0
  %v2815 = vadd.f32 0.0, %v2814
  %v2816 = vpop.f32.mrb[0].mxu0
  %2817 = vmatprep.mubr.bf16.mxu0 0
  %2818 = vmatmul.mubr.bf16.gmra.mrb[0].mxu0 %v372
  %v2819 = vpop.f32.mrb[0].mxu0
  %v2820 = vadd.f32 0.0, %v2819
  %v2821 = vpop.f32.mrb[0].mxu0
  %v2822 = vpop.f32.mrb[0].mxu0
  %v2823 = vadd.f32 0.0, %v2822
  %v2824 = vpop.f32.mrb[0].mxu0
  %2825 = vmatprep.mubr.bf16.mxu0 0
  %2826 = vmatmul.mubr.bf16.gmra.mrb[0].mxu0 %v373
  %v2827 = vpop.f32.mrb[0].mxu0
  %v2828 = vadd.f32 0.0, %v2827
  %v2829 = vpop.f32.mrb[0].mxu0
  %v2830 = vpop.f32.mrb[0].mxu0
  %v2831 = vadd.f32 0.0, %v2830
  %v2832 = vpop.f32.mrb[0].mxu0
  %2833 = vmatprep.mubr.bf16.mxu0 0
  %2834 = vmatmul.mubr.bf16.gmra.mrb[0].mxu0 %v374
  %v2835 = vpop.f32.mrb[0].mxu0
  %v2836 = vadd.f32 0.0, %v2835
  %v2837 = vpop.f32.mrb[0].mxu0
  %v2838 = vpop.f32.mrb[0].mxu0
  %v2839 = vadd.f32 0.0, %v2838
  %v2840 = vpop.f32.mrb[0].mxu0
  %2841 = vmatprep.mubr.bf16.mxu0 0
  %2842 = vmatmul.mubr.bf16.gmra.mrb[0].mxu0 %v375
  %v2843 = vpop.f32.mrb[0].mxu0
  %v2844 = vadd.f32 0.0, %v2843
  %v2845 = vpop.f32.mrb[0].mxu0
  %v2846 = vpop.f32.mrb[0].mxu0
  %v2847 = vadd.f32 0.0, %v2846
  %v2848 = vpop.f32.mrb[0].mxu0
  %2849 = vmatprep.mubr.bf16.mxu0 0
  %2850 = vmatmul.mubr.bf16.gmra.mrb[0].mxu0 %v376
  %v2851 = vpop.f32.mrb[0].mxu0
  %v2852 = vadd.f32 0.0, %v2851
  %v2853 = vpop.f32.mrb[0].mxu0
  %v2854 = vpop.f32.mrb[0].mxu0
  %v2855 = vadd.f32 0.0, %v2854
  %v2856 = vpop.f32.mrb[0].mxu0
  %2857 = vmatprep.mubr.bf16.mxu0 0
  %2858 = vmatmul.mubr.bf16.gmra.mrb[0].mxu0 %v377
  %v2859 = vpop.f32.mrb[0].mxu0
  %v2860 = vadd.f32 0.0, %v2859
  %v2861 = vpop.f32.mrb[0].mxu0
  %v2862 = vpop.f32.mrb[0].mxu0
  %v2863 = vadd.f32 0.0, %v2862
  %v2864 = vpop.f32.mrb[0].mxu0
  %2865 = vmatprep.mubr.bf16.mxu0 0
  %2866 = vmatmul.mubr.bf16.gmra.mrb[0].mxu0 %v378
  %v2867 = vpop.f32.mrb[0].mxu0
  %v2868 = vadd.f32 0.0, %v2867
  %v2869 = vpop.f32.mrb[0].mxu0
  %v2870 = vpop.f32.mrb[0].mxu0
  %v2871 = vadd.f32 0.0, %v2870
  %v2872 = vpop.f32.mrb[0].mxu0
  %2873 = vdwg.mxu0
  %v2874 = vmax.f32 %v2668, %v2772
  %v2875 = vmax.f32 %v2671, %v2775
  %v2876 = vmax.f32 %v2676, %v2780
  %v2877 = vmax.f32 %v2679, %v2783
  %v2878 = vmax.f32 %v2684, %v2788
  %v2879 = vmax.f32 %v2687, %v2791
  %v2880 = vmax.f32 %v2692, %v2796
  %v2881 = vmax.f32 %v2695, %v2799
  %v2882 = vmax.f32 %v2700, %v2804
  %v2883 = vmax.f32 %v2703, %v2807
  %v2884 = vmax.f32 %v2708, %v2812
  %v2885 = vmax.f32 %v2711, %v2815
  %v2886 = vmax.f32 %v2716, %v2820
  %v2887 = vmax.f32 %v2719, %v2823
  %v2888 = vmax.f32 %v2724, %v2828
  %v2889 = vmax.f32 %v2727, %v2831
  %v2890 = vmax.f32 %v2732, %v2836
  %v2891 = vmax.f32 %v2735, %v2839
  %v2892 = vmax.f32 %v2740, %v2844
  %v2893 = vmax.f32 %v2743, %v2847
  %v2894 = vmax.f32 %v2748, %v2852
  %v2895 = vmax.f32 %v2751, %v2855
  %v2896 = vmax.f32 %v2756, %v2860
  %v2897 = vmax.f32 %v2759, %v2863
  %v2898 = vmax.f32 %v2764, %v2868
  %v2899 = vmax.f32 %v2767, %v2871
  %v2900 = vmax.f32 %v2874, %v2875
  %v2901 = vmax.f32 %v2876, %v2877
  %v2902 = vmax.f32 %v2878, %v2879
  %v2903 = vmax.f32 %v2880, %v2881
  %v2904 = vmax.f32 %v2882, %v2883
  %v2905 = vmax.f32 %v2884, %v2885
  %v2906 = vmax.f32 %v2886, %v2887
  %v2907 = vmax.f32 %v2888, %v2889
  %v2908 = vmax.f32 %v2890, %v2891
  %v2909 = vmax.f32 %v2892, %v2893
  %v2910 = vmax.f32 %v2894, %v2895
  %v2911 = vmax.f32 %v2896, %v2897
  %v2912 = vmax.f32 %v2898, %v2899
  %v2913 = vadd.f32 %v2900, %v141
  %v2914 = vadd.f32 %v2901, %v146
  %v2915 = vadd.f32 %v2902, %v151
  %v2916 = vadd.f32 %v2903, %v156
  %v2917 = vadd.f32 %v2904, %v161
  %v2918 = vadd.f32 %v2905, %v166
  %v2919 = vadd.f32 %v2906, %v171
  %v2920 = vadd.f32 %v2907, %v176
  %v2921 = vadd.f32 %v2908, %v181
  %v2922 = vadd.f32 %v2909, %v186
  %v2923 = vadd.f32 %v2910, %v191
  %v2924 = vadd.f32 %v2911, %v196
  %v2925 = vadd.f32 %v2912, %v201
  %v2926 = vmax.f32 %v2913, 0.0
  %v2927 = vmax.f32 %v2914, 0.0
  %v2928 = vmax.f32 %v2915, 0.0
  %v2929 = vmax.f32 %v2916, 0.0
  %v2930 = vmax.f32 %v2917, 0.0
  %v2931 = vmax.f32 %v2918, 0.0
  %v2932 = vmax.f32 %v2919, 0.0
  %v2933 = vmax.f32 %v2920, 0.0
  %v2934 = vmax.f32 %v2921, 0.0
  %v2935 = vmax.f32 %v2922, 0.0
  %v2936 = vmax.f32 %v2923, 0.0
  %v2937 = vmax.f32 %v2924, 0.0
  %v2938 = vmax.f32 %v2925, 0.0
  %v2939 = vpack.c.bf16 %v2927, %v2926
  %v2940 = vpack.c.bf16 %v2929, %v2928
  %v2941 = vpack.c.bf16 %v2931, %v2930
  %v2942 = vpack.c.bf16 %v2933, %v2932
  %v2943 = vpack.c.bf16 %v2935, %v2934
  %v2944 = vpack.c.bf16 %v2937, %v2936
  %v2945 = vpack.c.bf16 %v2938, %v2938
  %v2953 = vunpack.c.l.b16 %v2939
  %v2954 = vunpack.c.h.b16 %v2939
  %v2955 = vunpack.c.l.b16 %v2940
  %v2956 = vunpack.c.h.b16 %v2940
  %v2957 = vunpack.c.l.b16 %v2941
  %v2958 = vunpack.c.h.b16 %v2941
  %v2959 = vunpack.c.l.b16 %v2942
  %v2960 = vunpack.c.h.b16 %v2942
  %v2961 = vunpack.c.l.b16 %v2943
  %v2962 = vunpack.c.h.b16 %v2943
  %v2963 = vunpack.c.l.b16 %v2944
  %v2964 = vunpack.c.h.b16 %v2944
  %v2965 = vunpack.c.l.b16 %v2945
  %v2966 = vpack.c.b16 %v2953, %v2953
  %v2967 = vpack.c.b16 %v2954, %v2954
  %v2968 = vpack.c.b16 %v2955, %v2955
  %v2969 = vpack.c.b16 %v2956, %v2956
  %v2970 = vpack.c.b16 %v2957, %v2957
  %v2971 = vpack.c.b16 %v2958, %v2958
  %v2972 = vpack.c.b16 %v2959, %v2959
  %v2973 = vpack.c.b16 %v2960, %v2960
  %v2974 = vpack.c.b16 %v2961, %v2961
  %v2975 = vpack.c.b16 %v2962, %v2962
  %v2976 = vpack.c.b16 %v2963, %v2963
  %v2977 = vpack.c.b16 %v2964, %v2964
  %v2978 = vpack.c.b16 %v2965, %v2965
  %2992 = vst [vmem:[#allocation2 + $0x104] sm:$0xf] %v2966
  %2993 = vst [vmem:[#allocation2 + $0x108] sm:$0xf] %v2967
  %2994 = vst [vmem:[#allocation2 + $0x10c] sm:$0xf] %v2968
  %2995 = vst [vmem:[#allocation2 + $0x110] sm:$0xf] %v2969
  %2996 = vst [vmem:[#allocation2 + $0x114] sm:$0xf] %v2970
  %2997 = vst [vmem:[#allocation2 + $0x118] sm:$0xf] %v2971
  %2998 = vst [vmem:[#allocation2 + $0x11c] sm:$0xf] %v2972
  %2999 = vst [vmem:[#allocation2 + $0x120] sm:$0xf] %v2973
  %3000 = vst [vmem:[#allocation2 + $0x124] sm:$0xf] %v2974
  %3001 = vst [vmem:[#allocation2 + $0x128] sm:$0xf] %v2975
  %3002 = vst [vmem:[#allocation2 + $0x12c] sm:$0xf] %v2976
  %3003 = vst [vmem:[#allocation2 + $0x130] sm:$0xf] %v2977
  %3004 = vst [vmem:[#allocation2 + $0x134] sm:$0xf] %v2978
  %v3005 = vld [vmem:[%s0 + $0xc0] sm:$0xf]
  %v3006 = vld [vmem:[%s0 + $0xc4] sm:$0xf]
  %v3007 = vld [vmem:[%s0 + $0xc8] sm:$0xf]
  %v3008 = vld [vmem:[%s0 + $0xcc] sm:$0xf]
  %v3009 = vld [vmem:[%s0 + $0xd0] sm:$0xf]
  %v3010 = vld [vmem:[%s0 + $0xd4] sm:$0xf]
  %v3011 = vld [vmem:[%s0 + $0xd8] sm:$0xf]
  %v3012 = vld [vmem:[%s0 + $0xdc] sm:$0xf]
  %v3013 = vld [vmem:[%s0 + $0xe0] sm:$0xf]
  %v3014 = vld [vmem:[%s0 + $0xe4] sm:$0xf]
  %v3015 = vld [vmem:[%s0 + $0xe8] sm:$0xf]
  %v3016 = vld [vmem:[%s0 + $0xec] sm:$0xf]
  %v3017 = vld [vmem:[%s0 + $0xf0] sm:$0xf]
  %v3018 = vld [vmem:[%s0 + $0xf4] sm:$0xf]
  %v3019 = vld [vmem:[%s0 + $0xf8] sm:$0xf]
  %v3020 = vld [vmem:[%s0 + $0xfc] sm:$0xf]
  %v3037 = vunpack.c.l.b16 %v3005
  %v3038 = vunpack.c.l.b16 %v3006
  %v3039 = vunpack.c.l.b16 %v3007
  %v3040 = vunpack.c.l.b16 %v3008
  %v3041 = vunpack.c.l.b16 %v3009
  %v3042 = vunpack.c.l.b16 %v3010
  %v3043 = vunpack.c.l.b16 %v3011
  %v3044 = vunpack.c.l.b16 %v3012
  %v3045 = vunpack.c.l.b16 %v3013
  %v3046 = vunpack.c.l.b16 %v3014
  %v3047 = vunpack.c.l.b16 %v3015
  %v3048 = vunpack.c.l.b16 %v3016
  %v3049 = vunpack.c.l.b16 %v3017
  %v3050 = vunpack.c.l.b16 %v3018
  %v3051 = vunpack.c.l.b16 %v3019
  %v3052 = vunpack.c.l.b16 %v3020
  %v3053 = vpack.c.b16 %v3038, %v3037
  %v3054 = vpack.c.b16 %v3040, %v3039
  %v3055 = vpack.c.b16 %v3042, %v3041
  %v3056 = vpack.c.b16 %v3044, %v3043
  %v3057 = vpack.c.b16 %v3046, %v3045
  %v3058 = vpack.c.b16 %v3048, %v3047
  %v3059 = vpack.c.b16 %v3050, %v3049
  %v3060 = vpack.c.b16 %v3052, %v3051
  %3069 = vmatprep.subr.bf16.mxu0 0
  %3070 = vmatpush1.bf16.msra.mxu0 %v3053
  %3071 = vmatprep.subr.bf16.mxu0 0
  %3072 = vmatpush1.bf16.msra.mxu0 %v3054
  %3073 = vmatprep.subr.bf16.mxu0 0
  %3074 = vmatpush1.bf16.msra.mxu0 %v3055
  %3075 = vmatprep.subr.bf16.mxu0 0
  %3076 = vmatpush1.bf16.msra.mxu0 %v3056
  %3077 = vmatprep.subr.bf16.mxu0 0
  %3078 = vmatpush1.bf16.msra.mxu0 %v3057
  %3079 = vmatprep.subr.bf16.mxu0 0
  %3080 = vmatpush1.bf16.msra.mxu0 %v3058
  %3081 = vmatprep.subr.bf16.mxu0 0
  %3082 = vmatpush1.bf16.msra.mxu0 %v3059
  %3083 = vmatprep.subr.bf16.mxu0 0
  %3084 = vmatpush1.bf16.msra.mxu0 %v3060
  %3085 = vmatprep.subr.bf16.mxu0 0
  %3086 = vmatpush1.bf16.msra.mxu0 0
  %3087 = vmatprep.subr.bf16.mxu0 0
  %3088 = vmatpush1.bf16.msra.mxu0 0
  %3089 = vmatprep.subr.bf16.mxu0 0
  %3090 = vmatpush1.bf16.msra.mxu0 0
  %3091 = vmatprep.subr.bf16.mxu0 0
  %3092 = vmatpush1.bf16.msra.mxu0 0
  %3093 = vmatprep.subr.bf16.mxu0 0
  %3094 = vmatpush1.bf16.msra.mxu0 0
  %3095 = vmatprep.subr.bf16.mxu0 0
  %3096 = vmatpush1.bf16.msra.mxu0 0
  %3097 = vmatprep.subr.bf16.mxu0 0
  %3098 = vmatpush1.bf16.msra.mxu0 0
  %3099 = vmatprep.subr.bf16.mxu0 0
  %3100 = vmatpush1.bf16.msra.mxu0 0
  %3101 = vmatprep.mubr.bf16.mxu0 0
  %3102 = vmatmul.mubr.bf16.gmra.mrb[0].mxu0 %v353
  %v3103 = vpop.f32.mrb[0].mxu0
  %v3104 = vadd.f32 0.0, %v3103
  %v3105 = vpop.f32.mrb[0].mxu0
  %v3106 = vpop.f32.mrb[0].mxu0
  %v3107 = vadd.f32 0.0, %v3106
  %v3108 = vpop.f32.mrb[0].mxu0
  %3109 = vmatprep.mubr.bf16.mxu0 0
  %3110 = vmatmul.mubr.bf16.gmra.mrb[0].mxu0 %v354
  %v3111 = vpop.f32.mrb[0].mxu0
  %v3112 = vadd.f32 0.0, %v3111
  %v3113 = vpop.f32.mrb[0].mxu0
  %v3114 = vpop.f32.mrb[0].mxu0
  %v3115 = vadd.f32 0.0, %v3114
  %v3116 = vpop.f32.mrb[0].mxu0
  %3117 = vmatprep.mubr.bf16.mxu0 0
  %3118 = vmatmul.mubr.bf16.gmra.mrb[0].mxu0 %v355
  %v3119 = vpop.f32.mrb[0].mxu0
  %v3120 = vadd.f32 0.0, %v3119
  %v3121 = vpop.f32.mrb[0].mxu0
  %v3122 = vpop.f32.mrb[0].mxu0
  %v3123 = vadd.f32 0.0, %v3122
  %v3124 = vpop.f32.mrb[0].mxu0
  %3125 = vmatprep.mubr.bf16.mxu0 0
  %3126 = vmatmul.mubr.bf16.gmra.mrb[0].mxu0 %v356
  %v3127 = vpop.f32.mrb[0].mxu0
  %v3128 = vadd.f32 0.0, %v3127
  %v3129 = vpop.f32.mrb[0].mxu0
  %v3130 = vpop.f32.mrb[0].mxu0
  %v3131 = vadd.f32 0.0, %v3130
  %v3132 = vpop.f32.mrb[0].mxu0
  %3133 = vmatprep.mubr.bf16.mxu0 0
  %3134 = vmatmul.mubr.bf16.gmra.mrb[0].mxu0 %v357
  %v3135 = vpop.f32.mrb[0].mxu0
  %v3136 = vadd.f32 0.0, %v3135
  %v3137 = vpop.f32.mrb[0].mxu0
  %v3138 = vpop.f32.mrb[0].mxu0
  %v3139 = vadd.f32 0.0, %v3138
  %v3140 = vpop.f32.mrb[0].mxu0
  %3141 = vmatprep.mubr.bf16.mxu0 0
  %3142 = vmatmul.mubr.bf16.gmra.mrb[0].mxu0 %v358
  %v3143 = vpop.f32.mrb[0].mxu0
  %v3144 = vadd.f32 0.0, %v3143
  %v3145 = vpop.f32.mrb[0].mxu0
  %v3146 = vpop.f32.mrb[0].mxu0
  %v3147 = vadd.f32 0.0, %v3146
  %v3148 = vpop.f32.mrb[0].mxu0
  %3149 = vmatprep.mubr.bf16.mxu0 0
  %3150 = vmatmul.mubr.bf16.gmra.mrb[0].mxu0 %v359
  %v3151 = vpop.f32.mrb[0].mxu0
  %v3152 = vadd.f32 0.0, %v3151
  %v3153 = vpop.f32.mrb[0].mxu0
  %v3154 = vpop.f32.mrb[0].mxu0
  %v3155 = vadd.f32 0.0, %v3154
  %v3156 = vpop.f32.mrb[0].mxu0
  %3157 = vmatprep.mubr.bf16.mxu0 0
  %3158 = vmatmul.mubr.bf16.gmra.mrb[0].mxu0 %v360
  %v3159 = vpop.f32.mrb[0].mxu0
  %v3160 = vadd.f32 0.0, %v3159
  %v3161 = vpop.f32.mrb[0].mxu0
  %v3162 = vpop.f32.mrb[0].mxu0
  %v3163 = vadd.f32 0.0, %v3162
  %v3164 = vpop.f32.mrb[0].mxu0
  %3165 = vmatprep.mubr.bf16.mxu0 0
  %3166 = vmatmul.mubr.bf16.gmra.mrb[0].mxu0 %v361
  %v3167 = vpop.f32.mrb[0].mxu0
  %v3168 = vadd.f32 0.0, %v3167
  %v3169 = vpop.f32.mrb[0].mxu0
  %v3170 = vpop.f32.mrb[0].mxu0
  %v3171 = vadd.f32 0.0, %v3170
  %v3172 = vpop.f32.mrb[0].mxu0
  %3173 = vmatprep.mubr.bf16.mxu0 0
  %3174 = vmatmul.mubr.bf16.gmra.mrb[0].mxu0 %v362
  %v3175 = vpop.f32.mrb[0].mxu0
  %v3176 = vadd.f32 0.0, %v3175
  %v3177 = vpop.f32.mrb[0].mxu0
  %v3178 = vpop.f32.mrb[0].mxu0
  %v3179 = vadd.f32 0.0, %v3178
  %v3180 = vpop.f32.mrb[0].mxu0
  %3181 = vmatprep.mubr.bf16.mxu0 0
  %3182 = vmatmul.mubr.bf16.gmra.mrb[0].mxu0 %v363
  %v3183 = vpop.f32.mrb[0].mxu0
  %v3184 = vadd.f32 0.0, %v3183
  %v3185 = vpop.f32.mrb[0].mxu0
  %v3186 = vpop.f32.mrb[0].mxu0
  %v3187 = vadd.f32 0.0, %v3186
  %v3188 = vpop.f32.mrb[0].mxu0
  %3189 = vmatprep.mubr.bf16.mxu0 0
  %3190 = vmatmul.mubr.bf16.gmra.mrb[0].mxu0 %v364
  %v3191 = vpop.f32.mrb[0].mxu0
  %v3192 = vadd.f32 0.0, %v3191
  %v3193 = vpop.f32.mrb[0].mxu0
  %v3194 = vpop.f32.mrb[0].mxu0
  %v3195 = vadd.f32 0.0, %v3194
  %v3196 = vpop.f32.mrb[0].mxu0
  %3197 = vmatprep.mubr.bf16.mxu0 0
  %3198 = vmatmul.mubr.bf16.gmra.mrb[0].mxu0 %v365
  %v3199 = vpop.f32.mrb[0].mxu0
  %v3200 = vadd.f32 0.0, %v3199
  %v3201 = vpop.f32.mrb[0].mxu0
  %v3202 = vpop.f32.mrb[0].mxu0
  %v3203 = vadd.f32 0.0, %v3202
  %v3204 = vpop.f32.mrb[0].mxu0
  %3205 = vmatprep.mubr.bf16.mxu0 0
  %3206 = vmatmul.mubr.bf16.gmra.mrb[0].mxu0 %v366
  %v3207 = vpop.f32.mrb[0].mxu0
  %v3208 = vadd.f32 0.0, %v3207
  %v3209 = vpop.f32.mrb[0].mxu0
  %v3210 = vpop.f32.mrb[0].mxu0
  %v3211 = vadd.f32 0.0, %v3210
  %v3212 = vpop.f32.mrb[0].mxu0
  %3213 = vmatprep.mubr.bf16.mxu0 0
  %3214 = vmatmul.mubr.bf16.gmra.mrb[0].mxu0 %v367
  %v3215 = vpop.f32.mrb[0].mxu0
  %v3216 = vadd.f32 0.0, %v3215
  %v3217 = vpop.f32.mrb[0].mxu0
  %v3218 = vpop.f32.mrb[0].mxu0
  %v3219 = vadd.f32 0.0, %v3218
  %v3220 = vpop.f32.mrb[0].mxu0
  %3221 = vmatprep.mubr.bf16.mxu0 0
  %3222 = vmatmul.mubr.bf16.gmra.mrb[0].mxu0 %v368
  %v3223 = vpop.f32.mrb[0].mxu0
  %v3224 = vadd.f32 0.0, %v3223
  %v3225 = vpop.f32.mrb[0].mxu0
  %v3226 = vpop.f32.mrb[0].mxu0
  %v3227 = vadd.f32 0.0, %v3226
  %v3228 = vpop.f32.mrb[0].mxu0
  %3229 = vmatprep.mubr.bf16.mxu0 0
  %3230 = vmatmul.mubr.bf16.gmra.mrb[0].mxu0 %v369
  %v3231 = vpop.f32.mrb[0].mxu0
  %v3232 = vadd.f32 0.0, %v3231
  %v3233 = vpop.f32.mrb[0].mxu0
  %v3234 = vpop.f32.mrb[0].mxu0
  %v3235 = vadd.f32 0.0, %v3234
  %v3236 = vpop.f32.mrb[0].mxu0
  %3237 = vmatprep.mubr.bf16.mxu0 0
  %3238 = vmatmul.mubr.bf16.gmra.mrb[0].mxu0 %v370
  %v3239 = vpop.f32.mrb[0].mxu0
  %v3240 = vadd.f32 0.0, %v3239
  %v3241 = vpop.f32.mrb[0].mxu0
  %v3242 = vpop.f32.mrb[0].mxu0
  %v3243 = vadd.f32 0.0, %v3242
  %v3244 = vpop.f32.mrb[0].mxu0
  %3245 = vmatprep.mubr.bf16.mxu0 0
  %3246 = vmatmul.mubr.bf16.gmra.mrb[0].mxu0 %v371
  %v3247 = vpop.f32.mrb[0].mxu0
  %v3248 = vadd.f32 0.0, %v3247
  %v3249 = vpop.f32.mrb[0].mxu0
  %v3250 = vpop.f32.mrb[0].mxu0
  %v3251 = vadd.f32 0.0, %v3250
  %v3252 = vpop.f32.mrb[0].mxu0
  %3253 = vmatprep.mubr.bf16.mxu0 0
  %3254 = vmatmul.mubr.bf16.gmra.mrb[0].mxu0 %v372
  %v3255 = vpop.f32.mrb[0].mxu0
  %v3256 = vadd.f32 0.0, %v3255
  %v3257 = vpop.f32.mrb[0].mxu0
  %v3258 = vpop.f32.mrb[0].mxu0
  %v3259 = vadd.f32 0.0, %v3258
  %v3260 = vpop.f32.mrb[0].mxu0
  %3261 = vmatprep.mubr.bf16.mxu0 0
  %3262 = vmatmul.mubr.bf16.gmra.mrb[0].mxu0 %v373
  %v3263 = vpop.f32.mrb[0].mxu0
  %v3264 = vadd.f32 0.0, %v3263
  %v3265 = vpop.f32.mrb[0].mxu0
  %v3266 = vpop.f32.mrb[0].mxu0
  %v3267 = vadd.f32 0.0, %v3266
  %v3268 = vpop.f32.mrb[0].mxu0
  %3269 = vmatprep.mubr.bf16.mxu0 0
  %3270 = vmatmul.mubr.bf16.gmra.mrb[0].mxu0 %v374
  %v3271 = vpop.f32.mrb[0].mxu0
  %v3272 = vadd.f32 0.0, %v3271
  %v3273 = vpop.f32.mrb[0].mxu0
  %v3274 = vpop.f32.mrb[0].mxu0
  %v3275 = vadd.f32 0.0, %v3274
  %v3276 = vpop.f32.mrb[0].mxu0
  %3277 = vmatprep.mubr.bf16.mxu0 0
  %3278 = vmatmul.mubr.bf16.gmra.mrb[0].mxu0 %v375
  %v3279 = vpop.f32.mrb[0].mxu0
  %v3280 = vadd.f32 0.0, %v3279
  %v3281 = vpop.f32.mrb[0].mxu0
  %v3282 = vpop.f32.mrb[0].mxu0
  %v3283 = vadd.f32 0.0, %v3282
  %v3284 = vpop.f32.mrb[0].mxu0
  %3285 = vmatprep.mubr.bf16.mxu0 0
  %3286 = vmatmul.mubr.bf16.gmra.mrb[0].mxu0 %v376
  %v3287 = vpop.f32.mrb[0].mxu0
  %v3288 = vadd.f32 0.0, %v3287
  %v3289 = vpop.f32.mrb[0].mxu0
  %v3290 = vpop.f32.mrb[0].mxu0
  %v3291 = vadd.f32 0.0, %v3290
  %v3292 = vpop.f32.mrb[0].mxu0
  %3293 = vmatprep.mubr.bf16.mxu0 0
  %3294 = vmatmul.mubr.bf16.gmra.mrb[0].mxu0 %v377
  %v3295 = vpop.f32.mrb[0].mxu0
  %v3296 = vadd.f32 0.0, %v3295
  %v3297 = vpop.f32.mrb[0].mxu0
  %v3298 = vpop.f32.mrb[0].mxu0
  %v3299 = vadd.f32 0.0, %v3298
  %v3300 = vpop.f32.mrb[0].mxu0
  %3301 = vmatprep.mubr.bf16.mxu0 0
  %3302 = vmatmul.mubr.bf16.gmra.mrb[0].mxu0 %v378
  %v3303 = vpop.f32.mrb[0].mxu0
  %v3304 = vadd.f32 0.0, %v3303
  %v3305 = vpop.f32.mrb[0].mxu0
  %v3306 = vpop.f32.mrb[0].mxu0
  %v3307 = vadd.f32 0.0, %v3306
  %v3308 = vpop.f32.mrb[0].mxu0
  %3309 = vdwg.mxu0
  %v3310 = vmax.f32 %v3104, %v3208
  %v3311 = vmax.f32 %v3107, %v3211
  %v3312 = vmax.f32 %v3112, %v3216
  %v3313 = vmax.f32 %v3115, %v3219
  %v3314 = vmax.f32 %v3120, %v3224
  %v3315 = vmax.f32 %v3123, %v3227
  %v3316 = vmax.f32 %v3128, %v3232
  %v3317 = vmax.f32 %v3131, %v3235
  %v3318 = vmax.f32 %v3136, %v3240
  %v3319 = vmax.f32 %v3139, %v3243
  %v3320 = vmax.f32 %v3144, %v3248
  %v3321 = vmax.f32 %v3147, %v3251
  %v3322 = vmax.f32 %v3152, %v3256
  %v3323 = vmax.f32 %v3155, %v3259
  %v3324 = vmax.f32 %v3160, %v3264
  %v3325 = vmax.f32 %v3163, %v3267
  %v3326 = vmax.f32 %v3168, %v3272
  %v3327 = vmax.f32 %v3171, %v3275
  %v3328 = vmax.f32 %v3176, %v3280
  %v3329 = vmax.f32 %v3179, %v3283
  %v3330 = vmax.f32 %v3184, %v3288
  %v3331 = vmax.f32 %v3187, %v3291
  %v3332 = vmax.f32 %v3192, %v3296
  %v3333 = vmax.f32 %v3195, %v3299
  %v3334 = vmax.f32 %v3200, %v3304
  %v3335 = vmax.f32 %v3203, %v3307
  %v3336 = vmax.f32 %v3310, %v3311
  %v3337 = vmax.f32 %v3312, %v3313
  %v3338 = vmax.f32 %v3314, %v3315
  %v3339 = vmax.f32 %v3316, %v3317
  %v3340 = vmax.f32 %v3318, %v3319
  %v3341 = vmax.f32 %v3320, %v3321
  %v3342 = vmax.f32 %v3322, %v3323
  %v3343 = vmax.f32 %v3324, %v3325
  %v3344 = vmax.f32 %v3326, %v3327
  %v3345 = vmax.f32 %v3328, %v3329
  %v3346 = vmax.f32 %v3330, %v3331
  %v3347 = vmax.f32 %v3332, %v3333
  %v3348 = vmax.f32 %v3334, %v3335
  %v3349 = vadd.f32 %v3336, %v141
  %v3350 = vadd.f32 %v3337, %v146
  %v3351 = vadd.f32 %v3338, %v151
  %v3352 = vadd.f32 %v3339, %v156
  %v3353 = vadd.f32 %v3340, %v161
  %v3354 = vadd.f32 %v3341, %v166
  %v3355 = vadd.f32 %v3342, %v171
  %v3356 = vadd.f32 %v3343, %v176
  %v3357 = vadd.f32 %v3344, %v181
  %v3358 = vadd.f32 %v3345, %v186
  %v3359 = vadd.f32 %v3346, %v191
  %v3360 = vadd.f32 %v3347, %v196
  %v3361 = vadd.f32 %v3348, %v201
  %v3362 = vmax.f32 %v3349, 0.0
  %v3363 = vmax.f32 %v3350, 0.0
  %v3364 = vmax.f32 %v3351, 0.0
  %v3365 = vmax.f32 %v3352, 0.0
  %v3366 = vmax.f32 %v3353, 0.0
  %v3367 = vmax.f32 %v3354, 0.0
  %v3368 = vmax.f32 %v3355, 0.0
  %v3369 = vmax.f32 %v3356, 0.0
  %v3370 = vmax.f32 %v3357, 0.0
  %v3371 = vmax.f32 %v3358, 0.0
  %v3372 = vmax.f32 %v3359, 0.0
  %v3373 = vmax.f32 %v3360, 0.0
  %v3374 = vmax.f32 %v3361, 0.0
  %v3375 = vpack.c.bf16 %v3363, %v3362
  %v3376 = vpack.c.bf16 %v3365, %v3364
  %v3377 = vpack.c.bf16 %v3367, %v3366
  %v3378 = vpack.c.bf16 %v3369, %v3368
  %v3379 = vpack.c.bf16 %v3371, %v3370
  %v3380 = vpack.c.bf16 %v3373, %v3372
  %v3381 = vpack.c.bf16 %v3374, %v3374
  %v3389 = vunpack.c.l.b16 %v3375
  %v3390 = vunpack.c.h.b16 %v3375
  %v3391 = vunpack.c.l.b16 %v3376
  %v3392 = vunpack.c.h.b16 %v3376
  %v3393 = vunpack.c.l.b16 %v3377
  %v3394 = vunpack.c.h.b16 %v3377
  %v3395 = vunpack.c.l.b16 %v3378
  %v3396 = vunpack.c.h.b16 %v3378
  %v3397 = vunpack.c.l.b16 %v3379
  %v3398 = vunpack.c.h.b16 %v3379
  %v3399 = vunpack.c.l.b16 %v3380
  %v3400 = vunpack.c.h.b16 %v3380
  %v3401 = vunpack.c.l.b16 %v3381
  %v3402 = vpack.c.b16 %v3389, %v3389
  %v3403 = vpack.c.b16 %v3390, %v3390
  %v3404 = vpack.c.b16 %v3391, %v3391
  %v3405 = vpack.c.b16 %v3392, %v3392
  %v3406 = vpack.c.b16 %v3393, %v3393
  %v3407 = vpack.c.b16 %v3394, %v3394
  %v3408 = vpack.c.b16 %v3395, %v3395
  %v3409 = vpack.c.b16 %v3396, %v3396
  %v3410 = vpack.c.b16 %v3397, %v3397
  %v3411 = vpack.c.b16 %v3398, %v3398
  %v3412 = vpack.c.b16 %v3399, %v3399
  %v3413 = vpack.c.b16 %v3400, %v3400
  %v3414 = vpack.c.b16 %v3401, %v3401
  %3428 = vst [vmem:[#allocation2 + $0x138] sm:$0xf] %v3402
  %3429 = vst [vmem:[#allocation2 + $0x13c] sm:$0xf] %v3403
  %3430 = vst [vmem:[#allocation2 + $0x140] sm:$0xf] %v3404
  %3431 = vst [vmem:[#allocation2 + $0x144] sm:$0xf] %v3405
  %3432 = vst [vmem:[#allocation2 + $0x148] sm:$0xf] %v3406
  %3433 = vst [vmem:[#allocation2 + $0x14c] sm:$0xf] %v3407
  %3434 = vst [vmem:[#allocation2 + $0x150] sm:$0xf] %v3408
  %3435 = vst [vmem:[#allocation2 + $0x154] sm:$0xf] %v3409
  %3436 = vst [vmem:[#allocation2 + $0x158] sm:$0xf] %v3410
  %3437 = vst [vmem:[#allocation2 + $0x15c] sm:$0xf] %v3411
  %3438 = vst [vmem:[#allocation2 + $0x160] sm:$0xf] %v3412
  %3439 = vst [vmem:[#allocation2 + $0x164] sm:$0xf] %v3413
  %3440 = vst [vmem:[#allocation2 + $0x168] sm:$0xf] %v3414
  %v3441 = vld [vmem:[%s0 + $0xe0] sm:$0xf]
  %v3442 = vld [vmem:[%s0 + $0xe4] sm:$0xf]
  %v3443 = vld [vmem:[%s0 + $0xe8] sm:$0xf]
  %v3444 = vld [vmem:[%s0 + $0xec] sm:$0xf]
  %v3445 = vld [vmem:[%s0 + $0xf0] sm:$0xf]
  %v3446 = vld [vmem:[%s0 + $0xf4] sm:$0xf]
  %v3447 = vld [vmem:[%s0 + $0xf8] sm:$0xf]
  %v3448 = vld [vmem:[%s0 + $0xfc] sm:$0xf]
  %v3449 = vld [vmem:[%s0 + $0x100] sm:$0xf]
  %v3450 = vld [vmem:[%s0 + $0x104] sm:$0xf]
  %v3451 = vld [vmem:[%s0 + $0x108] sm:$0xf]
  %v3452 = vld [vmem:[%s0 + $0x10c] sm:$0xf]
  %v3453 = vld [vmem:[%s0 + $0x110] sm:$0xf]
  %v3454 = vld [vmem:[%s0 + $0x114] sm:$0xf]
  %v3455 = vld [vmem:[%s0 + $0x118] sm:$0xf]
  %v3456 = vld [vmem:[%s0 + $0x11c] sm:$0xf]
  %v3473 = vunpack.c.l.b16 %v3441
  %v3474 = vunpack.c.l.b16 %v3442
  %v3475 = vunpack.c.l.b16 %v3443
  %v3476 = vunpack.c.l.b16 %v3444
  %v3477 = vunpack.c.l.b16 %v3445
  %v3478 = vunpack.c.l.b16 %v3446
  %v3479 = vunpack.c.l.b16 %v3447
  %v3480 = vunpack.c.l.b16 %v3448
  %v3481 = vunpack.c.l.b16 %v3449
  %v3482 = vunpack.c.l.b16 %v3450
  %v3483 = vunpack.c.l.b16 %v3451
  %v3484 = vunpack.c.l.b16 %v3452
  %v3485 = vunpack.c.l.b16 %v3453
  %v3486 = vunpack.c.l.b16 %v3454
  %v3487 = vunpack.c.l.b16 %v3455
  %v3488 = vunpack.c.l.b16 %v3456
  %v3489 = vpack.c.b16 %v3474, %v3473
  %v3490 = vpack.c.b16 %v3476, %v3475
  %v3491 = vpack.c.b16 %v3478, %v3477
  %v3492 = vpack.c.b16 %v3480, %v3479
  %v3493 = vpack.c.b16 %v3482, %v3481
  %v3494 = vpack.c.b16 %v3484, %v3483
  %v3495 = vpack.c.b16 %v3486, %v3485
  %v3496 = vpack.c.b16 %v3488, %v3487
  %3505 = vmatprep.subr.bf16.mxu0 0
  %3506 = vmatpush1.bf16.msra.mxu0 %v3489
  %3507 = vmatprep.subr.bf16.mxu0 0
  %3508 = vmatpush1.bf16.msra.mxu0 %v3490
  %3509 = vmatprep.subr.bf16.mxu0 0
  %3510 = vmatpush1.bf16.msra.mxu0 %v3491
  %3511 = vmatprep.subr.bf16.mxu0 0
  %3512 = vmatpush1.bf16.msra.mxu0 %v3492
  %3513 = vmatprep.subr.bf16.mxu0 0
  %3514 = vmatpush1.bf16.msra.mxu0 %v3493
  %3515 = vmatprep.subr.bf16.mxu0 0
  %3516 = vmatpush1.bf16.msra.mxu0 %v3494
  %3517 = vmatprep.subr.bf16.mxu0 0
  %3518 = vmatpush1.bf16.msra.mxu0 %v3495
  %3519 = vmatprep.subr.bf16.mxu0 0
  %3520 = vmatpush1.bf16.msra.mxu0 %v3496
  %3521 = vmatprep.subr.bf16.mxu0 0
  %3522 = vmatpush1.bf16.msra.mxu0 0
  %3523 = vmatprep.subr.bf16.mxu0 0
  %3524 = vmatpush1.bf16.msra.mxu0 0
  %3525 = vmatprep.subr.bf16.mxu0 0
  %3526 = vmatpush1.bf16.msra.mxu0 0
  %3527 = vmatprep.subr.bf16.mxu0 0
  %3528 = vmatpush1.bf16.msra.mxu0 0
  %3529 = vmatprep.subr.bf16.mxu0 0
  %3530 = vmatpush1.bf16.msra.mxu0 0
  %3531 = vmatprep.subr.bf16.mxu0 0
  %3532 = vmatpush1.bf16.msra.mxu0 0
  %3533 = vmatprep.subr.bf16.mxu0 0
  %3534 = vmatpush1.bf16.msra.mxu0 0
  %3535 = vmatprep.subr.bf16.mxu0 0
  %3536 = vmatpush1.bf16.msra.mxu0 0
  %3537 = vmatprep.mubr.bf16.mxu0 0
  %3538 = vmatmul.mubr.bf16.gmra.mrb[0].mxu0 %v353
  %v3539 = vpop.f32.mrb[0].mxu0
  %v3540 = vadd.f32 0.0, %v3539
  %v3541 = vpop.f32.mrb[0].mxu0
  %v3542 = vpop.f32.mrb[0].mxu0
  %v3543 = vadd.f32 0.0, %v3542
  %v3544 = vpop.f32.mrb[0].mxu0
  %3545 = vmatprep.mubr.bf16.mxu0 0
  %3546 = vmatmul.mubr.bf16.gmra.mrb[0].mxu0 %v354
  %v3547 = vpop.f32.mrb[0].mxu0
  %v3548 = vadd.f32 0.0, %v3547
  %v3549 = vpop.f32.mrb[0].mxu0
  %v3550 = vpop.f32.mrb[0].mxu0
  %v3551 = vadd.f32 0.0, %v3550
  %v3552 = vpop.f32.mrb[0].mxu0
  %3553 = vmatprep.mubr.bf16.mxu0 0
  %3554 = vmatmul.mubr.bf16.gmra.mrb[0].mxu0 %v355
  %v3555 = vpop.f32.mrb[0].mxu0
  %v3556 = vadd.f32 0.0, %v3555
  %v3557 = vpop.f32.mrb[0].mxu0
  %v3558 = vpop.f32.mrb[0].mxu0
  %v3559 = vadd.f32 0.0, %v3558
  %v3560 = vpop.f32.mrb[0].mxu0
  %3561 = vmatprep.mubr.bf16.mxu0 0
  %3562 = vmatmul.mubr.bf16.gmra.mrb[0].mxu0 %v356
  %v3563 = vpop.f32.mrb[0].mxu0
  %v3564 = vadd.f32 0.0, %v3563
  %v3565 = vpop.f32.mrb[0].mxu0
  %v3566 = vpop.f32.mrb[0].mxu0
  %v3567 = vadd.f32 0.0, %v3566
  %v3568 = vpop.f32.mrb[0].mxu0
  %3569 = vmatprep.mubr.bf16.mxu0 0
  %3570 = vmatmul.mubr.bf16.gmra.mrb[0].mxu0 %v357
  %v3571 = vpop.f32.mrb[0].mxu0
  %v3572 = vadd.f32 0.0, %v3571
  %v3573 = vpop.f32.mrb[0].mxu0
  %v3574 = vpop.f32.mrb[0].mxu0
  %v3575 = vadd.f32 0.0, %v3574
  %v3576 = vpop.f32.mrb[0].mxu0
  %3577 = vmatprep.mubr.bf16.mxu0 0
  %3578 = vmatmul.mubr.bf16.gmra.mrb[0].mxu0 %v358
  %v3579 = vpop.f32.mrb[0].mxu0
  %v3580 = vadd.f32 0.0, %v3579
  %v3581 = vpop.f32.mrb[0].mxu0
  %v3582 = vpop.f32.mrb[0].mxu0
  %v3583 = vadd.f32 0.0, %v3582
  %v3584 = vpop.f32.mrb[0].mxu0
  %3585 = vmatprep.mubr.bf16.mxu0 0
  %3586 = vmatmul.mubr.bf16.gmra.mrb[0].mxu0 %v359
  %v3587 = vpop.f32.mrb[0].mxu0
  %v3588 = vadd.f32 0.0, %v3587
  %v3589 = vpop.f32.mrb[0].mxu0
  %v3590 = vpop.f32.mrb[0].mxu0
  %v3591 = vadd.f32 0.0, %v3590
  %v3592 = vpop.f32.mrb[0].mxu0
  %3593 = vmatprep.mubr.bf16.mxu0 0
  %3594 = vmatmul.mubr.bf16.gmra.mrb[0].mxu0 %v360
  %v3595 = vpop.f32.mrb[0].mxu0
  %v3596 = vadd.f32 0.0, %v3595
  %v3597 = vpop.f32.mrb[0].mxu0
  %v3598 = vpop.f32.mrb[0].mxu0
  %v3599 = vadd.f32 0.0, %v3598
  %v3600 = vpop.f32.mrb[0].mxu0
  %3601 = vmatprep.mubr.bf16.mxu0 0
  %3602 = vmatmul.mubr.bf16.gmra.mrb[0].mxu0 %v361
  %v3603 = vpop.f32.mrb[0].mxu0
  %v3604 = vadd.f32 0.0, %v3603
  %v3605 = vpop.f32.mrb[0].mxu0
  %v3606 = vpop.f32.mrb[0].mxu0
  %v3607 = vadd.f32 0.0, %v3606
  %v3608 = vpop.f32.mrb[0].mxu0
  %3609 = vmatprep.mubr.bf16.mxu0 0
  %3610 = vmatmul.mubr.bf16.gmra.mrb[0].mxu0 %v362
  %v3611 = vpop.f32.mrb[0].mxu0
  %v3612 = vadd.f32 0.0, %v3611
  %v3613 = vpop.f32.mrb[0].mxu0
  %v3614 = vpop.f32.mrb[0].mxu0
  %v3615 = vadd.f32 0.0, %v3614
  %v3616 = vpop.f32.mrb[0].mxu0
  %3617 = vmatprep.mubr.bf16.mxu0 0
  %3618 = vmatmul.mubr.bf16.gmra.mrb[0].mxu0 %v363
  %v3619 = vpop.f32.mrb[0].mxu0
  %v3620 = vadd.f32 0.0, %v3619
  %v3621 = vpop.f32.mrb[0].mxu0
  %v3622 = vpop.f32.mrb[0].mxu0
  %v3623 = vadd.f32 0.0, %v3622
  %v3624 = vpop.f32.mrb[0].mxu0
  %3625 = vmatprep.mubr.bf16.mxu0 0
  %3626 = vmatmul.mubr.bf16.gmra.mrb[0].mxu0 %v364
  %v3627 = vpop.f32.mrb[0].mxu0
  %v3628 = vadd.f32 0.0, %v3627
  %v3629 = vpop.f32.mrb[0].mxu0
  %v3630 = vpop.f32.mrb[0].mxu0
  %v3631 = vadd.f32 0.0, %v3630
  %v3632 = vpop.f32.mrb[0].mxu0
  %3633 = vmatprep.mubr.bf16.mxu0 0
  %3634 = vmatmul.mubr.bf16.gmra.mrb[0].mxu0 %v365
  %v3635 = vpop.f32.mrb[0].mxu0
  %v3636 = vadd.f32 0.0, %v3635
  %v3637 = vpop.f32.mrb[0].mxu0
  %v3638 = vpop.f32.mrb[0].mxu0
  %v3639 = vadd.f32 0.0, %v3638
  %v3640 = vpop.f32.mrb[0].mxu0
  %3641 = vmatprep.mubr.bf16.mxu0 0
  %3642 = vmatmul.mubr.bf16.gmra.mrb[0].mxu0 %v366
  %v3643 = vpop.f32.mrb[0].mxu0
  %v3644 = vadd.f32 0.0, %v3643
  %v3645 = vpop.f32.mrb[0].mxu0
  %v3646 = vpop.f32.mrb[0].mxu0
  %v3647 = vadd.f32 0.0, %v3646
  %v3648 = vpop.f32.mrb[0].mxu0
  %3649 = vmatprep.mubr.bf16.mxu0 0
  %3650 = vmatmul.mubr.bf16.gmra.mrb[0].mxu0 %v367
  %v3651 = vpop.f32.mrb[0].mxu0
  %v3652 = vadd.f32 0.0, %v3651
  %v3653 = vpop.f32.mrb[0].mxu0
  %v3654 = vpop.f32.mrb[0].mxu0
  %v3655 = vadd.f32 0.0, %v3654
  %v3656 = vpop.f32.mrb[0].mxu0
  %3657 = vmatprep.mubr.bf16.mxu0 0
  %3658 = vmatmul.mubr.bf16.gmra.mrb[0].mxu0 %v368
  %v3659 = vpop.f32.mrb[0].mxu0
  %v3660 = vadd.f32 0.0, %v3659
  %v3661 = vpop.f32.mrb[0].mxu0
  %v3662 = vpop.f32.mrb[0].mxu0
  %v3663 = vadd.f32 0.0, %v3662
  %v3664 = vpop.f32.mrb[0].mxu0
  %3665 = vmatprep.mubr.bf16.mxu0 0
  %3666 = vmatmul.mubr.bf16.gmra.mrb[0].mxu0 %v369
  %v3667 = vpop.f32.mrb[0].mxu0
  %v3668 = vadd.f32 0.0, %v3667
  %v3669 = vpop.f32.mrb[0].mxu0
  %v3670 = vpop.f32.mrb[0].mxu0
  %v3671 = vadd.f32 0.0, %v3670
  %v3672 = vpop.f32.mrb[0].mxu0
  %3673 = vmatprep.mubr.bf16.mxu0 0
  %3674 = vmatmul.mubr.bf16.gmra.mrb[0].mxu0 %v370
  %v3675 = vpop.f32.mrb[0].mxu0
  %v3676 = vadd.f32 0.0, %v3675
  %v3677 = vpop.f32.mrb[0].mxu0
  %v3678 = vpop.f32.mrb[0].mxu0
  %v3679 = vadd.f32 0.0, %v3678
  %v3680 = vpop.f32.mrb[0].mxu0
  %3681 = vmatprep.mubr.bf16.mxu0 0
  %3682 = vmatmul.mubr.bf16.gmra.mrb[0].mxu0 %v371
  %v3683 = vpop.f32.mrb[0].mxu0
  %v3684 = vadd.f32 0.0, %v3683
  %v3685 = vpop.f32.mrb[0].mxu0
  %v3686 = vpop.f32.mrb[0].mxu0
  %v3687 = vadd.f32 0.0, %v3686
  %v3688 = vpop.f32.mrb[0].mxu0
  %3689 = vmatprep.mubr.bf16.mxu0 0
  %3690 = vmatmul.mubr.bf16.gmra.mrb[0].mxu0 %v372
  %v3691 = vpop.f32.mrb[0].mxu0
  %v3692 = vadd.f32 0.0, %v3691
  %v3693 = vpop.f32.mrb[0].mxu0
  %v3694 = vpop.f32.mrb[0].mxu0
  %v3695 = vadd.f32 0.0, %v3694
  %v3696 = vpop.f32.mrb[0].mxu0
  %3697 = vmatprep.mubr.bf16.mxu0 0
  %3698 = vmatmul.mubr.bf16.gmra.mrb[0].mxu0 %v373
  %v3699 = vpop.f32.mrb[0].mxu0
  %v3700 = vadd.f32 0.0, %v3699
  %v3701 = vpop.f32.mrb[0].mxu0
  %v3702 = vpop.f32.mrb[0].mxu0
  %v3703 = vadd.f32 0.0, %v3702
  %v3704 = vpop.f32.mrb[0].mxu0
  %3705 = vmatprep.mubr.bf16.mxu0 0
  %3706 = vmatmul.mubr.bf16.gmra.mrb[0].mxu0 %v374
  %v3707 = vpop.f32.mrb[0].mxu0
  %v3708 = vadd.f32 0.0, %v3707
  %v3709 = vpop.f32.mrb[0].mxu0
  %v3710 = vpop.f32.mrb[0].mxu0
  %v3711 = vadd.f32 0.0, %v3710
  %v3712 = vpop.f32.mrb[0].mxu0
  %3713 = vmatprep.mubr.bf16.mxu0 0
  %3714 = vmatmul.mubr.bf16.gmra.mrb[0].mxu0 %v375
  %v3715 = vpop.f32.mrb[0].mxu0
  %v3716 = vadd.f32 0.0, %v3715
  %v3717 = vpop.f32.mrb[0].mxu0
  %v3718 = vpop.f32.mrb[0].mxu0
  %v3719 = vadd.f32 0.0, %v3718
  %v3720 = vpop.f32.mrb[0].mxu0
  %3721 = vmatprep.mubr.bf16.mxu0 0
  %3722 = vmatmul.mubr.bf16.gmra.mrb[0].mxu0 %v376
  %v3723 = vpop.f32.mrb[0].mxu0
  %v3724 = vadd.f32 0.0, %v3723
  %v3725 = vpop.f32.mrb[0].mxu0
  %v3726 = vpop.f32.mrb[0].mxu0
  %v3727 = vadd.f32 0.0, %v3726
  %v3728 = vpop.f32.mrb[0].mxu0
  %3729 = vmatprep.mubr.bf16.mxu0 0
  %3730 = vmatmul.mubr.bf16.gmra.mrb[0].mxu0 %v377
  %v3731 = vpop.f32.mrb[0].mxu0
  %v3732 = vadd.f32 0.0, %v3731
  %v3733 = vpop.f32.mrb[0].mxu0
  %v3734 = vpop.f32.mrb[0].mxu0
  %v3735 = vadd.f32 0.0, %v3734
  %v3736 = vpop.f32.mrb[0].mxu0
  %3737 = vmatprep.mubr.bf16.mxu0 0
  %3738 = vmatmul.mubr.bf16.gmra.mrb[0].mxu0 %v378
  %v3739 = vpop.f32.mrb[0].mxu0
  %v3740 = vadd.f32 0.0, %v3739
  %v3741 = vpop.f32.mrb[0].mxu0
  %v3742 = vpop.f32.mrb[0].mxu0
  %v3743 = vadd.f32 0.0, %v3742
  %v3744 = vpop.f32.mrb[0].mxu0
  %3745 = vdwg.mxu0
  %v3746 = vmax.f32 %v3540, %v3644
  %v3747 = vmax.f32 %v3543, %v3647
  %v3748 = vmax.f32 %v3548, %v3652
  %v3749 = vmax.f32 %v3551, %v3655
  %v3750 = vmax.f32 %v3556, %v3660
  %v3751 = vmax.f32 %v3559, %v3663
  %v3752 = vmax.f32 %v3564, %v3668
  %v3753 = vmax.f32 %v3567, %v3671
  %v3754 = vmax.f32 %v3572, %v3676
  %v3755 = vmax.f32 %v3575, %v3679
  %v3756 = vmax.f32 %v3580, %v3684
  %v3757 = vmax.f32 %v3583, %v3687
  %v3758 = vmax.f32 %v3588, %v3692
  %v3759 = vmax.f32 %v3591, %v3695
  %v3760 = vmax.f32 %v3596, %v3700
  %v3761 = vmax.f32 %v3599, %v3703
  %v3762 = vmax.f32 %v3604, %v3708
  %v3763 = vmax.f32 %v3607, %v3711
  %v3764 = vmax.f32 %v3612, %v3716
  %v3765 = vmax.f32 %v3615, %v3719
  %v3766 = vmax.f32 %v3620, %v3724
  %v3767 = vmax.f32 %v3623, %v3727
  %v3768 = vmax.f32 %v3628, %v3732
  %v3769 = vmax.f32 %v3631, %v3735
  %v3770 = vmax.f32 %v3636, %v3740
  %v3771 = vmax.f32 %v3639, %v3743
  %v3772 = vmax.f32 %v3746, %v3747
  %v3773 = vmax.f32 %v3748, %v3749
  %v3774 = vmax.f32 %v3750, %v3751
  %v3775 = vmax.f32 %v3752, %v3753
  %v3776 = vmax.f32 %v3754, %v3755
  %v3777 = vmax.f32 %v3756, %v3757
  %v3778 = vmax.f32 %v3758, %v3759
  %v3779 = vmax.f32 %v3760, %v3761
  %v3780 = vmax.f32 %v3762, %v3763
  %v3781 = vmax.f32 %v3764, %v3765
  %v3782 = vmax.f32 %v3766, %v3767
  %v3783 = vmax.f32 %v3768, %v3769
  %v3784 = vmax.f32 %v3770, %v3771
  %v3785 = vadd.f32 %v3772, %v141
  %v3786 = vadd.f32 %v3773, %v146
  %v3787 = vadd.f32 %v3774, %v151
  %v3788 = vadd.f32 %v3775, %v156
  %v3789 = vadd.f32 %v3776, %v161
  %v3790 = vadd.f32 %v3777, %v166
  %v3791 = vadd.f32 %v3778, %v171
  %v3792 = vadd.f32 %v3779, %v176
  %v3793 = vadd.f32 %v3780, %v181
  %v3794 = vadd.f32 %v3781, %v186
  %v3795 = vadd.f32 %v3782, %v191
  %v3796 = vadd.f32 %v3783, %v196
  %v3797 = vadd.f32 %v3784, %v201
  %v3798 = vmax.f32 %v3785, 0.0
  %v3799 = vmax.f32 %v3786, 0.0
  %v3800 = vmax.f32 %v3787, 0.0
  %v3801 = vmax.f32 %v3788, 0.0
  %v3802 = vmax.f32 %v3789, 0.0
  %v3803 = vmax.f32 %v3790, 0.0
  %v3804 = vmax.f32 %v3791, 0.0
  %v3805 = vmax.f32 %v3792, 0.0
  %v3806 = vmax.f32 %v3793, 0.0
  %v3807 = vmax.f32 %v3794, 0.0
  %v3808 = vmax.f32 %v3795, 0.0
  %v3809 = vmax.f32 %v3796, 0.0
  %v3810 = vmax.f32 %v3797, 0.0
  %v3811 = vpack.c.bf16 %v3799, %v3798
  %v3812 = vpack.c.bf16 %v3801, %v3800
  %v3813 = vpack.c.bf16 %v3803, %v3802
  %v3814 = vpack.c.bf16 %v3805, %v3804
  %v3815 = vpack.c.bf16 %v3807, %v3806
  %v3816 = vpack.c.bf16 %v3809, %v3808
  %v3817 = vpack.c.bf16 %v3810, %v3810
  %v3825 = vunpack.c.l.b16 %v3811
  %v3826 = vunpack.c.h.b16 %v3811
  %v3827 = vunpack.c.l.b16 %v3812
  %v3828 = vunpack.c.h.b16 %v3812
  %v3829 = vunpack.c.l.b16 %v3813
  %v3830 = vunpack.c.h.b16 %v3813
  %v3831 = vunpack.c.l.b16 %v3814
  %v3832 = vunpack.c.h.b16 %v3814
  %v3833 = vunpack.c.l.b16 %v3815
  %v3834 = vunpack.c.h.b16 %v3815
  %v3835 = vunpack.c.l.b16 %v3816
  %v3836 = vunpack.c.h.b16 %v3816
  %v3837 = vunpack.c.l.b16 %v3817
  %v3838 = vpack.c.b16 %v3825, %v3825
  %v3839 = vpack.c.b16 %v3826, %v3826
  %v3840 = vpack.c.b16 %v3827, %v3827
  %v3841 = vpack.c.b16 %v3828, %v3828
  %v3842 = vpack.c.b16 %v3829, %v3829
  %v3843 = vpack.c.b16 %v3830, %v3830
  %v3844 = vpack.c.b16 %v3831, %v3831
  %v3845 = vpack.c.b16 %v3832, %v3832
  %v3846 = vpack.c.b16 %v3833, %v3833
  %v3847 = vpack.c.b16 %v3834, %v3834
  %v3848 = vpack.c.b16 %v3835, %v3835
  %v3849 = vpack.c.b16 %v3836, %v3836
  %v3850 = vpack.c.b16 %v3837, %v3837
  %3864 = vst [vmem:[#allocation2 + $0x16c] sm:$0xf] %v3838
  %3865 = vst [vmem:[#allocation2 + $0x170] sm:$0xf] %v3839
  %3866 = vst [vmem:[#allocation2 + $0x174] sm:$0xf] %v3840
  %3867 = vst [vmem:[#allocation2 + $0x178] sm:$0xf] %v3841
  %3868 = vst [vmem:[#allocation2 + $0x17c] sm:$0xf] %v3842
  %3869 = vst [vmem:[#allocation2 + $0x180] sm:$0xf] %v3843
  %3870 = vst [vmem:[#allocation2 + $0x184] sm:$0xf] %v3844
  %3871 = vst [vmem:[#allocation2 + $0x188] sm:$0xf] %v3845
  %3872 = vst [vmem:[#allocation2 + $0x18c] sm:$0xf] %v3846
  %3873 = vst [vmem:[#allocation2 + $0x190] sm:$0xf] %v3847
  %3874 = vst [vmem:[#allocation2 + $0x194] sm:$0xf] %v3848
  %3875 = vst [vmem:[#allocation2 + $0x198] sm:$0xf] %v3849
  %3876 = vst [vmem:[#allocation2 + $0x19c] sm:$0xf] %v3850
  %v3877 = vld [vmem:[%s0 + $0x100] sm:$0xf]
  %v3878 = vld [vmem:[%s0 + $0x104] sm:$0xf]
  %v3879 = vld [vmem:[%s0 + $0x108] sm:$0xf]
  %v3880 = vld [vmem:[%s0 + $0x10c] sm:$0xf]
  %v3881 = vld [vmem:[%s0 + $0x110] sm:$0xf]
  %v3882 = vld [vmem:[%s0 + $0x114] sm:$0xf]
  %v3883 = vld [vmem:[%s0 + $0x118] sm:$0xf]
  %v3884 = vld [vmem:[%s0 + $0x11c] sm:$0xf]
  %v3885 = vld [vmem:[%s0 + $0x120] sm:$0xf]
  %v3886 = vld [vmem:[%s0 + $0x124] sm:$0xf]
  %v3887 = vld [vmem:[%s0 + $0x128] sm:$0xf]
  %v3888 = vld [vmem:[%s0 + $0x12c] sm:$0xf]
  %v3889 = vld [vmem:[%s0 + $0x130] sm:$0xf]
  %v3890 = vld [vmem:[%s0 + $0x134] sm:$0xf]
  %v3891 = vld [vmem:[%s0 + $0x138] sm:$0xf]
  %v3892 = vld [vmem:[%s0 + $0x13c] sm:$0xf]
  %v3909 = vunpack.c.l.b16 %v3877
  %v3910 = vunpack.c.l.b16 %v3878
  %v3911 = vunpack.c.l.b16 %v3879
  %v3912 = vunpack.c.l.b16 %v3880
  %v3913 = vunpack.c.l.b16 %v3881
  %v3914 = vunpack.c.l.b16 %v3882
  %v3915 = vunpack.c.l.b16 %v3883
  %v3916 = vunpack.c.l.b16 %v3884
  %v3917 = vunpack.c.l.b16 %v3885
  %v3918 = vunpack.c.l.b16 %v3886
  %v3919 = vunpack.c.l.b16 %v3887
  %v3920 = vunpack.c.l.b16 %v3888
  %v3921 = vunpack.c.l.b16 %v3889
  %v3922 = vunpack.c.l.b16 %v3890
  %v3923 = vunpack.c.l.b16 %v3891
  %v3924 = vunpack.c.l.b16 %v3892
  %v3925 = vpack.c.b16 %v3910, %v3909
  %v3926 = vpack.c.b16 %v3912, %v3911
  %v3927 = vpack.c.b16 %v3914, %v3913
  %v3928 = vpack.c.b16 %v3916, %v3915
  %v3929 = vpack.c.b16 %v3918, %v3917
  %v3930 = vpack.c.b16 %v3920, %v3919
  %v3931 = vpack.c.b16 %v3922, %v3921
  %v3932 = vpack.c.b16 %v3924, %v3923
  %3941 = vmatprep.subr.bf16.mxu0 0
  %3942 = vmatpush1.bf16.msra.mxu0 %v3925
  %3943 = vmatprep.subr.bf16.mxu0 0
  %3944 = vmatpush1.bf16.msra.mxu0 %v3926
  %3945 = vmatprep.subr.bf16.mxu0 0
  %3946 = vmatpush1.bf16.msra.mxu0 %v3927
  %3947 = vmatprep.subr.bf16.mxu0 0
  %3948 = vmatpush1.bf16.msra.mxu0 %v3928
  %3949 = vmatprep.subr.bf16.mxu0 0
  %3950 = vmatpush1.bf16.msra.mxu0 %v3929
  %3951 = vmatprep.subr.bf16.mxu0 0
  %3952 = vmatpush1.bf16.msra.mxu0 %v3930
  %3953 = vmatprep.subr.bf16.mxu0 0
  %3954 = vmatpush1.bf16.msra.mxu0 %v3931
  %3955 = vmatprep.subr.bf16.mxu0 0
  %3956 = vmatpush1.bf16.msra.mxu0 %v3932
  %3957 = vmatprep.subr.bf16.mxu0 0
  %3958 = vmatpush1.bf16.msra.mxu0 0
  %3959 = vmatprep.subr.bf16.mxu0 0
  %3960 = vmatpush1.bf16.msra.mxu0 0
  %3961 = vmatprep.subr.bf16.mxu0 0
  %3962 = vmatpush1.bf16.msra.mxu0 0
  %3963 = vmatprep.subr.bf16.mxu0 0
  %3964 = vmatpush1.bf16.msra.mxu0 0
  %3965 = vmatprep.subr.bf16.mxu0 0
  %3966 = vmatpush1.bf16.msra.mxu0 0
  %3967 = vmatprep.subr.bf16.mxu0 0
  %3968 = vmatpush1.bf16.msra.mxu0 0
  %3969 = vmatprep.subr.bf16.mxu0 0
  %3970 = vmatpush1.bf16.msra.mxu0 0
  %3971 = vmatprep.subr.bf16.mxu0 0
  %3972 = vmatpush1.bf16.msra.mxu0 0
  %3973 = vmatprep.mubr.bf16.mxu0 0
  %3974 = vmatmul.mubr.bf16.gmra.mrb[0].mxu0 %v353
  %v3975 = vpop.f32.mrb[0].mxu0
  %v3976 = vadd.f32 0.0, %v3975
  %v3977 = vpop.f32.mrb[0].mxu0
  %v3978 = vpop.f32.mrb[0].mxu0
  %v3979 = vadd.f32 0.0, %v3978
  %v3980 = vpop.f32.mrb[0].mxu0
  %3981 = vmatprep.mubr.bf16.mxu0 0
  %3982 = vmatmul.mubr.bf16.gmra.mrb[0].mxu0 %v354
  %v3983 = vpop.f32.mrb[0].mxu0
  %v3984 = vadd.f32 0.0, %v3983
  %v3985 = vpop.f32.mrb[0].mxu0
  %v3986 = vpop.f32.mrb[0].mxu0
  %v3987 = vadd.f32 0.0, %v3986
  %v3988 = vpop.f32.mrb[0].mxu0
  %3989 = vmatprep.mubr.bf16.mxu0 0
  %3990 = vmatmul.mubr.bf16.gmra.mrb[0].mxu0 %v355
  %v3991 = vpop.f32.mrb[0].mxu0
  %v3992 = vadd.f32 0.0, %v3991
  %v3993 = vpop.f32.mrb[0].mxu0
  %v3994 = vpop.f32.mrb[0].mxu0
  %v3995 = vadd.f32 0.0, %v3994
  %v3996 = vpop.f32.mrb[0].mxu0
  %3997 = vmatprep.mubr.bf16.mxu0 0
  %3998 = vmatmul.mubr.bf16.gmra.mrb[0].mxu0 %v356
  %v3999 = vpop.f32.mrb[0].mxu0
  %v4000 = vadd.f32 0.0, %v3999
  %v4001 = vpop.f32.mrb[0].mxu0
  %v4002 = vpop.f32.mrb[0].mxu0
  %v4003 = vadd.f32 0.0, %v4002
  %v4004 = vpop.f32.mrb[0].mxu0
  %4005 = vmatprep.mubr.bf16.mxu0 0
  %4006 = vmatmul.mubr.bf16.gmra.mrb[0].mxu0 %v357
  %v4007 = vpop.f32.mrb[0].mxu0
  %v4008 = vadd.f32 0.0, %v4007
  %v4009 = vpop.f32.mrb[0].mxu0
  %v4010 = vpop.f32.mrb[0].mxu0
  %v4011 = vadd.f32 0.0, %v4010
  %v4012 = vpop.f32.mrb[0].mxu0
  %4013 = vmatprep.mubr.bf16.mxu0 0
  %4014 = vmatmul.mubr.bf16.gmra.mrb[0].mxu0 %v358
  %v4015 = vpop.f32.mrb[0].mxu0
  %v4016 = vadd.f32 0.0, %v4015
  %v4017 = vpop.f32.mrb[0].mxu0
  %v4018 = vpop.f32.mrb[0].mxu0
  %v4019 = vadd.f32 0.0, %v4018
  %v4020 = vpop.f32.mrb[0].mxu0
  %4021 = vmatprep.mubr.bf16.mxu0 0
  %4022 = vmatmul.mubr.bf16.gmra.mrb[0].mxu0 %v359
  %v4023 = vpop.f32.mrb[0].mxu0
  %v4024 = vadd.f32 0.0, %v4023
  %v4025 = vpop.f32.mrb[0].mxu0
  %v4026 = vpop.f32.mrb[0].mxu0
  %v4027 = vadd.f32 0.0, %v4026
  %v4028 = vpop.f32.mrb[0].mxu0
  %4029 = vmatprep.mubr.bf16.mxu0 0
  %4030 = vmatmul.mubr.bf16.gmra.mrb[0].mxu0 %v360
  %v4031 = vpop.f32.mrb[0].mxu0
  %v4032 = vadd.f32 0.0, %v4031
  %v4033 = vpop.f32.mrb[0].mxu0
  %v4034 = vpop.f32.mrb[0].mxu0
  %v4035 = vadd.f32 0.0, %v4034
  %v4036 = vpop.f32.mrb[0].mxu0
  %4037 = vmatprep.mubr.bf16.mxu0 0
  %4038 = vmatmul.mubr.bf16.gmra.mrb[0].mxu0 %v361
  %v4039 = vpop.f32.mrb[0].mxu0
  %v4040 = vadd.f32 0.0, %v4039
  %v4041 = vpop.f32.mrb[0].mxu0
  %v4042 = vpop.f32.mrb[0].mxu0
  %v4043 = vadd.f32 0.0, %v4042
  %v4044 = vpop.f32.mrb[0].mxu0
  %4045 = vmatprep.mubr.bf16.mxu0 0
  %4046 = vmatmul.mubr.bf16.gmra.mrb[0].mxu0 %v362
  %v4047 = vpop.f32.mrb[0].mxu0
  %v4048 = vadd.f32 0.0, %v4047
  %v4049 = vpop.f32.mrb[0].mxu0
  %v4050 = vpop.f32.mrb[0].mxu0
  %v4051 = vadd.f32 0.0, %v4050
  %v4052 = vpop.f32.mrb[0].mxu0
  %4053 = vmatprep.mubr.bf16.mxu0 0
  %4054 = vmatmul.mubr.bf16.gmra.mrb[0].mxu0 %v363
  %v4055 = vpop.f32.mrb[0].mxu0
  %v4056 = vadd.f32 0.0, %v4055
  %v4057 = vpop.f32.mrb[0].mxu0
  %v4058 = vpop.f32.mrb[0].mxu0
  %v4059 = vadd.f32 0.0, %v4058
  %v4060 = vpop.f32.mrb[0].mxu0
  %4061 = vmatprep.mubr.bf16.mxu0 0
  %4062 = vmatmul.mubr.bf16.gmra.mrb[0].mxu0 %v364
  %v4063 = vpop.f32.mrb[0].mxu0
  %v4064 = vadd.f32 0.0, %v4063
  %v4065 = vpop.f32.mrb[0].mxu0
  %v4066 = vpop.f32.mrb[0].mxu0
  %v4067 = vadd.f32 0.0, %v4066
  %v4068 = vpop.f32.mrb[0].mxu0
  %4069 = vmatprep.mubr.bf16.mxu0 0
  %4070 = vmatmul.mubr.bf16.gmra.mrb[0].mxu0 %v365
  %v4071 = vpop.f32.mrb[0].mxu0
  %v4072 = vadd.f32 0.0, %v4071
  %v4073 = vpop.f32.mrb[0].mxu0
  %v4074 = vpop.f32.mrb[0].mxu0
  %v4075 = vadd.f32 0.0, %v4074
  %v4076 = vpop.f32.mrb[0].mxu0
  %4077 = vmatprep.mubr.bf16.mxu0 0
  %4078 = vmatmul.mubr.bf16.gmra.mrb[0].mxu0 %v366
  %v4079 = vpop.f32.mrb[0].mxu0
  %v4080 = vadd.f32 0.0, %v4079
  %v4081 = vpop.f32.mrb[0].mxu0
  %v4082 = vpop.f32.mrb[0].mxu0
  %v4083 = vadd.f32 0.0, %v4082
  %v4084 = vpop.f32.mrb[0].mxu0
  %4085 = vmatprep.mubr.bf16.mxu0 0
  %4086 = vmatmul.mubr.bf16.gmra.mrb[0].mxu0 %v367
  %v4087 = vpop.f32.mrb[0].mxu0
  %v4088 = vadd.f32 0.0, %v4087
  %v4089 = vpop.f32.mrb[0].mxu0
  %v4090 = vpop.f32.mrb[0].mxu0
  %v4091 = vadd.f32 0.0, %v4090
  %v4092 = vpop.f32.mrb[0].mxu0
  %4093 = vmatprep.mubr.bf16.mxu0 0
  %4094 = vmatmul.mubr.bf16.gmra.mrb[0].mxu0 %v368
  %v4095 = vpop.f32.mrb[0].mxu0
  %v4096 = vadd.f32 0.0, %v4095
  %v4097 = vpop.f32.mrb[0].mxu0
  %v4098 = vpop.f32.mrb[0].mxu0
  %v4099 = vadd.f32 0.0, %v4098
  %v4100 = vpop.f32.mrb[0].mxu0
  %4101 = vmatprep.mubr.bf16.mxu0 0
  %4102 = vmatmul.mubr.bf16.gmra.mrb[0].mxu0 %v369
  %v4103 = vpop.f32.mrb[0].mxu0
  %v4104 = vadd.f32 0.0, %v4103
  %v4105 = vpop.f32.mrb[0].mxu0
  %v4106 = vpop.f32.mrb[0].mxu0
  %v4107 = vadd.f32 0.0, %v4106
  %v4108 = vpop.f32.mrb[0].mxu0
  %4109 = vmatprep.mubr.bf16.mxu0 0
  %4110 = vmatmul.mubr.bf16.gmra.mrb[0].mxu0 %v370
  %v4111 = vpop.f32.mrb[0].mxu0
  %v4112 = vadd.f32 0.0, %v4111
  %v4113 = vpop.f32.mrb[0].mxu0
  %v4114 = vpop.f32.mrb[0].mxu0
  %v4115 = vadd.f32 0.0, %v4114
  %v4116 = vpop.f32.mrb[0].mxu0
  %4117 = vmatprep.mubr.bf16.mxu0 0
  %4118 = vmatmul.mubr.bf16.gmra.mrb[0].mxu0 %v371
  %v4119 = vpop.f32.mrb[0].mxu0
  %v4120 = vadd.f32 0.0, %v4119
  %v4121 = vpop.f32.mrb[0].mxu0
  %v4122 = vpop.f32.mrb[0].mxu0
  %v4123 = vadd.f32 0.0, %v4122
  %v4124 = vpop.f32.mrb[0].mxu0
  %4125 = vmatprep.mubr.bf16.mxu0 0
  %4126 = vmatmul.mubr.bf16.gmra.mrb[0].mxu0 %v372
  %v4127 = vpop.f32.mrb[0].mxu0
  %v4128 = vadd.f32 0.0, %v4127
  %v4129 = vpop.f32.mrb[0].mxu0
  %v4130 = vpop.f32.mrb[0].mxu0
  %v4131 = vadd.f32 0.0, %v4130
  %v4132 = vpop.f32.mrb[0].mxu0
  %4133 = vmatprep.mubr.bf16.mxu0 0
  %4134 = vmatmul.mubr.bf16.gmra.mrb[0].mxu0 %v373
  %v4135 = vpop.f32.mrb[0].mxu0
  %v4136 = vadd.f32 0.0, %v4135
  %v4137 = vpop.f32.mrb[0].mxu0
  %v4138 = vpop.f32.mrb[0].mxu0
  %v4139 = vadd.f32 0.0, %v4138
  %v4140 = vpop.f32.mrb[0].mxu0
  %4141 = vmatprep.mubr.bf16.mxu0 0
  %4142 = vmatmul.mubr.bf16.gmra.mrb[0].mxu0 %v374
  %v4143 = vpop.f32.mrb[0].mxu0
  %v4144 = vadd.f32 0.0, %v4143
  %v4145 = vpop.f32.mrb[0].mxu0
  %v4146 = vpop.f32.mrb[0].mxu0
  %v4147 = vadd.f32 0.0, %v4146
  %v4148 = vpop.f32.mrb[0].mxu0
  %4149 = vmatprep.mubr.bf16.mxu0 0
  %4150 = vmatmul.mubr.bf16.gmra.mrb[0].mxu0 %v375
  %v4151 = vpop.f32.mrb[0].mxu0
  %v4152 = vadd.f32 0.0, %v4151
  %v4153 = vpop.f32.mrb[0].mxu0
  %v4154 = vpop.f32.mrb[0].mxu0
  %v4155 = vadd.f32 0.0, %v4154
  %v4156 = vpop.f32.mrb[0].mxu0
  %4157 = vmatprep.mubr.bf16.mxu0 0
  %4158 = vmatmul.mubr.bf16.gmra.mrb[0].mxu0 %v376
  %v4159 = vpop.f32.mrb[0].mxu0
  %v4160 = vadd.f32 0.0, %v4159
  %v4161 = vpop.f32.mrb[0].mxu0
  %v4162 = vpop.f32.mrb[0].mxu0
  %v4163 = vadd.f32 0.0, %v4162
  %v4164 = vpop.f32.mrb[0].mxu0
  %4165 = vmatprep.mubr.bf16.mxu0 0
  %4166 = vmatmul.mubr.bf16.gmra.mrb[0].mxu0 %v377
  %v4167 = vpop.f32.mrb[0].mxu0
  %v4168 = vadd.f32 0.0, %v4167
  %v4169 = vpop.f32.mrb[0].mxu0
  %v4170 = vpop.f32.mrb[0].mxu0
  %v4171 = vadd.f32 0.0, %v4170
  %v4172 = vpop.f32.mrb[0].mxu0
  %4173 = vmatprep.mubr.bf16.mxu0 0
  %4174 = vmatmul.mubr.bf16.gmra.mrb[0].mxu0 %v378
  %v4175 = vpop.f32.mrb[0].mxu0
  %v4176 = vadd.f32 0.0, %v4175
  %v4177 = vpop.f32.mrb[0].mxu0
  %v4178 = vpop.f32.mrb[0].mxu0
  %v4179 = vadd.f32 0.0, %v4178
  %v4180 = vpop.f32.mrb[0].mxu0
  %4181 = vdwg.mxu0
  %v4182 = vmax.f32 %v3976, %v4080
  %v4183 = vmax.f32 %v3979, %v4083
  %v4184 = vmax.f32 %v3984, %v4088
  %v4185 = vmax.f32 %v3987, %v4091
  %v4186 = vmax.f32 %v3992, %v4096
  %v4187 = vmax.f32 %v3995, %v4099
  %v4188 = vmax.f32 %v4000, %v4104
  %v4189 = vmax.f32 %v4003, %v4107
  %v4190 = vmax.f32 %v4008, %v4112
  %v4191 = vmax.f32 %v4011, %v4115
  %v4192 = vmax.f32 %v4016, %v4120
  %v4193 = vmax.f32 %v4019, %v4123
  %v4194 = vmax.f32 %v4024, %v4128
  %v4195 = vmax.f32 %v4027, %v4131
  %v4196 = vmax.f32 %v4032, %v4136
  %v4197 = vmax.f32 %v4035, %v4139
  %v4198 = vmax.f32 %v4040, %v4144
  %v4199 = vmax.f32 %v4043, %v4147
  %v4200 = vmax.f32 %v4048, %v4152
  %v4201 = vmax.f32 %v4051, %v4155
  %v4202 = vmax.f32 %v4056, %v4160
  %v4203 = vmax.f32 %v4059, %v4163
  %v4204 = vmax.f32 %v4064, %v4168
  %v4205 = vmax.f32 %v4067, %v4171
  %v4206 = vmax.f32 %v4072, %v4176
  %v4207 = vmax.f32 %v4075, %v4179
  %v4208 = vmax.f32 %v4182, %v4183
  %v4209 = vmax.f32 %v4184, %v4185
  %v4210 = vmax.f32 %v4186, %v4187
  %v4211 = vmax.f32 %v4188, %v4189
  %v4212 = vmax.f32 %v4190, %v4191
  %v4213 = vmax.f32 %v4192, %v4193
  %v4214 = vmax.f32 %v4194, %v4195
  %v4215 = vmax.f32 %v4196, %v4197
  %v4216 = vmax.f32 %v4198, %v4199
  %v4217 = vmax.f32 %v4200, %v4201
  %v4218 = vmax.f32 %v4202, %v4203
  %v4219 = vmax.f32 %v4204, %v4205
  %v4220 = vmax.f32 %v4206, %v4207
  %v4221 = vadd.f32 %v4208, %v141
  %v4222 = vadd.f32 %v4209, %v146
  %v4223 = vadd.f32 %v4210, %v151
  %v4224 = vadd.f32 %v4211, %v156
  %v4225 = vadd.f32 %v4212, %v161
  %v4226 = vadd.f32 %v4213, %v166
  %v4227 = vadd.f32 %v4214, %v171
  %v4228 = vadd.f32 %v4215, %v176
  %v4229 = vadd.f32 %v4216, %v181
  %v4230 = vadd.f32 %v4217, %v186
  %v4231 = vadd.f32 %v4218, %v191
  %v4232 = vadd.f32 %v4219, %v196
  %v4233 = vadd.f32 %v4220, %v201
  %v4234 = vmax.f32 %v4221, 0.0
  %v4235 = vmax.f32 %v4222, 0.0
  %v4236 = vmax.f32 %v4223, 0.0
  %v4237 = vmax.f32 %v4224, 0.0
  %v4238 = vmax.f32 %v4225, 0.0
  %v4239 = vmax.f32 %v4226, 0.0
  %v4240 = vmax.f32 %v4227, 0.0
  %v4241 = vmax.f32 %v4228, 0.0
  %v4242 = vmax.f32 %v4229, 0.0
  %v4243 = vmax.f32 %v4230, 0.0
  %v4244 = vmax.f32 %v4231, 0.0
  %v4245 = vmax.f32 %v4232, 0.0
  %v4246 = vmax.f32 %v4233, 0.0
  %v4247 = vpack.c.bf16 %v4235, %v4234
  %v4248 = vpack.c.bf16 %v4237, %v4236
  %v4249 = vpack.c.bf16 %v4239, %v4238
  %v4250 = vpack.c.bf16 %v4241, %v4240
  %v4251 = vpack.c.bf16 %v4243, %v4242
  %v4252 = vpack.c.bf16 %v4245, %v4244
  %v4253 = vpack.c.bf16 %v4246, %v4246
  %v4261 = vunpack.c.l.b16 %v4247
  %v4262 = vunpack.c.h.b16 %v4247
  %v4263 = vunpack.c.l.b16 %v4248
  %v4264 = vunpack.c.h.b16 %v4248
  %v4265 = vunpack.c.l.b16 %v4249
  %v4266 = vunpack.c.h.b16 %v4249
  %v4267 = vunpack.c.l.b16 %v4250
  %v4268 = vunpack.c.h.b16 %v4250
  %v4269 = vunpack.c.l.b16 %v4251
  %v4270 = vunpack.c.h.b16 %v4251
  %v4271 = vunpack.c.l.b16 %v4252
  %v4272 = vunpack.c.h.b16 %v4252
  %v4273 = vunpack.c.l.b16 %v4253
  %v4274 = vpack.c.b16 %v4261, %v4261
  %v4275 = vpack.c.b16 %v4262, %v4262
  %v4276 = vpack.c.b16 %v4263, %v4263
  %v4277 = vpack.c.b16 %v4264, %v4264
  %v4278 = vpack.c.b16 %v4265, %v4265
  %v4279 = vpack.c.b16 %v4266, %v4266
  %v4280 = vpack.c.b16 %v4267, %v4267
  %v4281 = vpack.c.b16 %v4268, %v4268
  %v4282 = vpack.c.b16 %v4269, %v4269
  %v4283 = vpack.c.b16 %v4270, %v4270
  %v4284 = vpack.c.b16 %v4271, %v4271
  %v4285 = vpack.c.b16 %v4272, %v4272
  %v4286 = vpack.c.b16 %v4273, %v4273
  %4300 = vst [vmem:[#allocation2 + $0x1a0] sm:$0xf] %v4274
  %4301 = vst [vmem:[#allocation2 + $0x1a4] sm:$0xf] %v4275
  %4302 = vst [vmem:[#allocation2 + $0x1a8] sm:$0xf] %v4276
  %4303 = vst [vmem:[#allocation2 + $0x1ac] sm:$0xf] %v4277
  %4304 = vst [vmem:[#allocation2 + $0x1b0] sm:$0xf] %v4278
  %4305 = vst [vmem:[#allocation2 + $0x1b4] sm:$0xf] %v4279
  %4306 = vst [vmem:[#allocation2 + $0x1b8] sm:$0xf] %v4280
  %4307 = vst [vmem:[#allocation2 + $0x1bc] sm:$0xf] %v4281
  %4308 = vst [vmem:[#allocation2 + $0x1c0] sm:$0xf] %v4282
  %4309 = vst [vmem:[#allocation2 + $0x1c4] sm:$0xf] %v4283
  %4310 = vst [vmem:[#allocation2 + $0x1c8] sm:$0xf] %v4284
  %4311 = vst [vmem:[#allocation2 + $0x1cc] sm:$0xf] %v4285
  %4312 = vst [vmem:[#allocation2 + $0x1d0] sm:$0xf] %v4286
  %v4313 = vld [vmem:[%s0 + $0x120] sm:$0xf]
  %v4314 = vld [vmem:[%s0 + $0x124] sm:$0xf]
  %v4315 = vld [vmem:[%s0 + $0x128] sm:$0xf]
  %v4316 = vld [vmem:[%s0 + $0x12c] sm:$0xf]
  %v4317 = vld [vmem:[%s0 + $0x130] sm:$0xf]
  %v4318 = vld [vmem:[%s0 + $0x134] sm:$0xf]
  %v4319 = vld [vmem:[%s0 + $0x138] sm:$0xf]
  %v4320 = vld [vmem:[%s0 + $0x13c] sm:$0xf]
  %v4321 = vld [vmem:[%s0 + $0x140] sm:$0xf]
  %v4322 = vld [vmem:[%s0 + $0x144] sm:$0xf]
  %v4323 = vld [vmem:[%s0 + $0x148] sm:$0xf]
  %v4324 = vld [vmem:[%s0 + $0x14c] sm:$0xf]
  %v4325 = vld [vmem:[%s0 + $0x150] sm:$0xf]
  %v4326 = vld [vmem:[%s0 + $0x154] sm:$0xf]
  %v4327 = vld [vmem:[%s0 + $0x158] sm:$0xf]
  %v4328 = vld [vmem:[%s0 + $0x15c] sm:$0xf]
  %v4345 = vunpack.c.l.b16 %v4313
  %v4346 = vunpack.c.l.b16 %v4314
  %v4347 = vunpack.c.l.b16 %v4315
  %v4348 = vunpack.c.l.b16 %v4316
  %v4349 = vunpack.c.l.b16 %v4317
  %v4350 = vunpack.c.l.b16 %v4318
  %v4351 = vunpack.c.l.b16 %v4319
  %v4352 = vunpack.c.l.b16 %v4320
  %v4353 = vunpack.c.l.b16 %v4321
  %v4354 = vunpack.c.l.b16 %v4322
  %v4355 = vunpack.c.l.b16 %v4323
  %v4356 = vunpack.c.l.b16 %v4324
  %v4357 = vunpack.c.l.b16 %v4325
  %v4358 = vunpack.c.l.b16 %v4326
  %v4359 = vunpack.c.l.b16 %v4327
  %v4360 = vunpack.c.l.b16 %v4328
  %v4361 = vpack.c.b16 %v4346, %v4345
  %v4362 = vpack.c.b16 %v4348, %v4347
  %v4363 = vpack.c.b16 %v4350, %v4349
  %v4364 = vpack.c.b16 %v4352, %v4351
  %v4365 = vpack.c.b16 %v4354, %v4353
  %v4366 = vpack.c.b16 %v4356, %v4355
  %v4367 = vpack.c.b16 %v4358, %v4357
  %v4368 = vpack.c.b16 %v4360, %v4359
  %4377 = vmatprep.subr.bf16.mxu0 0
  %4378 = vmatpush1.bf16.msra.mxu0 %v4361
  %4379 = vmatprep.subr.bf16.mxu0 0
  %4380 = vmatpush1.bf16.msra.mxu0 %v4362
  %4381 = vmatprep.subr.bf16.mxu0 0
  %4382 = vmatpush1.bf16.msra.mxu0 %v4363
  %4383 = vmatprep.subr.bf16.mxu0 0
  %4384 = vmatpush1.bf16.msra.mxu0 %v4364
  %4385 = vmatprep.subr.bf16.mxu0 0
  %4386 = vmatpush1.bf16.msra.mxu0 %v4365
  %4387 = vmatprep.subr.bf16.mxu0 0
  %4388 = vmatpush1.bf16.msra.mxu0 %v4366
  %4389 = vmatprep.subr.bf16.mxu0 0
  %4390 = vmatpush1.bf16.msra.mxu0 %v4367
  %4391 = vmatprep.subr.bf16.mxu0 0
  %4392 = vmatpush1.bf16.msra.mxu0 %v4368
  %4393 = vmatprep.subr.bf16.mxu0 0
  %4394 = vmatpush1.bf16.msra.mxu0 0
  %4395 = vmatprep.subr.bf16.mxu0 0
  %4396 = vmatpush1.bf16.msra.mxu0 0
  %4397 = vmatprep.subr.bf16.mxu0 0
  %4398 = vmatpush1.bf16.msra.mxu0 0
  %4399 = vmatprep.subr.bf16.mxu0 0
  %4400 = vmatpush1.bf16.msra.mxu0 0
  %4401 = vmatprep.subr.bf16.mxu0 0
  %4402 = vmatpush1.bf16.msra.mxu0 0
  %4403 = vmatprep.subr.bf16.mxu0 0
  %4404 = vmatpush1.bf16.msra.mxu0 0
  %4405 = vmatprep.subr.bf16.mxu0 0
  %4406 = vmatpush1.bf16.msra.mxu0 0
  %4407 = vmatprep.subr.bf16.mxu0 0
  %4408 = vmatpush1.bf16.msra.mxu0 0
  %4409 = vmatprep.mubr.bf16.mxu0 0
  %4410 = vmatmul.mubr.bf16.gmra.mrb[0].mxu0 %v353
  %v4411 = vpop.f32.mrb[0].mxu0
  %v4412 = vadd.f32 0.0, %v4411
  %v4413 = vpop.f32.mrb[0].mxu0
  %v4414 = vpop.f32.mrb[0].mxu0
  %v4415 = vadd.f32 0.0, %v4414
  %v4416 = vpop.f32.mrb[0].mxu0
  %4417 = vmatprep.mubr.bf16.mxu0 0
  %4418 = vmatmul.mubr.bf16.gmra.mrb[0].mxu0 %v354
  %v4419 = vpop.f32.mrb[0].mxu0
  %v4420 = vadd.f32 0.0, %v4419
  %v4421 = vpop.f32.mrb[0].mxu0
  %v4422 = vpop.f32.mrb[0].mxu0
  %v4423 = vadd.f32 0.0, %v4422
  %v4424 = vpop.f32.mrb[0].mxu0
  %4425 = vmatprep.mubr.bf16.mxu0 0
  %4426 = vmatmul.mubr.bf16.gmra.mrb[0].mxu0 %v355
  %v4427 = vpop.f32.mrb[0].mxu0
  %v4428 = vadd.f32 0.0, %v4427
  %v4429 = vpop.f32.mrb[0].mxu0
  %v4430 = vpop.f32.mrb[0].mxu0
  %v4431 = vadd.f32 0.0, %v4430
  %v4432 = vpop.f32.mrb[0].mxu0
  %4433 = vmatprep.mubr.bf16.mxu0 0
  %4434 = vmatmul.mubr.bf16.gmra.mrb[0].mxu0 %v356
  %v4435 = vpop.f32.mrb[0].mxu0
  %v4436 = vadd.f32 0.0, %v4435
  %v4437 = vpop.f32.mrb[0].mxu0
  %v4438 = vpop.f32.mrb[0].mxu0
  %v4439 = vadd.f32 0.0, %v4438
  %v4440 = vpop.f32.mrb[0].mxu0
  %4441 = vmatprep.mubr.bf16.mxu0 0
  %4442 = vmatmul.mubr.bf16.gmra.mrb[0].mxu0 %v357
  %v4443 = vpop.f32.mrb[0].mxu0
  %v4444 = vadd.f32 0.0, %v4443
  %v4445 = vpop.f32.mrb[0].mxu0
  %v4446 = vpop.f32.mrb[0].mxu0
  %v4447 = vadd.f32 0.0, %v4446
  %v4448 = vpop.f32.mrb[0].mxu0
  %4449 = vmatprep.mubr.bf16.mxu0 0
  %4450 = vmatmul.mubr.bf16.gmra.mrb[0].mxu0 %v358
  %v4451 = vpop.f32.mrb[0].mxu0
  %v4452 = vadd.f32 0.0, %v4451
  %v4453 = vpop.f32.mrb[0].mxu0
  %v4454 = vpop.f32.mrb[0].mxu0
  %v4455 = vadd.f32 0.0, %v4454
  %v4456 = vpop.f32.mrb[0].mxu0
  %4457 = vmatprep.mubr.bf16.mxu0 0
  %4458 = vmatmul.mubr.bf16.gmra.mrb[0].mxu0 %v359
  %v4459 = vpop.f32.mrb[0].mxu0
  %v4460 = vadd.f32 0.0, %v4459
  %v4461 = vpop.f32.mrb[0].mxu0
  %v4462 = vpop.f32.mrb[0].mxu0
  %v4463 = vadd.f32 0.0, %v4462
  %v4464 = vpop.f32.mrb[0].mxu0
  %4465 = vmatprep.mubr.bf16.mxu0 0
  %4466 = vmatmul.mubr.bf16.gmra.mrb[0].mxu0 %v360
  %v4467 = vpop.f32.mrb[0].mxu0
  %v4468 = vadd.f32 0.0, %v4467
  %v4469 = vpop.f32.mrb[0].mxu0
  %v4470 = vpop.f32.mrb[0].mxu0
  %v4471 = vadd.f32 0.0, %v4470
  %v4472 = vpop.f32.mrb[0].mxu0
  %4473 = vmatprep.mubr.bf16.mxu0 0
  %4474 = vmatmul.mubr.bf16.gmra.mrb[0].mxu0 %v361
  %v4475 = vpop.f32.mrb[0].mxu0
  %v4476 = vadd.f32 0.0, %v4475
  %v4477 = vpop.f32.mrb[0].mxu0
  %v4478 = vpop.f32.mrb[0].mxu0
  %v4479 = vadd.f32 0.0, %v4478
  %v4480 = vpop.f32.mrb[0].mxu0
  %4481 = vmatprep.mubr.bf16.mxu0 0
  %4482 = vmatmul.mubr.bf16.gmra.mrb[0].mxu0 %v362
  %v4483 = vpop.f32.mrb[0].mxu0
  %v4484 = vadd.f32 0.0, %v4483
  %v4485 = vpop.f32.mrb[0].mxu0
  %v4486 = vpop.f32.mrb[0].mxu0
  %v4487 = vadd.f32 0.0, %v4486
  %v4488 = vpop.f32.mrb[0].mxu0
  %4489 = vmatprep.mubr.bf16.mxu0 0
  %4490 = vmatmul.mubr.bf16.gmra.mrb[0].mxu0 %v363
  %v4491 = vpop.f32.mrb[0].mxu0
  %v4492 = vadd.f32 0.0, %v4491
  %v4493 = vpop.f32.mrb[0].mxu0
  %v4494 = vpop.f32.mrb[0].mxu0
  %v4495 = vadd.f32 0.0, %v4494
  %v4496 = vpop.f32.mrb[0].mxu0
  %4497 = vmatprep.mubr.bf16.mxu0 0
  %4498 = vmatmul.mubr.bf16.gmra.mrb[0].mxu0 %v364
  %v4499 = vpop.f32.mrb[0].mxu0
  %v4500 = vadd.f32 0.0, %v4499
  %v4501 = vpop.f32.mrb[0].mxu0
  %v4502 = vpop.f32.mrb[0].mxu0
  %v4503 = vadd.f32 0.0, %v4502
  %v4504 = vpop.f32.mrb[0].mxu0
  %4505 = vmatprep.mubr.bf16.mxu0 0
  %4506 = vmatmul.mubr.bf16.gmra.mrb[0].mxu0 %v365
  %v4507 = vpop.f32.mrb[0].mxu0
  %v4508 = vadd.f32 0.0, %v4507
  %v4509 = vpop.f32.mrb[0].mxu0
  %v4510 = vpop.f32.mrb[0].mxu0
  %v4511 = vadd.f32 0.0, %v4510
  %v4512 = vpop.f32.mrb[0].mxu0
  %4513 = vmatprep.mubr.bf16.mxu0 0
  %4514 = vmatmul.mubr.bf16.gmra.mrb[0].mxu0 %v366
  %v4515 = vpop.f32.mrb[0].mxu0
  %v4516 = vadd.f32 0.0, %v4515
  %v4517 = vpop.f32.mrb[0].mxu0
  %v4518 = vpop.f32.mrb[0].mxu0
  %v4519 = vadd.f32 0.0, %v4518
  %v4520 = vpop.f32.mrb[0].mxu0
  %4521 = vmatprep.mubr.bf16.mxu0 0
  %4522 = vmatmul.mubr.bf16.gmra.mrb[0].mxu0 %v367
  %v4523 = vpop.f32.mrb[0].mxu0
  %v4524 = vadd.f32 0.0, %v4523
  %v4525 = vpop.f32.mrb[0].mxu0
  %v4526 = vpop.f32.mrb[0].mxu0
  %v4527 = vadd.f32 0.0, %v4526
  %v4528 = vpop.f32.mrb[0].mxu0
  %4529 = vmatprep.mubr.bf16.mxu0 0
  %4530 = vmatmul.mubr.bf16.gmra.mrb[0].mxu0 %v368
  %v4531 = vpop.f32.mrb[0].mxu0
  %v4532 = vadd.f32 0.0, %v4531
  %v4533 = vpop.f32.mrb[0].mxu0
  %v4534 = vpop.f32.mrb[0].mxu0
  %v4535 = vadd.f32 0.0, %v4534
  %v4536 = vpop.f32.mrb[0].mxu0
  %4537 = vmatprep.mubr.bf16.mxu0 0
  %4538 = vmatmul.mubr.bf16.gmra.mrb[0].mxu0 %v369
  %v4539 = vpop.f32.mrb[0].mxu0
  %v4540 = vadd.f32 0.0, %v4539
  %v4541 = vpop.f32.mrb[0].mxu0
  %v4542 = vpop.f32.mrb[0].mxu0
  %v4543 = vadd.f32 0.0, %v4542
  %v4544 = vpop.f32.mrb[0].mxu0
  %4545 = vmatprep.mubr.bf16.mxu0 0
  %4546 = vmatmul.mubr.bf16.gmra.mrb[0].mxu0 %v370
  %v4547 = vpop.f32.mrb[0].mxu0
  %v4548 = vadd.f32 0.0, %v4547
  %v4549 = vpop.f32.mrb[0].mxu0
  %v4550 = vpop.f32.mrb[0].mxu0
  %v4551 = vadd.f32 0.0, %v4550
  %v4552 = vpop.f32.mrb[0].mxu0
  %4553 = vmatprep.mubr.bf16.mxu0 0
  %4554 = vmatmul.mubr.bf16.gmra.mrb[0].mxu0 %v371
  %v4555 = vpop.f32.mrb[0].mxu0
  %v4556 = vadd.f32 0.0, %v4555
  %v4557 = vpop.f32.mrb[0].mxu0
  %v4558 = vpop.f32.mrb[0].mxu0
  %v4559 = vadd.f32 0.0, %v4558
  %v4560 = vpop.f32.mrb[0].mxu0
  %4561 = vmatprep.mubr.bf16.mxu0 0
  %4562 = vmatmul.mubr.bf16.gmra.mrb[0].mxu0 %v372
  %v4563 = vpop.f32.mrb[0].mxu0
  %v4564 = vadd.f32 0.0, %v4563
  %v4565 = vpop.f32.mrb[0].mxu0
  %v4566 = vpop.f32.mrb[0].mxu0
  %v4567 = vadd.f32 0.0, %v4566
  %v4568 = vpop.f32.mrb[0].mxu0
  %4569 = vmatprep.mubr.bf16.mxu0 0
  %4570 = vmatmul.mubr.bf16.gmra.mrb[0].mxu0 %v373
  %v4571 = vpop.f32.mrb[0].mxu0
  %v4572 = vadd.f32 0.0, %v4571
  %v4573 = vpop.f32.mrb[0].mxu0
  %v4574 = vpop.f32.mrb[0].mxu0
  %v4575 = vadd.f32 0.0, %v4574
  %v4576 = vpop.f32.mrb[0].mxu0
  %4577 = vmatprep.mubr.bf16.mxu0 0
  %4578 = vmatmul.mubr.bf16.gmra.mrb[0].mxu0 %v374
  %v4579 = vpop.f32.mrb[0].mxu0
  %v4580 = vadd.f32 0.0, %v4579
  %v4581 = vpop.f32.mrb[0].mxu0
  %v4582 = vpop.f32.mrb[0].mxu0
  %v4583 = vadd.f32 0.0, %v4582
  %v4584 = vpop.f32.mrb[0].mxu0
  %4585 = vmatprep.mubr.bf16.mxu0 0
  %4586 = vmatmul.mubr.bf16.gmra.mrb[0].mxu0 %v375
  %v4587 = vpop.f32.mrb[0].mxu0
  %v4588 = vadd.f32 0.0, %v4587
  %v4589 = vpop.f32.mrb[0].mxu0
  %v4590 = vpop.f32.mrb[0].mxu0
  %v4591 = vadd.f32 0.0, %v4590
  %v4592 = vpop.f32.mrb[0].mxu0
  %4593 = vmatprep.mubr.bf16.mxu0 0
  %4594 = vmatmul.mubr.bf16.gmra.mrb[0].mxu0 %v376
  %v4595 = vpop.f32.mrb[0].mxu0
  %v4596 = vadd.f32 0.0, %v4595
  %v4597 = vpop.f32.mrb[0].mxu0
  %v4598 = vpop.f32.mrb[0].mxu0
  %v4599 = vadd.f32 0.0, %v4598
  %v4600 = vpop.f32.mrb[0].mxu0
  %4601 = vmatprep.mubr.bf16.mxu0 0
  %4602 = vmatmul.mubr.bf16.gmra.mrb[0].mxu0 %v377
  %v4603 = vpop.f32.mrb[0].mxu0
  %v4604 = vadd.f32 0.0, %v4603
  %v4605 = vpop.f32.mrb[0].mxu0
  %v4606 = vpop.f32.mrb[0].mxu0
  %v4607 = vadd.f32 0.0, %v4606
  %v4608 = vpop.f32.mrb[0].mxu0
  %4609 = vmatprep.mubr.bf16.mxu0 0
  %4610 = vmatmul.mubr.bf16.gmra.mrb[0].mxu0 %v378
  %v4611 = vpop.f32.mrb[0].mxu0
  %v4612 = vadd.f32 0.0, %v4611
  %v4613 = vpop.f32.mrb[0].mxu0
  %v4614 = vpop.f32.mrb[0].mxu0
  %v4615 = vadd.f32 0.0, %v4614
  %v4616 = vpop.f32.mrb[0].mxu0
  %4617 = vdwg.mxu0
  %v4618 = vmax.f32 %v4412, %v4516
  %v4619 = vmax.f32 %v4415, %v4519
  %v4620 = vmax.f32 %v4420, %v4524
  %v4621 = vmax.f32 %v4423, %v4527
  %v4622 = vmax.f32 %v4428, %v4532
  %v4623 = vmax.f32 %v4431, %v4535
  %v4624 = vmax.f32 %v4436, %v4540
  %v4625 = vmax.f32 %v4439, %v4543
  %v4626 = vmax.f32 %v4444, %v4548
  %v4627 = vmax.f32 %v4447, %v4551
  %v4628 = vmax.f32 %v4452, %v4556
  %v4629 = vmax.f32 %v4455, %v4559
  %v4630 = vmax.f32 %v4460, %v4564
  %v4631 = vmax.f32 %v4463, %v4567
  %v4632 = vmax.f32 %v4468, %v4572
  %v4633 = vmax.f32 %v4471, %v4575
  %v4634 = vmax.f32 %v4476, %v4580
  %v4635 = vmax.f32 %v4479, %v4583
  %v4636 = vmax.f32 %v4484, %v4588
  %v4637 = vmax.f32 %v4487, %v4591
  %v4638 = vmax.f32 %v4492, %v4596
  %v4639 = vmax.f32 %v4495, %v4599
  %v4640 = vmax.f32 %v4500, %v4604
  %v4641 = vmax.f32 %v4503, %v4607
  %v4642 = vmax.f32 %v4508, %v4612
  %v4643 = vmax.f32 %v4511, %v4615
  %v4644 = vmax.f32 %v4618, %v4619
  %v4645 = vmax.f32 %v4620, %v4621
  %v4646 = vmax.f32 %v4622, %v4623
  %v4647 = vmax.f32 %v4624, %v4625
  %v4648 = vmax.f32 %v4626, %v4627
  %v4649 = vmax.f32 %v4628, %v4629
  %v4650 = vmax.f32 %v4630, %v4631
  %v4651 = vmax.f32 %v4632, %v4633
  %v4652 = vmax.f32 %v4634, %v4635
  %v4653 = vmax.f32 %v4636, %v4637
  %v4654 = vmax.f32 %v4638, %v4639
  %v4655 = vmax.f32 %v4640, %v4641
  %v4656 = vmax.f32 %v4642, %v4643
  %v4657 = vadd.f32 %v4644, %v141
  %v4658 = vadd.f32 %v4645, %v146
  %v4659 = vadd.f32 %v4646, %v151
  %v4660 = vadd.f32 %v4647, %v156
  %v4661 = vadd.f32 %v4648, %v161
  %v4662 = vadd.f32 %v4649, %v166
  %v4663 = vadd.f32 %v4650, %v171
  %v4664 = vadd.f32 %v4651, %v176
  %v4665 = vadd.f32 %v4652, %v181
  %v4666 = vadd.f32 %v4653, %v186
  %v4667 = vadd.f32 %v4654, %v191
  %v4668 = vadd.f32 %v4655, %v196
  %v4669 = vadd.f32 %v4656, %v201
  %v4670 = vmax.f32 %v4657, 0.0
  %v4671 = vmax.f32 %v4658, 0.0
  %v4672 = vmax.f32 %v4659, 0.0
  %v4673 = vmax.f32 %v4660, 0.0
  %v4674 = vmax.f32 %v4661, 0.0
  %v4675 = vmax.f32 %v4662, 0.0
  %v4676 = vmax.f32 %v4663, 0.0
  %v4677 = vmax.f32 %v4664, 0.0
  %v4678 = vmax.f32 %v4665, 0.0
  %v4679 = vmax.f32 %v4666, 0.0
  %v4680 = vmax.f32 %v4667, 0.0
  %v4681 = vmax.f32 %v4668, 0.0
  %v4682 = vmax.f32 %v4669, 0.0
  %v4683 = vpack.c.bf16 %v4671, %v4670
  %v4684 = vpack.c.bf16 %v4673, %v4672
  %v4685 = vpack.c.bf16 %v4675, %v4674
  %v4686 = vpack.c.bf16 %v4677, %v4676
  %v4687 = vpack.c.bf16 %v4679, %v4678
  %v4688 = vpack.c.bf16 %v4681, %v4680
  %v4689 = vpack.c.bf16 %v4682, %v4682
  %v4697 = vunpack.c.l.b16 %v4683
  %v4698 = vunpack.c.h.b16 %v4683
  %v4699 = vunpack.c.l.b16 %v4684
  %v4700 = vunpack.c.h.b16 %v4684
  %v4701 = vunpack.c.l.b16 %v4685
  %v4702 = vunpack.c.h.b16 %v4685
  %v4703 = vunpack.c.l.b16 %v4686
  %v4704 = vunpack.c.h.b16 %v4686
  %v4705 = vunpack.c.l.b16 %v4687
  %v4706 = vunpack.c.h.b16 %v4687
  %v4707 = vunpack.c.l.b16 %v4688
  %v4708 = vunpack.c.h.b16 %v4688
  %v4709 = vunpack.c.l.b16 %v4689
  %v4710 = vpack.c.b16 %v4697, %v4697
  %v4711 = vpack.c.b16 %v4698, %v4698
  %v4712 = vpack.c.b16 %v4699, %v4699
  %v4713 = vpack.c.b16 %v4700, %v4700
  %v4714 = vpack.c.b16 %v4701, %v4701
  %v4715 = vpack.c.b16 %v4702, %v4702
  %v4716 = vpack.c.b16 %v4703, %v4703
  %v4717 = vpack.c.b16 %v4704, %v4704
  %v4718 = vpack.c.b16 %v4705, %v4705
  %v4719 = vpack.c.b16 %v4706, %v4706
  %v4720 = vpack.c.b16 %v4707, %v4707
  %v4721 = vpack.c.b16 %v4708, %v4708
  %v4722 = vpack.c.b16 %v4709, %v4709
  %4736 = vst [vmem:[#allocation2 + $0x1d4] sm:$0xf] %v4710
  %4737 = vst [vmem:[#allocation2 + $0x1d8] sm:$0xf] %v4711
  %4738 = vst [vmem:[#allocation2 + $0x1dc] sm:$0xf] %v4712
  %4739 = vst [vmem:[#allocation2 + $0x1e0] sm:$0xf] %v4713
  %4740 = vst [vmem:[#allocation2 + $0x1e4] sm:$0xf] %v4714
  %4741 = vst [vmem:[#allocation2 + $0x1e8] sm:$0xf] %v4715
  %4742 = vst [vmem:[#allocation2 + $0x1ec] sm:$0xf] %v4716
  %4743 = vst [vmem:[#allocation2 + $0x1f0] sm:$0xf] %v4717
  %4744 = vst [vmem:[#allocation2 + $0x1f4] sm:$0xf] %v4718
  %4745 = vst [vmem:[#allocation2 + $0x1f8] sm:$0xf] %v4719
  %4746 = vst [vmem:[#allocation2 + $0x1fc] sm:$0xf] %v4720
  %4747 = vst [vmem:[#allocation2 + $0x200] sm:$0xf] %v4721
  %4748 = vst [vmem:[#allocation2 + $0x204] sm:$0xf] %v4722
  %v4749 = vld [vmem:[%s0 + $0x140] sm:$0xf]
  %v4750 = vld [vmem:[%s0 + $0x144] sm:$0xf]
  %v4751 = vld [vmem:[%s0 + $0x148] sm:$0xf]
  %v4752 = vld [vmem:[%s0 + $0x14c] sm:$0xf]
  %v4753 = vld [vmem:[%s0 + $0x150] sm:$0xf]
  %v4754 = vld [vmem:[%s0 + $0x154] sm:$0xf]
  %v4755 = vld [vmem:[%s0 + $0x158] sm:$0xf]
  %v4756 = vld [vmem:[%s0 + $0x15c] sm:$0xf]
  %v4757 = vld [vmem:[%s0 + $0x160] sm:$0xf]
  %v4758 = vld [vmem:[%s0 + $0x164] sm:$0xf]
  %v4759 = vld [vmem:[%s0 + $0x168] sm:$0xf]
  %v4760 = vld [vmem:[%s0 + $0x16c] sm:$0xf]
  %v4761 = vld [vmem:[%s0 + $0x170] sm:$0xf]
  %v4762 = vld [vmem:[%s0 + $0x174] sm:$0xf]
  %v4763 = vld [vmem:[%s0 + $0x178] sm:$0xf]
  %v4764 = vld [vmem:[%s0 + $0x17c] sm:$0xf]
  %v4781 = vunpack.c.l.b16 %v4749
  %v4782 = vunpack.c.l.b16 %v4750
  %v4783 = vunpack.c.l.b16 %v4751
  %v4784 = vunpack.c.l.b16 %v4752
  %v4785 = vunpack.c.l.b16 %v4753
  %v4786 = vunpack.c.l.b16 %v4754
  %v4787 = vunpack.c.l.b16 %v4755
  %v4788 = vunpack.c.l.b16 %v4756
  %v4789 = vunpack.c.l.b16 %v4757
  %v4790 = vunpack.c.l.b16 %v4758
  %v4791 = vunpack.c.l.b16 %v4759
  %v4792 = vunpack.c.l.b16 %v4760
  %v4793 = vunpack.c.l.b16 %v4761
  %v4794 = vunpack.c.l.b16 %v4762
  %v4795 = vunpack.c.l.b16 %v4763
  %v4796 = vunpack.c.l.b16 %v4764
  %v4797 = vpack.c.b16 %v4782, %v4781
  %v4798 = vpack.c.b16 %v4784, %v4783
  %v4799 = vpack.c.b16 %v4786, %v4785
  %v4800 = vpack.c.b16 %v4788, %v4787
  %v4801 = vpack.c.b16 %v4790, %v4789
  %v4802 = vpack.c.b16 %v4792, %v4791
  %v4803 = vpack.c.b16 %v4794, %v4793
  %v4804 = vpack.c.b16 %v4796, %v4795
  %4813 = vmatprep.subr.bf16.mxu0 0
  %4814 = vmatpush1.bf16.msra.mxu0 %v4797
  %4815 = vmatprep.subr.bf16.mxu0 0
  %4816 = vmatpush1.bf16.msra.mxu0 %v4798
  %4817 = vmatprep.subr.bf16.mxu0 0
  %4818 = vmatpush1.bf16.msra.mxu0 %v4799
  %4819 = vmatprep.subr.bf16.mxu0 0
  %4820 = vmatpush1.bf16.msra.mxu0 %v4800
  %4821 = vmatprep.subr.bf16.mxu0 0
  %4822 = vmatpush1.bf16.msra.mxu0 %v4801
  %4823 = vmatprep.subr.bf16.mxu0 0
  %4824 = vmatpush1.bf16.msra.mxu0 %v4802
  %4825 = vmatprep.subr.bf16.mxu0 0
  %4826 = vmatpush1.bf16.msra.mxu0 %v4803
  %4827 = vmatprep.subr.bf16.mxu0 0
  %4828 = vmatpush1.bf16.msra.mxu0 %v4804
  %4829 = vmatprep.subr.bf16.mxu0 0
  %4830 = vmatpush1.bf16.msra.mxu0 0
  %4831 = vmatprep.subr.bf16.mxu0 0
  %4832 = vmatpush1.bf16.msra.mxu0 0
  %4833 = vmatprep.subr.bf16.mxu0 0
  %4834 = vmatpush1.bf16.msra.mxu0 0
  %4835 = vmatprep.subr.bf16.mxu0 0
  %4836 = vmatpush1.bf16.msra.mxu0 0
  %4837 = vmatprep.subr.bf16.mxu0 0
  %4838 = vmatpush1.bf16.msra.mxu0 0
  %4839 = vmatprep.subr.bf16.mxu0 0
  %4840 = vmatpush1.bf16.msra.mxu0 0
  %4841 = vmatprep.subr.bf16.mxu0 0
  %4842 = vmatpush1.bf16.msra.mxu0 0
  %4843 = vmatprep.subr.bf16.mxu0 0
  %4844 = vmatpush1.bf16.msra.mxu0 0
  %4845 = vmatprep.mubr.bf16.mxu0 0
  %4846 = vmatmul.mubr.bf16.gmra.mrb[0].mxu0 %v353
  %v4847 = vpop.f32.mrb[0].mxu0
  %v4848 = vadd.f32 0.0, %v4847
  %v4849 = vpop.f32.mrb[0].mxu0
  %v4850 = vpop.f32.mrb[0].mxu0
  %v4851 = vadd.f32 0.0, %v4850
  %v4852 = vpop.f32.mrb[0].mxu0
  %4853 = vmatprep.mubr.bf16.mxu0 0
  %4854 = vmatmul.mubr.bf16.gmra.mrb[0].mxu0 %v354
  %v4855 = vpop.f32.mrb[0].mxu0
  %v4856 = vadd.f32 0.0, %v4855
  %v4857 = vpop.f32.mrb[0].mxu0
  %v4858 = vpop.f32.mrb[0].mxu0
  %v4859 = vadd.f32 0.0, %v4858
  %v4860 = vpop.f32.mrb[0].mxu0
  %4861 = vmatprep.mubr.bf16.mxu0 0
  %4862 = vmatmul.mubr.bf16.gmra.mrb[0].mxu0 %v355
  %v4863 = vpop.f32.mrb[0].mxu0
  %v4864 = vadd.f32 0.0, %v4863
  %v4865 = vpop.f32.mrb[0].mxu0
  %v4866 = vpop.f32.mrb[0].mxu0
  %v4867 = vadd.f32 0.0, %v4866
  %v4868 = vpop.f32.mrb[0].mxu0
  %4869 = vmatprep.mubr.bf16.mxu0 0
  %4870 = vmatmul.mubr.bf16.gmra.mrb[0].mxu0 %v356
  %v4871 = vpop.f32.mrb[0].mxu0
  %v4872 = vadd.f32 0.0, %v4871
  %v4873 = vpop.f32.mrb[0].mxu0
  %v4874 = vpop.f32.mrb[0].mxu0
  %v4875 = vadd.f32 0.0, %v4874
  %v4876 = vpop.f32.mrb[0].mxu0
  %4877 = vmatprep.mubr.bf16.mxu0 0
  %4878 = vmatmul.mubr.bf16.gmra.mrb[0].mxu0 %v357
  %v4879 = vpop.f32.mrb[0].mxu0
  %v4880 = vadd.f32 0.0, %v4879
  %v4881 = vpop.f32.mrb[0].mxu0
  %v4882 = vpop.f32.mrb[0].mxu0
  %v4883 = vadd.f32 0.0, %v4882
  %v4884 = vpop.f32.mrb[0].mxu0
  %4885 = vmatprep.mubr.bf16.mxu0 0
  %4886 = vmatmul.mubr.bf16.gmra.mrb[0].mxu0 %v358
  %v4887 = vpop.f32.mrb[0].mxu0
  %v4888 = vadd.f32 0.0, %v4887
  %v4889 = vpop.f32.mrb[0].mxu0
  %v4890 = vpop.f32.mrb[0].mxu0
  %v4891 = vadd.f32 0.0, %v4890
  %v4892 = vpop.f32.mrb[0].mxu0
  %4893 = vmatprep.mubr.bf16.mxu0 0
  %4894 = vmatmul.mubr.bf16.gmra.mrb[0].mxu0 %v359
  %v4895 = vpop.f32.mrb[0].mxu0
  %v4896 = vadd.f32 0.0, %v4895
  %v4897 = vpop.f32.mrb[0].mxu0
  %v4898 = vpop.f32.mrb[0].mxu0
  %v4899 = vadd.f32 0.0, %v4898
  %v4900 = vpop.f32.mrb[0].mxu0
  %4901 = vmatprep.mubr.bf16.mxu0 0
  %4902 = vmatmul.mubr.bf16.gmra.mrb[0].mxu0 %v360
  %v4903 = vpop.f32.mrb[0].mxu0
  %v4904 = vadd.f32 0.0, %v4903
  %v4905 = vpop.f32.mrb[0].mxu0
  %v4906 = vpop.f32.mrb[0].mxu0
  %v4907 = vadd.f32 0.0, %v4906
  %v4908 = vpop.f32.mrb[0].mxu0
  %4909 = vmatprep.mubr.bf16.mxu0 0
  %4910 = vmatmul.mubr.bf16.gmra.mrb[0].mxu0 %v361
  %v4911 = vpop.f32.mrb[0].mxu0
  %v4912 = vadd.f32 0.0, %v4911
  %v4913 = vpop.f32.mrb[0].mxu0
  %v4914 = vpop.f32.mrb[0].mxu0
  %v4915 = vadd.f32 0.0, %v4914
  %v4916 = vpop.f32.mrb[0].mxu0
  %4917 = vmatprep.mubr.bf16.mxu0 0
  %4918 = vmatmul.mubr.bf16.gmra.mrb[0].mxu0 %v362
  %v4919 = vpop.f32.mrb[0].mxu0
  %v4920 = vadd.f32 0.0, %v4919
  %v4921 = vpop.f32.mrb[0].mxu0
  %v4922 = vpop.f32.mrb[0].mxu0
  %v4923 = vadd.f32 0.0, %v4922
  %v4924 = vpop.f32.mrb[0].mxu0
  %4925 = vmatprep.mubr.bf16.mxu0 0
  %4926 = vmatmul.mubr.bf16.gmra.mrb[0].mxu0 %v363
  %v4927 = vpop.f32.mrb[0].mxu0
  %v4928 = vadd.f32 0.0, %v4927
  %v4929 = vpop.f32.mrb[0].mxu0
  %v4930 = vpop.f32.mrb[0].mxu0
  %v4931 = vadd.f32 0.0, %v4930
  %v4932 = vpop.f32.mrb[0].mxu0
  %4933 = vmatprep.mubr.bf16.mxu0 0
  %4934 = vmatmul.mubr.bf16.gmra.mrb[0].mxu0 %v364
  %v4935 = vpop.f32.mrb[0].mxu0
  %v4936 = vadd.f32 0.0, %v4935
  %v4937 = vpop.f32.mrb[0].mxu0
  %v4938 = vpop.f32.mrb[0].mxu0
  %v4939 = vadd.f32 0.0, %v4938
  %v4940 = vpop.f32.mrb[0].mxu0
  %4941 = vmatprep.mubr.bf16.mxu0 0
  %4942 = vmatmul.mubr.bf16.gmra.mrb[0].mxu0 %v365
  %v4943 = vpop.f32.mrb[0].mxu0
  %v4944 = vadd.f32 0.0, %v4943
  %v4945 = vpop.f32.mrb[0].mxu0
  %v4946 = vpop.f32.mrb[0].mxu0
  %v4947 = vadd.f32 0.0, %v4946
  %v4948 = vpop.f32.mrb[0].mxu0
  %4949 = vmatprep.mubr.bf16.mxu0 0
  %4950 = vmatmul.mubr.bf16.gmra.mrb[0].mxu0 %v366
  %v4951 = vpop.f32.mrb[0].mxu0
  %v4952 = vadd.f32 0.0, %v4951
  %v4953 = vpop.f32.mrb[0].mxu0
  %v4954 = vpop.f32.mrb[0].mxu0
  %v4955 = vadd.f32 0.0, %v4954
  %v4956 = vpop.f32.mrb[0].mxu0
  %4957 = vmatprep.mubr.bf16.mxu0 0
  %4958 = vmatmul.mubr.bf16.gmra.mrb[0].mxu0 %v367
  %v4959 = vpop.f32.mrb[0].mxu0
  %v4960 = vadd.f32 0.0, %v4959
  %v4961 = vpop.f32.mrb[0].mxu0
  %v4962 = vpop.f32.mrb[0].mxu0
  %v4963 = vadd.f32 0.0, %v4962
  %v4964 = vpop.f32.mrb[0].mxu0
  %4965 = vmatprep.mubr.bf16.mxu0 0
  %4966 = vmatmul.mubr.bf16.gmra.mrb[0].mxu0 %v368
  %v4967 = vpop.f32.mrb[0].mxu0
  %v4968 = vadd.f32 0.0, %v4967
  %v4969 = vpop.f32.mrb[0].mxu0
  %v4970 = vpop.f32.mrb[0].mxu0
  %v4971 = vadd.f32 0.0, %v4970
  %v4972 = vpop.f32.mrb[0].mxu0
  %4973 = vmatprep.mubr.bf16.mxu0 0
  %4974 = vmatmul.mubr.bf16.gmra.mrb[0].mxu0 %v369
  %v4975 = vpop.f32.mrb[0].mxu0
  %v4976 = vadd.f32 0.0, %v4975
  %v4977 = vpop.f32.mrb[0].mxu0
  %v4978 = vpop.f32.mrb[0].mxu0
  %v4979 = vadd.f32 0.0, %v4978
  %v4980 = vpop.f32.mrb[0].mxu0
  %4981 = vmatprep.mubr.bf16.mxu0 0
  %4982 = vmatmul.mubr.bf16.gmra.mrb[0].mxu0 %v370
  %v4983 = vpop.f32.mrb[0].mxu0
  %v4984 = vadd.f32 0.0, %v4983
  %v4985 = vpop.f32.mrb[0].mxu0
  %v4986 = vpop.f32.mrb[0].mxu0
  %v4987 = vadd.f32 0.0, %v4986
  %v4988 = vpop.f32.mrb[0].mxu0
  %4989 = vmatprep.mubr.bf16.mxu0 0
  %4990 = vmatmul.mubr.bf16.gmra.mrb[0].mxu0 %v371
  %v4991 = vpop.f32.mrb[0].mxu0
  %v4992 = vadd.f32 0.0, %v4991
  %v4993 = vpop.f32.mrb[0].mxu0
  %v4994 = vpop.f32.mrb[0].mxu0
  %v4995 = vadd.f32 0.0, %v4994
  %v4996 = vpop.f32.mrb[0].mxu0
  %4997 = vmatprep.mubr.bf16.mxu0 0
  %4998 = vmatmul.mubr.bf16.gmra.mrb[0].mxu0 %v372
  %v4999 = vpop.f32.mrb[0].mxu0
  %v5000 = vadd.f32 0.0, %v4999
  %v5001 = vpop.f32.mrb[0].mxu0
  %v5002 = vpop.f32.mrb[0].mxu0
  %v5003 = vadd.f32 0.0, %v5002
  %v5004 = vpop.f32.mrb[0].mxu0
  %5005 = vmatprep.mubr.bf16.mxu0 0
  %5006 = vmatmul.mubr.bf16.gmra.mrb[0].mxu0 %v373
  %v5007 = vpop.f32.mrb[0].mxu0
  %v5008 = vadd.f32 0.0, %v5007
  %v5009 = vpop.f32.mrb[0].mxu0
  %v5010 = vpop.f32.mrb[0].mxu0
  %v5011 = vadd.f32 0.0, %v5010
  %v5012 = vpop.f32.mrb[0].mxu0
  %5013 = vmatprep.mubr.bf16.mxu0 0
  %5014 = vmatmul.mubr.bf16.gmra.mrb[0].mxu0 %v374
  %v5015 = vpop.f32.mrb[0].mxu0
  %v5016 = vadd.f32 0.0, %v5015
  %v5017 = vpop.f32.mrb[0].mxu0
  %v5018 = vpop.f32.mrb[0].mxu0
  %v5019 = vadd.f32 0.0, %v5018
  %v5020 = vpop.f32.mrb[0].mxu0
  %5021 = vmatprep.mubr.bf16.mxu0 0
  %5022 = vmatmul.mubr.bf16.gmra.mrb[0].mxu0 %v375
  %v5023 = vpop.f32.mrb[0].mxu0
  %v5024 = vadd.f32 0.0, %v5023
  %v5025 = vpop.f32.mrb[0].mxu0
  %v5026 = vpop.f32.mrb[0].mxu0
  %v5027 = vadd.f32 0.0, %v5026
  %v5028 = vpop.f32.mrb[0].mxu0
  %5029 = vmatprep.mubr.bf16.mxu0 0
  %5030 = vmatmul.mubr.bf16.gmra.mrb[0].mxu0 %v376
  %v5031 = vpop.f32.mrb[0].mxu0
  %v5032 = vadd.f32 0.0, %v5031
  %v5033 = vpop.f32.mrb[0].mxu0
  %v5034 = vpop.f32.mrb[0].mxu0
  %v5035 = vadd.f32 0.0, %v5034
  %v5036 = vpop.f32.mrb[0].mxu0
  %5037 = vmatprep.mubr.bf16.mxu0 0
  %5038 = vmatmul.mubr.bf16.gmra.mrb[0].mxu0 %v377
  %v5039 = vpop.f32.mrb[0].mxu0
  %v5040 = vadd.f32 0.0, %v5039
  %v5041 = vpop.f32.mrb[0].mxu0
  %v5042 = vpop.f32.mrb[0].mxu0
  %v5043 = vadd.f32 0.0, %v5042
  %v5044 = vpop.f32.mrb[0].mxu0
  %5045 = vmatprep.mubr.bf16.mxu0 0
  %5046 = vmatmul.mubr.bf16.gmra.mrb[0].mxu0 %v378
  %v5047 = vpop.f32.mrb[0].mxu0
  %v5048 = vadd.f32 0.0, %v5047
  %v5049 = vpop.f32.mrb[0].mxu0
  %v5050 = vpop.f32.mrb[0].mxu0
  %v5051 = vadd.f32 0.0, %v5050
  %v5052 = vpop.f32.mrb[0].mxu0
  %5053 = vdwg.mxu0
  %v5054 = vmax.f32 %v4848, %v4952
  %v5055 = vmax.f32 %v4851, %v4955
  %v5056 = vmax.f32 %v4856, %v4960
  %v5057 = vmax.f32 %v4859, %v4963
  %v5058 = vmax.f32 %v4864, %v4968
  %v5059 = vmax.f32 %v4867, %v4971
  %v5060 = vmax.f32 %v4872, %v4976
  %v5061 = vmax.f32 %v4875, %v4979
  %v5062 = vmax.f32 %v4880, %v4984
  %v5063 = vmax.f32 %v4883, %v4987
  %v5064 = vmax.f32 %v4888, %v4992
  %v5065 = vmax.f32 %v4891, %v4995
  %v5066 = vmax.f32 %v4896, %v5000
  %v5067 = vmax.f32 %v4899, %v5003
  %v5068 = vmax.f32 %v4904, %v5008
  %v5069 = vmax.f32 %v4907, %v5011
  %v5070 = vmax.f32 %v4912, %v5016
  %v5071 = vmax.f32 %v4915, %v5019
  %v5072 = vmax.f32 %v4920, %v5024
  %v5073 = vmax.f32 %v4923, %v5027
  %v5074 = vmax.f32 %v4928, %v5032
  %v5075 = vmax.f32 %v4931, %v5035
  %v5076 = vmax.f32 %v4936, %v5040
  %v5077 = vmax.f32 %v4939, %v5043
  %v5078 = vmax.f32 %v4944, %v5048
  %v5079 = vmax.f32 %v4947, %v5051
  %v5080 = vmax.f32 %v5054, %v5055
  %v5081 = vmax.f32 %v5056, %v5057
  %v5082 = vmax.f32 %v5058, %v5059
  %v5083 = vmax.f32 %v5060, %v5061
  %v5084 = vmax.f32 %v5062, %v5063
  %v5085 = vmax.f32 %v5064, %v5065
  %v5086 = vmax.f32 %v5066, %v5067
  %v5087 = vmax.f32 %v5068, %v5069
  %v5088 = vmax.f32 %v5070, %v5071
  %v5089 = vmax.f32 %v5072, %v5073
  %v5090 = vmax.f32 %v5074, %v5075
  %v5091 = vmax.f32 %v5076, %v5077
  %v5092 = vmax.f32 %v5078, %v5079
  %v5093 = vadd.f32 %v5080, %v141
  %v5094 = vadd.f32 %v5081, %v146
  %v5095 = vadd.f32 %v5082, %v151
  %v5096 = vadd.f32 %v5083, %v156
  %v5097 = vadd.f32 %v5084, %v161
  %v5098 = vadd.f32 %v5085, %v166
  %v5099 = vadd.f32 %v5086, %v171
  %v5100 = vadd.f32 %v5087, %v176
  %v5101 = vadd.f32 %v5088, %v181
  %v5102 = vadd.f32 %v5089, %v186
  %v5103 = vadd.f32 %v5090, %v191
  %v5104 = vadd.f32 %v5091, %v196
  %v5105 = vadd.f32 %v5092, %v201
  %v5106 = vmax.f32 %v5093, 0.0
  %v5107 = vmax.f32 %v5094, 0.0
  %v5108 = vmax.f32 %v5095, 0.0
  %v5109 = vmax.f32 %v5096, 0.0
  %v5110 = vmax.f32 %v5097, 0.0
  %v5111 = vmax.f32 %v5098, 0.0
  %v5112 = vmax.f32 %v5099, 0.0
  %v5113 = vmax.f32 %v5100, 0.0
  %v5114 = vmax.f32 %v5101, 0.0
  %v5115 = vmax.f32 %v5102, 0.0
  %v5116 = vmax.f32 %v5103, 0.0
  %v5117 = vmax.f32 %v5104, 0.0
  %v5118 = vmax.f32 %v5105, 0.0
  %v5119 = vpack.c.bf16 %v5107, %v5106
  %v5120 = vpack.c.bf16 %v5109, %v5108
  %v5121 = vpack.c.bf16 %v5111, %v5110
  %v5122 = vpack.c.bf16 %v5113, %v5112
  %v5123 = vpack.c.bf16 %v5115, %v5114
  %v5124 = vpack.c.bf16 %v5117, %v5116
  %v5125 = vpack.c.bf16 %v5118, %v5118
  %v5133 = vunpack.c.l.b16 %v5119
  %v5134 = vunpack.c.h.b16 %v5119
  %v5135 = vunpack.c.l.b16 %v5120
  %v5136 = vunpack.c.h.b16 %v5120
  %v5137 = vunpack.c.l.b16 %v5121
  %v5138 = vunpack.c.h.b16 %v5121
  %v5139 = vunpack.c.l.b16 %v5122
  %v5140 = vunpack.c.h.b16 %v5122
  %v5141 = vunpack.c.l.b16 %v5123
  %v5142 = vunpack.c.h.b16 %v5123
  %v5143 = vunpack.c.l.b16 %v5124
  %v5144 = vunpack.c.h.b16 %v5124
  %v5145 = vunpack.c.l.b16 %v5125
  %v5146 = vpack.c.b16 %v5133, %v5133
  %v5147 = vpack.c.b16 %v5134, %v5134
  %v5148 = vpack.c.b16 %v5135, %v5135
  %v5149 = vpack.c.b16 %v5136, %v5136
  %v5150 = vpack.c.b16 %v5137, %v5137
  %v5151 = vpack.c.b16 %v5138, %v5138
  %v5152 = vpack.c.b16 %v5139, %v5139
  %v5153 = vpack.c.b16 %v5140, %v5140
  %v5154 = vpack.c.b16 %v5141, %v5141
  %v5155 = vpack.c.b16 %v5142, %v5142
  %v5156 = vpack.c.b16 %v5143, %v5143
  %v5157 = vpack.c.b16 %v5144, %v5144
  %v5158 = vpack.c.b16 %v5145, %v5145
  %5172 = vst [vmem:[#allocation2 + $0x208] sm:$0xf] %v5146
  %5173 = vst [vmem:[#allocation2 + $0x20c] sm:$0xf] %v5147
  %5174 = vst [vmem:[#allocation2 + $0x210] sm:$0xf] %v5148
  %5175 = vst [vmem:[#allocation2 + $0x214] sm:$0xf] %v5149
  %5176 = vst [vmem:[#allocation2 + $0x218] sm:$0xf] %v5150
  %5177 = vst [vmem:[#allocation2 + $0x21c] sm:$0xf] %v5151
  %5178 = vst [vmem:[#allocation2 + $0x220] sm:$0xf] %v5152
  %5179 = vst [vmem:[#allocation2 + $0x224] sm:$0xf] %v5153
  %5180 = vst [vmem:[#allocation2 + $0x228] sm:$0xf] %v5154
  %5181 = vst [vmem:[#allocation2 + $0x22c] sm:$0xf] %v5155
  %5182 = vst [vmem:[#allocation2 + $0x230] sm:$0xf] %v5156
  %5183 = vst [vmem:[#allocation2 + $0x234] sm:$0xf] %v5157
  %5184 = vst [vmem:[#allocation2 + $0x238] sm:$0xf] %v5158
  %v5185 = vld [vmem:[%s0 + $0x160] sm:$0xf]
  %v5186 = vld [vmem:[%s0 + $0x164] sm:$0xf]
  %v5187 = vld [vmem:[%s0 + $0x168] sm:$0xf]
  %v5188 = vld [vmem:[%s0 + $0x16c] sm:$0xf]
  %v5189 = vld [vmem:[%s0 + $0x170] sm:$0xf]
  %v5190 = vld [vmem:[%s0 + $0x174] sm:$0xf]
  %v5191 = vld [vmem:[%s0 + $0x178] sm:$0xf]
  %v5192 = vld [vmem:[%s0 + $0x17c] sm:$0xf]
  %v5193 = vld [vmem:[%s0 + $0x180] sm:$0xf]
  %v5194 = vld [vmem:[%s0 + $0x184] sm:$0xf]
  %v5195 = vld [vmem:[%s0 + $0x188] sm:$0xf]
  %v5196 = vld [vmem:[%s0 + $0x18c] sm:$0xf]
  %v5197 = vld [vmem:[%s0 + $0x190] sm:$0xf]
  %v5198 = vld [vmem:[%s0 + $0x194] sm:$0xf]
  %v5199 = vld [vmem:[%s0 + $0x198] sm:$0xf]
  %v5200 = vld [vmem:[%s0 + $0x19c] sm:$0xf]
  %v5217 = vunpack.c.l.b16 %v5185
  %v5218 = vunpack.c.l.b16 %v5186
  %v5219 = vunpack.c.l.b16 %v5187
  %v5220 = vunpack.c.l.b16 %v5188
  %v5221 = vunpack.c.l.b16 %v5189
  %v5222 = vunpack.c.l.b16 %v5190
  %v5223 = vunpack.c.l.b16 %v5191
  %v5224 = vunpack.c.l.b16 %v5192
  %v5225 = vunpack.c.l.b16 %v5193
  %v5226 = vunpack.c.l.b16 %v5194
  %v5227 = vunpack.c.l.b16 %v5195
  %v5228 = vunpack.c.l.b16 %v5196
  %v5229 = vunpack.c.l.b16 %v5197
  %v5230 = vunpack.c.l.b16 %v5198
  %v5231 = vunpack.c.l.b16 %v5199
  %v5232 = vunpack.c.l.b16 %v5200
  %v5233 = vpack.c.b16 %v5218, %v5217
  %v5234 = vpack.c.b16 %v5220, %v5219
  %v5235 = vpack.c.b16 %v5222, %v5221
  %v5236 = vpack.c.b16 %v5224, %v5223
  %v5237 = vpack.c.b16 %v5226, %v5225
  %v5238 = vpack.c.b16 %v5228, %v5227
  %v5239 = vpack.c.b16 %v5230, %v5229
  %v5240 = vpack.c.b16 %v5232, %v5231
  %5249 = vmatprep.subr.bf16.mxu0 0
  %5250 = vmatpush1.bf16.msra.mxu0 %v5233
  %5251 = vmatprep.subr.bf16.mxu0 0
  %5252 = vmatpush1.bf16.msra.mxu0 %v5234
  %5253 = vmatprep.subr.bf16.mxu0 0
  %5254 = vmatpush1.bf16.msra.mxu0 %v5235
  %5255 = vmatprep.subr.bf16.mxu0 0
  %5256 = vmatpush1.bf16.msra.mxu0 %v5236
  %5257 = vmatprep.subr.bf16.mxu0 0
  %5258 = vmatpush1.bf16.msra.mxu0 %v5237
  %5259 = vmatprep.subr.bf16.mxu0 0
  %5260 = vmatpush1.bf16.msra.mxu0 %v5238
  %5261 = vmatprep.subr.bf16.mxu0 0
  %5262 = vmatpush1.bf16.msra.mxu0 %v5239
  %5263 = vmatprep.subr.bf16.mxu0 0
  %5264 = vmatpush1.bf16.msra.mxu0 %v5240
  %5265 = vmatprep.subr.bf16.mxu0 0
  %5266 = vmatpush1.bf16.msra.mxu0 0
  %5267 = vmatprep.subr.bf16.mxu0 0
  %5268 = vmatpush1.bf16.msra.mxu0 0
  %5269 = vmatprep.subr.bf16.mxu0 0
  %5270 = vmatpush1.bf16.msra.mxu0 0
  %5271 = vmatprep.subr.bf16.mxu0 0
  %5272 = vmatpush1.bf16.msra.mxu0 0
  %5273 = vmatprep.subr.bf16.mxu0 0
  %5274 = vmatpush1.bf16.msra.mxu0 0
  %5275 = vmatprep.subr.bf16.mxu0 0
  %5276 = vmatpush1.bf16.msra.mxu0 0
  %5277 = vmatprep.subr.bf16.mxu0 0
  %5278 = vmatpush1.bf16.msra.mxu0 0
  %5279 = vmatprep.subr.bf16.mxu0 0
  %5280 = vmatpush1.bf16.msra.mxu0 0
  %5281 = vmatprep.mubr.bf16.mxu0 0
  %5282 = vmatmul.mubr.bf16.gmra.mrb[0].mxu0 %v353
  %v5283 = vpop.f32.mrb[0].mxu0
  %v5284 = vadd.f32 0.0, %v5283
  %v5285 = vpop.f32.mrb[0].mxu0
  %v5286 = vpop.f32.mrb[0].mxu0
  %v5287 = vadd.f32 0.0, %v5286
  %v5288 = vpop.f32.mrb[0].mxu0
  %5289 = vmatprep.mubr.bf16.mxu0 0
  %5290 = vmatmul.mubr.bf16.gmra.mrb[0].mxu0 %v354
  %v5291 = vpop.f32.mrb[0].mxu0
  %v5292 = vadd.f32 0.0, %v5291
  %v5293 = vpop.f32.mrb[0].mxu0
  %v5294 = vpop.f32.mrb[0].mxu0
  %v5295 = vadd.f32 0.0, %v5294
  %v5296 = vpop.f32.mrb[0].mxu0
  %5297 = vmatprep.mubr.bf16.mxu0 0
  %5298 = vmatmul.mubr.bf16.gmra.mrb[0].mxu0 %v355
  %v5299 = vpop.f32.mrb[0].mxu0
  %v5300 = vadd.f32 0.0, %v5299
  %v5301 = vpop.f32.mrb[0].mxu0
  %v5302 = vpop.f32.mrb[0].mxu0
  %v5303 = vadd.f32 0.0, %v5302
  %v5304 = vpop.f32.mrb[0].mxu0
  %5305 = vmatprep.mubr.bf16.mxu0 0
  %5306 = vmatmul.mubr.bf16.gmra.mrb[0].mxu0 %v356
  %v5307 = vpop.f32.mrb[0].mxu0
  %v5308 = vadd.f32 0.0, %v5307
  %v5309 = vpop.f32.mrb[0].mxu0
  %v5310 = vpop.f32.mrb[0].mxu0
  %v5311 = vadd.f32 0.0, %v5310
  %v5312 = vpop.f32.mrb[0].mxu0
  %5313 = vmatprep.mubr.bf16.mxu0 0
  %5314 = vmatmul.mubr.bf16.gmra.mrb[0].mxu0 %v357
  %v5315 = vpop.f32.mrb[0].mxu0
  %v5316 = vadd.f32 0.0, %v5315
  %v5317 = vpop.f32.mrb[0].mxu0
  %v5318 = vpop.f32.mrb[0].mxu0
  %v5319 = vadd.f32 0.0, %v5318
  %v5320 = vpop.f32.mrb[0].mxu0
  %5321 = vmatprep.mubr.bf16.mxu0 0
  %5322 = vmatmul.mubr.bf16.gmra.mrb[0].mxu0 %v358
  %v5323 = vpop.f32.mrb[0].mxu0
  %v5324 = vadd.f32 0.0, %v5323
  %v5325 = vpop.f32.mrb[0].mxu0
  %v5326 = vpop.f32.mrb[0].mxu0
  %v5327 = vadd.f32 0.0, %v5326
  %v5328 = vpop.f32.mrb[0].mxu0
  %5329 = vmatprep.mubr.bf16.mxu0 0
  %5330 = vmatmul.mubr.bf16.gmra.mrb[0].mxu0 %v359
  %v5331 = vpop.f32.mrb[0].mxu0
  %v5332 = vadd.f32 0.0, %v5331
  %v5333 = vpop.f32.mrb[0].mxu0
  %v5334 = vpop.f32.mrb[0].mxu0
  %v5335 = vadd.f32 0.0, %v5334
  %v5336 = vpop.f32.mrb[0].mxu0
  %5337 = vmatprep.mubr.bf16.mxu0 0
  %5338 = vmatmul.mubr.bf16.gmra.mrb[0].mxu0 %v360
  %v5339 = vpop.f32.mrb[0].mxu0
  %v5340 = vadd.f32 0.0, %v5339
  %v5341 = vpop.f32.mrb[0].mxu0
  %v5342 = vpop.f32.mrb[0].mxu0
  %v5343 = vadd.f32 0.0, %v5342
  %v5344 = vpop.f32.mrb[0].mxu0
  %5345 = vmatprep.mubr.bf16.mxu0 0
  %5346 = vmatmul.mubr.bf16.gmra.mrb[0].mxu0 %v361
  %v5347 = vpop.f32.mrb[0].mxu0
  %v5348 = vadd.f32 0.0, %v5347
  %v5349 = vpop.f32.mrb[0].mxu0
  %v5350 = vpop.f32.mrb[0].mxu0
  %v5351 = vadd.f32 0.0, %v5350
  %v5352 = vpop.f32.mrb[0].mxu0
  %5353 = vmatprep.mubr.bf16.mxu0 0
  %5354 = vmatmul.mubr.bf16.gmra.mrb[0].mxu0 %v362
  %v5355 = vpop.f32.mrb[0].mxu0
  %v5356 = vadd.f32 0.0, %v5355
  %v5357 = vpop.f32.mrb[0].mxu0
  %v5358 = vpop.f32.mrb[0].mxu0
  %v5359 = vadd.f32 0.0, %v5358
  %v5360 = vpop.f32.mrb[0].mxu0
  %5361 = vmatprep.mubr.bf16.mxu0 0
  %5362 = vmatmul.mubr.bf16.gmra.mrb[0].mxu0 %v363
  %v5363 = vpop.f32.mrb[0].mxu0
  %v5364 = vadd.f32 0.0, %v5363
  %v5365 = vpop.f32.mrb[0].mxu0
  %v5366 = vpop.f32.mrb[0].mxu0
  %v5367 = vadd.f32 0.0, %v5366
  %v5368 = vpop.f32.mrb[0].mxu0
  %5369 = vmatprep.mubr.bf16.mxu0 0
  %5370 = vmatmul.mubr.bf16.gmra.mrb[0].mxu0 %v364
  %v5371 = vpop.f32.mrb[0].mxu0
  %v5372 = vadd.f32 0.0, %v5371
  %v5373 = vpop.f32.mrb[0].mxu0
  %v5374 = vpop.f32.mrb[0].mxu0
  %v5375 = vadd.f32 0.0, %v5374
  %v5376 = vpop.f32.mrb[0].mxu0
  %5377 = vmatprep.mubr.bf16.mxu0 0
  %5378 = vmatmul.mubr.bf16.gmra.mrb[0].mxu0 %v365
  %v5379 = vpop.f32.mrb[0].mxu0
  %v5380 = vadd.f32 0.0, %v5379
  %v5381 = vpop.f32.mrb[0].mxu0
  %v5382 = vpop.f32.mrb[0].mxu0
  %v5383 = vadd.f32 0.0, %v5382
  %v5384 = vpop.f32.mrb[0].mxu0
  %5385 = vmatprep.mubr.bf16.mxu0 0
  %5386 = vmatmul.mubr.bf16.gmra.mrb[0].mxu0 %v366
  %v5387 = vpop.f32.mrb[0].mxu0
  %v5388 = vadd.f32 0.0, %v5387
  %v5389 = vpop.f32.mrb[0].mxu0
  %v5390 = vpop.f32.mrb[0].mxu0
  %v5391 = vadd.f32 0.0, %v5390
  %v5392 = vpop.f32.mrb[0].mxu0
  %5393 = vmatprep.mubr.bf16.mxu0 0
  %5394 = vmatmul.mubr.bf16.gmra.mrb[0].mxu0 %v367
  %v5395 = vpop.f32.mrb[0].mxu0
  %v5396 = vadd.f32 0.0, %v5395
  %v5397 = vpop.f32.mrb[0].mxu0
  %v5398 = vpop.f32.mrb[0].mxu0
  %v5399 = vadd.f32 0.0, %v5398
  %v5400 = vpop.f32.mrb[0].mxu0
  %5401 = vmatprep.mubr.bf16.mxu0 0
  %5402 = vmatmul.mubr.bf16.gmra.mrb[0].mxu0 %v368
  %v5403 = vpop.f32.mrb[0].mxu0
  %v5404 = vadd.f32 0.0, %v5403
  %v5405 = vpop.f32.mrb[0].mxu0
  %v5406 = vpop.f32.mrb[0].mxu0
  %v5407 = vadd.f32 0.0, %v5406
  %v5408 = vpop.f32.mrb[0].mxu0
  %5409 = vmatprep.mubr.bf16.mxu0 0
  %5410 = vmatmul.mubr.bf16.gmra.mrb[0].mxu0 %v369
  %v5411 = vpop.f32.mrb[0].mxu0
  %v5412 = vadd.f32 0.0, %v5411
  %v5413 = vpop.f32.mrb[0].mxu0
  %v5414 = vpop.f32.mrb[0].mxu0
  %v5415 = vadd.f32 0.0, %v5414
  %v5416 = vpop.f32.mrb[0].mxu0
  %5417 = vmatprep.mubr.bf16.mxu0 0
  %5418 = vmatmul.mubr.bf16.gmra.mrb[0].mxu0 %v370
  %v5419 = vpop.f32.mrb[0].mxu0
  %v5420 = vadd.f32 0.0, %v5419
  %v5421 = vpop.f32.mrb[0].mxu0
  %v5422 = vpop.f32.mrb[0].mxu0
  %v5423 = vadd.f32 0.0, %v5422
  %v5424 = vpop.f32.mrb[0].mxu0
  %5425 = vmatprep.mubr.bf16.mxu0 0
  %5426 = vmatmul.mubr.bf16.gmra.mrb[0].mxu0 %v371
  %v5427 = vpop.f32.mrb[0].mxu0
  %v5428 = vadd.f32 0.0, %v5427
  %v5429 = vpop.f32.mrb[0].mxu0
  %v5430 = vpop.f32.mrb[0].mxu0
  %v5431 = vadd.f32 0.0, %v5430
  %v5432 = vpop.f32.mrb[0].mxu0
  %5433 = vmatprep.mubr.bf16.mxu0 0
  %5434 = vmatmul.mubr.bf16.gmra.mrb[0].mxu0 %v372
  %v5435 = vpop.f32.mrb[0].mxu0
  %v5436 = vadd.f32 0.0, %v5435
  %v5437 = vpop.f32.mrb[0].mxu0
  %v5438 = vpop.f32.mrb[0].mxu0
  %v5439 = vadd.f32 0.0, %v5438
  %v5440 = vpop.f32.mrb[0].mxu0
  %5441 = vmatprep.mubr.bf16.mxu0 0
  %5442 = vmatmul.mubr.bf16.gmra.mrb[0].mxu0 %v373
  %v5443 = vpop.f32.mrb[0].mxu0
  %v5444 = vadd.f32 0.0, %v5443
  %v5445 = vpop.f32.mrb[0].mxu0
  %v5446 = vpop.f32.mrb[0].mxu0
  %v5447 = vadd.f32 0.0, %v5446
  %v5448 = vpop.f32.mrb[0].mxu0
  %5449 = vmatprep.mubr.bf16.mxu0 0
  %5450 = vmatmul.mubr.bf16.gmra.mrb[0].mxu0 %v374
  %v5451 = vpop.f32.mrb[0].mxu0
  %v5452 = vadd.f32 0.0, %v5451
  %v5453 = vpop.f32.mrb[0].mxu0
  %v5454 = vpop.f32.mrb[0].mxu0
  %v5455 = vadd.f32 0.0, %v5454
  %v5456 = vpop.f32.mrb[0].mxu0
  %5457 = vmatprep.mubr.bf16.mxu0 0
  %5458 = vmatmul.mubr.bf16.gmra.mrb[0].mxu0 %v375
  %v5459 = vpop.f32.mrb[0].mxu0
  %v5460 = vadd.f32 0.0, %v5459
  %v5461 = vpop.f32.mrb[0].mxu0
  %v5462 = vpop.f32.mrb[0].mxu0
  %v5463 = vadd.f32 0.0, %v5462
  %v5464 = vpop.f32.mrb[0].mxu0
  %5465 = vmatprep.mubr.bf16.mxu0 0
  %5466 = vmatmul.mubr.bf16.gmra.mrb[0].mxu0 %v376
  %v5467 = vpop.f32.mrb[0].mxu0
  %v5468 = vadd.f32 0.0, %v5467
  %v5469 = vpop.f32.mrb[0].mxu0
  %v5470 = vpop.f32.mrb[0].mxu0
  %v5471 = vadd.f32 0.0, %v5470
  %v5472 = vpop.f32.mrb[0].mxu0
  %5473 = vmatprep.mubr.bf16.mxu0 0
  %5474 = vmatmul.mubr.bf16.gmra.mrb[0].mxu0 %v377
  %v5475 = vpop.f32.mrb[0].mxu0
  %v5476 = vadd.f32 0.0, %v5475
  %v5477 = vpop.f32.mrb[0].mxu0
  %v5478 = vpop.f32.mrb[0].mxu0
  %v5479 = vadd.f32 0.0, %v5478
  %v5480 = vpop.f32.mrb[0].mxu0
  %5481 = vmatprep.mubr.bf16.mxu0 0
  %5482 = vmatmul.mubr.bf16.gmra.mrb[0].mxu0 %v378
  %v5483 = vpop.f32.mrb[0].mxu0
  %v5484 = vadd.f32 0.0, %v5483
  %v5485 = vpop.f32.mrb[0].mxu0
  %v5486 = vpop.f32.mrb[0].mxu0
  %v5487 = vadd.f32 0.0, %v5486
  %v5488 = vpop.f32.mrb[0].mxu0
  %5489 = vdwg.mxu0
  %v5490 = vmax.f32 %v5284, %v5388
  %v5491 = vmax.f32 %v5287, %v5391
  %v5492 = vmax.f32 %v5292, %v5396
  %v5493 = vmax.f32 %v5295, %v5399
  %v5494 = vmax.f32 %v5300, %v5404
  %v5495 = vmax.f32 %v5303, %v5407
  %v5496 = vmax.f32 %v5308, %v5412
  %v5497 = vmax.f32 %v5311, %v5415
  %v5498 = vmax.f32 %v5316, %v5420
  %v5499 = vmax.f32 %v5319, %v5423
  %v5500 = vmax.f32 %v5324, %v5428
  %v5501 = vmax.f32 %v5327, %v5431
  %v5502 = vmax.f32 %v5332, %v5436
  %v5503 = vmax.f32 %v5335, %v5439
  %v5504 = vmax.f32 %v5340, %v5444
  %v5505 = vmax.f32 %v5343, %v5447
  %v5506 = vmax.f32 %v5348, %v5452
  %v5507 = vmax.f32 %v5351, %v5455
  %v5508 = vmax.f32 %v5356, %v5460
  %v5509 = vmax.f32 %v5359, %v5463
  %v5510 = vmax.f32 %v5364, %v5468
  %v5511 = vmax.f32 %v5367, %v5471
  %v5512 = vmax.f32 %v5372, %v5476
  %v5513 = vmax.f32 %v5375, %v5479
  %v5514 = vmax.f32 %v5380, %v5484
  %v5515 = vmax.f32 %v5383, %v5487
  %v5516 = vmax.f32 %v5490, %v5491
  %v5517 = vmax.f32 %v5492, %v5493
  %v5518 = vmax.f32 %v5494, %v5495
  %v5519 = vmax.f32 %v5496, %v5497
  %v5520 = vmax.f32 %v5498, %v5499
  %v5521 = vmax.f32 %v5500, %v5501
  %v5522 = vmax.f32 %v5502, %v5503
  %v5523 = vmax.f32 %v5504, %v5505
  %v5524 = vmax.f32 %v5506, %v5507
  %v5525 = vmax.f32 %v5508, %v5509
  %v5526 = vmax.f32 %v5510, %v5511
  %v5527 = vmax.f32 %v5512, %v5513
  %v5528 = vmax.f32 %v5514, %v5515
  %v5529 = vadd.f32 %v5516, %v141
  %v5530 = vadd.f32 %v5517, %v146
  %v5531 = vadd.f32 %v5518, %v151
  %v5532 = vadd.f32 %v5519, %v156
  %v5533 = vadd.f32 %v5520, %v161
  %v5534 = vadd.f32 %v5521, %v166
  %v5535 = vadd.f32 %v5522, %v171
  %v5536 = vadd.f32 %v5523, %v176
  %v5537 = vadd.f32 %v5524, %v181
  %v5538 = vadd.f32 %v5525, %v186
  %v5539 = vadd.f32 %v5526, %v191
  %v5540 = vadd.f32 %v5527, %v196
  %v5541 = vadd.f32 %v5528, %v201
  %v5542 = vmax.f32 %v5529, 0.0
  %v5543 = vmax.f32 %v5530, 0.0
  %v5544 = vmax.f32 %v5531, 0.0
  %v5545 = vmax.f32 %v5532, 0.0
  %v5546 = vmax.f32 %v5533, 0.0
  %v5547 = vmax.f32 %v5534, 0.0
  %v5548 = vmax.f32 %v5535, 0.0
  %v5549 = vmax.f32 %v5536, 0.0
  %v5550 = vmax.f32 %v5537, 0.0
  %v5551 = vmax.f32 %v5538, 0.0
  %v5552 = vmax.f32 %v5539, 0.0
  %v5553 = vmax.f32 %v5540, 0.0
  %v5554 = vmax.f32 %v5541, 0.0
  %v5555 = vpack.c.bf16 %v5543, %v5542
  %v5556 = vpack.c.bf16 %v5545, %v5544
  %v5557 = vpack.c.bf16 %v5547, %v5546
  %v5558 = vpack.c.bf16 %v5549, %v5548
  %v5559 = vpack.c.bf16 %v5551, %v5550
  %v5560 = vpack.c.bf16 %v5553, %v5552
  %v5561 = vpack.c.bf16 %v5554, %v5554
  %v5569 = vunpack.c.l.b16 %v5555
  %v5570 = vunpack.c.h.b16 %v5555
  %v5571 = vunpack.c.l.b16 %v5556
  %v5572 = vunpack.c.h.b16 %v5556
  %v5573 = vunpack.c.l.b16 %v5557
  %v5574 = vunpack.c.h.b16 %v5557
  %v5575 = vunpack.c.l.b16 %v5558
  %v5576 = vunpack.c.h.b16 %v5558
  %v5577 = vunpack.c.l.b16 %v5559
  %v5578 = vunpack.c.h.b16 %v5559
  %v5579 = vunpack.c.l.b16 %v5560
  %v5580 = vunpack.c.h.b16 %v5560
  %v5581 = vunpack.c.l.b16 %v5561
  %v5582 = vpack.c.b16 %v5569, %v5569
  %v5583 = vpack.c.b16 %v5570, %v5570
  %v5584 = vpack.c.b16 %v5571, %v5571
  %v5585 = vpack.c.b16 %v5572, %v5572
  %v5586 = vpack.c.b16 %v5573, %v5573
  %v5587 = vpack.c.b16 %v5574, %v5574
  %v5588 = vpack.c.b16 %v5575, %v5575
  %v5589 = vpack.c.b16 %v5576, %v5576
  %v5590 = vpack.c.b16 %v5577, %v5577
  %v5591 = vpack.c.b16 %v5578, %v5578
  %v5592 = vpack.c.b16 %v5579, %v5579
  %v5593 = vpack.c.b16 %v5580, %v5580
  %v5594 = vpack.c.b16 %v5581, %v5581
  %5608 = vst [vmem:[#allocation2 + $0x23c] sm:$0xf] %v5582
  %5609 = vst [vmem:[#allocation2 + $0x240] sm:$0xf] %v5583
  %5610 = vst [vmem:[#allocation2 + $0x244] sm:$0xf] %v5584
  %5611 = vst [vmem:[#allocation2 + $0x248] sm:$0xf] %v5585
  %5612 = vst [vmem:[#allocation2 + $0x24c] sm:$0xf] %v5586
  %5613 = vst [vmem:[#allocation2 + $0x250] sm:$0xf] %v5587
  %5614 = vst [vmem:[#allocation2 + $0x254] sm:$0xf] %v5588
  %5615 = vst [vmem:[#allocation2 + $0x258] sm:$0xf] %v5589
  %5616 = vst [vmem:[#allocation2 + $0x25c] sm:$0xf] %v5590
  %5617 = vst [vmem:[#allocation2 + $0x260] sm:$0xf] %v5591
  %5618 = vst [vmem:[#allocation2 + $0x264] sm:$0xf] %v5592
  %5619 = vst [vmem:[#allocation2 + $0x268] sm:$0xf] %v5593
  %5620 = vst [vmem:[#allocation2 + $0x26c] sm:$0xf] %v5594
  %v5621 = vld [vmem:[%s0 + $0x180] sm:$0xf]
  %v5622 = vld [vmem:[%s0 + $0x184] sm:$0xf]
  %v5623 = vld [vmem:[%s0 + $0x188] sm:$0xf]
  %v5624 = vld [vmem:[%s0 + $0x18c] sm:$0xf]
  %v5625 = vld [vmem:[%s0 + $0x190] sm:$0xf]
  %v5626 = vld [vmem:[%s0 + $0x194] sm:$0xf]
  %v5627 = vld [vmem:[%s0 + $0x198] sm:$0xf]
  %v5628 = vld [vmem:[%s0 + $0x19c] sm:$0xf]
  %v5629 = vld [vmem:[%s0 + $0x1a0] sm:$0xf]
  %v5630 = vld [vmem:[%s0 + $0x1a4] sm:$0xf]
  %v5631 = vld [vmem:[%s0 + $0x1a8] sm:$0xf]
  %v5632 = vld [vmem:[%s0 + $0x1ac] sm:$0xf]
  %v5633 = vld [vmem:[%s0 + $0x1b0] sm:$0xf]
  %v5634 = vld [vmem:[%s0 + $0x1b4] sm:$0xf]
  %v5635 = vld [vmem:[%s0 + $0x1b8] sm:$0xf]
  %v5636 = vld [vmem:[%s0 + $0x1bc] sm:$0xf]
  %v5653 = vunpack.c.l.b16 %v5621
  %v5654 = vunpack.c.l.b16 %v5622
  %v5655 = vunpack.c.l.b16 %v5623
  %v5656 = vunpack.c.l.b16 %v5624
  %v5657 = vunpack.c.l.b16 %v5625
  %v5658 = vunpack.c.l.b16 %v5626
  %v5659 = vunpack.c.l.b16 %v5627
  %v5660 = vunpack.c.l.b16 %v5628
  %v5661 = vunpack.c.l.b16 %v5629
  %v5662 = vunpack.c.l.b16 %v5630
  %v5663 = vunpack.c.l.b16 %v5631
  %v5664 = vunpack.c.l.b16 %v5632
  %v5665 = vunpack.c.l.b16 %v5633
  %v5666 = vunpack.c.l.b16 %v5634
  %v5667 = vunpack.c.l.b16 %v5635
  %v5668 = vunpack.c.l.b16 %v5636
  %v5669 = vpack.c.b16 %v5654, %v5653
  %v5670 = vpack.c.b16 %v5656, %v5655
  %v5671 = vpack.c.b16 %v5658, %v5657
  %v5672 = vpack.c.b16 %v5660, %v5659
  %v5673 = vpack.c.b16 %v5662, %v5661
  %v5674 = vpack.c.b16 %v5664, %v5663
  %v5675 = vpack.c.b16 %v5666, %v5665
  %v5676 = vpack.c.b16 %v5668, %v5667
  %5685 = vmatprep.subr.bf16.mxu0 0
  %5686 = vmatpush1.bf16.msra.mxu0 %v5669
  %5687 = vmatprep.subr.bf16.mxu0 0
  %5688 = vmatpush1.bf16.msra.mxu0 %v5670
  %5689 = vmatprep.subr.bf16.mxu0 0
  %5690 = vmatpush1.bf16.msra.mxu0 %v5671
  %5691 = vmatprep.subr.bf16.mxu0 0
  %5692 = vmatpush1.bf16.msra.mxu0 %v5672
  %5693 = vmatprep.subr.bf16.mxu0 0
  %5694 = vmatpush1.bf16.msra.mxu0 %v5673
  %5695 = vmatprep.subr.bf16.mxu0 0
  %5696 = vmatpush1.bf16.msra.mxu0 %v5674
  %5697 = vmatprep.subr.bf16.mxu0 0
  %5698 = vmatpush1.bf16.msra.mxu0 %v5675
  %5699 = vmatprep.subr.bf16.mxu0 0
  %5700 = vmatpush1.bf16.msra.mxu0 %v5676
  %5701 = vmatprep.subr.bf16.mxu0 0
  %5702 = vmatpush1.bf16.msra.mxu0 0
  %5703 = vmatprep.subr.bf16.mxu0 0
  %5704 = vmatpush1.bf16.msra.mxu0 0
  %5705 = vmatprep.subr.bf16.mxu0 0
  %5706 = vmatpush1.bf16.msra.mxu0 0
  %5707 = vmatprep.subr.bf16.mxu0 0
  %5708 = vmatpush1.bf16.msra.mxu0 0
  %5709 = vmatprep.subr.bf16.mxu0 0
  %5710 = vmatpush1.bf16.msra.mxu0 0
  %5711 = vmatprep.subr.bf16.mxu0 0
  %5712 = vmatpush1.bf16.msra.mxu0 0
  %5713 = vmatprep.subr.bf16.mxu0 0
  %5714 = vmatpush1.bf16.msra.mxu0 0
  %5715 = vmatprep.subr.bf16.mxu0 0
  %5716 = vmatpush1.bf16.msra.mxu0 0
  %5717 = vmatprep.mubr.bf16.mxu0 0
  %5718 = vmatmul.mubr.bf16.gmra.mrb[0].mxu0 %v353
  %v5719 = vpop.f32.mrb[0].mxu0
  %v5720 = vadd.f32 0.0, %v5719
  %v5721 = vpop.f32.mrb[0].mxu0
  %v5722 = vpop.f32.mrb[0].mxu0
  %v5723 = vadd.f32 0.0, %v5722
  %v5724 = vpop.f32.mrb[0].mxu0
  %5725 = vmatprep.mubr.bf16.mxu0 0
  %5726 = vmatmul.mubr.bf16.gmra.mrb[0].mxu0 %v354
  %v5727 = vpop.f32.mrb[0].mxu0
  %v5728 = vadd.f32 0.0, %v5727
  %v5729 = vpop.f32.mrb[0].mxu0
  %v5730 = vpop.f32.mrb[0].mxu0
  %v5731 = vadd.f32 0.0, %v5730
  %v5732 = vpop.f32.mrb[0].mxu0
  %5733 = vmatprep.mubr.bf16.mxu0 0
  %5734 = vmatmul.mubr.bf16.gmra.mrb[0].mxu0 %v355
  %v5735 = vpop.f32.mrb[0].mxu0
  %v5736 = vadd.f32 0.0, %v5735
  %v5737 = vpop.f32.mrb[0].mxu0
  %v5738 = vpop.f32.mrb[0].mxu0
  %v5739 = vadd.f32 0.0, %v5738
  %v5740 = vpop.f32.mrb[0].mxu0
  %5741 = vmatprep.mubr.bf16.mxu0 0
  %5742 = vmatmul.mubr.bf16.gmra.mrb[0].mxu0 %v356
  %v5743 = vpop.f32.mrb[0].mxu0
  %v5744 = vadd.f32 0.0, %v5743
  %v5745 = vpop.f32.mrb[0].mxu0
  %v5746 = vpop.f32.mrb[0].mxu0
  %v5747 = vadd.f32 0.0, %v5746
  %v5748 = vpop.f32.mrb[0].mxu0
  %5749 = vmatprep.mubr.bf16.mxu0 0
  %5750 = vmatmul.mubr.bf16.gmra.mrb[0].mxu0 %v357
  %v5751 = vpop.f32.mrb[0].mxu0
  %v5752 = vadd.f32 0.0, %v5751
  %v5753 = vpop.f32.mrb[0].mxu0
  %v5754 = vpop.f32.mrb[0].mxu0
  %v5755 = vadd.f32 0.0, %v5754
  %v5756 = vpop.f32.mrb[0].mxu0
  %5757 = vmatprep.mubr.bf16.mxu0 0
  %5758 = vmatmul.mubr.bf16.gmra.mrb[0].mxu0 %v358
  %v5759 = vpop.f32.mrb[0].mxu0
  %v5760 = vadd.f32 0.0, %v5759
  %v5761 = vpop.f32.mrb[0].mxu0
  %v5762 = vpop.f32.mrb[0].mxu0
  %v5763 = vadd.f32 0.0, %v5762
  %v5764 = vpop.f32.mrb[0].mxu0
  %5765 = vmatprep.mubr.bf16.mxu0 0
  %5766 = vmatmul.mubr.bf16.gmra.mrb[0].mxu0 %v359
  %v5767 = vpop.f32.mrb[0].mxu0
  %v5768 = vadd.f32 0.0, %v5767
  %v5769 = vpop.f32.mrb[0].mxu0
  %v5770 = vpop.f32.mrb[0].mxu0
  %v5771 = vadd.f32 0.0, %v5770
  %v5772 = vpop.f32.mrb[0].mxu0
  %5773 = vmatprep.mubr.bf16.mxu0 0
  %5774 = vmatmul.mubr.bf16.gmra.mrb[0].mxu0 %v360
  %v5775 = vpop.f32.mrb[0].mxu0
  %v5776 = vadd.f32 0.0, %v5775
  %v5777 = vpop.f32.mrb[0].mxu0
  %v5778 = vpop.f32.mrb[0].mxu0
  %v5779 = vadd.f32 0.0, %v5778
  %v5780 = vpop.f32.mrb[0].mxu0
  %5781 = vmatprep.mubr.bf16.mxu0 0
  %5782 = vmatmul.mubr.bf16.gmra.mrb[0].mxu0 %v361
  %v5783 = vpop.f32.mrb[0].mxu0
  %v5784 = vadd.f32 0.0, %v5783
  %v5785 = vpop.f32.mrb[0].mxu0
  %v5786 = vpop.f32.mrb[0].mxu0
  %v5787 = vadd.f32 0.0, %v5786
  %v5788 = vpop.f32.mrb[0].mxu0
  %5789 = vmatprep.mubr.bf16.mxu0 0
  %5790 = vmatmul.mubr.bf16.gmra.mrb[0].mxu0 %v362
  %v5791 = vpop.f32.mrb[0].mxu0
  %v5792 = vadd.f32 0.0, %v5791
  %v5793 = vpop.f32.mrb[0].mxu0
  %v5794 = vpop.f32.mrb[0].mxu0
  %v5795 = vadd.f32 0.0, %v5794
  %v5796 = vpop.f32.mrb[0].mxu0
  %5797 = vmatprep.mubr.bf16.mxu0 0
  %5798 = vmatmul.mubr.bf16.gmra.mrb[0].mxu0 %v363
  %v5799 = vpop.f32.mrb[0].mxu0
  %v5800 = vadd.f32 0.0, %v5799
  %v5801 = vpop.f32.mrb[0].mxu0
  %v5802 = vpop.f32.mrb[0].mxu0
  %v5803 = vadd.f32 0.0, %v5802
  %v5804 = vpop.f32.mrb[0].mxu0
  %5805 = vmatprep.mubr.bf16.mxu0 0
  %5806 = vmatmul.mubr.bf16.gmra.mrb[0].mxu0 %v364
  %v5807 = vpop.f32.mrb[0].mxu0
  %v5808 = vadd.f32 0.0, %v5807
  %v5809 = vpop.f32.mrb[0].mxu0
  %v5810 = vpop.f32.mrb[0].mxu0
  %v5811 = vadd.f32 0.0, %v5810
  %v5812 = vpop.f32.mrb[0].mxu0
  %5813 = vmatprep.mubr.bf16.mxu0 0
  %5814 = vmatmul.mubr.bf16.gmra.mrb[0].mxu0 %v365
  %v5815 = vpop.f32.mrb[0].mxu0
  %v5816 = vadd.f32 0.0, %v5815
  %v5817 = vpop.f32.mrb[0].mxu0
  %v5818 = vpop.f32.mrb[0].mxu0
  %v5819 = vadd.f32 0.0, %v5818
  %v5820 = vpop.f32.mrb[0].mxu0
  %5821 = vmatprep.mubr.bf16.mxu0 0
  %5822 = vmatmul.mubr.bf16.gmra.mrb[0].mxu0 %v366
  %v5823 = vpop.f32.mrb[0].mxu0
  %v5824 = vadd.f32 0.0, %v5823
  %v5825 = vpop.f32.mrb[0].mxu0
  %v5826 = vpop.f32.mrb[0].mxu0
  %v5827 = vadd.f32 0.0, %v5826
  %v5828 = vpop.f32.mrb[0].mxu0
  %5829 = vmatprep.mubr.bf16.mxu0 0
  %5830 = vmatmul.mubr.bf16.gmra.mrb[0].mxu0 %v367
  %v5831 = vpop.f32.mrb[0].mxu0
  %v5832 = vadd.f32 0.0, %v5831
  %v5833 = vpop.f32.mrb[0].mxu0
  %v5834 = vpop.f32.mrb[0].mxu0
  %v5835 = vadd.f32 0.0, %v5834
  %v5836 = vpop.f32.mrb[0].mxu0
  %5837 = vmatprep.mubr.bf16.mxu0 0
  %5838 = vmatmul.mubr.bf16.gmra.mrb[0].mxu0 %v368
  %v5839 = vpop.f32.mrb[0].mxu0
  %v5840 = vadd.f32 0.0, %v5839
  %v5841 = vpop.f32.mrb[0].mxu0
  %v5842 = vpop.f32.mrb[0].mxu0
  %v5843 = vadd.f32 0.0, %v5842
  %v5844 = vpop.f32.mrb[0].mxu0
  %5845 = vmatprep.mubr.bf16.mxu0 0
  %5846 = vmatmul.mubr.bf16.gmra.mrb[0].mxu0 %v369
  %v5847 = vpop.f32.mrb[0].mxu0
  %v5848 = vadd.f32 0.0, %v5847
  %v5849 = vpop.f32.mrb[0].mxu0
  %v5850 = vpop.f32.mrb[0].mxu0
  %v5851 = vadd.f32 0.0, %v5850
  %v5852 = vpop.f32.mrb[0].mxu0
  %5853 = vmatprep.mubr.bf16.mxu0 0
  %5854 = vmatmul.mubr.bf16.gmra.mrb[0].mxu0 %v370
  %v5855 = vpop.f32.mrb[0].mxu0
  %v5856 = vadd.f32 0.0, %v5855
  %v5857 = vpop.f32.mrb[0].mxu0
  %v5858 = vpop.f32.mrb[0].mxu0
  %v5859 = vadd.f32 0.0, %v5858
  %v5860 = vpop.f32.mrb[0].mxu0
  %5861 = vmatprep.mubr.bf16.mxu0 0
  %5862 = vmatmul.mubr.bf16.gmra.mrb[0].mxu0 %v371
  %v5863 = vpop.f32.mrb[0].mxu0
  %v5864 = vadd.f32 0.0, %v5863
  %v5865 = vpop.f32.mrb[0].mxu0
  %v5866 = vpop.f32.mrb[0].mxu0
  %v5867 = vadd.f32 0.0, %v5866
  %v5868 = vpop.f32.mrb[0].mxu0
  %5869 = vmatprep.mubr.bf16.mxu0 0
  %5870 = vmatmul.mubr.bf16.gmra.mrb[0].mxu0 %v372
  %v5871 = vpop.f32.mrb[0].mxu0
  %v5872 = vadd.f32 0.0, %v5871
  %v5873 = vpop.f32.mrb[0].mxu0
  %v5874 = vpop.f32.mrb[0].mxu0
  %v5875 = vadd.f32 0.0, %v5874
  %v5876 = vpop.f32.mrb[0].mxu0
  %5877 = vmatprep.mubr.bf16.mxu0 0
  %5878 = vmatmul.mubr.bf16.gmra.mrb[0].mxu0 %v373
  %v5879 = vpop.f32.mrb[0].mxu0
  %v5880 = vadd.f32 0.0, %v5879
  %v5881 = vpop.f32.mrb[0].mxu0
  %v5882 = vpop.f32.mrb[0].mxu0
  %v5883 = vadd.f32 0.0, %v5882
  %v5884 = vpop.f32.mrb[0].mxu0
  %5885 = vmatprep.mubr.bf16.mxu0 0
  %5886 = vmatmul.mubr.bf16.gmra.mrb[0].mxu0 %v374
  %v5887 = vpop.f32.mrb[0].mxu0
  %v5888 = vadd.f32 0.0, %v5887
  %v5889 = vpop.f32.mrb[0].mxu0
  %v5890 = vpop.f32.mrb[0].mxu0
  %v5891 = vadd.f32 0.0, %v5890
  %v5892 = vpop.f32.mrb[0].mxu0
  %5893 = vmatprep.mubr.bf16.mxu0 0
  %5894 = vmatmul.mubr.bf16.gmra.mrb[0].mxu0 %v375
  %v5895 = vpop.f32.mrb[0].mxu0
  %v5896 = vadd.f32 0.0, %v5895
  %v5897 = vpop.f32.mrb[0].mxu0
  %v5898 = vpop.f32.mrb[0].mxu0
  %v5899 = vadd.f32 0.0, %v5898
  %v5900 = vpop.f32.mrb[0].mxu0
  %5901 = vmatprep.mubr.bf16.mxu0 0
  %5902 = vmatmul.mubr.bf16.gmra.mrb[0].mxu0 %v376
  %v5903 = vpop.f32.mrb[0].mxu0
  %v5904 = vadd.f32 0.0, %v5903
  %v5905 = vpop.f32.mrb[0].mxu0
  %v5906 = vpop.f32.mrb[0].mxu0
  %v5907 = vadd.f32 0.0, %v5906
  %v5908 = vpop.f32.mrb[0].mxu0
  %5909 = vmatprep.mubr.bf16.mxu0 0
  %5910 = vmatmul.mubr.bf16.gmra.mrb[0].mxu0 %v377
  %v5911 = vpop.f32.mrb[0].mxu0
  %v5912 = vadd.f32 0.0, %v5911
  %v5913 = vpop.f32.mrb[0].mxu0
  %v5914 = vpop.f32.mrb[0].mxu0
  %v5915 = vadd.f32 0.0, %v5914
  %v5916 = vpop.f32.mrb[0].mxu0
  %5917 = vmatprep.mubr.bf16.mxu0 0
  %5918 = vmatmul.mubr.bf16.gmra.mrb[0].mxu0 %v378
  %v5919 = vpop.f32.mrb[0].mxu0
  %v5920 = vadd.f32 0.0, %v5919
  %v5921 = vpop.f32.mrb[0].mxu0
  %v5922 = vpop.f32.mrb[0].mxu0
  %v5923 = vadd.f32 0.0, %v5922
  %v5924 = vpop.f32.mrb[0].mxu0
  %5925 = vdwg.mxu0
  %v5926 = vmax.f32 %v5720, %v5824
  %v5927 = vmax.f32 %v5723, %v5827
  %v5928 = vmax.f32 %v5728, %v5832
  %v5929 = vmax.f32 %v5731, %v5835
  %v5930 = vmax.f32 %v5736, %v5840
  %v5931 = vmax.f32 %v5739, %v5843
  %v5932 = vmax.f32 %v5744, %v5848
  %v5933 = vmax.f32 %v5747, %v5851
  %v5934 = vmax.f32 %v5752, %v5856
  %v5935 = vmax.f32 %v5755, %v5859
  %v5936 = vmax.f32 %v5760, %v5864
  %v5937 = vmax.f32 %v5763, %v5867
  %v5938 = vmax.f32 %v5768, %v5872
  %v5939 = vmax.f32 %v5771, %v5875
  %v5940 = vmax.f32 %v5776, %v5880
  %v5941 = vmax.f32 %v5779, %v5883
  %v5942 = vmax.f32 %v5784, %v5888
  %v5943 = vmax.f32 %v5787, %v5891
  %v5944 = vmax.f32 %v5792, %v5896
  %v5945 = vmax.f32 %v5795, %v5899
  %v5946 = vmax.f32 %v5800, %v5904
  %v5947 = vmax.f32 %v5803, %v5907
  %v5948 = vmax.f32 %v5808, %v5912
  %v5949 = vmax.f32 %v5811, %v5915
  %v5950 = vmax.f32 %v5816, %v5920
  %v5951 = vmax.f32 %v5819, %v5923
  %v5952 = vmax.f32 %v5926, %v5927
  %v5953 = vmax.f32 %v5928, %v5929
  %v5954 = vmax.f32 %v5930, %v5931
  %v5955 = vmax.f32 %v5932, %v5933
  %v5956 = vmax.f32 %v5934, %v5935
  %v5957 = vmax.f32 %v5936, %v5937
  %v5958 = vmax.f32 %v5938, %v5939
  %v5959 = vmax.f32 %v5940, %v5941
  %v5960 = vmax.f32 %v5942, %v5943
  %v5961 = vmax.f32 %v5944, %v5945
  %v5962 = vmax.f32 %v5946, %v5947
  %v5963 = vmax.f32 %v5948, %v5949
  %v5964 = vmax.f32 %v5950, %v5951
  %v5965 = vadd.f32 %v5952, %v141
  %v5966 = vadd.f32 %v5953, %v146
  %v5967 = vadd.f32 %v5954, %v151
  %v5968 = vadd.f32 %v5955, %v156
  %v5969 = vadd.f32 %v5956, %v161
  %v5970 = vadd.f32 %v5957, %v166
  %v5971 = vadd.f32 %v5958, %v171
  %v5972 = vadd.f32 %v5959, %v176
  %v5973 = vadd.f32 %v5960, %v181
  %v5974 = vadd.f32 %v5961, %v186
  %v5975 = vadd.f32 %v5962, %v191
  %v5976 = vadd.f32 %v5963, %v196
  %v5977 = vadd.f32 %v5964, %v201
  %v5978 = vmax.f32 %v5965, 0.0
  %v5979 = vmax.f32 %v5966, 0.0
  %v5980 = vmax.f32 %v5967, 0.0
  %v5981 = vmax.f32 %v5968, 0.0
  %v5982 = vmax.f32 %v5969, 0.0
  %v5983 = vmax.f32 %v5970, 0.0
  %v5984 = vmax.f32 %v5971, 0.0
  %v5985 = vmax.f32 %v5972, 0.0
  %v5986 = vmax.f32 %v5973, 0.0
  %v5987 = vmax.f32 %v5974, 0.0
  %v5988 = vmax.f32 %v5975, 0.0
  %v5989 = vmax.f32 %v5976, 0.0
  %v5990 = vmax.f32 %v5977, 0.0
  %v5991 = vpack.c.bf16 %v5979, %v5978
  %v5992 = vpack.c.bf16 %v5981, %v5980
  %v5993 = vpack.c.bf16 %v5983, %v5982
  %v5994 = vpack.c.bf16 %v5985, %v5984
  %v5995 = vpack.c.bf16 %v5987, %v5986
  %v5996 = vpack.c.bf16 %v5989, %v5988
  %v5997 = vpack.c.bf16 %v5990, %v5990
  %v6005 = vunpack.c.l.b16 %v5991
  %v6006 = vunpack.c.h.b16 %v5991
  %v6007 = vunpack.c.l.b16 %v5992
  %v6008 = vunpack.c.h.b16 %v5992
  %v6009 = vunpack.c.l.b16 %v5993
  %v6010 = vunpack.c.h.b16 %v5993
  %v6011 = vunpack.c.l.b16 %v5994
  %v6012 = vunpack.c.h.b16 %v5994
  %v6013 = vunpack.c.l.b16 %v5995
  %v6014 = vunpack.c.h.b16 %v5995
  %v6015 = vunpack.c.l.b16 %v5996
  %v6016 = vunpack.c.h.b16 %v5996
  %v6017 = vunpack.c.l.b16 %v5997
  %v6018 = vpack.c.b16 %v6005, %v6005
  %v6019 = vpack.c.b16 %v6006, %v6006
  %v6020 = vpack.c.b16 %v6007, %v6007
  %v6021 = vpack.c.b16 %v6008, %v6008
  %v6022 = vpack.c.b16 %v6009, %v6009
  %v6023 = vpack.c.b16 %v6010, %v6010
  %v6024 = vpack.c.b16 %v6011, %v6011
  %v6025 = vpack.c.b16 %v6012, %v6012
  %v6026 = vpack.c.b16 %v6013, %v6013
  %v6027 = vpack.c.b16 %v6014, %v6014
  %v6028 = vpack.c.b16 %v6015, %v6015
  %v6029 = vpack.c.b16 %v6016, %v6016
  %v6030 = vpack.c.b16 %v6017, %v6017
  %6044 = vst [vmem:[#allocation2 + $0x270] sm:$0xf] %v6018
  %6045 = vst [vmem:[#allocation2 + $0x274] sm:$0xf] %v6019
  %6046 = vst [vmem:[#allocation2 + $0x278] sm:$0xf] %v6020
  %6047 = vst [vmem:[#allocation2 + $0x27c] sm:$0xf] %v6021
  %6048 = vst [vmem:[#allocation2 + $0x280] sm:$0xf] %v6022
  %6049 = vst [vmem:[#allocation2 + $0x284] sm:$0xf] %v6023
  %6050 = vst [vmem:[#allocation2 + $0x288] sm:$0xf] %v6024
  %6051 = vst [vmem:[#allocation2 + $0x28c] sm:$0xf] %v6025
  %6052 = vst [vmem:[#allocation2 + $0x290] sm:$0xf] %v6026
  %6053 = vst [vmem:[#allocation2 + $0x294] sm:$0xf] %v6027
  %6054 = vst [vmem:[#allocation2 + $0x298] sm:$0xf] %v6028
  %6055 = vst [vmem:[#allocation2 + $0x29c] sm:$0xf] %v6029
  %6056 = vst [vmem:[#allocation2 + $0x2a0] sm:$0xf] %v6030
  %v6057 = vld [vmem:[#allocation2] sm:$0xf]
  %v6058 = vld [vmem:[#allocation2 + $0x4] sm:$0xf]
  %v6059 = vld [vmem:[#allocation2 + $0x8] sm:$0xf]
  %v6060 = vld [vmem:[#allocation2 + $0xc] sm:$0xf]
  %v6061 = vld [vmem:[#allocation2 + $0x10] sm:$0xf]
  %v6062 = vld [vmem:[#allocation2 + $0x14] sm:$0xf]
  %v6063 = vld [vmem:[#allocation2 + $0x18] sm:$0xf]
  %v6064 = vld [vmem:[#allocation2 + $0x1c] sm:$0xf]
  %v6065 = vld [vmem:[#allocation2 + $0x20] sm:$0xf]
  %v6066 = vld [vmem:[#allocation2 + $0x24] sm:$0xf]
  %v6067 = vld [vmem:[#allocation2 + $0x28] sm:$0xf]
  %v6068 = vld [vmem:[#allocation2 + $0x2c] sm:$0xf]
  %v6069 = vld [vmem:[#allocation2 + $0x30] sm:$0xf]
  %v6070 = vld [vmem:[#allocation2 + $0x34] sm:$0xf]
  %v6071 = vld [vmem:[#allocation2 + $0x38] sm:$0xf]
  %v6072 = vld [vmem:[#allocation2 + $0x3c] sm:$0xf]
  %v6073 = vld [vmem:[#allocation2 + $0x40] sm:$0xf]
  %v6074 = vld [vmem:[#allocation2 + $0x44] sm:$0xf]
  %v6075 = vld [vmem:[#allocation2 + $0x48] sm:$0xf]
  %v6076 = vld [vmem:[#allocation2 + $0x4c] sm:$0xf]
  %v6077 = vld [vmem:[#allocation2 + $0x50] sm:$0xf]
  %v6078 = vld [vmem:[#allocation2 + $0x54] sm:$0xf]
  %v6079 = vld [vmem:[#allocation2 + $0x58] sm:$0xf]
  %v6080 = vld [vmem:[#allocation2 + $0x5c] sm:$0xf]
  %v6081 = vld [vmem:[#allocation2 + $0x60] sm:$0xf]
  %v6082 = vld [vmem:[#allocation2 + $0x64] sm:$0xf]
  %v6083 = vld [vmem:[#allocation2 + $0x68] sm:$0xf]
  %v6084 = vld [vmem:[#allocation2 + $0x6c] sm:$0xf]
  %v6085 = vld [vmem:[#allocation2 + $0x70] sm:$0xf]
  %v6086 = vld [vmem:[#allocation2 + $0x74] sm:$0xf]
  %v6087 = vld [vmem:[#allocation2 + $0x78] sm:$0xf]
  %v6088 = vld [vmem:[#allocation2 + $0x7c] sm:$0xf]
  %v6089 = vld [vmem:[#allocation2 + $0x80] sm:$0xf]
  %v6090 = vld [vmem:[#allocation2 + $0x84] sm:$0xf]
  %v6091 = vld [vmem:[#allocation2 + $0x88] sm:$0xf]
  %v6092 = vld [vmem:[#allocation2 + $0x8c] sm:$0xf]
  %v6093 = vld [vmem:[#allocation2 + $0x90] sm:$0xf]
  %v6094 = vld [vmem:[#allocation2 + $0x94] sm:$0xf]
  %v6095 = vld [vmem:[#allocation2 + $0x98] sm:$0xf]
  %v6096 = vld [vmem:[#allocation2 + $0x9c] sm:$0xf]
  %v6097 = vld [vmem:[#allocation2 + $0xa0] sm:$0xf]
  %v6098 = vld [vmem:[#allocation2 + $0xa4] sm:$0xf]
  %v6099 = vld [vmem:[#allocation2 + $0xa8] sm:$0xf]
  %v6100 = vld [vmem:[#allocation2 + $0xac] sm:$0xf]
  %v6101 = vld [vmem:[#allocation2 + $0xb0] sm:$0xf]
  %v6102 = vld [vmem:[#allocation2 + $0xb4] sm:$0xf]
  %v6103 = vld [vmem:[#allocation2 + $0xb8] sm:$0xf]
  %v6104 = vld [vmem:[#allocation2 + $0xbc] sm:$0xf]
  %v6105 = vld [vmem:[#allocation2 + $0xc0] sm:$0xf]
  %v6106 = vld [vmem:[#allocation2 + $0xc4] sm:$0xf]
  %v6107 = vld [vmem:[#allocation2 + $0xc8] sm:$0xf]
  %v6108 = vld [vmem:[#allocation2 + $0xcc] sm:$0xf]
  %v6149 = vunpack.c.l.b16 %v85
  %v6150 = vunpack.c.h.b16 %v85
  %v6151 = vunpack.c.l.b16 %v86
  %v6152 = vunpack.c.h.b16 %v86
  %v6153 = vunpack.c.l.b16 %v87
  %v6154 = vunpack.c.h.b16 %v87
  %v6155 = vunpack.c.l.b16 %v88
  %v6156 = vunpack.c.h.b16 %v88
  %v6157 = vunpack.c.l.b16 %v89
  %v6158 = vunpack.c.h.b16 %v89
  %v6159 = vunpack.c.l.b16 %v90
  %v6160 = vunpack.c.h.b16 %v90
  %v6161 = vunpack.c.l.b16 %v91
  %v6162 = vunpack.c.h.b16 %v91
  %v6163 = vunpack.c.l.b16 %v92
  %v6164 = vunpack.c.h.b16 %v92
  %v6165 = vunpack.c.l.b16 %v93
  %v6166 = vunpack.c.h.b16 %v93
  %v6167 = vunpack.c.l.b16 %v94
  %v6168 = vunpack.c.h.b16 %v94
  %v6169 = vunpack.c.l.b16 %v95
  %v6170 = vunpack.c.h.b16 %v95
  %v6171 = vunpack.c.l.b16 %v96
  %v6172 = vunpack.c.h.b16 %v96
  %v6173 = vunpack.c.l.b16 %v97
  %v6174 = vunpack.c.h.b16 %v97
  %v6175 = vunpack.c.l.b16 %v98
  %v6176 = vunpack.c.h.b16 %v98
  %v6177 = vunpack.c.l.b16 %v99
  %v6178 = vunpack.c.h.b16 %v99
  %v6179 = vunpack.c.l.b16 %v100
  %v6180 = vunpack.c.h.b16 %v100
  %v6181 = vunpack.c.l.b16 %v101
  %v6182 = vunpack.c.h.b16 %v101
  %v6183 = vunpack.c.l.b16 %v102
  %v6184 = vunpack.c.h.b16 %v102
  %v6185 = vunpack.c.l.b16 %v103
  %v6186 = vunpack.c.h.b16 %v103
  %v6187 = vunpack.c.l.b16 %v104
  %v6188 = vunpack.c.h.b16 %v104
  %v6189 = vunpack.c.l.b16 %v105
  %v6190 = vunpack.c.h.b16 %v105
  %v6191 = vunpack.c.l.b16 %v106
  %v6192 = vunpack.c.h.b16 %v106
  %v6193 = vunpack.c.l.b16 %v107
  %v6194 = vunpack.c.h.b16 %v107
  %v6195 = vunpack.c.l.b16 %v108
  %v6196 = vunpack.c.h.b16 %v108
  %v6197 = vunpack.c.l.b16 %v109
  %v6198 = vunpack.c.h.b16 %v109
  %v6199 = vunpack.c.l.b16 %v110
  %v6200 = vunpack.c.h.b16 %v110
  %v6201 = vunpack.c.l.b16 %v111
  %v6202 = vunpack.c.h.b16 %v111
  %v6203 = vunpack.c.l.b16 %v112
  %v6204 = vunpack.c.h.b16 %v112
  %v6205 = vunpack.c.l.b16 %v113
  %v6206 = vunpack.c.h.b16 %v113
  %v6207 = vunpack.c.l.b16 %v114
  %v6208 = vunpack.c.h.b16 %v114
  %v6209 = vunpack.c.l.b16 %v115
  %v6210 = vunpack.c.h.b16 %v115
  %v6211 = vunpack.c.l.b16 %v116
  %v6212 = vunpack.c.h.b16 %v116
  %v6213 = vunpack.c.l.b16 %v117
  %v6214 = vunpack.c.h.b16 %v117
  %v6215 = vunpack.c.l.b16 %v118
  %v6216 = vunpack.c.h.b16 %v118
  %v6217 = vunpack.c.l.b16 %v119
  %v6218 = vunpack.c.h.b16 %v119
  %v6219 = vunpack.c.l.b16 %v120
  %v6220 = vunpack.c.h.b16 %v120
  %v6221 = vunpack.c.l.b16 %v121
  %v6222 = vunpack.c.h.b16 %v121
  %v6223 = vunpack.c.l.b16 %v122
  %v6224 = vunpack.c.h.b16 %v122
  %v6225 = vunpack.c.l.b16 %v123
  %v6226 = vunpack.c.h.b16 %v123
  %v6227 = vunpack.c.l.b16 %v124
  %v6228 = vunpack.c.h.b16 %v124
  %v6229 = vpack.c.b16 %v6153, %v6149
  %v6230 = vpack.c.b16 %v6154, %v6150
  %v6231 = vpack.c.b16 %v6155, %v6151
  %v6232 = vpack.c.b16 %v6156, %v6152
  %v6233 = vpack.c.b16 %v6161, %v6157
  %v6234 = vpack.c.b16 %v6162, %v6158
  %v6235 = vpack.c.b16 %v6163, %v6159
  %v6236 = vpack.c.b16 %v6164, %v6160
  %v6237 = vpack.c.b16 %v6169, %v6165
  %v6238 = vpack.c.b16 %v6170, %v6166
  %v6239 = vpack.c.b16 %v6171, %v6167
  %v6240 = vpack.c.b16 %v6172, %v6168
  %v6241 = vpack.c.b16 %v6177, %v6173
  %v6242 = vpack.c.b16 %v6178, %v6174
  %v6243 = vpack.c.b16 %v6179, %v6175
  %v6244 = vpack.c.b16 %v6180, %v6176
  %v6245 = vpack.c.b16 %v6185, %v6181
  %v6246 = vpack.c.b16 %v6186, %v6182
  %v6247 = vpack.c.b16 %v6187, %v6183
  %v6248 = vpack.c.b16 %v6188, %v6184
  %v6249 = vpack.c.b16 %v6193, %v6189
  %v6250 = vpack.c.b16 %v6194, %v6190
  %v6251 = vpack.c.b16 %v6195, %v6191
  %v6252 = vpack.c.b16 %v6196, %v6192
  %v6253 = vpack.c.b16 %v6201, %v6197
  %v6254 = vpack.c.b16 %v6202, %v6198
  %v6255 = vpack.c.b16 %v6203, %v6199
  %v6256 = vpack.c.b16 %v6204, %v6200
  %v6257 = vpack.c.b16 %v6209, %v6205
  %v6258 = vpack.c.b16 %v6210, %v6206
  %v6259 = vpack.c.b16 %v6211, %v6207
  %v6260 = vpack.c.b16 %v6212, %v6208
  %v6261 = vpack.c.b16 %v6217, %v6213
  %v6262 = vpack.c.b16 %v6218, %v6214
  %v6263 = vpack.c.b16 %v6219, %v6215
  %v6264 = vpack.c.b16 %v6220, %v6216
  %v6265 = vpack.c.b16 %v6225, %v6221
  %v6266 = vpack.c.b16 %v6226, %v6222
  %v6267 = vpack.c.b16 %v6227, %v6223
  %v6268 = vpack.c.b16 %v6228, %v6224
  %v6351 = vunpack.c.l.b16 %v6057
  %v6352 = vunpack.c.l.b16 %v6058
  %v6353 = vunpack.c.l.b16 %v6059
  %v6354 = vunpack.c.l.b16 %v6060
  %v6355 = vunpack.c.l.b16 %v6061
  %v6356 = vunpack.c.l.b16 %v6062
  %v6357 = vunpack.c.l.b16 %v6063
  %v6358 = vunpack.c.l.b16 %v6064
  %v6359 = vunpack.c.l.b16 %v6065
  %v6360 = vunpack.c.l.b16 %v6066
  %v6361 = vunpack.c.l.b16 %v6067
  %v6362 = vunpack.c.l.b16 %v6068
  %v6363 = vunpack.c.l.b16 %v6069
  %v6364 = vunpack.c.l.b16 %v6070
  %v6365 = vunpack.c.l.b16 %v6071
  %v6366 = vunpack.c.l.b16 %v6072
  %v6367 = vunpack.c.l.b16 %v6073
  %v6368 = vunpack.c.l.b16 %v6074
  %v6369 = vunpack.c.l.b16 %v6075
  %v6370 = vunpack.c.l.b16 %v6076
  %v6371 = vunpack.c.l.b16 %v6077
  %v6372 = vunpack.c.l.b16 %v6078
  %v6373 = vunpack.c.l.b16 %v6079
  %v6374 = vunpack.c.l.b16 %v6080
  %v6375 = vunpack.c.l.b16 %v6081
  %v6376 = vunpack.c.l.b16 %v6082
  %v6377 = vunpack.c.l.b16 %v6083
  %v6378 = vunpack.c.l.b16 %v6084
  %v6379 = vunpack.c.l.b16 %v6085
  %v6380 = vunpack.c.l.b16 %v6086
  %v6381 = vunpack.c.l.b16 %v6087
  %v6382 = vunpack.c.l.b16 %v6088
  %v6383 = vunpack.c.l.b16 %v6089
  %v6384 = vunpack.c.l.b16 %v6090
  %v6385 = vunpack.c.l.b16 %v6091
  %v6386 = vunpack.c.l.b16 %v6092
  %v6387 = vunpack.c.l.b16 %v6093
  %v6388 = vunpack.c.l.b16 %v6094
  %v6389 = vunpack.c.l.b16 %v6095
  %v6390 = vunpack.c.l.b16 %v6096
  %v6391 = vunpack.c.l.b16 %v6097
  %v6392 = vunpack.c.l.b16 %v6098
  %v6393 = vunpack.c.l.b16 %v6099
  %v6394 = vunpack.c.l.b16 %v6100
  %v6395 = vunpack.c.l.b16 %v6101
  %v6396 = vunpack.c.l.b16 %v6102
  %v6397 = vunpack.c.l.b16 %v6103
  %v6398 = vunpack.c.l.b16 %v6104
  %v6399 = vunpack.c.l.b16 %v6105
  %v6400 = vunpack.c.l.b16 %v6106
  %v6401 = vunpack.c.l.b16 %v6107
  %v6402 = vunpack.c.l.b16 %v6108
  %v6403 = vpack.c.b16 %v6352, %v6351
  %v6404 = vpack.c.b16 %v6354, %v6353
  %v6405 = vpack.c.b16 %v6356, %v6355
  %v6406 = vpack.c.b16 %v6358, %v6357
  %v6407 = vpack.c.b16 %v6360, %v6359
  %v6408 = vpack.c.b16 %v6362, %v6361
  %v6409 = vpack.c.b16 %v6364, %v6363
  %v6410 = vpack.c.b16 %v6366, %v6365
  %v6411 = vpack.c.b16 %v6368, %v6367
  %v6412 = vpack.c.b16 %v6370, %v6369
  %v6413 = vpack.c.b16 %v6372, %v6371
  %v6414 = vpack.c.b16 %v6374, %v6373
  %v6415 = vpack.c.b16 %v6376, %v6375
  %v6416 = vpack.c.b16 %v6378, %v6377
  %v6417 = vpack.c.b16 %v6380, %v6379
  %v6418 = vpack.c.b16 %v6382, %v6381
  %v6419 = vpack.c.b16 %v6384, %v6383
  %v6420 = vpack.c.b16 %v6386, %v6385
  %v6421 = vpack.c.b16 %v6388, %v6387
  %v6422 = vpack.c.b16 %v6390, %v6389
  %v6423 = vpack.c.b16 %v6392, %v6391
  %v6424 = vpack.c.b16 %v6394, %v6393
  %v6425 = vpack.c.b16 %v6396, %v6395
  %v6426 = vpack.c.b16 %v6398, %v6397
  %v6427 = vpack.c.b16 %v6400, %v6399
  %v6428 = vpack.c.b16 %v6402, %v6401
  %vm6455 = vcmask 261120
  %v6457 = vsel %vm6455, %v6232, 0
  %v6460 = vsel %vm6455, %v6236, 0
  %v6463 = vsel %vm6455, %v6240, 0
  %v6466 = vsel %vm6455, %v6244, 0
  %v6469 = vsel %vm6455, %v6248, 0
  %v6472 = vsel %vm6455, %v6252, 0
  %v6475 = vsel %vm6455, %v6256, 0
  %v6478 = vsel %vm6455, %v6260, 0
  %v6481 = vsel %vm6455, %v6264, 0
  %v6484 = vsel %vm6455, %v6268, 0
  %6486 = vmatprep.subr.bf16.mxu0 0
  %6487 = vmatpush1.bf16.msra.mxu0 %v6403
  %6488 = vmatprep.subr.bf16.mxu0 0
  %6489 = vmatpush1.bf16.msra.mxu0 %v6404
  %6490 = vmatprep.subr.bf16.mxu0 0
  %6491 = vmatpush1.bf16.msra.mxu0 %v6405
  %6492 = vmatprep.subr.bf16.mxu0 0
  %6493 = vmatpush1.bf16.msra.mxu0 %v6406
  %6494 = vmatprep.subr.bf16.mxu0 0
  %6495 = vmatpush1.bf16.msra.mxu0 %v6407
  %6496 = vmatprep.subr.bf16.mxu0 0
  %6497 = vmatpush1.bf16.msra.mxu0 %v6408
  %6498 = vmatprep.subr.bf16.mxu0 0
  %6499 = vmatpush1.bf16.msra.mxu0 %v6409
  %6500 = vmatprep.subr.bf16.mxu0 0
  %6501 = vmatpush1.bf16.msra.mxu0 %v6410
  %6502 = vmatprep.subr.bf16.mxu0 0
  %6503 = vmatpush1.bf16.msra.mxu0 %v6411
  %6504 = vmatprep.subr.bf16.mxu0 0
  %6505 = vmatpush1.bf16.msra.mxu0 %v6412
  %6506 = vmatprep.subr.bf16.mxu0 0
  %6507 = vmatpush1.bf16.msra.mxu0 %v6413
  %6508 = vmatprep.subr.bf16.mxu0 0
  %6509 = vmatpush1.bf16.msra.mxu0 %v6414
  %6510 = vmatprep.subr.bf16.mxu0 0
  %6511 = vmatpush1.bf16.msra.mxu0 %v6415
  %6512 = vmatprep.subr.bf16.mxu0 0
  %6513 = vmatpush1.bf16.msra.mxu0 %v6416
  %6514 = vmatprep.subr.bf16.mxu0 0
  %6515 = vmatpush1.bf16.msra.mxu0 %v6417
  %6516 = vmatprep.subr.bf16.mxu0 0
  %6517 = vmatpush1.bf16.msra.mxu0 %v6418
  %6518 = vmatprep.mubr.bf16.mxu0 %v6230
  %6519 = vmatmul.mubr.bf16.gmra.mrb[0].mxu0 %v6229
  %v6520 = vpop.f32.mrb[0].mxu0
  %v6521 = vadd.f32 0.0, %v6520
  %v6522 = vpop.f32.mrb[0].mxu0
  %v6523 = vpop.f32.mrb[0].mxu0
  %v6524 = vadd.f32 0.0, %v6523
  %v6525 = vpop.f32.mrb[0].mxu0
  %6526 = vmatprep.mubr.bf16.mxu0 %v6234
  %6527 = vmatmul.mubr.bf16.gmra.mrb[0].mxu0 %v6233
  %v6528 = vpop.f32.mrb[0].mxu0
  %v6529 = vadd.f32 0.0, %v6528
  %v6530 = vpop.f32.mrb[0].mxu0
  %v6531 = vpop.f32.mrb[0].mxu0
  %v6532 = vadd.f32 0.0, %v6531
  %v6533 = vpop.f32.mrb[0].mxu0
  %6534 = vmatprep.mubr.bf16.mxu0 %v6238
  %6535 = vmatmul.mubr.bf16.gmra.mrb[0].mxu0 %v6237
  %v6536 = vpop.f32.mrb[0].mxu0
  %v6537 = vadd.f32 0.0, %v6536
  %v6538 = vpop.f32.mrb[0].mxu0
  %v6539 = vpop.f32.mrb[0].mxu0
  %v6540 = vadd.f32 0.0, %v6539
  %v6541 = vpop.f32.mrb[0].mxu0
  %6542 = vmatprep.mubr.bf16.mxu0 %v6242
  %6543 = vmatmul.mubr.bf16.gmra.mrb[0].mxu0 %v6241
  %v6544 = vpop.f32.mrb[0].mxu0
  %v6545 = vadd.f32 0.0, %v6544
  %v6546 = vpop.f32.mrb[0].mxu0
  %v6547 = vpop.f32.mrb[0].mxu0
  %v6548 = vadd.f32 0.0, %v6547
  %v6549 = vpop.f32.mrb[0].mxu0
  %6550 = vmatprep.mubr.bf16.mxu0 %v6246
  %6551 = vmatmul.mubr.bf16.gmra.mrb[0].mxu0 %v6245
  %v6552 = vpop.f32.mrb[0].mxu0
  %v6553 = vadd.f32 0.0, %v6552
  %v6554 = vpop.f32.mrb[0].mxu0
  %v6555 = vpop.f32.mrb[0].mxu0
  %v6556 = vadd.f32 0.0, %v6555
  %v6557 = vpop.f32.mrb[0].mxu0
  %6558 = vmatprep.mubr.bf16.mxu0 %v6250
  %6559 = vmatmul.mubr.bf16.gmra.mrb[0].mxu0 %v6249
  %v6560 = vpop.f32.mrb[0].mxu0
  %v6561 = vadd.f32 0.0, %v6560
  %v6562 = vpop.f32.mrb[0].mxu0
  %v6563 = vpop.f32.mrb[0].mxu0
  %v6564 = vadd.f32 0.0, %v6563
  %v6565 = vpop.f32.mrb[0].mxu0
  %6566 = vmatprep.mubr.bf16.mxu0 %v6254
  %6567 = vmatmul.mubr.bf16.gmra.mrb[0].mxu0 %v6253
  %v6568 = vpop.f32.mrb[0].mxu0
  %v6569 = vadd.f32 0.0, %v6568
  %v6570 = vpop.f32.mrb[0].mxu0
  %v6571 = vpop.f32.mrb[0].mxu0
  %v6572 = vadd.f32 0.0, %v6571
  %v6573 = vpop.f32.mrb[0].mxu0
  %6574 = vmatprep.mubr.bf16.mxu0 %v6258
  %6575 = vmatmul.mubr.bf16.gmra.mrb[0].mxu0 %v6257
  %v6576 = vpop.f32.mrb[0].mxu0
  %v6577 = vadd.f32 0.0, %v6576
  %v6578 = vpop.f32.mrb[0].mxu0
  %v6579 = vpop.f32.mrb[0].mxu0
  %v6580 = vadd.f32 0.0, %v6579
  %v6581 = vpop.f32.mrb[0].mxu0
  %6582 = vmatprep.mubr.bf16.mxu0 %v6262
  %6583 = vmatmul.mubr.bf16.gmra.mrb[0].mxu0 %v6261
  %v6584 = vpop.f32.mrb[0].mxu0
  %v6585 = vadd.f32 0.0, %v6584
  %v6586 = vpop.f32.mrb[0].mxu0
  %v6587 = vpop.f32.mrb[0].mxu0
  %v6588 = vadd.f32 0.0, %v6587
  %v6589 = vpop.f32.mrb[0].mxu0
  %6590 = vmatprep.mubr.bf16.mxu0 %v6266
  %6591 = vmatmul.mubr.bf16.gmra.mrb[0].mxu0 %v6265
  %v6592 = vpop.f32.mrb[0].mxu0
  %v6593 = vadd.f32 0.0, %v6592
  %v6594 = vpop.f32.mrb[0].mxu0
  %v6595 = vpop.f32.mrb[0].mxu0
  %v6596 = vadd.f32 0.0, %v6595
  %v6597 = vpop.f32.mrb[0].mxu0
  %6598 = vdwg.mxu0
  %6599 = vmatprep.subr.bf16.mxu0 0
  %6600 = vmatpush1.bf16.msra.mxu0 %v6419
  %6601 = vmatprep.subr.bf16.mxu0 0
  %6602 = vmatpush1.bf16.msra.mxu0 %v6420
  %6603 = vmatprep.subr.bf16.mxu0 0
  %6604 = vmatpush1.bf16.msra.mxu0 %v6421
  %6605 = vmatprep.subr.bf16.mxu0 0
  %6606 = vmatpush1.bf16.msra.mxu0 %v6422
  %6607 = vmatprep.subr.bf16.mxu0 0
  %6608 = vmatpush1.bf16.msra.mxu0 %v6423
  %6609 = vmatprep.subr.bf16.mxu0 0
  %6610 = vmatpush1.bf16.msra.mxu0 %v6424
  %6611 = vmatprep.subr.bf16.mxu0 0
  %6612 = vmatpush1.bf16.msra.mxu0 %v6425
  %6613 = vmatprep.subr.bf16.mxu0 0
  %6614 = vmatpush1.bf16.msra.mxu0 %v6426
  %6615 = vmatprep.subr.bf16.mxu0 0
  %6616 = vmatpush1.bf16.msra.mxu0 %v6427
  %6617 = vmatprep.subr.bf16.mxu0 0
  %6618 = vmatpush1.bf16.msra.mxu0 %v6428
  %6619 = vmatprep.subr.bf16.mxu0 0
  %6620 = vmatpush1.bf16.msra.mxu0 0
  %6621 = vmatprep.subr.bf16.mxu0 0
  %6622 = vmatpush1.bf16.msra.mxu0 0
  %6623 = vmatprep.subr.bf16.mxu0 0
  %6624 = vmatpush1.bf16.msra.mxu0 0
  %6625 = vmatprep.subr.bf16.mxu0 0
  %6626 = vmatpush1.bf16.msra.mxu0 0
  %6627 = vmatprep.subr.bf16.mxu0 0
  %6628 = vmatpush1.bf16.msra.mxu0 0
  %6629 = vmatprep.subr.bf16.mxu0 0
  %6630 = vmatpush1.bf16.msra.mxu0 0
  %6631 = vmatprep.mubr.bf16.mxu0 %v6457
  %6632 = vmatmul.mubr.bf16.gmra.mrb[0].mxu0 %v6231
  %v6633 = vpop.f32.mrb[0].mxu0
  %v6634 = vadd.f32 %v6521, %v6633
  %v6635 = vpop.f32.mrb[0].mxu0
  %v6636 = vpop.f32.mrb[0].mxu0
  %v6637 = vadd.f32 %v6524, %v6636
  %v6638 = vpop.f32.mrb[0].mxu0
  %6639 = vmatprep.mubr.bf16.mxu0 %v6460
  %6640 = vmatmul.mubr.bf16.gmra.mrb[0].mxu0 %v6235
  %v6641 = vpop.f32.mrb[0].mxu0
  %v6642 = vadd.f32 %v6529, %v6641
  %v6643 = vpop.f32.mrb[0].mxu0
  %v6644 = vpop.f32.mrb[0].mxu0
  %v6645 = vadd.f32 %v6532, %v6644
  %v6646 = vpop.f32.mrb[0].mxu0
  %6647 = vmatprep.mubr.bf16.mxu0 %v6463
  %6648 = vmatmul.mubr.bf16.gmra.mrb[0].mxu0 %v6239
  %v6649 = vpop.f32.mrb[0].mxu0
  %v6650 = vadd.f32 %v6537, %v6649
  %v6651 = vpop.f32.mrb[0].mxu0
  %v6652 = vpop.f32.mrb[0].mxu0
  %v6653 = vadd.f32 %v6540, %v6652
  %v6654 = vpop.f32.mrb[0].mxu0
  %6655 = vmatprep.mubr.bf16.mxu0 %v6466
  %6656 = vmatmul.mubr.bf16.gmra.mrb[0].mxu0 %v6243
  %v6657 = vpop.f32.mrb[0].mxu0
  %v6658 = vadd.f32 %v6545, %v6657
  %v6659 = vpop.f32.mrb[0].mxu0
  %v6660 = vpop.f32.mrb[0].mxu0
  %v6661 = vadd.f32 %v6548, %v6660
  %v6662 = vpop.f32.mrb[0].mxu0
  %6663 = vmatprep.mubr.bf16.mxu0 %v6469
  %6664 = vmatmul.mubr.bf16.gmra.mrb[0].mxu0 %v6247
  %v6665 = vpop.f32.mrb[0].mxu0
  %v6666 = vadd.f32 %v6553, %v6665
  %v6667 = vpop.f32.mrb[0].mxu0
  %v6668 = vpop.f32.mrb[0].mxu0
  %v6669 = vadd.f32 %v6556, %v6668
  %v6670 = vpop.f32.mrb[0].mxu0
  %6671 = vmatprep.mubr.bf16.mxu0 %v6472
  %6672 = vmatmul.mubr.bf16.gmra.mrb[0].mxu0 %v6251
  %v6673 = vpop.f32.mrb[0].mxu0
  %v6674 = vadd.f32 %v6561, %v6673
  %v6675 = vpop.f32.mrb[0].mxu0
  %v6676 = vpop.f32.mrb[0].mxu0
  %v6677 = vadd.f32 %v6564, %v6676
  %v6678 = vpop.f32.mrb[0].mxu0
  %6679 = vmatprep.mubr.bf16.mxu0 %v6475
  %6680 = vmatmul.mubr.bf16.gmra.mrb[0].mxu0 %v6255
  %v6681 = vpop.f32.mrb[0].mxu0
  %v6682 = vadd.f32 %v6569, %v6681
  %v6683 = vpop.f32.mrb[0].mxu0
  %v6684 = vpop.f32.mrb[0].mxu0
  %v6685 = vadd.f32 %v6572, %v6684
  %v6686 = vpop.f32.mrb[0].mxu0
  %6687 = vmatprep.mubr.bf16.mxu0 %v6478
  %6688 = vmatmul.mubr.bf16.gmra.mrb[0].mxu0 %v6259
  %v6689 = vpop.f32.mrb[0].mxu0
  %v6690 = vadd.f32 %v6577, %v6689
  %v6691 = vpop.f32.mrb[0].mxu0
  %v6692 = vpop.f32.mrb[0].mxu0
  %v6693 = vadd.f32 %v6580, %v6692
  %v6694 = vpop.f32.mrb[0].mxu0
  %6695 = vmatprep.mubr.bf16.mxu0 %v6481
  %6696 = vmatmul.mubr.bf16.gmra.mrb[0].mxu0 %v6263
  %v6697 = vpop.f32.mrb[0].mxu0
  %v6698 = vadd.f32 %v6585, %v6697
  %v6699 = vpop.f32.mrb[0].mxu0
  %v6700 = vpop.f32.mrb[0].mxu0
  %v6701 = vadd.f32 %v6588, %v6700
  %v6702 = vpop.f32.mrb[0].mxu0
  %6703 = vmatprep.mubr.bf16.mxu0 %v6484
  %6704 = vmatmul.mubr.bf16.gmra.mrb[0].mxu0 %v6267
  %v6705 = vpop.f32.mrb[0].mxu0
  %v6706 = vadd.f32 %v6593, %v6705
  %v6707 = vpop.f32.mrb[0].mxu0
  %v6708 = vpop.f32.mrb[0].mxu0
  %v6709 = vadd.f32 %v6596, %v6708
  %v6710 = vpop.f32.mrb[0].mxu0
  %6711 = vdwg.mxu0
  %v6712 = vmax.f32 %v6634, %v6674
  %v6713 = vmax.f32 %v6637, %v6677
  %v6714 = vmax.f32 %v6642, %v6682
  %v6715 = vmax.f32 %v6645, %v6685
  %v6716 = vmax.f32 %v6650, %v6690
  %v6717 = vmax.f32 %v6653, %v6693
  %v6718 = vmax.f32 %v6658, %v6698
  %v6719 = vmax.f32 %v6661, %v6701
  %v6720 = vmax.f32 %v6666, %v6706
  %v6721 = vmax.f32 %v6669, %v6709
  %v6722 = vmax.f32 %v6712, %v6713
  %v6723 = vmax.f32 %v6714, %v6715
  %v6724 = vmax.f32 %v6716, %v6717
  %v6725 = vmax.f32 %v6718, %v6719
  %v6726 = vmax.f32 %v6720, %v6721
  %v6727 = vadd.f32 %v6722, %v211
  %v6728 = vadd.f32 %v6723, %v216
  %v6729 = vadd.f32 %v6724, %v221
  %v6730 = vadd.f32 %v6725, %v226
  %v6731 = vadd.f32 %v6726, %v231
  %v6732 = vmax.f32 %v6727, 0.0
  %v6733 = vmax.f32 %v6728, 0.0
  %v6734 = vmax.f32 %v6729, 0.0
  %v6735 = vmax.f32 %v6730, 0.0
  %v6736 = vmax.f32 %v6731, 0.0
  %v6737 = vpack.c.bf16 %v6733, %v6732
  %v6738 = vpack.c.bf16 %v6735, %v6734
  %v6739 = vpack.c.bf16 %v6736, %v6736
  %v6743 = vunpack.c.l.b16 %v6737
  %v6744 = vunpack.c.h.b16 %v6737
  %v6745 = vunpack.c.l.b16 %v6738
  %v6746 = vunpack.c.h.b16 %v6738
  %v6747 = vunpack.c.l.b16 %v6739
  %v6748 = vpack.c.b16 %v6743, %v6743
  %v6749 = vpack.c.b16 %v6744, %v6744
  %v6750 = vpack.c.b16 %v6745, %v6745
  %v6751 = vpack.c.b16 %v6746, %v6746
  %v6752 = vpack.c.b16 %v6747, %v6747
  %6758 = vst [vmem:[#allocation3] sm:$0xf] %v6748
  %6759 = vst [vmem:[#allocation3 + $0x4] sm:$0xf] %v6749
  %6760 = vst [vmem:[#allocation3 + $0x8] sm:$0xf] %v6750
  %6761 = vst [vmem:[#allocation3 + $0xc] sm:$0xf] %v6751
  %6762 = vst [vmem:[#allocation3 + $0x10] sm:$0xf] %v6752
  %v6763 = vld [vmem:[#allocation2 + $0x68] sm:$0xf]
  %v6764 = vld [vmem:[#allocation2 + $0x6c] sm:$0xf]
  %v6765 = vld [vmem:[#allocation2 + $0x70] sm:$0xf]
  %v6766 = vld [vmem:[#allocation2 + $0x74] sm:$0xf]
  %v6767 = vld [vmem:[#allocation2 + $0x78] sm:$0xf]
  %v6768 = vld [vmem:[#allocation2 + $0x7c] sm:$0xf]
  %v6769 = vld [vmem:[#allocation2 + $0x80] sm:$0xf]
  %v6770 = vld [vmem:[#allocation2 + $0x84] sm:$0xf]
  %v6771 = vld [vmem:[#allocation2 + $0x88] sm:$0xf]
  %v6772 = vld [vmem:[#allocation2 + $0x8c] sm:$0xf]
  %v6773 = vld [vmem:[#allocation2 + $0x90] sm:$0xf]
  %v6774 = vld [vmem:[#allocation2 + $0x94] sm:$0xf]
  %v6775 = vld [vmem:[#allocation2 + $0x98] sm:$0xf]
  %v6776 = vld [vmem:[#allocation2 + $0x9c] sm:$0xf]
  %v6777 = vld [vmem:[#allocation2 + $0xa0] sm:$0xf]
  %v6778 = vld [vmem:[#allocation2 + $0xa4] sm:$0xf]
  %v6779 = vld [vmem:[#allocation2 + $0xa8] sm:$0xf]
  %v6780 = vld [vmem:[#allocation2 + $0xac] sm:$0xf]
  %v6781 = vld [vmem:[#allocation2 + $0xb0] sm:$0xf]
  %v6782 = vld [vmem:[#allocation2 + $0xb4] sm:$0xf]
  %v6783 = vld [vmem:[#allocation2 + $0xb8] sm:$0xf]
  %v6784 = vld [vmem:[#allocation2 + $0xbc] sm:$0xf]
  %v6785 = vld [vmem:[#allocation2 + $0xc0] sm:$0xf]
  %v6786 = vld [vmem:[#allocation2 + $0xc4] sm:$0xf]
  %v6787 = vld [vmem:[#allocation2 + $0xc8] sm:$0xf]
  %v6788 = vld [vmem:[#allocation2 + $0xcc] sm:$0xf]
  %v6789 = vld [vmem:[#allocation2 + $0xd0] sm:$0xf]
  %v6790 = vld [vmem:[#allocation2 + $0xd4] sm:$0xf]
  %v6791 = vld [vmem:[#allocation2 + $0xd8] sm:$0xf]
  %v6792 = vld [vmem:[#allocation2 + $0xdc] sm:$0xf]
  %v6793 = vld [vmem:[#allocation2 + $0xe0] sm:$0xf]
  %v6794 = vld [vmem:[#allocation2 + $0xe4] sm:$0xf]
  %v6795 = vld [vmem:[#allocation2 + $0xe8] sm:$0xf]
  %v6796 = vld [vmem:[#allocation2 + $0xec] sm:$0xf]
  %v6797 = vld [vmem:[#allocation2 + $0xf0] sm:$0xf]
  %v6798 = vld [vmem:[#allocation2 + $0xf4] sm:$0xf]
  %v6799 = vld [vmem:[#allocation2 + $0xf8] sm:$0xf]
  %v6800 = vld [vmem:[#allocation2 + $0xfc] sm:$0xf]
  %v6801 = vld [vmem:[#allocation2 + $0x100] sm:$0xf]
  %v6802 = vld [vmem:[#allocation2 + $0x104] sm:$0xf]
  %v6803 = vld [vmem:[#allocation2 + $0x108] sm:$0xf]
  %v6804 = vld [vmem:[#allocation2 + $0x10c] sm:$0xf]
  %v6805 = vld [vmem:[#allocation2 + $0x110] sm:$0xf]
  %v6806 = vld [vmem:[#allocation2 + $0x114] sm:$0xf]
  %v6807 = vld [vmem:[#allocation2 + $0x118] sm:$0xf]
  %v6808 = vld [vmem:[#allocation2 + $0x11c] sm:$0xf]
  %v6809 = vld [vmem:[#allocation2 + $0x120] sm:$0xf]
  %v6810 = vld [vmem:[#allocation2 + $0x124] sm:$0xf]
  %v6811 = vld [vmem:[#allocation2 + $0x128] sm:$0xf]
  %v6812 = vld [vmem:[#allocation2 + $0x12c] sm:$0xf]
  %v6813 = vld [vmem:[#allocation2 + $0x130] sm:$0xf]
  %v6814 = vld [vmem:[#allocation2 + $0x134] sm:$0xf]
  %v6867 = vunpack.c.l.b16 %v6763
  %v6868 = vunpack.c.l.b16 %v6764
  %v6869 = vunpack.c.l.b16 %v6765
  %v6870 = vunpack.c.l.b16 %v6766
  %v6871 = vunpack.c.l.b16 %v6767
  %v6872 = vunpack.c.l.b16 %v6768
  %v6873 = vunpack.c.l.b16 %v6769
  %v6874 = vunpack.c.l.b16 %v6770
  %v6875 = vunpack.c.l.b16 %v6771
  %v6876 = vunpack.c.l.b16 %v6772
  %v6877 = vunpack.c.l.b16 %v6773
  %v6878 = vunpack.c.l.b16 %v6774
  %v6879 = vunpack.c.l.b16 %v6775
  %v6880 = vunpack.c.l.b16 %v6776
  %v6881 = vunpack.c.l.b16 %v6777
  %v6882 = vunpack.c.l.b16 %v6778
  %v6883 = vunpack.c.l.b16 %v6779
  %v6884 = vunpack.c.l.b16 %v6780
  %v6885 = vunpack.c.l.b16 %v6781
  %v6886 = vunpack.c.l.b16 %v6782
  %v6887 = vunpack.c.l.b16 %v6783
  %v6888 = vunpack.c.l.b16 %v6784
  %v6889 = vunpack.c.l.b16 %v6785
  %v6890 = vunpack.c.l.b16 %v6786
  %v6891 = vunpack.c.l.b16 %v6787
  %v6892 = vunpack.c.l.b16 %v6788
  %v6893 = vunpack.c.l.b16 %v6789
  %v6894 = vunpack.c.l.b16 %v6790
  %v6895 = vunpack.c.l.b16 %v6791
  %v6896 = vunpack.c.l.b16 %v6792
  %v6897 = vunpack.c.l.b16 %v6793
  %v6898 = vunpack.c.l.b16 %v6794
  %v6899 = vunpack.c.l.b16 %v6795
  %v6900 = vunpack.c.l.b16 %v6796
  %v6901 = vunpack.c.l.b16 %v6797
  %v6902 = vunpack.c.l.b16 %v6798
  %v6903 = vunpack.c.l.b16 %v6799
  %v6904 = vunpack.c.l.b16 %v6800
  %v6905 = vunpack.c.l.b16 %v6801
  %v6906 = vunpack.c.l.b16 %v6802
  %v6907 = vunpack.c.l.b16 %v6803
  %v6908 = vunpack.c.l.b16 %v6804
  %v6909 = vunpack.c.l.b16 %v6805
  %v6910 = vunpack.c.l.b16 %v6806
  %v6911 = vunpack.c.l.b16 %v6807
  %v6912 = vunpack.c.l.b16 %v6808
  %v6913 = vunpack.c.l.b16 %v6809
  %v6914 = vunpack.c.l.b16 %v6810
  %v6915 = vunpack.c.l.b16 %v6811
  %v6916 = vunpack.c.l.b16 %v6812
  %v6917 = vunpack.c.l.b16 %v6813
  %v6918 = vunpack.c.l.b16 %v6814
  %v6919 = vpack.c.b16 %v6868, %v6867
  %v6920 = vpack.c.b16 %v6870, %v6869
  %v6921 = vpack.c.b16 %v6872, %v6871
  %v6922 = vpack.c.b16 %v6874, %v6873
  %v6923 = vpack.c.b16 %v6876, %v6875
  %v6924 = vpack.c.b16 %v6878, %v6877
  %v6925 = vpack.c.b16 %v6880, %v6879
  %v6926 = vpack.c.b16 %v6882, %v6881
  %v6927 = vpack.c.b16 %v6884, %v6883
  %v6928 = vpack.c.b16 %v6886, %v6885
  %v6929 = vpack.c.b16 %v6888, %v6887
  %v6930 = vpack.c.b16 %v6890, %v6889
  %v6931 = vpack.c.b16 %v6892, %v6891
  %v6932 = vpack.c.b16 %v6894, %v6893
  %v6933 = vpack.c.b16 %v6896, %v6895
  %v6934 = vpack.c.b16 %v6898, %v6897
  %v6935 = vpack.c.b16 %v6900, %v6899
  %v6936 = vpack.c.b16 %v6902, %v6901
  %v6937 = vpack.c.b16 %v6904, %v6903
  %v6938 = vpack.c.b16 %v6906, %v6905
  %v6939 = vpack.c.b16 %v6908, %v6907
  %v6940 = vpack.c.b16 %v6910, %v6909
  %v6941 = vpack.c.b16 %v6912, %v6911
  %v6942 = vpack.c.b16 %v6914, %v6913
  %v6943 = vpack.c.b16 %v6916, %v6915
  %v6944 = vpack.c.b16 %v6918, %v6917
  %6971 = vmatprep.subr.bf16.mxu0 0
  %6972 = vmatpush1.bf16.msra.mxu0 %v6919
  %6973 = vmatprep.subr.bf16.mxu0 0
  %6974 = vmatpush1.bf16.msra.mxu0 %v6920
  %6975 = vmatprep.subr.bf16.mxu0 0
  %6976 = vmatpush1.bf16.msra.mxu0 %v6921
  %6977 = vmatprep.subr.bf16.mxu0 0
  %6978 = vmatpush1.bf16.msra.mxu0 %v6922
  %6979 = vmatprep.subr.bf16.mxu0 0
  %6980 = vmatpush1.bf16.msra.mxu0 %v6923
  %6981 = vmatprep.subr.bf16.mxu0 0
  %6982 = vmatpush1.bf16.msra.mxu0 %v6924
  %6983 = vmatprep.subr.bf16.mxu0 0
  %6984 = vmatpush1.bf16.msra.mxu0 %v6925
  %6985 = vmatprep.subr.bf16.mxu0 0
  %6986 = vmatpush1.bf16.msra.mxu0 %v6926
  %6987 = vmatprep.subr.bf16.mxu0 0
  %6988 = vmatpush1.bf16.msra.mxu0 %v6927
  %6989 = vmatprep.subr.bf16.mxu0 0
  %6990 = vmatpush1.bf16.msra.mxu0 %v6928
  %6991 = vmatprep.subr.bf16.mxu0 0
  %6992 = vmatpush1.bf16.msra.mxu0 %v6929
  %6993 = vmatprep.subr.bf16.mxu0 0
  %6994 = vmatpush1.bf16.msra.mxu0 %v6930
  %6995 = vmatprep.subr.bf16.mxu0 0
  %6996 = vmatpush1.bf16.msra.mxu0 %v6931
  %6997 = vmatprep.subr.bf16.mxu0 0
  %6998 = vmatpush1.bf16.msra.mxu0 %v6932
  %6999 = vmatprep.subr.bf16.mxu0 0
  %7000 = vmatpush1.bf16.msra.mxu0 %v6933
  %7001 = vmatprep.subr.bf16.mxu0 0
  %7002 = vmatpush1.bf16.msra.mxu0 %v6934
  %7003 = vmatprep.mubr.bf16.mxu0 %v6230
  %7004 = vmatmul.mubr.bf16.gmra.mrb[0].mxu0 %v6229
  %v7005 = vpop.f32.mrb[0].mxu0
  %v7006 = vadd.f32 0.0, %v7005
  %v7007 = vpop.f32.mrb[0].mxu0
  %v7008 = vpop.f32.mrb[0].mxu0
  %v7009 = vadd.f32 0.0, %v7008
  %v7010 = vpop.f32.mrb[0].mxu0
  %7011 = vmatprep.mubr.bf16.mxu0 %v6234
  %7012 = vmatmul.mubr.bf16.gmra.mrb[0].mxu0 %v6233
  %v7013 = vpop.f32.mrb[0].mxu0
  %v7014 = vadd.f32 0.0, %v7013
  %v7015 = vpop.f32.mrb[0].mxu0
  %v7016 = vpop.f32.mrb[0].mxu0
  %v7017 = vadd.f32 0.0, %v7016
  %v7018 = vpop.f32.mrb[0].mxu0
  %7019 = vmatprep.mubr.bf16.mxu0 %v6238
  %7020 = vmatmul.mubr.bf16.gmra.mrb[0].mxu0 %v6237
  %v7021 = vpop.f32.mrb[0].mxu0
  %v7022 = vadd.f32 0.0, %v7021
  %v7023 = vpop.f32.mrb[0].mxu0
  %v7024 = vpop.f32.mrb[0].mxu0
  %v7025 = vadd.f32 0.0, %v7024
  %v7026 = vpop.f32.mrb[0].mxu0
  %7027 = vmatprep.mubr.bf16.mxu0 %v6242
  %7028 = vmatmul.mubr.bf16.gmra.mrb[0].mxu0 %v6241
  %v7029 = vpop.f32.mrb[0].mxu0
  %v7030 = vadd.f32 0.0, %v7029
  %v7031 = vpop.f32.mrb[0].mxu0
  %v7032 = vpop.f32.mrb[0].mxu0
  %v7033 = vadd.f32 0.0, %v7032
  %v7034 = vpop.f32.mrb[0].mxu0
  %7035 = vmatprep.mubr.bf16.mxu0 %v6246
  %7036 = vmatmul.mubr.bf16.gmra.mrb[0].mxu0 %v6245
  %v7037 = vpop.f32.mrb[0].mxu0
  %v7038 = vadd.f32 0.0, %v7037
  %v7039 = vpop.f32.mrb[0].mxu0
  %v7040 = vpop.f32.mrb[0].mxu0
  %v7041 = vadd.f32 0.0, %v7040
  %v7042 = vpop.f32.mrb[0].mxu0
  %7043 = vmatprep.mubr.bf16.mxu0 %v6250
  %7044 = vmatmul.mubr.bf16.gmra.mrb[0].mxu0 %v6249
  %v7045 = vpop.f32.mrb[0].mxu0
  %v7046 = vadd.f32 0.0, %v7045
  %v7047 = vpop.f32.mrb[0].mxu0
  %v7048 = vpop.f32.mrb[0].mxu0
  %v7049 = vadd.f32 0.0, %v7048
  %v7050 = vpop.f32.mrb[0].mxu0
  %7051 = vmatprep.mubr.bf16.mxu0 %v6254
  %7052 = vmatmul.mubr.bf16.gmra.mrb[0].mxu0 %v6253
  %v7053 = vpop.f32.mrb[0].mxu0
  %v7054 = vadd.f32 0.0, %v7053
  %v7055 = vpop.f32.mrb[0].mxu0
  %v7056 = vpop.f32.mrb[0].mxu0
  %v7057 = vadd.f32 0.0, %v7056
  %v7058 = vpop.f32.mrb[0].mxu0
  %7059 = vmatprep.mubr.bf16.mxu0 %v6258
  %7060 = vmatmul.mubr.bf16.gmra.mrb[0].mxu0 %v6257
  %v7061 = vpop.f32.mrb[0].mxu0
  %v7062 = vadd.f32 0.0, %v7061
  %v7063 = vpop.f32.mrb[0].mxu0
  %v7064 = vpop.f32.mrb[0].mxu0
  %v7065 = vadd.f32 0.0, %v7064
  %v7066 = vpop.f32.mrb[0].mxu0
  %7067 = vmatprep.mubr.bf16.mxu0 %v6262
  %7068 = vmatmul.mubr.bf16.gmra.mrb[0].mxu0 %v6261
  %v7069 = vpop.f32.mrb[0].mxu0
  %v7070 = vadd.f32 0.0, %v7069
  %v7071 = vpop.f32.mrb[0].mxu0
  %v7072 = vpop.f32.mrb[0].mxu0
  %v7073 = vadd.f32 0.0, %v7072
  %v7074 = vpop.f32.mrb[0].mxu0
  %7075 = vmatprep.mubr.bf16.mxu0 %v6266
  %7076 = vmatmul.mubr.bf16.gmra.mrb[0].mxu0 %v6265
  %v7077 = vpop.f32.mrb[0].mxu0
  %v7078 = vadd.f32 0.0, %v7077
  %v7079 = vpop.f32.mrb[0].mxu0
  %v7080 = vpop.f32.mrb[0].mxu0
  %v7081 = vadd.f32 0.0, %v7080
  %v7082 = vpop.f32.mrb[0].mxu0
  %7083 = vdwg.mxu0
  %7084 = vmatprep.subr.bf16.mxu0 0
  %7085 = vmatpush1.bf16.msra.mxu0 %v6935
  %7086 = vmatprep.subr.bf16.mxu0 0
  %7087 = vmatpush1.bf16.msra.mxu0 %v6936
  %7088 = vmatprep.subr.bf16.mxu0 0
  %7089 = vmatpush1.bf16.msra.mxu0 %v6937
  %7090 = vmatprep.subr.bf16.mxu0 0
  %7091 = vmatpush1.bf16.msra.mxu0 %v6938
  %7092 = vmatprep.subr.bf16.mxu0 0
  %7093 = vmatpush1.bf16.msra.mxu0 %v6939
  %7094 = vmatprep.subr.bf16.mxu0 0
  %7095 = vmatpush1.bf16.msra.mxu0 %v6940
  %7096 = vmatprep.subr.bf16.mxu0 0
  %7097 = vmatpush1.bf16.msra.mxu0 %v6941
  %7098 = vmatprep.subr.bf16.mxu0 0
  %7099 = vmatpush1.bf16.msra.mxu0 %v6942
  %7100 = vmatprep.subr.bf16.mxu0 0
  %7101 = vmatpush1.bf16.msra.mxu0 %v6943
  %7102 = vmatprep.subr.bf16.mxu0 0
  %7103 = vmatpush1.bf16.msra.mxu0 %v6944
  %7104 = vmatprep.subr.bf16.mxu0 0
  %7105 = vmatpush1.bf16.msra.mxu0 0
  %7106 = vmatprep.subr.bf16.mxu0 0
  %7107 = vmatpush1.bf16.msra.mxu0 0
  %7108 = vmatprep.subr.bf16.mxu0 0
  %7109 = vmatpush1.bf16.msra.mxu0 0
  %7110 = vmatprep.subr.bf16.mxu0 0
  %7111 = vmatpush1.bf16.msra.mxu0 0
  %7112 = vmatprep.subr.bf16.mxu0 0
  %7113 = vmatpush1.bf16.msra.mxu0 0
  %7114 = vmatprep.subr.bf16.mxu0 0
  %7115 = vmatpush1.bf16.msra.mxu0 0
  %7116 = vmatprep.mubr.bf16.mxu0 %v6457
  %7117 = vmatmul.mubr.bf16.gmra.mrb[0].mxu0 %v6231
  %v7118 = vpop.f32.mrb[0].mxu0
  %v7119 = vadd.f32 %v7006, %v7118
  %v7120 = vpop.f32.mrb[0].mxu0
  %v7121 = vpop.f32.mrb[0].mxu0
  %v7122 = vadd.f32 %v7009, %v7121
  %v7123 = vpop.f32.mrb[0].mxu0
  %7124 = vmatprep.mubr.bf16.mxu0 %v6460
  %7125 = vmatmul.mubr.bf16.gmra.mrb[0].mxu0 %v6235
  %v7126 = vpop.f32.mrb[0].mxu0
  %v7127 = vadd.f32 %v7014, %v7126
  %v7128 = vpop.f32.mrb[0].mxu0
  %v7129 = vpop.f32.mrb[0].mxu0
  %v7130 = vadd.f32 %v7017, %v7129
  %v7131 = vpop.f32.mrb[0].mxu0
  %7132 = vmatprep.mubr.bf16.mxu0 %v6463
  %7133 = vmatmul.mubr.bf16.gmra.mrb[0].mxu0 %v6239
  %v7134 = vpop.f32.mrb[0].mxu0
  %v7135 = vadd.f32 %v7022, %v7134
  %v7136 = vpop.f32.mrb[0].mxu0
  %v7137 = vpop.f32.mrb[0].mxu0
  %v7138 = vadd.f32 %v7025, %v7137
  %v7139 = vpop.f32.mrb[0].mxu0
  %7140 = vmatprep.mubr.bf16.mxu0 %v6466
  %7141 = vmatmul.mubr.bf16.gmra.mrb[0].mxu0 %v6243
  %v7142 = vpop.f32.mrb[0].mxu0
  %v7143 = vadd.f32 %v7030, %v7142
  %v7144 = vpop.f32.mrb[0].mxu0
  %v7145 = vpop.f32.mrb[0].mxu0
  %v7146 = vadd.f32 %v7033, %v7145
  %v7147 = vpop.f32.mrb[0].mxu0
  %7148 = vmatprep.mubr.bf16.mxu0 %v6469
  %7149 = vmatmul.mubr.bf16.gmra.mrb[0].mxu0 %v6247
  %v7150 = vpop.f32.mrb[0].mxu0
  %v7151 = vadd.f32 %v7038, %v7150
  %v7152 = vpop.f32.mrb[0].mxu0
  %v7153 = vpop.f32.mrb[0].mxu0
  %v7154 = vadd.f32 %v7041, %v7153
  %v7155 = vpop.f32.mrb[0].mxu0
  %7156 = vmatprep.mubr.bf16.mxu0 %v6472
  %7157 = vmatmul.mubr.bf16.gmra.mrb[0].mxu0 %v6251
  %v7158 = vpop.f32.mrb[0].mxu0
  %v7159 = vadd.f32 %v7046, %v7158
  %v7160 = vpop.f32.mrb[0].mxu0
  %v7161 = vpop.f32.mrb[0].mxu0
  %v7162 = vadd.f32 %v7049, %v7161
  %v7163 = vpop.f32.mrb[0].mxu0
  %7164 = vmatprep.mubr.bf16.mxu0 %v6475
  %7165 = vmatmul.mubr.bf16.gmra.mrb[0].mxu0 %v6255
  %v7166 = vpop.f32.mrb[0].mxu0
  %v7167 = vadd.f32 %v7054, %v7166
  %v7168 = vpop.f32.mrb[0].mxu0
  %v7169 = vpop.f32.mrb[0].mxu0
  %v7170 = vadd.f32 %v7057, %v7169
  %v7171 = vpop.f32.mrb[0].mxu0
  %7172 = vmatprep.mubr.bf16.mxu0 %v6478
  %7173 = vmatmul.mubr.bf16.gmra.mrb[0].mxu0 %v6259
  %v7174 = vpop.f32.mrb[0].mxu0
  %v7175 = vadd.f32 %v7062, %v7174
  %v7176 = vpop.f32.mrb[0].mxu0
  %v7177 = vpop.f32.mrb[0].mxu0
  %v7178 = vadd.f32 %v7065, %v7177
  %v7179 = vpop.f32.mrb[0].mxu0
  %7180 = vmatprep.mubr.bf16.mxu0 %v6481
  %7181 = vmatmul.mubr.bf16.gmra.mrb[0].mxu0 %v6263
  %v7182 = vpop.f32.mrb[0].mxu0
  %v7183 = vadd.f32 %v7070, %v7182
  %v7184 = vpop.f32.mrb[0].mxu0
  %v7185 = vpop.f32.mrb[0].mxu0
  %v7186 = vadd.f32 %v7073, %v7185
  %v7187 = vpop.f32.mrb[0].mxu0
  %7188 = vmatprep.mubr.bf16.mxu0 %v6484
  %7189 = vmatmul.mubr.bf16.gmra.mrb[0].mxu0 %v6267
  %v7190 = vpop.f32.mrb[0].mxu0
  %v7191 = vadd.f32 %v7078, %v7190
  %v7192 = vpop.f32.mrb[0].mxu0
  %v7193 = vpop.f32.mrb[0].mxu0
  %v7194 = vadd.f32 %v7081, %v7193
  %v7195 = vpop.f32.mrb[0].mxu0
  %7196 = vdwg.mxu0
  %v7197 = vmax.f32 %v7119, %v7159
  %v7198 = vmax.f32 %v7122, %v7162
  %v7199 = vmax.f32 %v7127, %v7167
  %v7200 = vmax.f32 %v7130, %v7170
  %v7201 = vmax.f32 %v7135, %v7175
  %v7202 = vmax.f32 %v7138, %v7178
  %v7203 = vmax.f32 %v7143, %v7183
  %v7204 = vmax.f32 %v7146, %v7186
  %v7205 = vmax.f32 %v7151, %v7191
  %v7206 = vmax.f32 %v7154, %v7194
  %v7207 = vmax.f32 %v7197, %v7198
  %v7208 = vmax.f32 %v7199, %v7200
  %v7209 = vmax.f32 %v7201, %v7202
  %v7210 = vmax.f32 %v7203, %v7204
  %v7211 = vmax.f32 %v7205, %v7206
  %v7212 = vadd.f32 %v7207, %v211
  %v7213 = vadd.f32 %v7208, %v216
  %v7214 = vadd.f32 %v7209, %v221
  %v7215 = vadd.f32 %v7210, %v226
  %v7216 = vadd.f32 %v7211, %v231
  %v7217 = vmax.f32 %v7212, 0.0
  %v7218 = vmax.f32 %v7213, 0.0
  %v7219 = vmax.f32 %v7214, 0.0
  %v7220 = vmax.f32 %v7215, 0.0
  %v7221 = vmax.f32 %v7216, 0.0
  %v7222 = vpack.c.bf16 %v7218, %v7217
  %v7223 = vpack.c.bf16 %v7220, %v7219
  %v7224 = vpack.c.bf16 %v7221, %v7221
  %v7228 = vunpack.c.l.b16 %v7222
  %v7229 = vunpack.c.h.b16 %v7222
  %v7230 = vunpack.c.l.b16 %v7223
  %v7231 = vunpack.c.h.b16 %v7223
  %v7232 = vunpack.c.l.b16 %v7224
  %v7233 = vpack.c.b16 %v7228, %v7228
  %v7234 = vpack.c.b16 %v7229, %v7229
  %v7235 = vpack.c.b16 %v7230, %v7230
  %v7236 = vpack.c.b16 %v7231, %v7231
  %v7237 = vpack.c.b16 %v7232, %v7232
  %7243 = vst [vmem:[#allocation3 + $0x14] sm:$0xf] %v7233
  %7244 = vst [vmem:[#allocation3 + $0x18] sm:$0xf] %v7234
  %7245 = vst [vmem:[#allocation3 + $0x1c] sm:$0xf] %v7235
  %7246 = vst [vmem:[#allocation3 + $0x20] sm:$0xf] %v7236
  %7247 = vst [vmem:[#allocation3 + $0x24] sm:$0xf] %v7237
  %v7248 = vld [vmem:[#allocation2 + $0xd0] sm:$0xf]
  %v7249 = vld [vmem:[#allocation2 + $0xd4] sm:$0xf]
  %v7250 = vld [vmem:[#allocation2 + $0xd8] sm:$0xf]
  %v7251 = vld [vmem:[#allocation2 + $0xdc] sm:$0xf]
  %v7252 = vld [vmem:[#allocation2 + $0xe0] sm:$0xf]
  %v7253 = vld [vmem:[#allocation2 + $0xe4] sm:$0xf]
  %v7254 = vld [vmem:[#allocation2 + $0xe8] sm:$0xf]
  %v7255 = vld [vmem:[#allocation2 + $0xec] sm:$0xf]
  %v7256 = vld [vmem:[#allocation2 + $0xf0] sm:$0xf]
  %v7257 = vld [vmem:[#allocation2 + $0xf4] sm:$0xf]
  %v7258 = vld [vmem:[#allocation2 + $0xf8] sm:$0xf]
  %v7259 = vld [vmem:[#allocation2 + $0xfc] sm:$0xf]
  %v7260 = vld [vmem:[#allocation2 + $0x100] sm:$0xf]
  %v7261 = vld [vmem:[#allocation2 + $0x104] sm:$0xf]
  %v7262 = vld [vmem:[#allocation2 + $0x108] sm:$0xf]
  %v7263 = vld [vmem:[#allocation2 + $0x10c] sm:$0xf]
  %v7264 = vld [vmem:[#allocation2 + $0x110] sm:$0xf]
  %v7265 = vld [vmem:[#allocation2 + $0x114] sm:$0xf]
  %v7266 = vld [vmem:[#allocation2 + $0x118] sm:$0xf]
  %v7267 = vld [vmem:[#allocation2 + $0x11c] sm:$0xf]
  %v7268 = vld [vmem:[#allocation2 + $0x120] sm:$0xf]
  %v7269 = vld [vmem:[#allocation2 + $0x124] sm:$0xf]
  %v7270 = vld [vmem:[#allocation2 + $0x128] sm:$0xf]
  %v7271 = vld [vmem:[#allocation2 + $0x12c] sm:$0xf]
  %v7272 = vld [vmem:[#allocation2 + $0x130] sm:$0xf]
  %v7273 = vld [vmem:[#allocation2 + $0x134] sm:$0xf]
  %v7274 = vld [vmem:[#allocation2 + $0x138] sm:$0xf]
  %v7275 = vld [vmem:[#allocation2 + $0x13c] sm:$0xf]
  %v7276 = vld [vmem:[#allocation2 + $0x140] sm:$0xf]
  %v7277 = vld [vmem:[#allocation2 + $0x144] sm:$0xf]
  %v7278 = vld [vmem:[#allocation2 + $0x148] sm:$0xf]
  %v7279 = vld [vmem:[#allocation2 + $0x14c] sm:$0xf]
  %v7280 = vld [vmem:[#allocation2 + $0x150] sm:$0xf]
  %v7281 = vld [vmem:[#allocation2 + $0x154] sm:$0xf]
  %v7282 = vld [vmem:[#allocation2 + $0x158] sm:$0xf]
  %v7283 = vld [vmem:[#allocation2 + $0x15c] sm:$0xf]
  %v7284 = vld [vmem:[#allocation2 + $0x160] sm:$0xf]
  %v7285 = vld [vmem:[#allocation2 + $0x164] sm:$0xf]
  %v7286 = vld [vmem:[#allocation2 + $0x168] sm:$0xf]
  %v7287 = vld [vmem:[#allocation2 + $0x16c] sm:$0xf]
  %v7288 = vld [vmem:[#allocation2 + $0x170] sm:$0xf]
  %v7289 = vld [vmem:[#allocation2 + $0x174] sm:$0xf]
  %v7290 = vld [vmem:[#allocation2 + $0x178] sm:$0xf]
  %v7291 = vld [vmem:[#allocation2 + $0x17c] sm:$0xf]
  %v7292 = vld [vmem:[#allocation2 + $0x180] sm:$0xf]
  %v7293 = vld [vmem:[#allocation2 + $0x184] sm:$0xf]
  %v7294 = vld [vmem:[#allocation2 + $0x188] sm:$0xf]
  %v7295 = vld [vmem:[#allocation2 + $0x18c] sm:$0xf]
  %v7296 = vld [vmem:[#allocation2 + $0x190] sm:$0xf]
  %v7297 = vld [vmem:[#allocation2 + $0x194] sm:$0xf]
  %v7298 = vld [vmem:[#allocation2 + $0x198] sm:$0xf]
  %v7299 = vld [vmem:[#allocation2 + $0x19c] sm:$0xf]
  %v7352 = vunpack.c.l.b16 %v7248
  %v7353 = vunpack.c.l.b16 %v7249
  %v7354 = vunpack.c.l.b16 %v7250
  %v7355 = vunpack.c.l.b16 %v7251
  %v7356 = vunpack.c.l.b16 %v7252
  %v7357 = vunpack.c.l.b16 %v7253
  %v7358 = vunpack.c.l.b16 %v7254
  %v7359 = vunpack.c.l.b16 %v7255
  %v7360 = vunpack.c.l.b16 %v7256
  %v7361 = vunpack.c.l.b16 %v7257
  %v7362 = vunpack.c.l.b16 %v7258
  %v7363 = vunpack.c.l.b16 %v7259
  %v7364 = vunpack.c.l.b16 %v7260
  %v7365 = vunpack.c.l.b16 %v7261
  %v7366 = vunpack.c.l.b16 %v7262
  %v7367 = vunpack.c.l.b16 %v7263
  %v7368 = vunpack.c.l.b16 %v7264
  %v7369 = vunpack.c.l.b16 %v7265
  %v7370 = vunpack.c.l.b16 %v7266
  %v7371 = vunpack.c.l.b16 %v7267
  %v7372 = vunpack.c.l.b16 %v7268
  %v7373 = vunpack.c.l.b16 %v7269
  %v7374 = vunpack.c.l.b16 %v7270
  %v7375 = vunpack.c.l.b16 %v7271
  %v7376 = vunpack.c.l.b16 %v7272
  %v7377 = vunpack.c.l.b16 %v7273
  %v7378 = vunpack.c.l.b16 %v7274
  %v7379 = vunpack.c.l.b16 %v7275
  %v7380 = vunpack.c.l.b16 %v7276
  %v7381 = vunpack.c.l.b16 %v7277
  %v7382 = vunpack.c.l.b16 %v7278
  %v7383 = vunpack.c.l.b16 %v7279
  %v7384 = vunpack.c.l.b16 %v7280
  %v7385 = vunpack.c.l.b16 %v7281
  %v7386 = vunpack.c.l.b16 %v7282
  %v7387 = vunpack.c.l.b16 %v7283
  %v7388 = vunpack.c.l.b16 %v7284
  %v7389 = vunpack.c.l.b16 %v7285
  %v7390 = vunpack.c.l.b16 %v7286
  %v7391 = vunpack.c.l.b16 %v7287
  %v7392 = vunpack.c.l.b16 %v7288
  %v7393 = vunpack.c.l.b16 %v7289
  %v7394 = vunpack.c.l.b16 %v7290
  %v7395 = vunpack.c.l.b16 %v7291
  %v7396 = vunpack.c.l.b16 %v7292
  %v7397 = vunpack.c.l.b16 %v7293
  %v7398 = vunpack.c.l.b16 %v7294
  %v7399 = vunpack.c.l.b16 %v7295
  %v7400 = vunpack.c.l.b16 %v7296
  %v7401 = vunpack.c.l.b16 %v7297
  %v7402 = vunpack.c.l.b16 %v7298
  %v7403 = vunpack.c.l.b16 %v7299
  %v7404 = vpack.c.b16 %v7353, %v7352
  %v7405 = vpack.c.b16 %v7355, %v7354
  %v7406 = vpack.c.b16 %v7357, %v7356
  %v7407 = vpack.c.b16 %v7359, %v7358
  %v7408 = vpack.c.b16 %v7361, %v7360
  %v7409 = vpack.c.b16 %v7363, %v7362
  %v7410 = vpack.c.b16 %v7365, %v7364
  %v7411 = vpack.c.b16 %v7367, %v7366
  %v7412 = vpack.c.b16 %v7369, %v7368
  %v7413 = vpack.c.b16 %v7371, %v7370
  %v7414 = vpack.c.b16 %v7373, %v7372
  %v7415 = vpack.c.b16 %v7375, %v7374
  %v7416 = vpack.c.b16 %v7377, %v7376
  %v7417 = vpack.c.b16 %v7379, %v7378
  %v7418 = vpack.c.b16 %v7381, %v7380
  %v7419 = vpack.c.b16 %v7383, %v7382
  %v7420 = vpack.c.b16 %v7385, %v7384
  %v7421 = vpack.c.b16 %v7387, %v7386
  %v7422 = vpack.c.b16 %v7389, %v7388
  %v7423 = vpack.c.b16 %v7391, %v7390
  %v7424 = vpack.c.b16 %v7393, %v7392
  %v7425 = vpack.c.b16 %v7395, %v7394
  %v7426 = vpack.c.b16 %v7397, %v7396
  %v7427 = vpack.c.b16 %v7399, %v7398
  %v7428 = vpack.c.b16 %v7401, %v7400
  %v7429 = vpack.c.b16 %v7403, %v7402
  %7456 = vmatprep.subr.bf16.mxu0 0
  %7457 = vmatpush1.bf16.msra.mxu0 %v7404
  %7458 = vmatprep.subr.bf16.mxu0 0
  %7459 = vmatpush1.bf16.msra.mxu0 %v7405
  %7460 = vmatprep.subr.bf16.mxu0 0
  %7461 = vmatpush1.bf16.msra.mxu0 %v7406
  %7462 = vmatprep.subr.bf16.mxu0 0
  %7463 = vmatpush1.bf16.msra.mxu0 %v7407
  %7464 = vmatprep.subr.bf16.mxu0 0
  %7465 = vmatpush1.bf16.msra.mxu0 %v7408
  %7466 = vmatprep.subr.bf16.mxu0 0
  %7467 = vmatpush1.bf16.msra.mxu0 %v7409
  %7468 = vmatprep.subr.bf16.mxu0 0
  %7469 = vmatpush1.bf16.msra.mxu0 %v7410
  %7470 = vmatprep.subr.bf16.mxu0 0
  %7471 = vmatpush1.bf16.msra.mxu0 %v7411
  %7472 = vmatprep.subr.bf16.mxu0 0
  %7473 = vmatpush1.bf16.msra.mxu0 %v7412
  %7474 = vmatprep.subr.bf16.mxu0 0
  %7475 = vmatpush1.bf16.msra.mxu0 %v7413
  %7476 = vmatprep.subr.bf16.mxu0 0
  %7477 = vmatpush1.bf16.msra.mxu0 %v7414
  %7478 = vmatprep.subr.bf16.mxu0 0
  %7479 = vmatpush1.bf16.msra.mxu0 %v7415
  %7480 = vmatprep.subr.bf16.mxu0 0
  %7481 = vmatpush1.bf16.msra.mxu0 %v7416
  %7482 = vmatprep.subr.bf16.mxu0 0
  %7483 = vmatpush1.bf16.msra.mxu0 %v7417
  %7484 = vmatprep.subr.bf16.mxu0 0
  %7485 = vmatpush1.bf16.msra.mxu0 %v7418
  %7486 = vmatprep.subr.bf16.mxu0 0
  %7487 = vmatpush1.bf16.msra.mxu0 %v7419
  %7488 = vmatprep.mubr.bf16.mxu0 %v6230
  %7489 = vmatmul.mubr.bf16.gmra.mrb[0].mxu0 %v6229
  %v7490 = vpop.f32.mrb[0].mxu0
  %v7491 = vadd.f32 0.0, %v7490
  %v7492 = vpop.f32.mrb[0].mxu0
  %v7493 = vpop.f32.mrb[0].mxu0
  %v7494 = vadd.f32 0.0, %v7493
  %v7495 = vpop.f32.mrb[0].mxu0
  %7496 = vmatprep.mubr.bf16.mxu0 %v6234
  %7497 = vmatmul.mubr.bf16.gmra.mrb[0].mxu0 %v6233
  %v7498 = vpop.f32.mrb[0].mxu0
  %v7499 = vadd.f32 0.0, %v7498
  %v7500 = vpop.f32.mrb[0].mxu0
  %v7501 = vpop.f32.mrb[0].mxu0
  %v7502 = vadd.f32 0.0, %v7501
  %v7503 = vpop.f32.mrb[0].mxu0
  %7504 = vmatprep.mubr.bf16.mxu0 %v6238
  %7505 = vmatmul.mubr.bf16.gmra.mrb[0].mxu0 %v6237
  %v7506 = vpop.f32.mrb[0].mxu0
  %v7507 = vadd.f32 0.0, %v7506
  %v7508 = vpop.f32.mrb[0].mxu0
  %v7509 = vpop.f32.mrb[0].mxu0
  %v7510 = vadd.f32 0.0, %v7509
  %v7511 = vpop.f32.mrb[0].mxu0
  %7512 = vmatprep.mubr.bf16.mxu0 %v6242
  %7513 = vmatmul.mubr.bf16.gmra.mrb[0].mxu0 %v6241
  %v7514 = vpop.f32.mrb[0].mxu0
  %v7515 = vadd.f32 0.0, %v7514
  %v7516 = vpop.f32.mrb[0].mxu0
  %v7517 = vpop.f32.mrb[0].mxu0
  %v7518 = vadd.f32 0.0, %v7517
  %v7519 = vpop.f32.mrb[0].mxu0
  %7520 = vmatprep.mubr.bf16.mxu0 %v6246
  %7521 = vmatmul.mubr.bf16.gmra.mrb[0].mxu0 %v6245
  %v7522 = vpop.f32.mrb[0].mxu0
  %v7523 = vadd.f32 0.0, %v7522
  %v7524 = vpop.f32.mrb[0].mxu0
  %v7525 = vpop.f32.mrb[0].mxu0
  %v7526 = vadd.f32 0.0, %v7525
  %v7527 = vpop.f32.mrb[0].mxu0
  %7528 = vmatprep.mubr.bf16.mxu0 %v6250
  %7529 = vmatmul.mubr.bf16.gmra.mrb[0].mxu0 %v6249
  %v7530 = vpop.f32.mrb[0].mxu0
  %v7531 = vadd.f32 0.0, %v7530
  %v7532 = vpop.f32.mrb[0].mxu0
  %v7533 = vpop.f32.mrb[0].mxu0
  %v7534 = vadd.f32 0.0, %v7533
  %v7535 = vpop.f32.mrb[0].mxu0
  %7536 = vmatprep.mubr.bf16.mxu0 %v6254
  %7537 = vmatmul.mubr.bf16.gmra.mrb[0].mxu0 %v6253
  %v7538 = vpop.f32.mrb[0].mxu0
  %v7539 = vadd.f32 0.0, %v7538
  %v7540 = vpop.f32.mrb[0].mxu0
  %v7541 = vpop.f32.mrb[0].mxu0
  %v7542 = vadd.f32 0.0, %v7541
  %v7543 = vpop.f32.mrb[0].mxu0
  %7544 = vmatprep.mubr.bf16.mxu0 %v6258
  %7545 = vmatmul.mubr.bf16.gmra.mrb[0].mxu0 %v6257
  %v7546 = vpop.f32.mrb[0].mxu0
  %v7547 = vadd.f32 0.0, %v7546
  %v7548 = vpop.f32.mrb[0].mxu0
  %v7549 = vpop.f32.mrb[0].mxu0
  %v7550 = vadd.f32 0.0, %v7549
  %v7551 = vpop.f32.mrb[0].mxu0
  %7552 = vmatprep.mubr.bf16.mxu0 %v6262
  %7553 = vmatmul.mubr.bf16.gmra.mrb[0].mxu0 %v6261
  %v7554 = vpop.f32.mrb[0].mxu0
  %v7555 = vadd.f32 0.0, %v7554
  %v7556 = vpop.f32.mrb[0].mxu0
  %v7557 = vpop.f32.mrb[0].mxu0
  %v7558 = vadd.f32 0.0, %v7557
  %v7559 = vpop.f32.mrb[0].mxu0
  %7560 = vmatprep.mubr.bf16.mxu0 %v6266
  %7561 = vmatmul.mubr.bf16.gmra.mrb[0].mxu0 %v6265
  %v7562 = vpop.f32.mrb[0].mxu0
  %v7563 = vadd.f32 0.0, %v7562
  %v7564 = vpop.f32.mrb[0].mxu0
  %v7565 = vpop.f32.mrb[0].mxu0
  %v7566 = vadd.f32 0.0, %v7565
  %v7567 = vpop.f32.mrb[0].mxu0
  %7568 = vdwg.mxu0
  %7569 = vmatprep.subr.bf16.mxu0 0
  %7570 = vmatpush1.bf16.msra.mxu0 %v7420
  %7571 = vmatprep.subr.bf16.mxu0 0
  %7572 = vmatpush1.bf16.msra.mxu0 %v7421
  %7573 = vmatprep.subr.bf16.mxu0 0
  %7574 = vmatpush1.bf16.msra.mxu0 %v7422
  %7575 = vmatprep.subr.bf16.mxu0 0
  %7576 = vmatpush1.bf16.msra.mxu0 %v7423
  %7577 = vmatprep.subr.bf16.mxu0 0
  %7578 = vmatpush1.bf16.msra.mxu0 %v7424
  %7579 = vmatprep.subr.bf16.mxu0 0
  %7580 = vmatpush1.bf16.msra.mxu0 %v7425
  %7581 = vmatprep.subr.bf16.mxu0 0
  %7582 = vmatpush1.bf16.msra.mxu0 %v7426
  %7583 = vmatprep.subr.bf16.mxu0 0
  %7584 = vmatpush1.bf16.msra.mxu0 %v7427
  %7585 = vmatprep.subr.bf16.mxu0 0
  %7586 = vmatpush1.bf16.msra.mxu0 %v7428
  %7587 = vmatprep.subr.bf16.mxu0 0
  %7588 = vmatpush1.bf16.msra.mxu0 %v7429
  %7589 = vmatprep.subr.bf16.mxu0 0
  %7590 = vmatpush1.bf16.msra.mxu0 0
  %7591 = vmatprep.subr.bf16.mxu0 0
  %7592 = vmatpush1.bf16.msra.mxu0 0
  %7593 = vmatprep.subr.bf16.mxu0 0
  %7594 = vmatpush1.bf16.msra.mxu0 0
  %7595 = vmatprep.subr.bf16.mxu0 0
  %7596 = vmatpush1.bf16.msra.mxu0 0
  %7597 = vmatprep.subr.bf16.mxu0 0
  %7598 = vmatpush1.bf16.msra.mxu0 0
  %7599 = vmatprep.subr.bf16.mxu0 0
  %7600 = vmatpush1.bf16.msra.mxu0 0
  %7601 = vmatprep.mubr.bf16.mxu0 %v6457
  %7602 = vmatmul.mubr.bf16.gmra.mrb[0].mxu0 %v6231
  %v7603 = vpop.f32.mrb[0].mxu0
  %v7604 = vadd.f32 %v7491, %v7603
  %v7605 = vpop.f32.mrb[0].mxu0
  %v7606 = vpop.f32.mrb[0].mxu0
  %v7607 = vadd.f32 %v7494, %v7606
  %v7608 = vpop.f32.mrb[0].mxu0
  %7609 = vmatprep.mubr.bf16.mxu0 %v6460
  %7610 = vmatmul.mubr.bf16.gmra.mrb[0].mxu0 %v6235
  %v7611 = vpop.f32.mrb[0].mxu0
  %v7612 = vadd.f32 %v7499, %v7611
  %v7613 = vpop.f32.mrb[0].mxu0
  %v7614 = vpop.f32.mrb[0].mxu0
  %v7615 = vadd.f32 %v7502, %v7614
  %v7616 = vpop.f32.mrb[0].mxu0
  %7617 = vmatprep.mubr.bf16.mxu0 %v6463
  %7618 = vmatmul.mubr.bf16.gmra.mrb[0].mxu0 %v6239
  %v7619 = vpop.f32.mrb[0].mxu0
  %v7620 = vadd.f32 %v7507, %v7619
  %v7621 = vpop.f32.mrb[0].mxu0
  %v7622 = vpop.f32.mrb[0].mxu0
  %v7623 = vadd.f32 %v7510, %v7622
  %v7624 = vpop.f32.mrb[0].mxu0
  %7625 = vmatprep.mubr.bf16.mxu0 %v6466
  %7626 = vmatmul.mubr.bf16.gmra.mrb[0].mxu0 %v6243
  %v7627 = vpop.f32.mrb[0].mxu0
  %v7628 = vadd.f32 %v7515, %v7627
  %v7629 = vpop.f32.mrb[0].mxu0
  %v7630 = vpop.f32.mrb[0].mxu0
  %v7631 = vadd.f32 %v7518, %v7630
  %v7632 = vpop.f32.mrb[0].mxu0
  %7633 = vmatprep.mubr.bf16.mxu0 %v6469
  %7634 = vmatmul.mubr.bf16.gmra.mrb[0].mxu0 %v6247
  %v7635 = vpop.f32.mrb[0].mxu0
  %v7636 = vadd.f32 %v7523, %v7635
  %v7637 = vpop.f32.mrb[0].mxu0
  %v7638 = vpop.f32.mrb[0].mxu0
  %v7639 = vadd.f32 %v7526, %v7638
  %v7640 = vpop.f32.mrb[0].mxu0
  %7641 = vmatprep.mubr.bf16.mxu0 %v6472
  %7642 = vmatmul.mubr.bf16.gmra.mrb[0].mxu0 %v6251
  %v7643 = vpop.f32.mrb[0].mxu0
  %v7644 = vadd.f32 %v7531, %v7643
  %v7645 = vpop.f32.mrb[0].mxu0
  %v7646 = vpop.f32.mrb[0].mxu0
  %v7647 = vadd.f32 %v7534, %v7646
  %v7648 = vpop.f32.mrb[0].mxu0
  %7649 = vmatprep.mubr.bf16.mxu0 %v6475
  %7650 = vmatmul.mubr.bf16.gmra.mrb[0].mxu0 %v6255
  %v7651 = vpop.f32.mrb[0].mxu0
  %v7652 = vadd.f32 %v7539, %v7651
  %v7653 = vpop.f32.mrb[0].mxu0
  %v7654 = vpop.f32.mrb[0].mxu0
  %v7655 = vadd.f32 %v7542, %v7654
  %v7656 = vpop.f32.mrb[0].mxu0
  %7657 = vmatprep.mubr.bf16.mxu0 %v6478
  %7658 = vmatmul.mubr.bf16.gmra.mrb[0].mxu0 %v6259
  %v7659 = vpop.f32.mrb[0].mxu0
  %v7660 = vadd.f32 %v7547, %v7659
  %v7661 = vpop.f32.mrb[0].mxu0
  %v7662 = vpop.f32.mrb[0].mxu0
  %v7663 = vadd.f32 %v7550, %v7662
  %v7664 = vpop.f32.mrb[0].mxu0
  %7665 = vmatprep.mubr.bf16.mxu0 %v6481
  %7666 = vmatmul.mubr.bf16.gmra.mrb[0].mxu0 %v6263
  %v7667 = vpop.f32.mrb[0].mxu0
  %v7668 = vadd.f32 %v7555, %v7667
  %v7669 = vpop.f32.mrb[0].mxu0
  %v7670 = vpop.f32.mrb[0].mxu0
  %v7671 = vadd.f32 %v7558, %v7670
  %v7672 = vpop.f32.mrb[0].mxu0
  %7673 = vmatprep.mubr.bf16.mxu0 %v6484
  %7674 = vmatmul.mubr.bf16.gmra.mrb[0].mxu0 %v6267
  %v7675 = vpop.f32.mrb[0].mxu0
  %v7676 = vadd.f32 %v7563, %v7675
  %v7677 = vpop.f32.mrb[0].mxu0
  %v7678 = vpop.f32.mrb[0].mxu0
  %v7679 = vadd.f32 %v7566, %v7678
  %v7680 = vpop.f32.mrb[0].mxu0
  %7681 = vdwg.mxu0
  %v7682 = vmax.f32 %v7604, %v7644
  %v7683 = vmax.f32 %v7607, %v7647
  %v7684 = vmax.f32 %v7612, %v7652
  %v7685 = vmax.f32 %v7615, %v7655
  %v7686 = vmax.f32 %v7620, %v7660
  %v7687 = vmax.f32 %v7623, %v7663
  %v7688 = vmax.f32 %v7628, %v7668
  %v7689 = vmax.f32 %v7631, %v7671
  %v7690 = vmax.f32 %v7636, %v7676
  %v7691 = vmax.f32 %v7639, %v7679
  %v7692 = vmax.f32 %v7682, %v7683
  %v7693 = vmax.f32 %v7684, %v7685
  %v7694 = vmax.f32 %v7686, %v7687
  %v7695 = vmax.f32 %v7688, %v7689
  %v7696 = vmax.f32 %v7690, %v7691
  %v7697 = vadd.f32 %v7692, %v211
  %v7698 = vadd.f32 %v7693, %v216
  %v7699 = vadd.f32 %v7694, %v221
  %v7700 = vadd.f32 %v7695, %v226
  %v7701 = vadd.f32 %v7696, %v231
  %v7702 = vmax.f32 %v7697, 0.0
  %v7703 = vmax.f32 %v7698, 0.0
  %v7704 = vmax.f32 %v7699, 0.0
  %v7705 = vmax.f32 %v7700, 0.0
  %v7706 = vmax.f32 %v7701, 0.0
  %v7707 = vpack.c.bf16 %v7703, %v7702
  %v7708 = vpack.c.bf16 %v7705, %v7704
  %v7709 = vpack.c.bf16 %v7706, %v7706
  %v7713 = vunpack.c.l.b16 %v7707
  %v7714 = vunpack.c.h.b16 %v7707
  %v7715 = vunpack.c.l.b16 %v7708
  %v7716 = vunpack.c.h.b16 %v7708
  %v7717 = vunpack.c.l.b16 %v7709
  %v7718 = vpack.c.b16 %v7713, %v7713
  %v7719 = vpack.c.b16 %v7714, %v7714
  %v7720 = vpack.c.b16 %v7715, %v7715
  %v7721 = vpack.c.b16 %v7716, %v7716
  %v7722 = vpack.c.b16 %v7717, %v7717
  %7728 = vst [vmem:[#allocation3 + $0x28] sm:$0xf] %v7718
  %7729 = vst [vmem:[#allocation3 + $0x2c] sm:$0xf] %v7719
  %7730 = vst [vmem:[#allocation3 + $0x30] sm:$0xf] %v7720
  %7731 = vst [vmem:[#allocation3 + $0x34] sm:$0xf] %v7721
  %7732 = vst [vmem:[#allocation3 + $0x38] sm:$0xf] %v7722
  %v7733 = vld [vmem:[#allocation2 + $0x138] sm:$0xf]
  %v7734 = vld [vmem:[#allocation2 + $0x13c] sm:$0xf]
  %v7735 = vld [vmem:[#allocation2 + $0x140] sm:$0xf]
  %v7736 = vld [vmem:[#allocation2 + $0x144] sm:$0xf]
  %v7737 = vld [vmem:[#allocation2 + $0x148] sm:$0xf]
  %v7738 = vld [vmem:[#allocation2 + $0x14c] sm:$0xf]
  %v7739 = vld [vmem:[#allocation2 + $0x150] sm:$0xf]
  %v7740 = vld [vmem:[#allocation2 + $0x154] sm:$0xf]
  %v7741 = vld [vmem:[#allocation2 + $0x158] sm:$0xf]
  %v7742 = vld [vmem:[#allocation2 + $0x15c] sm:$0xf]
  %v7743 = vld [vmem:[#allocation2 + $0x160] sm:$0xf]
  %v7744 = vld [vmem:[#allocation2 + $0x164] sm:$0xf]
  %v7745 = vld [vmem:[#allocation2 + $0x168] sm:$0xf]
  %v7746 = vld [vmem:[#allocation2 + $0x16c] sm:$0xf]
  %v7747 = vld [vmem:[#allocation2 + $0x170] sm:$0xf]
  %v7748 = vld [vmem:[#allocation2 + $0x174] sm:$0xf]
  %v7749 = vld [vmem:[#allocation2 + $0x178] sm:$0xf]
  %v7750 = vld [vmem:[#allocation2 + $0x17c] sm:$0xf]
  %v7751 = vld [vmem:[#allocation2 + $0x180] sm:$0xf]
  %v7752 = vld [vmem:[#allocation2 + $0x184] sm:$0xf]
  %v7753 = vld [vmem:[#allocation2 + $0x188] sm:$0xf]
  %v7754 = vld [vmem:[#allocation2 + $0x18c] sm:$0xf]
  %v7755 = vld [vmem:[#allocation2 + $0x190] sm:$0xf]
  %v7756 = vld [vmem:[#allocation2 + $0x194] sm:$0xf]
  %v7757 = vld [vmem:[#allocation2 + $0x198] sm:$0xf]
  %v7758 = vld [vmem:[#allocation2 + $0x19c] sm:$0xf]
  %v7759 = vld [vmem:[#allocation2 + $0x1a0] sm:$0xf]
  %v7760 = vld [vmem:[#allocation2 + $0x1a4] sm:$0xf]
  %v7761 = vld [vmem:[#allocation2 + $0x1a8] sm:$0xf]
  %v7762 = vld [vmem:[#allocation2 + $0x1ac] sm:$0xf]
  %v7763 = vld [vmem:[#allocation2 + $0x1b0] sm:$0xf]
  %v7764 = vld [vmem:[#allocation2 + $0x1b4] sm:$0xf]
  %v7765 = vld [vmem:[#allocation2 + $0x1b8] sm:$0xf]
  %v7766 = vld [vmem:[#allocation2 + $0x1bc] sm:$0xf]
  %v7767 = vld [vmem:[#allocation2 + $0x1c0] sm:$0xf]
  %v7768 = vld [vmem:[#allocation2 + $0x1c4] sm:$0xf]
  %v7769 = vld [vmem:[#allocation2 + $0x1c8] sm:$0xf]
  %v7770 = vld [vmem:[#allocation2 + $0x1cc] sm:$0xf]
  %v7771 = vld [vmem:[#allocation2 + $0x1d0] sm:$0xf]
  %v7772 = vld [vmem:[#allocation2 + $0x1d4] sm:$0xf]
  %v7773 = vld [vmem:[#allocation2 + $0x1d8] sm:$0xf]
  %v7774 = vld [vmem:[#allocation2 + $0x1dc] sm:$0xf]
  %v7775 = vld [vmem:[#allocation2 + $0x1e0] sm:$0xf]
  %v7776 = vld [vmem:[#allocation2 + $0x1e4] sm:$0xf]
  %v7777 = vld [vmem:[#allocation2 + $0x1e8] sm:$0xf]
  %v7778 = vld [vmem:[#allocation2 + $0x1ec] sm:$0xf]
  %v7779 = vld [vmem:[#allocation2 + $0x1f0] sm:$0xf]
  %v7780 = vld [vmem:[#allocation2 + $0x1f4] sm:$0xf]
  %v7781 = vld [vmem:[#allocation2 + $0x1f8] sm:$0xf]
  %v7782 = vld [vmem:[#allocation2 + $0x1fc] sm:$0xf]
  %v7783 = vld [vmem:[#allocation2 + $0x200] sm:$0xf]
  %v7784 = vld [vmem:[#allocation2 + $0x204] sm:$0xf]
  %v7837 = vunpack.c.l.b16 %v7733
  %v7838 = vunpack.c.l.b16 %v7734
  %v7839 = vunpack.c.l.b16 %v7735
  %v7840 = vunpack.c.l.b16 %v7736
  %v7841 = vunpack.c.l.b16 %v7737
  %v7842 = vunpack.c.l.b16 %v7738
  %v7843 = vunpack.c.l.b16 %v7739
  %v7844 = vunpack.c.l.b16 %v7740
  %v7845 = vunpack.c.l.b16 %v7741
  %v7846 = vunpack.c.l.b16 %v7742
  %v7847 = vunpack.c.l.b16 %v7743
  %v7848 = vunpack.c.l.b16 %v7744
  %v7849 = vunpack.c.l.b16 %v7745
  %v7850 = vunpack.c.l.b16 %v7746
  %v7851 = vunpack.c.l.b16 %v7747
  %v7852 = vunpack.c.l.b16 %v7748
  %v7853 = vunpack.c.l.b16 %v7749
  %v7854 = vunpack.c.l.b16 %v7750
  %v7855 = vunpack.c.l.b16 %v7751
  %v7856 = vunpack.c.l.b16 %v7752
  %v7857 = vunpack.c.l.b16 %v7753
  %v7858 = vunpack.c.l.b16 %v7754
  %v7859 = vunpack.c.l.b16 %v7755
  %v7860 = vunpack.c.l.b16 %v7756
  %v7861 = vunpack.c.l.b16 %v7757
  %v7862 = vunpack.c.l.b16 %v7758
  %v7863 = vunpack.c.l.b16 %v7759
  %v7864 = vunpack.c.l.b16 %v7760
  %v7865 = vunpack.c.l.b16 %v7761
  %v7866 = vunpack.c.l.b16 %v7762
  %v7867 = vunpack.c.l.b16 %v7763
  %v7868 = vunpack.c.l.b16 %v7764
  %v7869 = vunpack.c.l.b16 %v7765
  %v7870 = vunpack.c.l.b16 %v7766
  %v7871 = vunpack.c.l.b16 %v7767
  %v7872 = vunpack.c.l.b16 %v7768
  %v7873 = vunpack.c.l.b16 %v7769
  %v7874 = vunpack.c.l.b16 %v7770
  %v7875 = vunpack.c.l.b16 %v7771
  %v7876 = vunpack.c.l.b16 %v7772
  %v7877 = vunpack.c.l.b16 %v7773
  %v7878 = vunpack.c.l.b16 %v7774
  %v7879 = vunpack.c.l.b16 %v7775
  %v7880 = vunpack.c.l.b16 %v7776
  %v7881 = vunpack.c.l.b16 %v7777
  %v7882 = vunpack.c.l.b16 %v7778
  %v7883 = vunpack.c.l.b16 %v7779
  %v7884 = vunpack.c.l.b16 %v7780
  %v7885 = vunpack.c.l.b16 %v7781
  %v7886 = vunpack.c.l.b16 %v7782
  %v7887 = vunpack.c.l.b16 %v7783
  %v7888 = vunpack.c.l.b16 %v7784
  %v7889 = vpack.c.b16 %v7838, %v7837
  %v7890 = vpack.c.b16 %v7840, %v7839
  %v7891 = vpack.c.b16 %v7842, %v7841
  %v7892 = vpack.c.b16 %v7844, %v7843
  %v7893 = vpack.c.b16 %v7846, %v7845
  %v7894 = vpack.c.b16 %v7848, %v7847
  %v7895 = vpack.c.b16 %v7850, %v7849
  %v7896 = vpack.c.b16 %v7852, %v7851
  %v7897 = vpack.c.b16 %v7854, %v7853
  %v7898 = vpack.c.b16 %v7856, %v7855
  %v7899 = vpack.c.b16 %v7858, %v7857
  %v7900 = vpack.c.b16 %v7860, %v7859
  %v7901 = vpack.c.b16 %v7862, %v7861
  %v7902 = vpack.c.b16 %v7864, %v7863
  %v7903 = vpack.c.b16 %v7866, %v7865
  %v7904 = vpack.c.b16 %v7868, %v7867
  %v7905 = vpack.c.b16 %v7870, %v7869
  %v7906 = vpack.c.b16 %v7872, %v7871
  %v7907 = vpack.c.b16 %v7874, %v7873
  %v7908 = vpack.c.b16 %v7876, %v7875
  %v7909 = vpack.c.b16 %v7878, %v7877
  %v7910 = vpack.c.b16 %v7880, %v7879
  %v7911 = vpack.c.b16 %v7882, %v7881
  %v7912 = vpack.c.b16 %v7884, %v7883
  %v7913 = vpack.c.b16 %v7886, %v7885
  %v7914 = vpack.c.b16 %v7888, %v7887
  %7941 = vmatprep.subr.bf16.mxu0 0
  %7942 = vmatpush1.bf16.msra.mxu0 %v7889
  %7943 = vmatprep.subr.bf16.mxu0 0
  %7944 = vmatpush1.bf16.msra.mxu0 %v7890
  %7945 = vmatprep.subr.bf16.mxu0 0
  %7946 = vmatpush1.bf16.msra.mxu0 %v7891
  %7947 = vmatprep.subr.bf16.mxu0 0
  %7948 = vmatpush1.bf16.msra.mxu0 %v7892
  %7949 = vmatprep.subr.bf16.mxu0 0
  %7950 = vmatpush1.bf16.msra.mxu0 %v7893
  %7951 = vmatprep.subr.bf16.mxu0 0
  %7952 = vmatpush1.bf16.msra.mxu0 %v7894
  %7953 = vmatprep.subr.bf16.mxu0 0
  %7954 = vmatpush1.bf16.msra.mxu0 %v7895
  %7955 = vmatprep.subr.bf16.mxu0 0
  %7956 = vmatpush1.bf16.msra.mxu0 %v7896
  %7957 = vmatprep.subr.bf16.mxu0 0
  %7958 = vmatpush1.bf16.msra.mxu0 %v7897
  %7959 = vmatprep.subr.bf16.mxu0 0
  %7960 = vmatpush1.bf16.msra.mxu0 %v7898
  %7961 = vmatprep.subr.bf16.mxu0 0
  %7962 = vmatpush1.bf16.msra.mxu0 %v7899
  %7963 = vmatprep.subr.bf16.mxu0 0
  %7964 = vmatpush1.bf16.msra.mxu0 %v7900
  %7965 = vmatprep.subr.bf16.mxu0 0
  %7966 = vmatpush1.bf16.msra.mxu0 %v7901
  %7967 = vmatprep.subr.bf16.mxu0 0
  %7968 = vmatpush1.bf16.msra.mxu0 %v7902
  %7969 = vmatprep.subr.bf16.mxu0 0
  %7970 = vmatpush1.bf16.msra.mxu0 %v7903
  %7971 = vmatprep.subr.bf16.mxu0 0
  %7972 = vmatpush1.bf16.msra.mxu0 %v7904
  %7973 = vmatprep.mubr.bf16.mxu0 %v6230
  %7974 = vmatmul.mubr.bf16.gmra.mrb[0].mxu0 %v6229
  %v7975 = vpop.f32.mrb[0].mxu0
  %v7976 = vadd.f32 0.0, %v7975
  %v7977 = vpop.f32.mrb[0].mxu0
  %v7978 = vpop.f32.mrb[0].mxu0
  %v7979 = vadd.f32 0.0, %v7978
  %v7980 = vpop.f32.mrb[0].mxu0
  %7981 = vmatprep.mubr.bf16.mxu0 %v6234
  %7982 = vmatmul.mubr.bf16.gmra.mrb[0].mxu0 %v6233
  %v7983 = vpop.f32.mrb[0].mxu0
  %v7984 = vadd.f32 0.0, %v7983
  %v7985 = vpop.f32.mrb[0].mxu0
  %v7986 = vpop.f32.mrb[0].mxu0
  %v7987 = vadd.f32 0.0, %v7986
  %v7988 = vpop.f32.mrb[0].mxu0
  %7989 = vmatprep.mubr.bf16.mxu0 %v6238
  %7990 = vmatmul.mubr.bf16.gmra.mrb[0].mxu0 %v6237
  %v7991 = vpop.f32.mrb[0].mxu0
  %v7992 = vadd.f32 0.0, %v7991
  %v7993 = vpop.f32.mrb[0].mxu0
  %v7994 = vpop.f32.mrb[0].mxu0
  %v7995 = vadd.f32 0.0, %v7994
  %v7996 = vpop.f32.mrb[0].mxu0
  %7997 = vmatprep.mubr.bf16.mxu0 %v6242
  %7998 = vmatmul.mubr.bf16.gmra.mrb[0].mxu0 %v6241
  %v7999 = vpop.f32.mrb[0].mxu0
  %v8000 = vadd.f32 0.0, %v7999
  %v8001 = vpop.f32.mrb[0].mxu0
  %v8002 = vpop.f32.mrb[0].mxu0
  %v8003 = vadd.f32 0.0, %v8002
  %v8004 = vpop.f32.mrb[0].mxu0
  %8005 = vmatprep.mubr.bf16.mxu0 %v6246
  %8006 = vmatmul.mubr.bf16.gmra.mrb[0].mxu0 %v6245
  %v8007 = vpop.f32.mrb[0].mxu0
  %v8008 = vadd.f32 0.0, %v8007
  %v8009 = vpop.f32.mrb[0].mxu0
  %v8010 = vpop.f32.mrb[0].mxu0
  %v8011 = vadd.f32 0.0, %v8010
  %v8012 = vpop.f32.mrb[0].mxu0
  %8013 = vmatprep.mubr.bf16.mxu0 %v6250
  %8014 = vmatmul.mubr.bf16.gmra.mrb[0].mxu0 %v6249
  %v8015 = vpop.f32.mrb[0].mxu0
  %v8016 = vadd.f32 0.0, %v8015
  %v8017 = vpop.f32.mrb[0].mxu0
  %v8018 = vpop.f32.mrb[0].mxu0
  %v8019 = vadd.f32 0.0, %v8018
  %v8020 = vpop.f32.mrb[0].mxu0
  %8021 = vmatprep.mubr.bf16.mxu0 %v6254
  %8022 = vmatmul.mubr.bf16.gmra.mrb[0].mxu0 %v6253
  %v8023 = vpop.f32.mrb[0].mxu0
  %v8024 = vadd.f32 0.0, %v8023
  %v8025 = vpop.f32.mrb[0].mxu0
  %v8026 = vpop.f32.mrb[0].mxu0
  %v8027 = vadd.f32 0.0, %v8026
  %v8028 = vpop.f32.mrb[0].mxu0
  %8029 = vmatprep.mubr.bf16.mxu0 %v6258
  %8030 = vmatmul.mubr.bf16.gmra.mrb[0].mxu0 %v6257
  %v8031 = vpop.f32.mrb[0].mxu0
  %v8032 = vadd.f32 0.0, %v8031
  %v8033 = vpop.f32.mrb[0].mxu0
  %v8034 = vpop.f32.mrb[0].mxu0
  %v8035 = vadd.f32 0.0, %v8034
  %v8036 = vpop.f32.mrb[0].mxu0
  %8037 = vmatprep.mubr.bf16.mxu0 %v6262
  %8038 = vmatmul.mubr.bf16.gmra.mrb[0].mxu0 %v6261
  %v8039 = vpop.f32.mrb[0].mxu0
  %v8040 = vadd.f32 0.0, %v8039
  %v8041 = vpop.f32.mrb[0].mxu0
  %v8042 = vpop.f32.mrb[0].mxu0
  %v8043 = vadd.f32 0.0, %v8042
  %v8044 = vpop.f32.mrb[0].mxu0
  %8045 = vmatprep.mubr.bf16.mxu0 %v6266
  %8046 = vmatmul.mubr.bf16.gmra.mrb[0].mxu0 %v6265
  %v8047 = vpop.f32.mrb[0].mxu0
  %v8048 = vadd.f32 0.0, %v8047
  %v8049 = vpop.f32.mrb[0].mxu0
  %v8050 = vpop.f32.mrb[0].mxu0
  %v8051 = vadd.f32 0.0, %v8050
  %v8052 = vpop.f32.mrb[0].mxu0
  %8053 = vdwg.mxu0
  %8054 = vmatprep.subr.bf16.mxu0 0
  %8055 = vmatpush1.bf16.msra.mxu0 %v7905
  %8056 = vmatprep.subr.bf16.mxu0 0
  %8057 = vmatpush1.bf16.msra.mxu0 %v7906
  %8058 = vmatprep.subr.bf16.mxu0 0
  %8059 = vmatpush1.bf16.msra.mxu0 %v7907
  %8060 = vmatprep.subr.bf16.mxu0 0
  %8061 = vmatpush1.bf16.msra.mxu0 %v7908
  %8062 = vmatprep.subr.bf16.mxu0 0
  %8063 = vmatpush1.bf16.msra.mxu0 %v7909
  %8064 = vmatprep.subr.bf16.mxu0 0
  %8065 = vmatpush1.bf16.msra.mxu0 %v7910
  %8066 = vmatprep.subr.bf16.mxu0 0
  %8067 = vmatpush1.bf16.msra.mxu0 %v7911
  %8068 = vmatprep.subr.bf16.mxu0 0
  %8069 = vmatpush1.bf16.msra.mxu0 %v7912
  %8070 = vmatprep.subr.bf16.mxu0 0
  %8071 = vmatpush1.bf16.msra.mxu0 %v7913
  %8072 = vmatprep.subr.bf16.mxu0 0
  %8073 = vmatpush1.bf16.msra.mxu0 %v7914
  %8074 = vmatprep.subr.bf16.mxu0 0
  %8075 = vmatpush1.bf16.msra.mxu0 0
  %8076 = vmatprep.subr.bf16.mxu0 0
  %8077 = vmatpush1.bf16.msra.mxu0 0
  %8078 = vmatprep.subr.bf16.mxu0 0
  %8079 = vmatpush1.bf16.msra.mxu0 0
  %8080 = vmatprep.subr.bf16.mxu0 0
  %8081 = vmatpush1.bf16.msra.mxu0 0
  %8082 = vmatprep.subr.bf16.mxu0 0
  %8083 = vmatpush1.bf16.msra.mxu0 0
  %8084 = vmatprep.subr.bf16.mxu0 0
  %8085 = vmatpush1.bf16.msra.mxu0 0
  %8086 = vmatprep.mubr.bf16.mxu0 %v6457
  %8087 = vmatmul.mubr.bf16.gmra.mrb[0].mxu0 %v6231
  %v8088 = vpop.f32.mrb[0].mxu0
  %v8089 = vadd.f32 %v7976, %v8088
  %v8090 = vpop.f32.mrb[0].mxu0
  %v8091 = vpop.f32.mrb[0].mxu0
  %v8092 = vadd.f32 %v7979, %v8091
  %v8093 = vpop.f32.mrb[0].mxu0
  %8094 = vmatprep.mubr.bf16.mxu0 %v6460
  %8095 = vmatmul.mubr.bf16.gmra.mrb[0].mxu0 %v6235
  %v8096 = vpop.f32.mrb[0].mxu0
  %v8097 = vadd.f32 %v7984, %v8096
  %v8098 = vpop.f32.mrb[0].mxu0
  %v8099 = vpop.f32.mrb[0].mxu0
  %v8100 = vadd.f32 %v7987, %v8099
  %v8101 = vpop.f32.mrb[0].mxu0
  %8102 = vmatprep.mubr.bf16.mxu0 %v6463
  %8103 = vmatmul.mubr.bf16.gmra.mrb[0].mxu0 %v6239
  %v8104 = vpop.f32.mrb[0].mxu0
  %v8105 = vadd.f32 %v7992, %v8104
  %v8106 = vpop.f32.mrb[0].mxu0
  %v8107 = vpop.f32.mrb[0].mxu0
  %v8108 = vadd.f32 %v7995, %v8107
  %v8109 = vpop.f32.mrb[0].mxu0
  %8110 = vmatprep.mubr.bf16.mxu0 %v6466
  %8111 = vmatmul.mubr.bf16.gmra.mrb[0].mxu0 %v6243
  %v8112 = vpop.f32.mrb[0].mxu0
  %v8113 = vadd.f32 %v8000, %v8112
  %v8114 = vpop.f32.mrb[0].mxu0
  %v8115 = vpop.f32.mrb[0].mxu0
  %v8116 = vadd.f32 %v8003, %v8115
  %v8117 = vpop.f32.mrb[0].mxu0
  %8118 = vmatprep.mubr.bf16.mxu0 %v6469
  %8119 = vmatmul.mubr.bf16.gmra.mrb[0].mxu0 %v6247
  %v8120 = vpop.f32.mrb[0].mxu0
  %v8121 = vadd.f32 %v8008, %v8120
  %v8122 = vpop.f32.mrb[0].mxu0
  %v8123 = vpop.f32.mrb[0].mxu0
  %v8124 = vadd.f32 %v8011, %v8123
  %v8125 = vpop.f32.mrb[0].mxu0
  %8126 = vmatprep.mubr.bf16.mxu0 %v6472
  %8127 = vmatmul.mubr.bf16.gmra.mrb[0].mxu0 %v6251
  %v8128 = vpop.f32.mrb[0].mxu0
  %v8129 = vadd.f32 %v8016, %v8128
  %v8130 = vpop.f32.mrb[0].mxu0
  %v8131 = vpop.f32.mrb[0].mxu0
  %v8132 = vadd.f32 %v8019, %v8131
  %v8133 = vpop.f32.mrb[0].mxu0
  %8134 = vmatprep.mubr.bf16.mxu0 %v6475
  %8135 = vmatmul.mubr.bf16.gmra.mrb[0].mxu0 %v6255
  %v8136 = vpop.f32.mrb[0].mxu0
  %v8137 = vadd.f32 %v8024, %v8136
  %v8138 = vpop.f32.mrb[0].mxu0
  %v8139 = vpop.f32.mrb[0].mxu0
  %v8140 = vadd.f32 %v8027, %v8139
  %v8141 = vpop.f32.mrb[0].mxu0
  %8142 = vmatprep.mubr.bf16.mxu0 %v6478
  %8143 = vmatmul.mubr.bf16.gmra.mrb[0].mxu0 %v6259
  %v8144 = vpop.f32.mrb[0].mxu0
  %v8145 = vadd.f32 %v8032, %v8144
  %v8146 = vpop.f32.mrb[0].mxu0
  %v8147 = vpop.f32.mrb[0].mxu0
  %v8148 = vadd.f32 %v8035, %v8147
  %v8149 = vpop.f32.mrb[0].mxu0
  %8150 = vmatprep.mubr.bf16.mxu0 %v6481
  %8151 = vmatmul.mubr.bf16.gmra.mrb[0].mxu0 %v6263
  %v8152 = vpop.f32.mrb[0].mxu0
  %v8153 = vadd.f32 %v8040, %v8152
  %v8154 = vpop.f32.mrb[0].mxu0
  %v8155 = vpop.f32.mrb[0].mxu0
  %v8156 = vadd.f32 %v8043, %v8155
  %v8157 = vpop.f32.mrb[0].mxu0
  %8158 = vmatprep.mubr.bf16.mxu0 %v6484
  %8159 = vmatmul.mubr.bf16.gmra.mrb[0].mxu0 %v6267
  %v8160 = vpop.f32.mrb[0].mxu0
  %v8161 = vadd.f32 %v8048, %v8160
  %v8162 = vpop.f32.mrb[0].mxu0
  %v8163 = vpop.f32.mrb[0].mxu0
  %v8164 = vadd.f32 %v8051, %v8163
  %v8165 = vpop.f32.mrb[0].mxu0
  %8166 = vdwg.mxu0
  %v8167 = vmax.f32 %v8089, %v8129
  %v8168 = vmax.f32 %v8092, %v8132
  %v8169 = vmax.f32 %v8097, %v8137
  %v8170 = vmax.f32 %v8100, %v8140
  %v8171 = vmax.f32 %v8105, %v8145
  %v8172 = vmax.f32 %v8108, %v8148
  %v8173 = vmax.f32 %v8113, %v8153
  %v8174 = vmax.f32 %v8116, %v8156
  %v8175 = vmax.f32 %v8121, %v8161
  %v8176 = vmax.f32 %v8124, %v8164
  %v8177 = vmax.f32 %v8167, %v8168
  %v8178 = vmax.f32 %v8169, %v8170
  %v8179 = vmax.f32 %v8171, %v8172
  %v8180 = vmax.f32 %v8173, %v8174
  %v8181 = vmax.f32 %v8175, %v8176
  %v8182 = vadd.f32 %v8177, %v211
  %v8183 = vadd.f32 %v8178, %v216
  %v8184 = vadd.f32 %v8179, %v221
  %v8185 = vadd.f32 %v8180, %v226
  %v8186 = vadd.f32 %v8181, %v231
  %v8187 = vmax.f32 %v8182, 0.0
  %v8188 = vmax.f32 %v8183, 0.0
  %v8189 = vmax.f32 %v8184, 0.0
  %v8190 = vmax.f32 %v8185, 0.0
  %v8191 = vmax.f32 %v8186, 0.0
  %v8192 = vpack.c.bf16 %v8188, %v8187
  %v8193 = vpack.c.bf16 %v8190, %v8189
  %v8194 = vpack.c.bf16 %v8191, %v8191
  %v8198 = vunpack.c.l.b16 %v8192
  %v8199 = vunpack.c.h.b16 %v8192
  %v8200 = vunpack.c.l.b16 %v8193
  %v8201 = vunpack.c.h.b16 %v8193
  %v8202 = vunpack.c.l.b16 %v8194
  %v8203 = vpack.c.b16 %v8198, %v8198
  %v8204 = vpack.c.b16 %v8199, %v8199
  %v8205 = vpack.c.b16 %v8200, %v8200
  %v8206 = vpack.c.b16 %v8201, %v8201
  %v8207 = vpack.c.b16 %v8202, %v8202
  %8213 = vst [vmem:[#allocation3 + $0x3c] sm:$0xf] %v8203
  %8214 = vst [vmem:[#allocation3 + $0x40] sm:$0xf] %v8204
  %8215 = vst [vmem:[#allocation3 + $0x44] sm:$0xf] %v8205
  %8216 = vst [vmem:[#allocation3 + $0x48] sm:$0xf] %v8206
  %8217 = vst [vmem:[#allocation3 + $0x4c] sm:$0xf] %v8207
  %v8218 = vld [vmem:[#allocation2 + $0x1a0] sm:$0xf]
  %v8219 = vld [vmem:[#allocation2 + $0x1a4] sm:$0xf]
  %v8220 = vld [vmem:[#allocation2 + $0x1a8] sm:$0xf]
  %v8221 = vld [vmem:[#allocation2 + $0x1ac] sm:$0xf]
  %v8222 = vld [vmem:[#allocation2 + $0x1b0] sm:$0xf]
  %v8223 = vld [vmem:[#allocation2 + $0x1b4] sm:$0xf]
  %v8224 = vld [vmem:[#allocation2 + $0x1b8] sm:$0xf]
  %v8225 = vld [vmem:[#allocation2 + $0x1bc] sm:$0xf]
  %v8226 = vld [vmem:[#allocation2 + $0x1c0] sm:$0xf]
  %v8227 = vld [vmem:[#allocation2 + $0x1c4] sm:$0xf]
  %v8228 = vld [vmem:[#allocation2 + $0x1c8] sm:$0xf]
  %v8229 = vld [vmem:[#allocation2 + $0x1cc] sm:$0xf]
  %v8230 = vld [vmem:[#allocation2 + $0x1d0] sm:$0xf]
  %v8231 = vld [vmem:[#allocation2 + $0x1d4] sm:$0xf]
  %v8232 = vld [vmem:[#allocation2 + $0x1d8] sm:$0xf]
  %v8233 = vld [vmem:[#allocation2 + $0x1dc] sm:$0xf]
  %v8234 = vld [vmem:[#allocation2 + $0x1e0] sm:$0xf]
  %v8235 = vld [vmem:[#allocation2 + $0x1e4] sm:$0xf]
  %v8236 = vld [vmem:[#allocation2 + $0x1e8] sm:$0xf]
  %v8237 = vld [vmem:[#allocation2 + $0x1ec] sm:$0xf]
  %v8238 = vld [vmem:[#allocation2 + $0x1f0] sm:$0xf]
  %v8239 = vld [vmem:[#allocation2 + $0x1f4] sm:$0xf]
  %v8240 = vld [vmem:[#allocation2 + $0x1f8] sm:$0xf]
  %v8241 = vld [vmem:[#allocation2 + $0x1fc] sm:$0xf]
  %v8242 = vld [vmem:[#allocation2 + $0x200] sm:$0xf]
  %v8243 = vld [vmem:[#allocation2 + $0x204] sm:$0xf]
  %v8244 = vld [vmem:[#allocation2 + $0x208] sm:$0xf]
  %v8245 = vld [vmem:[#allocation2 + $0x20c] sm:$0xf]
  %v8246 = vld [vmem:[#allocation2 + $0x210] sm:$0xf]
  %v8247 = vld [vmem:[#allocation2 + $0x214] sm:$0xf]
  %v8248 = vld [vmem:[#allocation2 + $0x218] sm:$0xf]
  %v8249 = vld [vmem:[#allocation2 + $0x21c] sm:$0xf]
  %v8250 = vld [vmem:[#allocation2 + $0x220] sm:$0xf]
  %v8251 = vld [vmem:[#allocation2 + $0x224] sm:$0xf]
  %v8252 = vld [vmem:[#allocation2 + $0x228] sm:$0xf]
  %v8253 = vld [vmem:[#allocation2 + $0x22c] sm:$0xf]
  %v8254 = vld [vmem:[#allocation2 + $0x230] sm:$0xf]
  %v8255 = vld [vmem:[#allocation2 + $0x234] sm:$0xf]
  %v8256 = vld [vmem:[#allocation2 + $0x238] sm:$0xf]
  %v8257 = vld [vmem:[#allocation2 + $0x23c] sm:$0xf]
  %v8258 = vld [vmem:[#allocation2 + $0x240] sm:$0xf]
  %v8259 = vld [vmem:[#allocation2 + $0x244] sm:$0xf]
  %v8260 = vld [vmem:[#allocation2 + $0x248] sm:$0xf]
  %v8261 = vld [vmem:[#allocation2 + $0x24c] sm:$0xf]
  %v8262 = vld [vmem:[#allocation2 + $0x250] sm:$0xf]
  %v8263 = vld [vmem:[#allocation2 + $0x254] sm:$0xf]
  %v8264 = vld [vmem:[#allocation2 + $0x258] sm:$0xf]
  %v8265 = vld [vmem:[#allocation2 + $0x25c] sm:$0xf]
  %v8266 = vld [vmem:[#allocation2 + $0x260] sm:$0xf]
  %v8267 = vld [vmem:[#allocation2 + $0x264] sm:$0xf]
  %v8268 = vld [vmem:[#allocation2 + $0x268] sm:$0xf]
  %v8269 = vld [vmem:[#allocation2 + $0x26c] sm:$0xf]
  %v8322 = vunpack.c.l.b16 %v8218
  %v8323 = vunpack.c.l.b16 %v8219
  %v8324 = vunpack.c.l.b16 %v8220
  %v8325 = vunpack.c.l.b16 %v8221
  %v8326 = vunpack.c.l.b16 %v8222
  %v8327 = vunpack.c.l.b16 %v8223
  %v8328 = vunpack.c.l.b16 %v8224
  %v8329 = vunpack.c.l.b16 %v8225
  %v8330 = vunpack.c.l.b16 %v8226
  %v8331 = vunpack.c.l.b16 %v8227
  %v8332 = vunpack.c.l.b16 %v8228
  %v8333 = vunpack.c.l.b16 %v8229
  %v8334 = vunpack.c.l.b16 %v8230
  %v8335 = vunpack.c.l.b16 %v8231
  %v8336 = vunpack.c.l.b16 %v8232
  %v8337 = vunpack.c.l.b16 %v8233
  %v8338 = vunpack.c.l.b16 %v8234
  %v8339 = vunpack.c.l.b16 %v8235
  %v8340 = vunpack.c.l.b16 %v8236
  %v8341 = vunpack.c.l.b16 %v8237
  %v8342 = vunpack.c.l.b16 %v8238
  %v8343 = vunpack.c.l.b16 %v8239
  %v8344 = vunpack.c.l.b16 %v8240
  %v8345 = vunpack.c.l.b16 %v8241
  %v8346 = vunpack.c.l.b16 %v8242
  %v8347 = vunpack.c.l.b16 %v8243
  %v8348 = vunpack.c.l.b16 %v8244
  %v8349 = vunpack.c.l.b16 %v8245
  %v8350 = vunpack.c.l.b16 %v8246
  %v8351 = vunpack.c.l.b16 %v8247
  %v8352 = vunpack.c.l.b16 %v8248
  %v8353 = vunpack.c.l.b16 %v8249
  %v8354 = vunpack.c.l.b16 %v8250
  %v8355 = vunpack.c.l.b16 %v8251
  %v8356 = vunpack.c.l.b16 %v8252
  %v8357 = vunpack.c.l.b16 %v8253
  %v8358 = vunpack.c.l.b16 %v8254
  %v8359 = vunpack.c.l.b16 %v8255
  %v8360 = vunpack.c.l.b16 %v8256
  %v8361 = vunpack.c.l.b16 %v8257
  %v8362 = vunpack.c.l.b16 %v8258
  %v8363 = vunpack.c.l.b16 %v8259
  %v8364 = vunpack.c.l.b16 %v8260
  %v8365 = vunpack.c.l.b16 %v8261
  %v8366 = vunpack.c.l.b16 %v8262
  %v8367 = vunpack.c.l.b16 %v8263
  %v8368 = vunpack.c.l.b16 %v8264
  %v8369 = vunpack.c.l.b16 %v8265
  %v8370 = vunpack.c.l.b16 %v8266
  %v8371 = vunpack.c.l.b16 %v8267
  %v8372 = vunpack.c.l.b16 %v8268
  %v8373 = vunpack.c.l.b16 %v8269
  %v8374 = vpack.c.b16 %v8323, %v8322
  %v8375 = vpack.c.b16 %v8325, %v8324
  %v8376 = vpack.c.b16 %v8327, %v8326
  %v8377 = vpack.c.b16 %v8329, %v8328
  %v8378 = vpack.c.b16 %v8331, %v8330
  %v8379 = vpack.c.b16 %v8333, %v8332
  %v8380 = vpack.c.b16 %v8335, %v8334
  %v8381 = vpack.c.b16 %v8337, %v8336
  %v8382 = vpack.c.b16 %v8339, %v8338
  %v8383 = vpack.c.b16 %v8341, %v8340
  %v8384 = vpack.c.b16 %v8343, %v8342
  %v8385 = vpack.c.b16 %v8345, %v8344
  %v8386 = vpack.c.b16 %v8347, %v8346
  %v8387 = vpack.c.b16 %v8349, %v8348
  %v8388 = vpack.c.b16 %v8351, %v8350
  %v8389 = vpack.c.b16 %v8353, %v8352
  %v8390 = vpack.c.b16 %v8355, %v8354
  %v8391 = vpack.c.b16 %v8357, %v8356
  %v8392 = vpack.c.b16 %v8359, %v8358
  %v8393 = vpack.c.b16 %v8361, %v8360
  %v8394 = vpack.c.b16 %v8363, %v8362
  %v8395 = vpack.c.b16 %v8365, %v8364
  %v8396 = vpack.c.b16 %v8367, %v8366
  %v8397 = vpack.c.b16 %v8369, %v8368
  %v8398 = vpack.c.b16 %v8371, %v8370
  %v8399 = vpack.c.b16 %v8373, %v8372
  %8426 = vmatprep.subr.bf16.mxu0 0
  %8427 = vmatpush1.bf16.msra.mxu0 %v8374
  %8428 = vmatprep.subr.bf16.mxu0 0
  %8429 = vmatpush1.bf16.msra.mxu0 %v8375
  %8430 = vmatprep.subr.bf16.mxu0 0
  %8431 = vmatpush1.bf16.msra.mxu0 %v8376
  %8432 = vmatprep.subr.bf16.mxu0 0
  %8433 = vmatpush1.bf16.msra.mxu0 %v8377
  %8434 = vmatprep.subr.bf16.mxu0 0
  %8435 = vmatpush1.bf16.msra.mxu0 %v8378
  %8436 = vmatprep.subr.bf16.mxu0 0
  %8437 = vmatpush1.bf16.msra.mxu0 %v8379
  %8438 = vmatprep.subr.bf16.mxu0 0
  %8439 = vmatpush1.bf16.msra.mxu0 %v8380
  %8440 = vmatprep.subr.bf16.mxu0 0
  %8441 = vmatpush1.bf16.msra.mxu0 %v8381
  %8442 = vmatprep.subr.bf16.mxu0 0
  %8443 = vmatpush1.bf16.msra.mxu0 %v8382
  %8444 = vmatprep.subr.bf16.mxu0 0
  %8445 = vmatpush1.bf16.msra.mxu0 %v8383
  %8446 = vmatprep.subr.bf16.mxu0 0
  %8447 = vmatpush1.bf16.msra.mxu0 %v8384
  %8448 = vmatprep.subr.bf16.mxu0 0
  %8449 = vmatpush1.bf16.msra.mxu0 %v8385
  %8450 = vmatprep.subr.bf16.mxu0 0
  %8451 = vmatpush1.bf16.msra.mxu0 %v8386
  %8452 = vmatprep.subr.bf16.mxu0 0
  %8453 = vmatpush1.bf16.msra.mxu0 %v8387
  %8454 = vmatprep.subr.bf16.mxu0 0
  %8455 = vmatpush1.bf16.msra.mxu0 %v8388
  %8456 = vmatprep.subr.bf16.mxu0 0
  %8457 = vmatpush1.bf16.msra.mxu0 %v8389
  %8458 = vmatprep.mubr.bf16.mxu0 %v6230
  %8459 = vmatmul.mubr.bf16.gmra.mrb[0].mxu0 %v6229
  %v8460 = vpop.f32.mrb[0].mxu0
  %v8461 = vadd.f32 0.0, %v8460
  %v8462 = vpop.f32.mrb[0].mxu0
  %v8463 = vpop.f32.mrb[0].mxu0
  %v8464 = vadd.f32 0.0, %v8463
  %v8465 = vpop.f32.mrb[0].mxu0
  %8466 = vmatprep.mubr.bf16.mxu0 %v6234
  %8467 = vmatmul.mubr.bf16.gmra.mrb[0].mxu0 %v6233
  %v8468 = vpop.f32.mrb[0].mxu0
  %v8469 = vadd.f32 0.0, %v8468
  %v8470 = vpop.f32.mrb[0].mxu0
  %v8471 = vpop.f32.mrb[0].mxu0
  %v8472 = vadd.f32 0.0, %v8471
  %v8473 = vpop.f32.mrb[0].mxu0
  %8474 = vmatprep.mubr.bf16.mxu0 %v6238
  %8475 = vmatmul.mubr.bf16.gmra.mrb[0].mxu0 %v6237
  %v8476 = vpop.f32.mrb[0].mxu0
  %v8477 = vadd.f32 0.0, %v8476
  %v8478 = vpop.f32.mrb[0].mxu0
  %v8479 = vpop.f32.mrb[0].mxu0
  %v8480 = vadd.f32 0.0, %v8479
  %v8481 = vpop.f32.mrb[0].mxu0
  %8482 = vmatprep.mubr.bf16.mxu0 %v6242
  %8483 = vmatmul.mubr.bf16.gmra.mrb[0].mxu0 %v6241
  %v8484 = vpop.f32.mrb[0].mxu0
  %v8485 = vadd.f32 0.0, %v8484
  %v8486 = vpop.f32.mrb[0].mxu0
  %v8487 = vpop.f32.mrb[0].mxu0
  %v8488 = vadd.f32 0.0, %v8487
  %v8489 = vpop.f32.mrb[0].mxu0
  %8490 = vmatprep.mubr.bf16.mxu0 %v6246
  %8491 = vmatmul.mubr.bf16.gmra.mrb[0].mxu0 %v6245
  %v8492 = vpop.f32.mrb[0].mxu0
  %v8493 = vadd.f32 0.0, %v8492
  %v8494 = vpop.f32.mrb[0].mxu0
  %v8495 = vpop.f32.mrb[0].mxu0
  %v8496 = vadd.f32 0.0, %v8495
  %v8497 = vpop.f32.mrb[0].mxu0
  %8498 = vmatprep.mubr.bf16.mxu0 %v6250
  %8499 = vmatmul.mubr.bf16.gmra.mrb[0].mxu0 %v6249
  %v8500 = vpop.f32.mrb[0].mxu0
  %v8501 = vadd.f32 0.0, %v8500
  %v8502 = vpop.f32.mrb[0].mxu0
  %v8503 = vpop.f32.mrb[0].mxu0
  %v8504 = vadd.f32 0.0, %v8503
  %v8505 = vpop.f32.mrb[0].mxu0
  %8506 = vmatprep.mubr.bf16.mxu0 %v6254
  %8507 = vmatmul.mubr.bf16.gmra.mrb[0].mxu0 %v6253
  %v8508 = vpop.f32.mrb[0].mxu0
  %v8509 = vadd.f32 0.0, %v8508
  %v8510 = vpop.f32.mrb[0].mxu0
  %v8511 = vpop.f32.mrb[0].mxu0
  %v8512 = vadd.f32 0.0, %v8511
  %v8513 = vpop.f32.mrb[0].mxu0
  %8514 = vmatprep.mubr.bf16.mxu0 %v6258
  %8515 = vmatmul.mubr.bf16.gmra.mrb[0].mxu0 %v6257
  %v8516 = vpop.f32.mrb[0].mxu0
  %v8517 = vadd.f32 0.0, %v8516
  %v8518 = vpop.f32.mrb[0].mxu0
  %v8519 = vpop.f32.mrb[0].mxu0
  %v8520 = vadd.f32 0.0, %v8519
  %v8521 = vpop.f32.mrb[0].mxu0
  %8522 = vmatprep.mubr.bf16.mxu0 %v6262
  %8523 = vmatmul.mubr.bf16.gmra.mrb[0].mxu0 %v6261
  %v8524 = vpop.f32.mrb[0].mxu0
  %v8525 = vadd.f32 0.0, %v8524
  %v8526 = vpop.f32.mrb[0].mxu0
  %v8527 = vpop.f32.mrb[0].mxu0
  %v8528 = vadd.f32 0.0, %v8527
  %v8529 = vpop.f32.mrb[0].mxu0
  %8530 = vmatprep.mubr.bf16.mxu0 %v6266
  %8531 = vmatmul.mubr.bf16.gmra.mrb[0].mxu0 %v6265
  %v8532 = vpop.f32.mrb[0].mxu0
  %v8533 = vadd.f32 0.0, %v8532
  %v8534 = vpop.f32.mrb[0].mxu0
  %v8535 = vpop.f32.mrb[0].mxu0
  %v8536 = vadd.f32 0.0, %v8535
  %v8537 = vpop.f32.mrb[0].mxu0
  %8538 = vdwg.mxu0
  %8539 = vmatprep.subr.bf16.mxu0 0
  %8540 = vmatpush1.bf16.msra.mxu0 %v8390
  %8541 = vmatprep.subr.bf16.mxu0 0
  %8542 = vmatpush1.bf16.msra.mxu0 %v8391
  %8543 = vmatprep.subr.bf16.mxu0 0
  %8544 = vmatpush1.bf16.msra.mxu0 %v8392
  %8545 = vmatprep.subr.bf16.mxu0 0
  %8546 = vmatpush1.bf16.msra.mxu0 %v8393
  %8547 = vmatprep.subr.bf16.mxu0 0
  %8548 = vmatpush1.bf16.msra.mxu0 %v8394
  %8549 = vmatprep.subr.bf16.mxu0 0
  %8550 = vmatpush1.bf16.msra.mxu0 %v8395
  %8551 = vmatprep.subr.bf16.mxu0 0
  %8552 = vmatpush1.bf16.msra.mxu0 %v8396
  %8553 = vmatprep.subr.bf16.mxu0 0
  %8554 = vmatpush1.bf16.msra.mxu0 %v8397
  %8555 = vmatprep.subr.bf16.mxu0 0
  %8556 = vmatpush1.bf16.msra.mxu0 %v8398
  %8557 = vmatprep.subr.bf16.mxu0 0
  %8558 = vmatpush1.bf16.msra.mxu0 %v8399
  %8559 = vmatprep.subr.bf16.mxu0 0
  %8560 = vmatpush1.bf16.msra.mxu0 0
  %8561 = vmatprep.subr.bf16.mxu0 0
  %8562 = vmatpush1.bf16.msra.mxu0 0
  %8563 = vmatprep.subr.bf16.mxu0 0
  %8564 = vmatpush1.bf16.msra.mxu0 0
  %8565 = vmatprep.subr.bf16.mxu0 0
  %8566 = vmatpush1.bf16.msra.mxu0 0
  %8567 = vmatprep.subr.bf16.mxu0 0
  %8568 = vmatpush1.bf16.msra.mxu0 0
  %8569 = vmatprep.subr.bf16.mxu0 0
  %8570 = vmatpush1.bf16.msra.mxu0 0
  %8571 = vmatprep.mubr.bf16.mxu0 %v6457
  %8572 = vmatmul.mubr.bf16.gmra.mrb[0].mxu0 %v6231
  %v8573 = vpop.f32.mrb[0].mxu0
  %v8574 = vadd.f32 %v8461, %v8573
  %v8575 = vpop.f32.mrb[0].mxu0
  %v8576 = vpop.f32.mrb[0].mxu0
  %v8577 = vadd.f32 %v8464, %v8576
  %v8578 = vpop.f32.mrb[0].mxu0
  %8579 = vmatprep.mubr.bf16.mxu0 %v6460
  %8580 = vmatmul.mubr.bf16.gmra.mrb[0].mxu0 %v6235
  %v8581 = vpop.f32.mrb[0].mxu0
  %v8582 = vadd.f32 %v8469, %v8581
  %v8583 = vpop.f32.mrb[0].mxu0
  %v8584 = vpop.f32.mrb[0].mxu0
  %v8585 = vadd.f32 %v8472, %v8584
  %v8586 = vpop.f32.mrb[0].mxu0
  %8587 = vmatprep.mubr.bf16.mxu0 %v6463
  %8588 = vmatmul.mubr.bf16.gmra.mrb[0].mxu0 %v6239
  %v8589 = vpop.f32.mrb[0].mxu0
  %v8590 = vadd.f32 %v8477, %v8589
  %v8591 = vpop.f32.mrb[0].mxu0
  %v8592 = vpop.f32.mrb[0].mxu0
  %v8593 = vadd.f32 %v8480, %v8592
  %v8594 = vpop.f32.mrb[0].mxu0
  %8595 = vmatprep.mubr.bf16.mxu0 %v6466
  %8596 = vmatmul.mubr.bf16.gmra.mrb[0].mxu0 %v6243
  %v8597 = vpop.f32.mrb[0].mxu0
  %v8598 = vadd.f32 %v8485, %v8597
  %v8599 = vpop.f32.mrb[0].mxu0
  %v8600 = vpop.f32.mrb[0].mxu0
  %v8601 = vadd.f32 %v8488, %v8600
  %v8602 = vpop.f32.mrb[0].mxu0
  %8603 = vmatprep.mubr.bf16.mxu0 %v6469
  %8604 = vmatmul.mubr.bf16.gmra.mrb[0].mxu0 %v6247
  %v8605 = vpop.f32.mrb[0].mxu0
  %v8606 = vadd.f32 %v8493, %v8605
  %v8607 = vpop.f32.mrb[0].mxu0
  %v8608 = vpop.f32.mrb[0].mxu0
  %v8609 = vadd.f32 %v8496, %v8608
  %v8610 = vpop.f32.mrb[0].mxu0
  %8611 = vmatprep.mubr.bf16.mxu0 %v6472
  %8612 = vmatmul.mubr.bf16.gmra.mrb[0].mxu0 %v6251
  %v8613 = vpop.f32.mrb[0].mxu0
  %v8614 = vadd.f32 %v8501, %v8613
  %v8615 = vpop.f32.mrb[0].mxu0
  %v8616 = vpop.f32.mrb[0].mxu0
  %v8617 = vadd.f32 %v8504, %v8616
  %v8618 = vpop.f32.mrb[0].mxu0
  %8619 = vmatprep.mubr.bf16.mxu0 %v6475
  %8620 = vmatmul.mubr.bf16.gmra.mrb[0].mxu0 %v6255
  %v8621 = vpop.f32.mrb[0].mxu0
  %v8622 = vadd.f32 %v8509, %v8621
  %v8623 = vpop.f32.mrb[0].mxu0
  %v8624 = vpop.f32.mrb[0].mxu0
  %v8625 = vadd.f32 %v8512, %v8624
  %v8626 = vpop.f32.mrb[0].mxu0
  %8627 = vmatprep.mubr.bf16.mxu0 %v6478
  %8628 = vmatmul.mubr.bf16.gmra.mrb[0].mxu0 %v6259
  %v8629 = vpop.f32.mrb[0].mxu0
  %v8630 = vadd.f32 %v8517, %v8629
  %v8631 = vpop.f32.mrb[0].mxu0
  %v8632 = vpop.f32.mrb[0].mxu0
  %v8633 = vadd.f32 %v8520, %v8632
  %v8634 = vpop.f32.mrb[0].mxu0
  %8635 = vmatprep.mubr.bf16.mxu0 %v6481
  %8636 = vmatmul.mubr.bf16.gmra.mrb[0].mxu0 %v6263
  %v8637 = vpop.f32.mrb[0].mxu0
  %v8638 = vadd.f32 %v8525, %v8637
  %v8639 = vpop.f32.mrb[0].mxu0
  %v8640 = vpop.f32.mrb[0].mxu0
  %v8641 = vadd.f32 %v8528, %v8640
  %v8642 = vpop.f32.mrb[0].mxu0
  %8643 = vmatprep.mubr.bf16.mxu0 %v6484
  %8644 = vmatmul.mubr.bf16.gmra.mrb[0].mxu0 %v6267
  %v8645 = vpop.f32.mrb[0].mxu0
  %v8646 = vadd.f32 %v8533, %v8645
  %v8647 = vpop.f32.mrb[0].mxu0
  %v8648 = vpop.f32.mrb[0].mxu0
  %v8649 = vadd.f32 %v8536, %v8648
  %v8650 = vpop.f32.mrb[0].mxu0
  %8651 = vdwg.mxu0
  %v8652 = vmax.f32 %v8574, %v8614
  %v8653 = vmax.f32 %v8577, %v8617
  %v8654 = vmax.f32 %v8582, %v8622
  %v8655 = vmax.f32 %v8585, %v8625
  %v8656 = vmax.f32 %v8590, %v8630
  %v8657 = vmax.f32 %v8593, %v8633
  %v8658 = vmax.f32 %v8598, %v8638
  %v8659 = vmax.f32 %v8601, %v8641
  %v8660 = vmax.f32 %v8606, %v8646
  %v8661 = vmax.f32 %v8609, %v8649
  %v8662 = vmax.f32 %v8652, %v8653
  %v8663 = vmax.f32 %v8654, %v8655
  %v8664 = vmax.f32 %v8656, %v8657
  %v8665 = vmax.f32 %v8658, %v8659
  %v8666 = vmax.f32 %v8660, %v8661
  %v8667 = vadd.f32 %v8662, %v211
  %v8668 = vadd.f32 %v8663, %v216
  %v8669 = vadd.f32 %v8664, %v221
  %v8670 = vadd.f32 %v8665, %v226
  %v8671 = vadd.f32 %v8666, %v231
  %v8672 = vmax.f32 %v8667, 0.0
  %v8673 = vmax.f32 %v8668, 0.0
  %v8674 = vmax.f32 %v8669, 0.0
  %v8675 = vmax.f32 %v8670, 0.0
  %v8676 = vmax.f32 %v8671, 0.0
  %v8677 = vpack.c.bf16 %v8673, %v8672
  %v8678 = vpack.c.bf16 %v8675, %v8674
  %v8679 = vpack.c.bf16 %v8676, %v8676
  %v8683 = vunpack.c.l.b16 %v8677
  %v8684 = vunpack.c.h.b16 %v8677
  %v8685 = vunpack.c.l.b16 %v8678
  %v8686 = vunpack.c.h.b16 %v8678
  %v8687 = vunpack.c.l.b16 %v8679
  %v8688 = vpack.c.b16 %v8683, %v8683
  %v8689 = vpack.c.b16 %v8684, %v8684
  %v8690 = vpack.c.b16 %v8685, %v8685
  %v8691 = vpack.c.b16 %v8686, %v8686
  %v8692 = vpack.c.b16 %v8687, %v8687
  %8698 = vst [vmem:[#allocation3 + $0x50] sm:$0xf] %v8688
  %8699 = vst [vmem:[#allocation3 + $0x54] sm:$0xf] %v8689
  %8700 = vst [vmem:[#allocation3 + $0x58] sm:$0xf] %v8690
  %8701 = vst [vmem:[#allocation3 + $0x5c] sm:$0xf] %v8691
  %8702 = vst [vmem:[#allocation3 + $0x60] sm:$0xf] %v8692
  %v8703 = vld [vmem:[%s5] sm:$0xff]
  %v8704 = vld [vmem:[%s5 + $0x8] sm:$0xff]
  %v8705 = vld [vmem:[%s5 + $0x10] sm:$0xff]
  %v8706 = vld [vmem:[%s5 + $0x18] sm:$0xff]
  %v8707 = vld [vmem:[%s5 + $0x20] sm:$0xff]
  %v8708 = vld [vmem:[%s5 + $0x28] sm:$0xff]
  %v8709 = vld [vmem:[%s5 + $0x30] sm:$0xff]
  %v8710 = vld [vmem:[%s5 + $0x38] sm:$0xff]
  %v8711 = vld [vmem:[#allocation3] sm:$0xf]
  %v8712 = vld [vmem:[#allocation3 + $0x4] sm:$0xf]
  %v8713 = vld [vmem:[#allocation3 + $0x8] sm:$0xf]
  %v8714 = vld [vmem:[#allocation3 + $0xc] sm:$0xf]
  %v8715 = vld [vmem:[#allocation3 + $0x10] sm:$0xf]
  %v8716 = vld [vmem:[#allocation3 + $0x14] sm:$0xf]
  %v8717 = vld [vmem:[#allocation3 + $0x18] sm:$0xf]
  %v8718 = vld [vmem:[#allocation3 + $0x1c] sm:$0xf]
  %v8719 = vld [vmem:[#allocation3 + $0x20] sm:$0xf]
  %v8720 = vld [vmem:[#allocation3 + $0x24] sm:$0xf]
  %v8721 = vld [vmem:[#allocation3 + $0x28] sm:$0xf]
  %v8722 = vld [vmem:[#allocation3 + $0x2c] sm:$0xf]
  %v8723 = vld [vmem:[#allocation3 + $0x30] sm:$0xf]
  %v8724 = vld [vmem:[#allocation3 + $0x34] sm:$0xf]
  %v8725 = vld [vmem:[#allocation3 + $0x38] sm:$0xf]
  %v8726 = vld [vmem:[#allocation3 + $0x3c] sm:$0xf]
  %v8727 = vld [vmem:[#allocation3 + $0x40] sm:$0xf]
  %v8728 = vld [vmem:[#allocation3 + $0x44] sm:$0xf]
  %v8729 = vld [vmem:[#allocation3 + $0x48] sm:$0xf]
  %v8730 = vld [vmem:[#allocation3 + $0x4c] sm:$0xf]
  %v8731 = vld [vmem:[#allocation3 + $0x50] sm:$0xf]
  %v8732 = vld [vmem:[#allocation3 + $0x54] sm:$0xf]
  %v8733 = vld [vmem:[#allocation3 + $0x58] sm:$0xf]
  %v8734 = vld [vmem:[#allocation3 + $0x5c] sm:$0xf]
  %v8735 = vld [vmem:[#allocation3 + $0x60] sm:$0xf]
  %v8736 = vld [vmem:[%s6] sm:$0xff]
  %v8737 = vld [vmem:[%s6 + $0x8] sm:$0xff]
  %v8738 = vld [vmem:[%s6 + $0x10] sm:$0xff]
  %v8739 = vld [vmem:[%s6 + $0x18] sm:$0xff]
  %v8740 = vld [vmem:[%s6 + $0x20] sm:$0xff]
  %v8741 = vld [vmem:[%s6 + $0x28] sm:$0xff]
  %v8742 = vld [vmem:[%s6 + $0x30] sm:$0xff]
  %v8743 = vld [vmem:[%s6 + $0x38] sm:$0xff]
  %8745 = vset.pattern.permute.xlu0 0
  %8746 = vperm.xlu0 %8745, %v8736
  %v8747 = vpop.permute.xlu0 %8746
  %8750 = vset.pattern.permute.xlu0 0
  %8751 = vperm.xlu0 %8750, %v8737
  %v8752 = vpop.permute.xlu0 %8751
  %8755 = vset.pattern.permute.xlu0 0
  %8756 = vperm.xlu0 %8755, %v8738
  %v8757 = vpop.permute.xlu0 %8756
  %8760 = vset.pattern.permute.xlu0 0
  %8761 = vperm.xlu0 %8760, %v8739
  %v8762 = vpop.permute.xlu0 %8761
  %8765 = vset.pattern.permute.xlu0 0
  %8766 = vperm.xlu0 %8765, %v8740
  %v8767 = vpop.permute.xlu0 %8766
  %8770 = vset.pattern.permute.xlu0 0
  %8771 = vperm.xlu0 %8770, %v8741
  %v8772 = vpop.permute.xlu0 %8771
  %8775 = vset.pattern.permute.xlu0 0
  %8776 = vperm.xlu0 %8775, %v8742
  %v8777 = vpop.permute.xlu0 %8776
  %8780 = vset.pattern.permute.xlu0 0
  %8781 = vperm.xlu0 %8780, %v8743
  %v8782 = vpop.permute.xlu0 %8781
  %v8792 = vunpack.c.l.b16 %v8703
  %v8793 = vunpack.c.h.b16 %v8703
  %v8794 = vunpack.c.l.b16 %v8704
  %v8795 = vunpack.c.h.b16 %v8704
  %v8796 = vunpack.c.l.b16 %v8705
  %v8797 = vunpack.c.h.b16 %v8705
  %v8798 = vunpack.c.l.b16 %v8706
  %v8799 = vunpack.c.h.b16 %v8706
  %v8800 = vunpack.c.l.b16 %v8707
  %v8801 = vunpack.c.h.b16 %v8707
  %v8802 = vunpack.c.l.b16 %v8708
  %v8803 = vunpack.c.h.b16 %v8708
  %v8804 = vunpack.c.l.b16 %v8709
  %v8805 = vunpack.c.h.b16 %v8709
  %v8806 = vunpack.c.l.b16 %v8710
  %v8807 = vunpack.c.h.b16 %v8710
  %v8808 = vpack.c.b16 %v8794, %v8792
  %v8809 = vpack.c.b16 %v8795, %v8793
  %v8810 = vpack.c.b16 %v8798, %v8796
  %v8811 = vpack.c.b16 %v8799, %v8797
  %v8812 = vpack.c.b16 %v8802, %v8800
  %v8813 = vpack.c.b16 %v8803, %v8801
  %v8814 = vpack.c.b16 %v8806, %v8804
  %v8815 = vpack.c.b16 %v8807, %v8805
  %v8845 = vunpack.c.l.b16 %v8711
  %v8846 = vunpack.c.l.b16 %v8712
  %v8847 = vunpack.c.l.b16 %v8713
  %v8848 = vunpack.c.l.b16 %v8714
  %v8849 = vunpack.c.l.b16 %v8715
  %v8850 = vunpack.c.l.b16 %v8716
  %v8851 = vunpack.c.l.b16 %v8717
  %v8852 = vunpack.c.l.b16 %v8718
  %v8853 = vunpack.c.l.b16 %v8719
  %v8854 = vunpack.c.l.b16 %v8720
  %v8855 = vunpack.c.l.b16 %v8721
  %v8856 = vunpack.c.l.b16 %v8722
  %v8857 = vunpack.c.l.b16 %v8723
  %v8858 = vunpack.c.l.b16 %v8724
  %v8859 = vunpack.c.l.b16 %v8725
  %v8860 = vunpack.c.l.b16 %v8726
  %v8861 = vunpack.c.l.b16 %v8727
  %v8862 = vunpack.c.l.b16 %v8728
  %v8863 = vunpack.c.l.b16 %v8729
  %v8864 = vunpack.c.l.b16 %v8730
  %v8865 = vunpack.c.l.b16 %v8731
  %v8866 = vunpack.c.l.b16 %v8732
  %v8867 = vunpack.c.l.b16 %v8733
  %v8868 = vunpack.c.l.b16 %v8734
  %v8869 = vunpack.c.l.b16 %v8735
  %v8870 = vpack.c.b16 %v8846, %v8845
  %v8871 = vpack.c.b16 %v8848, %v8847
  %v8872 = vpack.c.b16 %v8850, %v8849
  %v8873 = vpack.c.b16 %v8852, %v8851
  %v8874 = vpack.c.b16 %v8854, %v8853
  %v8875 = vpack.c.b16 %v8856, %v8855
  %v8876 = vpack.c.b16 %v8858, %v8857
  %v8877 = vpack.c.b16 %v8860, %v8859
  %v8878 = vpack.c.b16 %v8862, %v8861
  %v8879 = vpack.c.b16 %v8864, %v8863
  %v8880 = vpack.c.b16 %v8866, %v8865
  %v8881 = vpack.c.b16 %v8868, %v8867
  %v8882 = vpack.c.b16 %v8869, %v8869
  %vm8895 = vcmask 588800
  %v8897 = vsel %vm8895, %v8809, 0
  %v8900 = vsel %vm8895, %v8811, 0
  %v8903 = vsel %vm8895, %v8813, 0
  %v8906 = vsel %vm8895, %v8815, 0
  %vm8908 = vcmask 1043456
  %v8910 = vsel %vm8908, %v8882, 0
  %8912 = vmatprep.subr.bf16.mxu0 0
  %8913 = vmatpush1.bf16.msra.mxu0 %v8870
  %8914 = vmatprep.subr.bf16.mxu0 0
  %8915 = vmatpush1.bf16.msra.mxu0 %v8871
  %8916 = vmatprep.subr.bf16.mxu0 0
  %8917 = vmatpush1.bf16.msra.mxu0 %v8872
  %8918 = vmatprep.subr.bf16.mxu0 0
  %8919 = vmatpush1.bf16.msra.mxu0 %v8873
  %8920 = vmatprep.subr.bf16.mxu0 0
  %8921 = vmatpush1.bf16.msra.mxu0 %v8874
  %8922 = vmatprep.subr.bf16.mxu0 0
  %8923 = vmatpush1.bf16.msra.mxu0 %v8875
  %8924 = vmatprep.subr.bf16.mxu0 0
  %8925 = vmatpush1.bf16.msra.mxu0 %v8876
  %8926 = vmatprep.subr.bf16.mxu0 0
  %8927 = vmatpush1.bf16.msra.mxu0 %v8877
  %8928 = vmatprep.subr.bf16.mxu0 0
  %8929 = vmatpush1.bf16.msra.mxu0 %v8878
  %8930 = vmatprep.subr.bf16.mxu0 0
  %8931 = vmatpush1.bf16.msra.mxu0 %v8879
  %8932 = vmatprep.subr.bf16.mxu0 0
  %8933 = vmatpush1.bf16.msra.mxu0 %v8880
  %8934 = vmatprep.subr.bf16.mxu0 0
  %8935 = vmatpush1.bf16.msra.mxu0 %v8881
  %8936 = vmatprep.subr.bf16.mxu0 0
  %8937 = vmatpush1.bf16.msra.mxu0 %v8910
  %8938 = vmatprep.subr.bf16.mxu0 0
  %8939 = vmatpush1.bf16.msra.mxu0 0
  %8940 = vmatprep.subr.bf16.mxu0 0
  %8941 = vmatpush1.bf16.msra.mxu0 0
  %8942 = vmatprep.subr.bf16.mxu0 0
  %8943 = vmatpush1.bf16.msra.mxu0 0
  %8944 = vmatprep.mubr.bf16.mxu0 %v8897
  %8945 = vmatmul.mubr.bf16.gmra.mrb[0].mxu0 %v8808
  %v8946 = vpop.f32.mrb[0].mxu0
  %v8947 = vadd.f32 %v8747, %v8946
  %v8948 = vpop.f32.mrb[0].mxu0
  %v8949 = vpop.f32.mrb[0].mxu0
  %v8950 = vadd.f32 %v8752, %v8949
  %v8951 = vpop.f32.mrb[0].mxu0
  %8952 = vmatprep.mubr.bf16.mxu0 %v8900
  %8953 = vmatmul.mubr.bf16.gmra.mrb[0].mxu0 %v8810
  %v8954 = vpop.f32.mrb[0].mxu0
  %v8955 = vadd.f32 %v8757, %v8954
  %v8956 = vpop.f32.mrb[0].mxu0
  %v8957 = vpop.f32.mrb[0].mxu0
  %v8958 = vadd.f32 %v8762, %v8957
  %v8959 = vpop.f32.mrb[0].mxu0
  %8960 = vmatprep.mubr.bf16.mxu0 %v8903
  %8961 = vmatmul.mubr.bf16.gmra.mrb[0].mxu0 %v8812
  %v8962 = vpop.f32.mrb[0].mxu0
  %v8963 = vadd.f32 %v8767, %v8962
  %v8964 = vpop.f32.mrb[0].mxu0
  %v8965 = vpop.f32.mrb[0].mxu0
  %v8966 = vadd.f32 %v8772, %v8965
  %v8967 = vpop.f32.mrb[0].mxu0
  %8968 = vmatprep.mubr.bf16.mxu0 %v8906
  %8969 = vmatmul.mubr.bf16.gmra.mrb[0].mxu0 %v8814
  %v8970 = vpop.f32.mrb[0].mxu0
  %v8971 = vadd.f32 %v8777, %v8970
  %v8972 = vpop.f32.mrb[0].mxu0
  %v8973 = vpop.f32.mrb[0].mxu0
  %v8974 = vadd.f32 %v8782, %v8973
  %v8975 = vpop.f32.mrb[0].mxu0
  %8976 = vdwg.mxu0
  %v8977 = vmax.f32 %v8947, 0.0
  %v8978 = vmax.f32 %v8950, 0.0
  %v8979 = vmax.f32 %v8955, 0.0
  %v8980 = vmax.f32 %v8958, 0.0
  %v8981 = vmax.f32 %v8963, 0.0
  %v8982 = vmax.f32 %v8966, 0.0
  %v8983 = vmax.f32 %v8971, 0.0
  %v8984 = vmax.f32 %v8974, 0.0
  %v8985 = vpack.c.bf16 %v8978, %v8977
  %v8986 = vpack.c.bf16 %v8980, %v8979
  %v8987 = vpack.c.bf16 %v8982, %v8981
  %v8988 = vpack.c.bf16 %v8984, %v8983
  %v8989 = vld [vmem:[%s7] sm:$0xf]
  %v8990 = vld [vmem:[%s7 + $0x4] sm:$0x1]
  %v8991 = vld [vmem:[%s8] sm:$0xff]
  %v8992 = vld [vmem:[%s8 + $0x8] sm:$0x3]
  %8994 = vset.pattern.permute.xlu0 0
  %8995 = vperm.xlu0 %8994, %v8991
  %v8996 = vpop.permute.xlu0 %8995
  %8999 = vset.pattern.permute.xlu0 0
  %9000 = vperm.xlu0 %8999, %v8992
  %v9001 = vpop.permute.xlu0 %9000
  %v9005 = vunpack.c.l.b16 %v8989
  %v9006 = vunpack.c.l.b16 %v8990
  %v9007 = vpack.c.b16 %v9006, %v9005
  %vm9008 = vcmask 523264
  %v9010 = vsel %vm9008, %v9007, 0
  %9012 = vmatprep.subr.bf16.mxu0 0
  %9013 = vmatpush1.bf16.msra.mxu0 %v8985
  %9014 = vmatprep.subr.bf16.mxu0 0
  %9015 = vmatpush1.bf16.msra.mxu0 %v8986
  %9016 = vmatprep.subr.bf16.mxu0 0
  %9017 = vmatpush1.bf16.msra.mxu0 %v8987
  %9018 = vmatprep.subr.bf16.mxu0 0
  %9019 = vmatpush1.bf16.msra.mxu0 %v8988
  %9020 = vmatprep.subr.bf16.mxu0 0
  %9021 = vmatpush1.bf16.msra.mxu0 0
  %9022 = vmatprep.subr.bf16.mxu0 0
  %9023 = vmatpush1.bf16.msra.mxu0 0
  %9024 = vmatprep.subr.bf16.mxu0 0
  %9025 = vmatpush1.bf16.msra.mxu0 0
  %9026 = vmatprep.subr.bf16.mxu0 0
  %9027 = vmatpush1.bf16.msra.mxu0 0
  %9028 = vmatprep.subr.bf16.mxu0 0
  %9029 = vmatpush1.bf16.msra.mxu0 0
  %9030 = vmatprep.subr.bf16.mxu0 0
  %9031 = vmatpush1.bf16.msra.mxu0 0
  %9032 = vmatprep.subr.bf16.mxu0 0
  %9033 = vmatpush1.bf16.msra.mxu0 0
  %9034 = vmatprep.subr.bf16.mxu0 0
  %9035 = vmatpush1.bf16.msra.mxu0 0
  %9036 = vmatprep.subr.bf16.mxu0 0
  %9037 = vmatpush1.bf16.msra.mxu0 0
  %9038 = vmatprep.subr.bf16.mxu0 0
  %9039 = vmatpush1.bf16.msra.mxu0 0
  %9040 = vmatprep.subr.bf16.mxu0 0
  %9041 = vmatpush1.bf16.msra.mxu0 0
  %9042 = vmatprep.subr.bf16.mxu0 0
  %9043 = vmatpush1.bf16.msra.mxu0 0
  %9044 = vmatprep.mubr.bf16.mxu0 0
  %9045 = vmatmul.mubr.bf16.gmra.mrb[0].mxu0 %v9010
  %v9046 = vpop.f32.mrb[0].mxu0
  %v9047 = vadd.f32 %v8996, %v9046
  %v9048 = vpop.f32.mrb[0].mxu0
  %v9049 = vpop.f32.mrb[0].mxu0
  %v9050 = vadd.f32 %v9001, %v9049
  %v9051 = vpop.f32.mrb[0].mxu0
  %9052 = vdwg.mxu0
  %vm9053 = vcmask 1041408
  %v9054 = vsel %vm9053, %v9050, -inf
  %v9055 = vmax.f32 %v9047, %v9054
  %v9056 = vrot.slane %v9055, 4
  %v9057 = vmax.f32 %v9055, %v9056
  %v9058 = vrot.slane %v9057, 2
  %v9059 = vmax.f32 %v9057, %v9058
  %v9060 = vrot.slane %v9059, 1
  %v9061 = vmax.f32 %v9059, %v9060
  %v9062 = vsub.f32 %v9047, %v9061
  %v9063 = vsub.f32 %v9050, %v9061
  %v9064 = vmul.f32 %v9062, 1.442695
  %v9065 = vpow.pop %v9064
  %v9066 = vmul.f32 %v9063, 1.442695
  %v9067 = vpow.pop %v9066
  %v9068 = vsel %vm9053, %v9067, 0.0
  %v9069 = vadd.f32 %v9065, %v9068
  %v9070 = vrot.slane %v9069, 4
  %v9071 = vadd.f32 %v9069, %v9070
  %v9072 = vrot.slane %v9071, 2
  %v9073 = vadd.f32 %v9071, %v9072
  %v9074 = vrot.slane %v9073, 1
  %v9075 = vadd.f32 %v9073, %v9074
  %v9076 = vlog2.pop %v9075
  %v9077 = vmul.f32 %v9076, 0.6931472
  %v9078 = vadd.f32 %v9061, %v9077
  %v9079 = vsub.f32 %v9047, %v9078
  %v9080 = vsub.f32 %v9050, %v9078
  %9081 = vst [vmem:[%s9] sm:$0xff] %v9079
  %9082 = vst [vmem:[%s9 + $0x8] sm:$0x3] %v9080
  // Predicated region
  $region38: #{convnet_forward.1} parent=0 // pred_check
    _
  $region39: #{convnet_forward.1} parent=0 // pred_check_branch
    %9084 = sbr.rel (0) target = $region41
  $region40: #{convnet_forward.1} parent=0 // pred_region
    _
  $region41: #{convnet_forward.1} parent=0 // pred_fallthru
    _
  // Predicated region
  $region42: #{convnet_forward.1} parent=0 // pred_check
    _
  $region43: #{convnet_forward.1} parent=0 // pred_check_branch
    %9086 = sbr.rel (0) target = $region45
  $region44: #{convnet_forward.1} parent=0 // pred_region
    _
  $region45: #{convnet_forward.1} parent=0 // pred_fallthru
    _

</llo_original>
